<compile_context>
chip_gen: v5e
topology: v5e:2x2
jax: 0.10.0
libtpu: 0.0.40
codegen_flags: <defaults>
</compile_context>

<pallas_src>
import functools
import math

import jax
import jax.numpy as jnp
from jax.experimental import pallas as pl
from jax.experimental.pallas import tpu as pltpu


# ----------------------------------------------------------------------------- in-kernel helpers

def _layernorm_f32(z, g, b, eps):
    mu = jnp.mean(z, axis=-1, keepdims=True)
    var = jnp.mean((z - mu) * (z - mu), axis=-1, keepdims=True)
    return (z - mu) * jax.lax.rsqrt(var + eps) * g + b


def _mha_heads(q_all, k_all, v_all, num_heads, head_dim, scale):
    """q_all: (Lq, D) bf16, k_all/v_all: (Lk, D) bf16 -> (Lq, D) f32.

    Per-head scaled-dot-product attention via static lane slices (no transposes,
    no (B,H,L,Dh) HBM layout). Scores/softmax in f32, matmul operands bf16.
    """
    heads = []
    for h in range(num_heads):
        lo, hi = h * head_dim, (h + 1) * head_dim
        q_h = q_all[:, lo:hi]                       # (Lq, Dh) bf16
        k_h = k_all[:, lo:hi]                       # (Lk, Dh) bf16
        v_h = v_all[:, lo:hi]                       # (Lk, Dh) bf16
        # "NT" matmul: contract last dims of q_h and k_h (no explicit transpose).
        s = jax.lax.dot_general(q_h, k_h, (((1,), (1,)), ((), ())),
                                preferred_element_type=jnp.float32) * scale    # (Lq, Lk) f32
        m = jnp.max(s, axis=-1, keepdims=True)
        p = jnp.exp(s - m)
        p = p * pl.reciprocal(jnp.sum(p, axis=-1, keepdims=True), approx=True)
        heads.append(jnp.dot(p.astype(jnp.bfloat16), v_h,
                             preferred_element_type=jnp.float32))              # (Lq, Dh) f32
    return jnp.concatenate(heads, axis=-1)                                     # (Lq, D) f32


# ----------------------------------------------------------------------------- kernels

def _cross_attn_kernel(t_ref, vis_ref, wq_ref, bq_ref, wkv_ref, bkv_ref,
                       wo_ref, bo_ref, o_ref, *, num_heads, scale):
    """Per grid step: one batch element. nn.MultiheadAttention(text, vis, vis) semantics."""
    D = wq_ref.shape[0]
    Dh = D // num_heads

    t = t_ref[0]                                    # (Lt, D) f32
    vis = vis_ref[0]                                # (Lv, D) f32

    q = jnp.dot(t.astype(jnp.bfloat16), wq_ref[...],
                preferred_element_type=jnp.float32) + bq_ref[...]              # (Lt, D)
    kv = jnp.dot(vis.astype(jnp.bfloat16), wkv_ref[...],
                 preferred_element_type=jnp.float32) + bkv_ref[...]            # (Lv, 2D)

    q_b = q.astype(jnp.bfloat16)
    k_b = kv[:, :D].astype(jnp.bfloat16)
    v_b = kv[:, D:].astype(jnp.bfloat16)

    attn = _mha_heads(q_b, k_b, v_b, num_heads, Dh, scale)                     # (Lt, D) f32

    # fused head-merge + output projection: single K=D matmul
    out = jnp.dot(attn.astype(jnp.bfloat16), wo_ref[...],
                  preferred_element_type=jnp.float32) + bo_ref[...]
    o_ref[0] = out.astype(o_ref.dtype)


def _encoder_layer_kernel(x_ref, wqkv_ref, bqkv_ref, wo_ref, bo_ref,
                          ln1g_ref, ln1b_ref, w1_ref, b1_ref, w2_ref, b2_ref,
                          ln2g_ref, ln2b_ref, o_ref, *, num_heads, scale, eps):
    """Per grid step: one batch element. Whole post-norm TransformerEncoderLayer, fused."""
    D = wo_ref.shape[0]
    Dh = D // num_heads

    x = x_ref[0]                                    # (L, D) f32

    # fused Q|K|V projection
    qkv = jnp.dot(x.astype(jnp.bfloat16), wqkv_ref[...],
                  preferred_element_type=jnp.float32) + bqkv_ref[...]          # (L, 3D)
    qkv_b = qkv.astype(jnp.bfloat16)
    q_b = qkv_b[:, :D]
    k_b = qkv_b[:, D:2 * D]
    v_b = qkv_b[:, 2 * D:]

    attn = _mha_heads(q_b, k_b, v_b, num_heads, Dh, scale)                     # (L, D) f32

    sa = jnp.dot(attn.astype(jnp.bfloat16), wo_ref[...],
                 preferred_element_type=jnp.float32) + bo_ref[...]             # (L, D)

    # residual + LayerNorm1 (f32, biased variance as in PyTorch)
    x2 = _layernorm_f32(x + sa, ln1g_ref[...], ln1b_ref[...], eps)

    # FFN: linear1 + ReLU + linear2 (the (L, F) intermediate never leaves VMEM)
    h1 = jnp.dot(x2.astype(jnp.bfloat16), w1_ref[...],
                 preferred_element_type=jnp.float32) + b1_ref[...]             # (L, F)
    h1 = jnp.maximum(h1, 0.0)
    y = jnp.dot(h1.astype(jnp.bfloat16), w2_ref[...],
                preferred_element_type=jnp.float32) + b2_ref[...]              # (L, D)

    # residual + LayerNorm2
    out = _layernorm_f32(x2 + y, ln2g_ref[...], ln2b_ref[...], eps)
    o_ref[0] = out.astype(o_ref.dtype)


# ----------------------------------------------------------------------------- wrappers

def pallas_cross_attention(text_emb, visual_patches, p, num_heads):
    B, Lt, D = text_emb.shape
    Lv = visual_patches.shape[1]
    scale = 1.0 / math.sqrt(D // num_heads)
    const = lambda b: (0, 0)
    return pl.pallas_call(
        functools.partial(_cross_attn_kernel, num_heads=num_heads, scale=scale),
        out_shape=jax.ShapeDtypeStruct((B, Lt, D), jnp.float32),
        grid=(B,),
        in_specs=[
            pl.BlockSpec((1, Lt, D), lambda b: (b, 0, 0)),
            pl.BlockSpec((1, Lv, D), lambda b: (b, 0, 0)),
            pl.BlockSpec((D, D), const),        # wq
            pl.BlockSpec((1, D), const),        # bq
            pl.BlockSpec((D, 2 * D), const),    # wkv (fused K|V)
            pl.BlockSpec((1, 2 * D), const),    # bkv
            pl.BlockSpec((D, D), const),        # wo
            pl.BlockSpec((1, D), const),        # bo
        ],
        out_specs=pl.BlockSpec((1, Lt, D), lambda b: (b, 0, 0)),
        compiler_params=pltpu.CompilerParams(dimension_semantics=("parallel",)),
    )(text_emb, visual_patches, p["wq"], p["bq"], p["wkv"], p["bkv"], p["wo"], p["bo"])


def pallas_encoder_layer(x, p, num_heads, eps=1e-5):
    B, L, D = x.shape
    F = p["w1"].shape[1]
    scale = 1.0 / math.sqrt(D // num_heads)
    const = lambda b: (0, 0)
    return pl.pallas_call(
        functools.partial(_encoder_layer_kernel, num_heads=num_heads, scale=scale, eps=eps),
        out_shape=jax.ShapeDtypeStruct((B, L, D), jnp.float32),
        grid=(B,),
        in_specs=[
            pl.BlockSpec((1, L, D), lambda b: (b, 0, 0)),
            pl.BlockSpec((D, 3 * D), const),    # wqkv (fused Q|K|V)
            pl.BlockSpec((1, 3 * D), const),    # bqkv
            pl.BlockSpec((D, D), const),        # wo
            pl.BlockSpec((1, D), const),        # bo
            pl.BlockSpec((1, D), const),        # ln1 gamma
            pl.BlockSpec((1, D), const),        # ln1 beta
            pl.BlockSpec((D, F), const),        # w1
            pl.BlockSpec((1, F), const),        # b1
            pl.BlockSpec((F, D), const),        # w2
            pl.BlockSpec((1, D), const),        # b2
            pl.BlockSpec((1, D), const),        # ln2 gamma
            pl.BlockSpec((1, D), const),        # ln2 beta
        ],
        out_specs=pl.BlockSpec((1, L, D), lambda b: (b, 0, 0)),
        compiler_params=pltpu.CompilerParams(dimension_semantics=("parallel",)),
    )(x, p["wqkv"], p["bqkv"], p["wo"], p["bo"], p["ln1_g"], p["ln1_b"],
      p["w1"], p["b1"], p["w2"], p["b2"], p["ln2_g"], p["ln2_b"])


def multimodal_interaction(text_emb, visual_patches, params, num_heads):
    """text_emb: (B, Lt, D), visual_patches: (B, Lv, D) -> (B, Lt, D).

    The PyTorch .transpose(0, 1) round trips are mathematical no-ops and are not materialized.
    """
    x = pallas_cross_attention(text_emb, visual_patches, params["cross"], num_heads)
    for blk in params["blocks"]:
        x = pallas_encoder_layer(x, blk, num_heads)
    return x


# ----------------------------------------------------------------------------- params

def _linear_params(key, d_in, d_out, scale=0.02):
    kw, _ = jax.random.split(key)
    w = (jax.random.normal(kw, (d_in, d_out), jnp.float32) * scale).astype(jnp.bfloat16)
    b = jnp.zeros((1, d_out), jnp.float32)
    return w, b


def init_cross_params(key, dim):
    ks = jax.random.split(key, 3)
    wq, bq = _linear_params(ks[0], dim, dim)
    wkv, bkv = _linear_params(ks[1], dim, 2 * dim)
    wo, bo = _linear_params(ks[2], dim, dim)
    return dict(wq=wq, bq=bq, wkv=wkv, bkv=bkv, wo=wo, bo=bo)


def init_block_params(key, dim, dim_ff):
    ks = jax.random.split(key, 4)
    wqkv, bqkv = _linear_params(ks[0], dim, 3 * dim)
    wo, bo = _linear_params(ks[1], dim, dim)
    w1, b1 = _linear_params(ks[2], dim, dim_ff)
    w2, b2 = _linear_params(ks[3], dim_ff, dim)
    return dict(
        wqkv=wqkv, bqkv=bqkv, wo=wo, bo=bo,
        w1=w1, b1=b1, w2=w2, b2=b2,
        ln1_g=jnp.ones((1, dim), jnp.float32), ln1_b=jnp.zeros((1, dim), jnp.float32),
        ln2_g=jnp.ones((1, dim), jnp.float32), ln2_b=jnp.zeros((1, dim), jnp.float32),
    )


def init_params(key, dim, depth, dim_ff):
    ks = jax.random.split(key, depth + 1)
    return dict(
        cross=init_cross_params(ks[0], dim),
        blocks=[init_block_params(ks[i + 1], dim, dim_ff) for i in range(depth)],
    )


# ----------------------------------------------------------------------------- main

if __name__ == "__main__":
    # Small config consistent with the module structure (scaled-down dim, PyTorch-default FFN).
    DIM = 64
    DEPTH = 2
    NUM_HEADS = 8
    DIM_FF = 2048          # nn.TransformerEncoderLayer default dim_feedforward
    B, LT, LV = 2, 8, 16   # batch, text tokens, visual patches

    key = jax.random.PRNGKey(0)
    k_params, k_text, k_vis = jax.random.split(key, 3)

    params = init_params(k_params, DIM, DEPTH, DIM_FF)
    text_emb = jax.random.normal(k_text, (B, LT, DIM), jnp.float32)
    visual_patches = jax.random.normal(k_vis, (B, LV, DIM), jnp.float32)

    fwd = jax.jit(functools.partial(multimodal_interaction, num_heads=NUM_HEADS))
    out = fwd(text_emb, visual_patches, params)
    out = jax.block_until_ready(out)

    assert out.shape == (B, LT, DIM), out.shape
    assert jnp.all(jnp.isfinite(out))
    print("KERNEL_OK")
</pallas_src>

<mosaic_0001>
module attributes {stable_mosaic.version = 11 : i64} {
  func.func @_encoder_layer_kernel(%arg0: i32, %arg1: memref<1x8x64xf32, #tpu.memory_space<vmem>>, %arg2: memref<64x192xbf16, #tpu.memory_space<vmem>>, %arg3: memref<1x192xf32, #tpu.memory_space<vmem>>, %arg4: memref<64x64xbf16, #tpu.memory_space<vmem>>, %arg5: memref<1x64xf32, #tpu.memory_space<vmem>>, %arg6: memref<1x64xf32, #tpu.memory_space<vmem>>, %arg7: memref<1x64xf32, #tpu.memory_space<vmem>>, %arg8: memref<64x2048xbf16, #tpu.memory_space<vmem>>, %arg9: memref<1x2048xf32, #tpu.memory_space<vmem>>, %arg10: memref<2048x64xbf16, #tpu.memory_space<vmem>>, %arg11: memref<1x64xf32, #tpu.memory_space<vmem>>, %arg12: memref<1x64xf32, #tpu.memory_space<vmem>>, %arg13: memref<1x64xf32, #tpu.memory_space<vmem>>, %arg14: memref<1x8x64xf32, #tpu.memory_space<vmem>>) attributes {dimension_semantics = [#tpu.dimension_semantics<parallel>], iteration_bounds = array<i64: 2>, scalar_prefetch = 0 : i64, scratch_operands = 0 : i64, tpu.core_type = #tpu.core_type<tc>, window_params = [{transform_indices = @transform_0, window_bounds = array<i64: 1, 8, 64>}, {pipeline_mode = #tpu.pipeline_mode<synchronous>, transform_indices = @transform_1, window_bounds = array<i64: 64, 192>}, {pipeline_mode = #tpu.pipeline_mode<synchronous>, transform_indices = @transform_2, window_bounds = array<i64: 1, 192>}, {pipeline_mode = #tpu.pipeline_mode<synchronous>, transform_indices = @transform_3, window_bounds = array<i64: 64, 64>}, {pipeline_mode = #tpu.pipeline_mode<synchronous>, transform_indices = @transform_4, window_bounds = array<i64: 1, 64>}, {pipeline_mode = #tpu.pipeline_mode<synchronous>, transform_indices = @transform_5, window_bounds = array<i64: 1, 64>}, {pipeline_mode = #tpu.pipeline_mode<synchronous>, transform_indices = @transform_6, window_bounds = array<i64: 1, 64>}, {pipeline_mode = #tpu.pipeline_mode<synchronous>, transform_indices = @transform_7, window_bounds = array<i64: 64, 2048>}, {pipeline_mode = #tpu.pipeline_mode<synchronous>, transform_indices = @transform_8, window_bounds = array<i64: 1, 2048>}, {pipeline_mode = #tpu.pipeline_mode<synchronous>, transform_indices = @transform_9, window_bounds = array<i64: 2048, 64>}, {pipeline_mode = #tpu.pipeline_mode<synchronous>, transform_indices = @transform_10, window_bounds = array<i64: 1, 64>}, {pipeline_mode = #tpu.pipeline_mode<synchronous>, transform_indices = @transform_11, window_bounds = array<i64: 1, 64>}, {pipeline_mode = #tpu.pipeline_mode<synchronous>, transform_indices = @transform_12, window_bounds = array<i64: 1, 64>}, {transform_indices = @transform_13, window_bounds = array<i64: 1, 8, 64>}]} {
    %c0 = arith.constant 0 : index
    %c0_0 = arith.constant 0 : index
    %c0_1 = arith.constant 0 : index
    %0 = vector.load %arg1[%c0, %c0_0, %c0_1] : memref<1x8x64xf32, #tpu.memory_space<vmem>>, vector<1x8x64xf32>
    %1 = vector.shape_cast %0 : vector<1x8x64xf32> to vector<8x64xf32>
    %2 = arith.truncf %1 : vector<8x64xf32> to vector<8x64xbf16>
    %c0_2 = arith.constant 0 : index
    %c0_3 = arith.constant 0 : index
    %3 = vector.load %arg2[%c0_2, %c0_3] : memref<64x192xbf16, #tpu.memory_space<vmem>>, vector<64x192xbf16>
    %cst = arith.constant dense<0.000000e+00> : vector<8x192xf32>
    %4 = tpu.matmul %2, %3, %cst {dimension_numbers = #tpu.dot_dimension_numbers<[1], [0], [0], [1], [0, 0, 1, 1], [], []>} : vector<8x64xbf16>, vector<64x192xbf16>, vector<8x192xf32> -> vector<8x192xf32>
    %c0_4 = arith.constant 0 : index
    %c0_5 = arith.constant 0 : index
    %5 = vector.load %arg3[%c0_4, %c0_5] : memref<1x192xf32, #tpu.memory_space<vmem>>, vector<1x192xf32>
    %6 = vector.broadcast %5 : vector<1x192xf32> to vector<8x192xf32>
    %7 = arith.addf %4, %6 : vector<8x192xf32>
    %8 = arith.truncf %7 : vector<8x192xf32> to vector<8x192xbf16>
    %9 = vector.extract_strided_slice %8 {offsets = [0, 0], sizes = [8, 64], strides = [1, 1]} : vector<8x192xbf16> to vector<8x64xbf16>
    %10 = vector.extract_strided_slice %8 {offsets = [0, 64], sizes = [8, 64], strides = [1, 1]} : vector<8x192xbf16> to vector<8x64xbf16>
    %11 = vector.extract_strided_slice %8 {offsets = [0, 128], sizes = [8, 64], strides = [1, 1]} : vector<8x192xbf16> to vector<8x64xbf16>
    %12 = vector.extract_strided_slice %9 {offsets = [0, 0], sizes = [8, 8], strides = [1, 1]} : vector<8x64xbf16> to vector<8x8xbf16>
    %13 = vector.extract_strided_slice %10 {offsets = [0, 0], sizes = [8, 8], strides = [1, 1]} : vector<8x64xbf16> to vector<8x8xbf16>
    %14 = vector.extract_strided_slice %11 {offsets = [0, 0], sizes = [8, 8], strides = [1, 1]} : vector<8x64xbf16> to vector<8x8xbf16>
    %cst_6 = arith.constant dense<0.000000e+00> : vector<8x8xf32>
    %15 = tpu.matmul %12, %13, %cst_6 {dimension_numbers = #tpu.dot_dimension_numbers<[1], [1], [0], [0], [0, 0, 1, 0], [], []>} : vector<8x8xbf16>, vector<8x8xbf16>, vector<8x8xf32> -> vector<8x8xf32>
    %cst_7 = arith.constant 0.353553385 : f32
    %16 = vector.broadcast %cst_7 : f32 to vector<8x8xf32>
    %17 = arith.mulf %15, %16 : vector<8x8xf32>
    %cst_8 = arith.constant dense<0xFF800000> : vector<8xf32>
    %18 = vector.multi_reduction <maximumf>, %17, %cst_8 [1] : vector<8x8xf32> to vector<8xf32>
    %19 = vector.shape_cast %18 : vector<8xf32> to vector<8x1xf32>
    %20 = vector.broadcast %19 : vector<8x1xf32> to vector<8x8xf32>
    %21 = arith.subf %17, %20 : vector<8x8xf32>
    %22 = math.exp %21 : vector<8x8xf32>
    %cst_9 = arith.constant dense<0.000000e+00> : vector<8xf32>
    %23 = vector.multi_reduction <add>, %22, %cst_9 [1] : vector<8x8xf32> to vector<8xf32>
    %24 = vector.shape_cast %23 : vector<8xf32> to vector<8x1xf32>
    %25 = tpu.reciprocal %24 {approx = true} : vector<8x1xf32> -> vector<8x1xf32>
    %26 = vector.broadcast %25 : vector<8x1xf32> to vector<8x8xf32>
    %27 = arith.mulf %22, %26 : vector<8x8xf32>
    %28 = arith.truncf %27 : vector<8x8xf32> to vector<8x8xbf16>
    %cst_10 = arith.constant dense<0.000000e+00> : vector<8x8xf32>
    %29 = tpu.matmul %28, %14, %cst_10 {dimension_numbers = #tpu.dot_dimension_numbers<[1], [0], [0], [1], [0, 0, 1, 1], [], []>} : vector<8x8xbf16>, vector<8x8xbf16>, vector<8x8xf32> -> vector<8x8xf32>
    %30 = vector.extract_strided_slice %9 {offsets = [0, 8], sizes = [8, 8], strides = [1, 1]} : vector<8x64xbf16> to vector<8x8xbf16>
    %31 = vector.extract_strided_slice %10 {offsets = [0, 8], sizes = [8, 8], strides = [1, 1]} : vector<8x64xbf16> to vector<8x8xbf16>
    %32 = vector.extract_strided_slice %11 {offsets = [0, 8], sizes = [8, 8], strides = [1, 1]} : vector<8x64xbf16> to vector<8x8xbf16>
    %cst_11 = arith.constant dense<0.000000e+00> : vector<8x8xf32>
    %33 = tpu.matmul %30, %31, %cst_11 {dimension_numbers = #tpu.dot_dimension_numbers<[1], [1], [0], [0], [0, 0, 1, 0], [], []>} : vector<8x8xbf16>, vector<8x8xbf16>, vector<8x8xf32> -> vector<8x8xf32>
    %cst_12 = arith.constant 0.353553385 : f32
    %34 = vector.broadcast %cst_12 : f32 to vector<8x8xf32>
    %35 = arith.mulf %33, %34 : vector<8x8xf32>
    %cst_13 = arith.constant dense<0xFF800000> : vector<8xf32>
    %36 = vector.multi_reduction <maximumf>, %35, %cst_13 [1] : vector<8x8xf32> to vector<8xf32>
    %37 = vector.shape_cast %36 : vector<8xf32> to vector<8x1xf32>
    %38 = vector.broadcast %37 : vector<8x1xf32> to vector<8x8xf32>
    %39 = arith.subf %35, %38 : vector<8x8xf32>
    %40 = math.exp %39 : vector<8x8xf32>
    %cst_14 = arith.constant dense<0.000000e+00> : vector<8xf32>
    %41 = vector.multi_reduction <add>, %40, %cst_14 [1] : vector<8x8xf32> to vector<8xf32>
    %42 = vector.shape_cast %41 : vector<8xf32> to vector<8x1xf32>
    %43 = tpu.reciprocal %42 {approx = true} : vector<8x1xf32> -> vector<8x1xf32>
    %44 = vector.broadcast %43 : vector<8x1xf32> to vector<8x8xf32>
    %45 = arith.mulf %40, %44 : vector<8x8xf32>
    %46 = arith.truncf %45 : vector<8x8xf32> to vector<8x8xbf16>
    %cst_15 = arith.constant dense<0.000000e+00> : vector<8x8xf32>
    %47 = tpu.matmul %46, %32, %cst_15 {dimension_numbers = #tpu.dot_dimension_numbers<[1], [0], [0], [1], [0, 0, 1, 1], [], []>} : vector<8x8xbf16>, vector<8x8xbf16>, vector<8x8xf32> -> vector<8x8xf32>
    %48 = vector.extract_strided_slice %9 {offsets = [0, 16], sizes = [8, 8], strides = [1, 1]} : vector<8x64xbf16> to vector<8x8xbf16>
    %49 = vector.extract_strided_slice %10 {offsets = [0, 16], sizes = [8, 8], strides = [1, 1]} : vector<8x64xbf16> to vector<8x8xbf16>
    %50 = vector.extract_strided_slice %11 {offsets = [0, 16], sizes = [8, 8], strides = [1, 1]} : vector<8x64xbf16> to vector<8x8xbf16>
    %cst_16 = arith.constant dense<0.000000e+00> : vector<8x8xf32>
    %51 = tpu.matmul %48, %49, %cst_16 {dimension_numbers = #tpu.dot_dimension_numbers<[1], [1], [0], [0], [0, 0, 1, 0], [], []>} : vector<8x8xbf16>, vector<8x8xbf16>, vector<8x8xf32> -> vector<8x8xf32>
    %cst_17 = arith.constant 0.353553385 : f32
    %52 = vector.broadcast %cst_17 : f32 to vector<8x8xf32>
    %53 = arith.mulf %51, %52 : vector<8x8xf32>
    %cst_18 = arith.constant dense<0xFF800000> : vector<8xf32>
    %54 = vector.multi_reduction <maximumf>, %53, %cst_18 [1] : vector<8x8xf32> to vector<8xf32>
    %55 = vector.shape_cast %54 : vector<8xf32> to vector<8x1xf32>
    %56 = vector.broadcast %55 : vector<8x1xf32> to vector<8x8xf32>
    %57 = arith.subf %53, %56 : vector<8x8xf32>
    %58 = math.exp %57 : vector<8x8xf32>
    %cst_19 = arith.constant dense<0.000000e+00> : vector<8xf32>
    %59 = vector.multi_reduction <add>, %58, %cst_19 [1] : vector<8x8xf32> to vector<8xf32>
    %60 = vector.shape_cast %59 : vector<8xf32> to vector<8x1xf32>
    %61 = tpu.reciprocal %60 {approx = true} : vector<8x1xf32> -> vector<8x1xf32>
    %62 = vector.broadcast %61 : vector<8x1xf32> to vector<8x8xf32>
    %63 = arith.mulf %58, %62 : vector<8x8xf32>
    %64 = arith.truncf %63 : vector<8x8xf32> to vector<8x8xbf16>
    %cst_20 = arith.constant dense<0.000000e+00> : vector<8x8xf32>
    %65 = tpu.matmul %64, %50, %cst_20 {dimension_numbers = #tpu.dot_dimension_numbers<[1], [0], [0], [1], [0, 0, 1, 1], [], []>} : vector<8x8xbf16>, vector<8x8xbf16>, vector<8x8xf32> -> vector<8x8xf32>
    %66 = vector.extract_strided_slice %9 {offsets = [0, 24], sizes = [8, 8], strides = [1, 1]} : vector<8x64xbf16> to vector<8x8xbf16>
    %67 = vector.extract_strided_slice %10 {offsets = [0, 24], sizes = [8, 8], strides = [1, 1]} : vector<8x64xbf16> to vector<8x8xbf16>
    %68 = vector.extract_strided_slice %11 {offsets = [0, 24], sizes = [8, 8], strides = [1, 1]} : vector<8x64xbf16> to vector<8x8xbf16>
    %cst_21 = arith.constant dense<0.000000e+00> : vector<8x8xf32>
    %69 = tpu.matmul %66, %67, %cst_21 {dimension_numbers = #tpu.dot_dimension_numbers<[1], [1], [0], [0], [0, 0, 1, 0], [], []>} : vector<8x8xbf16>, vector<8x8xbf16>, vector<8x8xf32> -> vector<8x8xf32>
    %cst_22 = arith.constant 0.353553385 : f32
    %70 = vector.broadcast %cst_22 : f32 to vector<8x8xf32>
    %71 = arith.mulf %69, %70 : vector<8x8xf32>
    %cst_23 = arith.constant dense<0xFF800000> : vector<8xf32>
    %72 = vector.multi_reduction <maximumf>, %71, %cst_23 [1] : vector<8x8xf32> to vector<8xf32>
    %73 = vector.shape_cast %72 : vector<8xf32> to vector<8x1xf32>
    %74 = vector.broadcast %73 : vector<8x1xf32> to vector<8x8xf32>
    %75 = arith.subf %71, %74 : vector<8x8xf32>
    %76 = math.exp %75 : vector<8x8xf32>
    %cst_24 = arith.constant dense<0.000000e+00> : vector<8xf32>
    %77 = vector.multi_reduction <add>, %76, %cst_24 [1] : vector<8x8xf32> to vector<8xf32>
    %78 = vector.shape_cast %77 : vector<8xf32> to vector<8x1xf32>
    %79 = tpu.reciprocal %78 {approx = true} : vector<8x1xf32> -> vector<8x1xf32>
    %80 = vector.broadcast %79 : vector<8x1xf32> to vector<8x8xf32>
    %81 = arith.mulf %76, %80 : vector<8x8xf32>
    %82 = arith.truncf %81 : vector<8x8xf32> to vector<8x8xbf16>
    %cst_25 = arith.constant dense<0.000000e+00> : vector<8x8xf32>
    %83 = tpu.matmul %82, %68, %cst_25 {dimension_numbers = #tpu.dot_dimension_numbers<[1], [0], [0], [1], [0, 0, 1, 1], [], []>} : vector<8x8xbf16>, vector<8x8xbf16>, vector<8x8xf32> -> vector<8x8xf32>
    %84 = vector.extract_strided_slice %9 {offsets = [0, 32], sizes = [8, 8], strides = [1, 1]} : vector<8x64xbf16> to vector<8x8xbf16>
    %85 = vector.extract_strided_slice %10 {offsets = [0, 32], sizes = [8, 8], strides = [1, 1]} : vector<8x64xbf16> to vector<8x8xbf16>
    %86 = vector.extract_strided_slice %11 {offsets = [0, 32], sizes = [8, 8], strides = [1, 1]} : vector<8x64xbf16> to vector<8x8xbf16>
    %cst_26 = arith.constant dense<0.000000e+00> : vector<8x8xf32>
    %87 = tpu.matmul %84, %85, %cst_26 {dimension_numbers = #tpu.dot_dimension_numbers<[1], [1], [0], [0], [0, 0, 1, 0], [], []>} : vector<8x8xbf16>, vector<8x8xbf16>, vector<8x8xf32> -> vector<8x8xf32>
    %cst_27 = arith.constant 0.353553385 : f32
    %88 = vector.broadcast %cst_27 : f32 to vector<8x8xf32>
    %89 = arith.mulf %87, %88 : vector<8x8xf32>
    %cst_28 = arith.constant dense<0xFF800000> : vector<8xf32>
    %90 = vector.multi_reduction <maximumf>, %89, %cst_28 [1] : vector<8x8xf32> to vector<8xf32>
    %91 = vector.shape_cast %90 : vector<8xf32> to vector<8x1xf32>
    %92 = vector.broadcast %91 : vector<8x1xf32> to vector<8x8xf32>
    %93 = arith.subf %89, %92 : vector<8x8xf32>
    %94 = math.exp %93 : vector<8x8xf32>
    %cst_29 = arith.constant dense<0.000000e+00> : vector<8xf32>
    %95 = vector.multi_reduction <add>, %94, %cst_29 [1] : vector<8x8xf32> to vector<8xf32>
    %96 = vector.shape_cast %95 : vector<8xf32> to vector<8x1xf32>
    %97 = tpu.reciprocal %96 {approx = true} : vector<8x1xf32> -> vector<8x1xf32>
    %98 = vector.broadcast %97 : vector<8x1xf32> to vector<8x8xf32>
    %99 = arith.mulf %94, %98 : vector<8x8xf32>
    %100 = arith.truncf %99 : vector<8x8xf32> to vector<8x8xbf16>
    %cst_30 = arith.constant dense<0.000000e+00> : vector<8x8xf32>
    %101 = tpu.matmul %100, %86, %cst_30 {dimension_numbers = #tpu.dot_dimension_numbers<[1], [0], [0], [1], [0, 0, 1, 1], [], []>} : vector<8x8xbf16>, vector<8x8xbf16>, vector<8x8xf32> -> vector<8x8xf32>
    %102 = vector.extract_strided_slice %9 {offsets = [0, 40], sizes = [8, 8], strides = [1, 1]} : vector<8x64xbf16> to vector<8x8xbf16>
    %103 = vector.extract_strided_slice %10 {offsets = [0, 40], sizes = [8, 8], strides = [1, 1]} : vector<8x64xbf16> to vector<8x8xbf16>
    %104 = vector.extract_strided_slice %11 {offsets = [0, 40], sizes = [8, 8], strides = [1, 1]} : vector<8x64xbf16> to vector<8x8xbf16>
    %cst_31 = arith.constant dense<0.000000e+00> : vector<8x8xf32>
    %105 = tpu.matmul %102, %103, %cst_31 {dimension_numbers = #tpu.dot_dimension_numbers<[1], [1], [0], [0], [0, 0, 1, 0], [], []>} : vector<8x8xbf16>, vector<8x8xbf16>, vector<8x8xf32> -> vector<8x8xf32>
    %cst_32 = arith.constant 0.353553385 : f32
    %106 = vector.broadcast %cst_32 : f32 to vector<8x8xf32>
    %107 = arith.mulf %105, %106 : vector<8x8xf32>
    %cst_33 = arith.constant dense<0xFF800000> : vector<8xf32>
    %108 = vector.multi_reduction <maximumf>, %107, %cst_33 [1] : vector<8x8xf32> to vector<8xf32>
    %109 = vector.shape_cast %108 : vector<8xf32> to vector<8x1xf32>
    %110 = vector.broadcast %109 : vector<8x1xf32> to vector<8x8xf32>
    %111 = arith.subf %107, %110 : vector<8x8xf32>
    %112 = math.exp %111 : vector<8x8xf32>
    %cst_34 = arith.constant dense<0.000000e+00> : vector<8xf32>
    %113 = vector.multi_reduction <add>, %112, %cst_34 [1] : vector<8x8xf32> to vector<8xf32>
    %114 = vector.shape_cast %113 : vector<8xf32> to vector<8x1xf32>
    %115 = tpu.reciprocal %114 {approx = true} : vector<8x1xf32> -> vector<8x1xf32>
    %116 = vector.broadcast %115 : vector<8x1xf32> to vector<8x8xf32>
    %117 = arith.mulf %112, %116 : vector<8x8xf32>
    %118 = arith.truncf %117 : vector<8x8xf32> to vector<8x8xbf16>
    %cst_35 = arith.constant dense<0.000000e+00> : vector<8x8xf32>
    %119 = tpu.matmul %118, %104, %cst_35 {dimension_numbers = #tpu.dot_dimension_numbers<[1], [0], [0], [1], [0, 0, 1, 1], [], []>} : vector<8x8xbf16>, vector<8x8xbf16>, vector<8x8xf32> -> vector<8x8xf32>
    %120 = vector.extract_strided_slice %9 {offsets = [0, 48], sizes = [8, 8], strides = [1, 1]} : vector<8x64xbf16> to vector<8x8xbf16>
    %121 = vector.extract_strided_slice %10 {offsets = [0, 48], sizes = [8, 8], strides = [1, 1]} : vector<8x64xbf16> to vector<8x8xbf16>
    %122 = vector.extract_strided_slice %11 {offsets = [0, 48], sizes = [8, 8], strides = [1, 1]} : vector<8x64xbf16> to vector<8x8xbf16>
    %cst_36 = arith.constant dense<0.000000e+00> : vector<8x8xf32>
    %123 = tpu.matmul %120, %121, %cst_36 {dimension_numbers = #tpu.dot_dimension_numbers<[1], [1], [0], [0], [0, 0, 1, 0], [], []>} : vector<8x8xbf16>, vector<8x8xbf16>, vector<8x8xf32> -> vector<8x8xf32>
    %cst_37 = arith.constant 0.353553385 : f32
    %124 = vector.broadcast %cst_37 : f32 to vector<8x8xf32>
    %125 = arith.mulf %123, %124 : vector<8x8xf32>
    %cst_38 = arith.constant dense<0xFF800000> : vector<8xf32>
    %126 = vector.multi_reduction <maximumf>, %125, %cst_38 [1] : vector<8x8xf32> to vector<8xf32>
    %127 = vector.shape_cast %126 : vector<8xf32> to vector<8x1xf32>
    %128 = vector.broadcast %127 : vector<8x1xf32> to vector<8x8xf32>
    %129 = arith.subf %125, %128 : vector<8x8xf32>
    %130 = math.exp %129 : vector<8x8xf32>
    %cst_39 = arith.constant dense<0.000000e+00> : vector<8xf32>
    %131 = vector.multi_reduction <add>, %130, %cst_39 [1] : vector<8x8xf32> to vector<8xf32>
    %132 = vector.shape_cast %131 : vector<8xf32> to vector<8x1xf32>
    %133 = tpu.reciprocal %132 {approx = true} : vector<8x1xf32> -> vector<8x1xf32>
    %134 = vector.broadcast %133 : vector<8x1xf32> to vector<8x8xf32>
    %135 = arith.mulf %130, %134 : vector<8x8xf32>
    %136 = arith.truncf %135 : vector<8x8xf32> to vector<8x8xbf16>
    %cst_40 = arith.constant dense<0.000000e+00> : vector<8x8xf32>
    %137 = tpu.matmul %136, %122, %cst_40 {dimension_numbers = #tpu.dot_dimension_numbers<[1], [0], [0], [1], [0, 0, 1, 1], [], []>} : vector<8x8xbf16>, vector<8x8xbf16>, vector<8x8xf32> -> vector<8x8xf32>
    %138 = vector.extract_strided_slice %9 {offsets = [0, 56], sizes = [8, 8], strides = [1, 1]} : vector<8x64xbf16> to vector<8x8xbf16>
    %139 = vector.extract_strided_slice %10 {offsets = [0, 56], sizes = [8, 8], strides = [1, 1]} : vector<8x64xbf16> to vector<8x8xbf16>
    %140 = vector.extract_strided_slice %11 {offsets = [0, 56], sizes = [8, 8], strides = [1, 1]} : vector<8x64xbf16> to vector<8x8xbf16>
    %cst_41 = arith.constant dense<0.000000e+00> : vector<8x8xf32>
    %141 = tpu.matmul %138, %139, %cst_41 {dimension_numbers = #tpu.dot_dimension_numbers<[1], [1], [0], [0], [0, 0, 1, 0], [], []>} : vector<8x8xbf16>, vector<8x8xbf16>, vector<8x8xf32> -> vector<8x8xf32>
    %cst_42 = arith.constant 0.353553385 : f32
    %142 = vector.broadcast %cst_42 : f32 to vector<8x8xf32>
    %143 = arith.mulf %141, %142 : vector<8x8xf32>
    %cst_43 = arith.constant dense<0xFF800000> : vector<8xf32>
    %144 = vector.multi_reduction <maximumf>, %143, %cst_43 [1] : vector<8x8xf32> to vector<8xf32>
    %145 = vector.shape_cast %144 : vector<8xf32> to vector<8x1xf32>
    %146 = vector.broadcast %145 : vector<8x1xf32> to vector<8x8xf32>
    %147 = arith.subf %143, %146 : vector<8x8xf32>
    %148 = math.exp %147 : vector<8x8xf32>
    %cst_44 = arith.constant dense<0.000000e+00> : vector<8xf32>
    %149 = vector.multi_reduction <add>, %148, %cst_44 [1] : vector<8x8xf32> to vector<8xf32>
    %150 = vector.shape_cast %149 : vector<8xf32> to vector<8x1xf32>
    %151 = tpu.reciprocal %150 {approx = true} : vector<8x1xf32> -> vector<8x1xf32>
    %152 = vector.broadcast %151 : vector<8x1xf32> to vector<8x8xf32>
    %153 = arith.mulf %148, %152 : vector<8x8xf32>
    %154 = arith.truncf %153 : vector<8x8xf32> to vector<8x8xbf16>
    %cst_45 = arith.constant dense<0.000000e+00> : vector<8x8xf32>
    %155 = tpu.matmul %154, %140, %cst_45 {dimension_numbers = #tpu.dot_dimension_numbers<[1], [0], [0], [1], [0, 0, 1, 1], [], []>} : vector<8x8xbf16>, vector<8x8xbf16>, vector<8x8xf32> -> vector<8x8xf32>
    %156 = tpu.concatenate %29, %47, %65, %83, %101, %119, %137, %155 in 1 : vector<8x8xf32>, vector<8x8xf32>, vector<8x8xf32>, vector<8x8xf32>, vector<8x8xf32>, vector<8x8xf32>, vector<8x8xf32>, vector<8x8xf32> -> vector<8x64xf32>
    %157 = arith.truncf %156 : vector<8x64xf32> to vector<8x64xbf16>
    %c0_46 = arith.constant 0 : index
    %c0_47 = arith.constant 0 : index
    %158 = vector.load %arg4[%c0_46, %c0_47] : memref<64x64xbf16, #tpu.memory_space<vmem>>, vector<64x64xbf16>
    %cst_48 = arith.constant dense<0.000000e+00> : vector<8x64xf32>
    %159 = tpu.matmul %157, %158, %cst_48 {dimension_numbers = #tpu.dot_dimension_numbers<[1], [0], [0], [1], [0, 0, 1, 1], [], []>} : vector<8x64xbf16>, vector<64x64xbf16>, vector<8x64xf32> -> vector<8x64xf32>
    %c0_49 = arith.constant 0 : index
    %c0_50 = arith.constant 0 : index
    %160 = vector.load %arg5[%c0_49, %c0_50] : memref<1x64xf32, #tpu.memory_space<vmem>>, vector<1x64xf32>
    %161 = vector.broadcast %160 : vector<1x64xf32> to vector<8x64xf32>
    %162 = arith.addf %159, %161 : vector<8x64xf32>
    %163 = arith.addf %1, %162 : vector<8x64xf32>
    %c0_51 = arith.constant 0 : index
    %c0_52 = arith.constant 0 : index
    %164 = vector.load %arg6[%c0_51, %c0_52] : memref<1x64xf32, #tpu.memory_space<vmem>>, vector<1x64xf32>
    %c0_53 = arith.constant 0 : index
    %c0_54 = arith.constant 0 : index
    %165 = vector.load %arg7[%c0_53, %c0_54] : memref<1x64xf32, #tpu.memory_space<vmem>>, vector<1x64xf32>
    %cst_55 = arith.constant dense<0.000000e+00> : vector<8xf32>
    %166 = vector.multi_reduction <add>, %163, %cst_55 [1] : vector<8x64xf32> to vector<8xf32>
    %167 = vector.shape_cast %166 : vector<8xf32> to vector<8x1xf32>
    %cst_56 = arith.constant 6.400000e+01 : f32
    %168 = vector.broadcast %cst_56 : f32 to vector<8x1xf32>
    %169 = arith.divf %167, %168 : vector<8x1xf32>
    %170 = vector.broadcast %169 : vector<8x1xf32> to vector<8x64xf32>
    %171 = arith.subf %163, %170 : vector<8x64xf32>
    %172 = vector.broadcast %169 : vector<8x1xf32> to vector<8x64xf32>
    %173 = arith.subf %163, %172 : vector<8x64xf32>
    %174 = arith.mulf %171, %173 : vector<8x64xf32>
    %cst_57 = arith.constant dense<0.000000e+00> : vector<8xf32>
    %175 = vector.multi_reduction <add>, %174, %cst_57 [1] : vector<8x64xf32> to vector<8xf32>
    %176 = vector.shape_cast %175 : vector<8xf32> to vector<8x1xf32>
    %cst_58 = arith.constant 6.400000e+01 : f32
    %177 = vector.broadcast %cst_58 : f32 to vector<8x1xf32>
    %178 = arith.divf %176, %177 : vector<8x1xf32>
    %179 = vector.broadcast %169 : vector<8x1xf32> to vector<8x64xf32>
    %180 = arith.subf %163, %179 : vector<8x64xf32>
    %cst_59 = arith.constant 9.99999974E-6 : f32
    %181 = vector.broadcast %cst_59 : f32 to vector<8x1xf32>
    %182 = arith.addf %178, %181 : vector<8x1xf32>
    %183 = math.rsqrt %182 : vector<8x1xf32>
    %184 = vector.broadcast %183 : vector<8x1xf32> to vector<8x64xf32>
    %185 = arith.mulf %180, %184 : vector<8x64xf32>
    %186 = vector.broadcast %164 : vector<1x64xf32> to vector<8x64xf32>
    %187 = arith.mulf %185, %186 : vector<8x64xf32>
    %188 = vector.broadcast %165 : vector<1x64xf32> to vector<8x64xf32>
    %189 = arith.addf %187, %188 : vector<8x64xf32>
    %190 = arith.truncf %189 : vector<8x64xf32> to vector<8x64xbf16>
    %c0_60 = arith.constant 0 : index
    %c0_61 = arith.constant 0 : index
    %191 = vector.load %arg8[%c0_60, %c0_61] : memref<64x2048xbf16, #tpu.memory_space<vmem>>, vector<64x2048xbf16>
    %cst_62 = arith.constant dense<0.000000e+00> : vector<8x2048xf32>
    %192 = tpu.matmul %190, %191, %cst_62 {dimension_numbers = #tpu.dot_dimension_numbers<[1], [0], [0], [1], [0, 0, 1, 1], [], []>} : vector<8x64xbf16>, vector<64x2048xbf16>, vector<8x2048xf32> -> vector<8x2048xf32>
    %c0_63 = arith.constant 0 : index
    %c0_64 = arith.constant 0 : index
    %193 = vector.load %arg9[%c0_63, %c0_64] : memref<1x2048xf32, #tpu.memory_space<vmem>>, vector<1x2048xf32>
    %194 = vector.broadcast %193 : vector<1x2048xf32> to vector<8x2048xf32>
    %195 = arith.addf %192, %194 : vector<8x2048xf32>
    %cst_65 = arith.constant 0.000000e+00 : f32
    %196 = vector.broadcast %cst_65 : f32 to vector<8x2048xf32>
    %197 = arith.maximumf %195, %196 : vector<8x2048xf32>
    %198 = arith.truncf %197 : vector<8x2048xf32> to vector<8x2048xbf16>
    %c0_66 = arith.constant 0 : index
    %c0_67 = arith.constant 0 : index
    %199 = vector.load %arg10[%c0_66, %c0_67] : memref<2048x64xbf16, #tpu.memory_space<vmem>>, vector<2048x64xbf16>
    %cst_68 = arith.constant dense<0.000000e+00> : vector<8x64xf32>
    %200 = tpu.matmul %198, %199, %cst_68 {dimension_numbers = #tpu.dot_dimension_numbers<[1], [0], [0], [1], [0, 0, 1, 1], [], []>} : vector<8x2048xbf16>, vector<2048x64xbf16>, vector<8x64xf32> -> vector<8x64xf32>
    %c0_69 = arith.constant 0 : index
    %c0_70 = arith.constant 0 : index
    %201 = vector.load %arg11[%c0_69, %c0_70] : memref<1x64xf32, #tpu.memory_space<vmem>>, vector<1x64xf32>
    %202 = vector.broadcast %201 : vector<1x64xf32> to vector<8x64xf32>
    %203 = arith.addf %200, %202 : vector<8x64xf32>
    %204 = arith.addf %189, %203 : vector<8x64xf32>
    %c0_71 = arith.constant 0 : index
    %c0_72 = arith.constant 0 : index
    %205 = vector.load %arg12[%c0_71, %c0_72] : memref<1x64xf32, #tpu.memory_space<vmem>>, vector<1x64xf32>
    %c0_73 = arith.constant 0 : index
    %c0_74 = arith.constant 0 : index
    %206 = vector.load %arg13[%c0_73, %c0_74] : memref<1x64xf32, #tpu.memory_space<vmem>>, vector<1x64xf32>
    %cst_75 = arith.constant dense<0.000000e+00> : vector<8xf32>
    %207 = vector.multi_reduction <add>, %204, %cst_75 [1] : vector<8x64xf32> to vector<8xf32>
    %208 = vector.shape_cast %207 : vector<8xf32> to vector<8x1xf32>
    %cst_76 = arith.constant 6.400000e+01 : f32
    %209 = vector.broadcast %cst_76 : f32 to vector<8x1xf32>
    %210 = arith.divf %208, %209 : vector<8x1xf32>
    %211 = vector.broadcast %210 : vector<8x1xf32> to vector<8x64xf32>
    %212 = arith.subf %204, %211 : vector<8x64xf32>
    %213 = vector.broadcast %210 : vector<8x1xf32> to vector<8x64xf32>
    %214 = arith.subf %204, %213 : vector<8x64xf32>
    %215 = arith.mulf %212, %214 : vector<8x64xf32>
    %cst_77 = arith.constant dense<0.000000e+00> : vector<8xf32>
    %216 = vector.multi_reduction <add>, %215, %cst_77 [1] : vector<8x64xf32> to vector<8xf32>
    %217 = vector.shape_cast %216 : vector<8xf32> to vector<8x1xf32>
    %cst_78 = arith.constant 6.400000e+01 : f32
    %218 = vector.broadcast %cst_78 : f32 to vector<8x1xf32>
    %219 = arith.divf %217, %218 : vector<8x1xf32>
    %220 = vector.broadcast %210 : vector<8x1xf32> to vector<8x64xf32>
    %221 = arith.subf %204, %220 : vector<8x64xf32>
    %cst_79 = arith.constant 9.99999974E-6 : f32
    %222 = vector.broadcast %cst_79 : f32 to vector<8x1xf32>
    %223 = arith.addf %219, %222 : vector<8x1xf32>
    %224 = math.rsqrt %223 : vector<8x1xf32>
    %225 = vector.broadcast %224 : vector<8x1xf32> to vector<8x64xf32>
    %226 = arith.mulf %221, %225 : vector<8x64xf32>
    %227 = vector.broadcast %205 : vector<1x64xf32> to vector<8x64xf32>
    %228 = arith.mulf %226, %227 : vector<8x64xf32>
    %229 = vector.broadcast %206 : vector<1x64xf32> to vector<8x64xf32>
    %230 = arith.addf %228, %229 : vector<8x64xf32>
    %c0_80 = arith.constant 0 : index
    %c0_81 = arith.constant 0 : index
    %c0_82 = arith.constant 0 : index
    %231 = vector.load %arg14[%c0_80, %c0_81, %c0_82] : memref<1x8x64xf32, #tpu.memory_space<vmem>>, vector<1x8x64xf32>
    %232 = vector.shape_cast %231 : vector<1x8x64xf32> to vector<8x64xf32>
    %233 = vector.shape_cast %230 : vector<8x64xf32> to vector<1x8x64xf32>
    tpu.vector_store %arg14[%c0_80, %c0_81, %c0_82], %233 {strides = array<i32>} : memref<1x8x64xf32, #tpu.memory_space<vmem>>, vector<1x8x64xf32>,
    return
  }
  func.func @transform_0(%arg0: i32) -> (i32, i32, i32) {
    %c0_i32 = arith.constant 0 : i32
    %c0_i32_0 = arith.constant 0 : i32
    %c0_i32_1 = arith.constant 0 : i32
    return %arg0, %c0_i32, %c0_i32_0 : i32, i32, i32
  }
  func.func @transform_1(%arg0: i32) -> (i32, i32) {
    %c0_i32 = arith.constant 0 : i32
    %c0_i32_0 = arith.constant 0 : i32
    %c0_i32_1 = arith.constant 0 : i32
    return %c0_i32, %c0_i32_0 : i32, i32
  }
  func.func @transform_2(%arg0: i32) -> (i32, i32) {
    %c0_i32 = arith.constant 0 : i32
    %c0_i32_0 = arith.constant 0 : i32
    %c0_i32_1 = arith.constant 0 : i32
    return %c0_i32, %c0_i32_0 : i32, i32
  }
  func.func @transform_3(%arg0: i32) -> (i32, i32) {
    %c0_i32 = arith.constant 0 : i32
    %c0_i32_0 = arith.constant 0 : i32
    %c0_i32_1 = arith.constant 0 : i32
    return %c0_i32, %c0_i32_0 : i32, i32
  }
  func.func @transform_4(%arg0: i32) -> (i32, i32) {
    %c0_i32 = arith.constant 0 : i32
    %c0_i32_0 = arith.constant 0 : i32
    %c0_i32_1 = arith.constant 0 : i32
    return %c0_i32, %c0_i32_0 : i32, i32
  }
  func.func @transform_5(%arg0: i32) -> (i32, i32) {
    %c0_i32 = arith.constant 0 : i32
    %c0_i32_0 = arith.constant 0 : i32
    %c0_i32_1 = arith.constant 0 : i32
    return %c0_i32, %c0_i32_0 : i32, i32
  }
  func.func @transform_6(%arg0: i32) -> (i32, i32) {
    %c0_i32 = arith.constant 0 : i32
    %c0_i32_0 = arith.constant 0 : i32
    %c0_i32_1 = arith.constant 0 : i32
    return %c0_i32, %c0_i32_0 : i32, i32
  }
  func.func @transform_7(%arg0: i32) -> (i32, i32) {
    %c0_i32 = arith.constant 0 : i32
    %c0_i32_0 = arith.constant 0 : i32
    %c0_i32_1 = arith.constant 0 : i32
    return %c0_i32, %c0_i32_0 : i32, i32
  }
  func.func @transform_8(%arg0: i32) -> (i32, i32) {
    %c0_i32 = arith.constant 0 : i32
    %c0_i32_0 = arith.constant 0 : i32
    %c0_i32_1 = arith.constant 0 : i32
    return %c0_i32, %c0_i32_0 : i32, i32
  }
  func.func @transform_9(%arg0: i32) -> (i32, i32) {
    %c0_i32 = arith.constant 0 : i32
    %c0_i32_0 = arith.constant 0 : i32
    %c0_i32_1 = arith.constant 0 : i32
    return %c0_i32, %c0_i32_0 : i32, i32
  }
  func.func @transform_10(%arg0: i32) -> (i32, i32) {
    %c0_i32 = arith.constant 0 : i32
    %c0_i32_0 = arith.constant 0 : i32
    %c0_i32_1 = arith.constant 0 : i32
    return %c0_i32, %c0_i32_0 : i32, i32
  }
  func.func @transform_11(%arg0: i32) -> (i32, i32) {
    %c0_i32 = arith.constant 0 : i32
    %c0_i32_0 = arith.constant 0 : i32
    %c0_i32_1 = arith.constant 0 : i32
    return %c0_i32, %c0_i32_0 : i32, i32
  }
  func.func @transform_12(%arg0: i32) -> (i32, i32) {
    %c0_i32 = arith.constant 0 : i32
    %c0_i32_0 = arith.constant 0 : i32
    %c0_i32_1 = arith.constant 0 : i32
    return %c0_i32, %c0_i32_0 : i32, i32
  }
  func.func @transform_13(%arg0: i32) -> (i32, i32, i32) {
    %c0_i32 = arith.constant 0 : i32
    %c0_i32_0 = arith.constant 0 : i32
    %c0_i32_1 = arith.constant 0 : i32
    return %arg0, %c0_i32, %c0_i32_0 : i32, i32, i32
  }
}

module attributes {stable_mosaic.version = 11 : i64} {
  func.func @_cross_attn_kernel(%arg0: i32, %arg1: memref<1x8x64xf32, #tpu.memory_space<vmem>>, %arg2: memref<1x16x64xf32, #tpu.memory_space<vmem>>, %arg3: memref<64x64xbf16, #tpu.memory_space<vmem>>, %arg4: memref<1x64xf32, #tpu.memory_space<vmem>>, %arg5: memref<64x128xbf16, #tpu.memory_space<vmem>>, %arg6: memref<1x128xf32, #tpu.memory_space<vmem>>, %arg7: memref<64x64xbf16, #tpu.memory_space<vmem>>, %arg8: memref<1x64xf32, #tpu.memory_space<vmem>>, %arg9: memref<1x8x64xf32, #tpu.memory_space<vmem>>) attributes {dimension_semantics = [#tpu.dimension_semantics<parallel>], iteration_bounds = array<i64: 2>, scalar_prefetch = 0 : i64, scratch_operands = 0 : i64, tpu.core_type = #tpu.core_type<tc>, window_params = [{transform_indices = @transform_0, window_bounds = array<i64: 1, 8, 64>}, {transform_indices = @transform_1, window_bounds = array<i64: 1, 16, 64>}, {pipeline_mode = #tpu.pipeline_mode<synchronous>, transform_indices = @transform_2, window_bounds = array<i64: 64, 64>}, {pipeline_mode = #tpu.pipeline_mode<synchronous>, transform_indices = @transform_3, window_bounds = array<i64: 1, 64>}, {pipeline_mode = #tpu.pipeline_mode<synchronous>, transform_indices = @transform_4, window_bounds = array<i64: 64, 128>}, {pipeline_mode = #tpu.pipeline_mode<synchronous>, transform_indices = @transform_5, window_bounds = array<i64: 1, 128>}, {pipeline_mode = #tpu.pipeline_mode<synchronous>, transform_indices = @transform_6, window_bounds = array<i64: 64, 64>}, {pipeline_mode = #tpu.pipeline_mode<synchronous>, transform_indices = @transform_7, window_bounds = array<i64: 1, 64>}, {transform_indices = @transform_8, window_bounds = array<i64: 1, 8, 64>}]} {
    %c0 = arith.constant 0 : index
    %c0_0 = arith.constant 0 : index
    %c0_1 = arith.constant 0 : index
    %0 = vector.load %arg1[%c0, %c0_0, %c0_1] : memref<1x8x64xf32, #tpu.memory_space<vmem>>, vector<1x8x64xf32>
    %1 = vector.shape_cast %0 : vector<1x8x64xf32> to vector<8x64xf32>
    %c0_2 = arith.constant 0 : index
    %c0_3 = arith.constant 0 : index
    %c0_4 = arith.constant 0 : index
    %2 = vector.load %arg2[%c0_2, %c0_3, %c0_4] : memref<1x16x64xf32, #tpu.memory_space<vmem>>, vector<1x16x64xf32>
    %3 = vector.shape_cast %2 : vector<1x16x64xf32> to vector<16x64xf32>
    %4 = arith.truncf %1 : vector<8x64xf32> to vector<8x64xbf16>
    %c0_5 = arith.constant 0 : index
    %c0_6 = arith.constant 0 : index
    %5 = vector.load %arg3[%c0_5, %c0_6] : memref<64x64xbf16, #tpu.memory_space<vmem>>, vector<64x64xbf16>
    %cst = arith.constant dense<0.000000e+00> : vector<8x64xf32>
    %6 = tpu.matmul %4, %5, %cst {dimension_numbers = #tpu.dot_dimension_numbers<[1], [0], [0], [1], [0, 0, 1, 1], [], []>} : vector<8x64xbf16>, vector<64x64xbf16>, vector<8x64xf32> -> vector<8x64xf32>
    %c0_7 = arith.constant 0 : index
    %c0_8 = arith.constant 0 : index
    %7 = vector.load %arg4[%c0_7, %c0_8] : memref<1x64xf32, #tpu.memory_space<vmem>>, vector<1x64xf32>
    %8 = vector.broadcast %7 : vector<1x64xf32> to vector<8x64xf32>
    %9 = arith.addf %6, %8 : vector<8x64xf32>
    %10 = arith.truncf %3 : vector<16x64xf32> to vector<16x64xbf16>
    %c0_9 = arith.constant 0 : index
    %c0_10 = arith.constant 0 : index
    %11 = vector.load %arg5[%c0_9, %c0_10] : memref<64x128xbf16, #tpu.memory_space<vmem>>, vector<64x128xbf16>
    %cst_11 = arith.constant dense<0.000000e+00> : vector<16x128xf32>
    %12 = tpu.matmul %10, %11, %cst_11 {dimension_numbers = #tpu.dot_dimension_numbers<[1], [0], [0], [1], [0, 0, 1, 1], [], []>} : vector<16x64xbf16>, vector<64x128xbf16>, vector<16x128xf32> -> vector<16x128xf32>
    %c0_12 = arith.constant 0 : index
    %c0_13 = arith.constant 0 : index
    %13 = vector.load %arg6[%c0_12, %c0_13] : memref<1x128xf32, #tpu.memory_space<vmem>>, vector<1x128xf32>
    %14 = vector.broadcast %13 : vector<1x128xf32> to vector<16x128xf32>
    %15 = arith.addf %12, %14 : vector<16x128xf32>
    %16 = arith.truncf %9 : vector<8x64xf32> to vector<8x64xbf16>
    %17 = vector.extract_strided_slice %15 {offsets = [0, 0], sizes = [16, 64], strides = [1, 1]} : vector<16x128xf32> to vector<16x64xf32>
    %18 = arith.truncf %17 : vector<16x64xf32> to vector<16x64xbf16>
    %19 = vector.extract_strided_slice %15 {offsets = [0, 64], sizes = [16, 64], strides = [1, 1]} : vector<16x128xf32> to vector<16x64xf32>
    %20 = arith.truncf %19 : vector<16x64xf32> to vector<16x64xbf16>
    %21 = vector.extract_strided_slice %16 {offsets = [0, 0], sizes = [8, 8], strides = [1, 1]} : vector<8x64xbf16> to vector<8x8xbf16>
    %22 = vector.extract_strided_slice %18 {offsets = [0, 0], sizes = [16, 8], strides = [1, 1]} : vector<16x64xbf16> to vector<16x8xbf16>
    %23 = vector.extract_strided_slice %20 {offsets = [0, 0], sizes = [16, 8], strides = [1, 1]} : vector<16x64xbf16> to vector<16x8xbf16>
    %cst_14 = arith.constant dense<0.000000e+00> : vector<8x16xf32>
    %24 = tpu.matmul %21, %22, %cst_14 {dimension_numbers = #tpu.dot_dimension_numbers<[1], [1], [0], [0], [0, 0, 1, 0], [], []>} : vector<8x8xbf16>, vector<16x8xbf16>, vector<8x16xf32> -> vector<8x16xf32>
    %cst_15 = arith.constant 0.353553385 : f32
    %25 = vector.broadcast %cst_15 : f32 to vector<8x16xf32>
    %26 = arith.mulf %24, %25 : vector<8x16xf32>
    %cst_16 = arith.constant dense<0xFF800000> : vector<8xf32>
    %27 = vector.multi_reduction <maximumf>, %26, %cst_16 [1] : vector<8x16xf32> to vector<8xf32>
    %28 = vector.shape_cast %27 : vector<8xf32> to vector<8x1xf32>
    %29 = vector.broadcast %28 : vector<8x1xf32> to vector<8x16xf32>
    %30 = arith.subf %26, %29 : vector<8x16xf32>
    %31 = math.exp %30 : vector<8x16xf32>
    %cst_17 = arith.constant dense<0.000000e+00> : vector<8xf32>
    %32 = vector.multi_reduction <add>, %31, %cst_17 [1] : vector<8x16xf32> to vector<8xf32>
    %33 = vector.shape_cast %32 : vector<8xf32> to vector<8x1xf32>
    %34 = tpu.reciprocal %33 {approx = true} : vector<8x1xf32> -> vector<8x1xf32>
    %35 = vector.broadcast %34 : vector<8x1xf32> to vector<8x16xf32>
    %36 = arith.mulf %31, %35 : vector<8x16xf32>
    %37 = arith.truncf %36 : vector<8x16xf32> to vector<8x16xbf16>
    %cst_18 = arith.constant dense<0.000000e+00> : vector<8x8xf32>
    %38 = tpu.matmul %37, %23, %cst_18 {dimension_numbers = #tpu.dot_dimension_numbers<[1], [0], [0], [1], [0, 0, 1, 1], [], []>} : vector<8x16xbf16>, vector<16x8xbf16>, vector<8x8xf32> -> vector<8x8xf32>
    %39 = vector.extract_strided_slice %16 {offsets = [0, 8], sizes = [8, 8], strides = [1, 1]} : vector<8x64xbf16> to vector<8x8xbf16>
    %40 = vector.extract_strided_slice %18 {offsets = [0, 8], sizes = [16, 8], strides = [1, 1]} : vector<16x64xbf16> to vector<16x8xbf16>
    %41 = vector.extract_strided_slice %20 {offsets = [0, 8], sizes = [16, 8], strides = [1, 1]} : vector<16x64xbf16> to vector<16x8xbf16>
    %cst_19 = arith.constant dense<0.000000e+00> : vector<8x16xf32>
    %42 = tpu.matmul %39, %40, %cst_19 {dimension_numbers = #tpu.dot_dimension_numbers<[1], [1], [0], [0], [0, 0, 1, 0], [], []>} : vector<8x8xbf16>, vector<16x8xbf16>, vector<8x16xf32> -> vector<8x16xf32>
    %cst_20 = arith.constant 0.353553385 : f32
    %43 = vector.broadcast %cst_20 : f32 to vector<8x16xf32>
    %44 = arith.mulf %42, %43 : vector<8x16xf32>
    %cst_21 = arith.constant dense<0xFF800000> : vector<8xf32>
    %45 = vector.multi_reduction <maximumf>, %44, %cst_21 [1] : vector<8x16xf32> to vector<8xf32>
    %46 = vector.shape_cast %45 : vector<8xf32> to vector<8x1xf32>
    %47 = vector.broadcast %46 : vector<8x1xf32> to vector<8x16xf32>
    %48 = arith.subf %44, %47 : vector<8x16xf32>
    %49 = math.exp %48 : vector<8x16xf32>
    %cst_22 = arith.constant dense<0.000000e+00> : vector<8xf32>
    %50 = vector.multi_reduction <add>, %49, %cst_22 [1] : vector<8x16xf32> to vector<8xf32>
    %51 = vector.shape_cast %50 : vector<8xf32> to vector<8x1xf32>
    %52 = tpu.reciprocal %51 {approx = true} : vector<8x1xf32> -> vector<8x1xf32>
    %53 = vector.broadcast %52 : vector<8x1xf32> to vector<8x16xf32>
    %54 = arith.mulf %49, %53 : vector<8x16xf32>
    %55 = arith.truncf %54 : vector<8x16xf32> to vector<8x16xbf16>
    %cst_23 = arith.constant dense<0.000000e+00> : vector<8x8xf32>
    %56 = tpu.matmul %55, %41, %cst_23 {dimension_numbers = #tpu.dot_dimension_numbers<[1], [0], [0], [1], [0, 0, 1, 1], [], []>} : vector<8x16xbf16>, vector<16x8xbf16>, vector<8x8xf32> -> vector<8x8xf32>
    %57 = vector.extract_strided_slice %16 {offsets = [0, 16], sizes = [8, 8], strides = [1, 1]} : vector<8x64xbf16> to vector<8x8xbf16>
    %58 = vector.extract_strided_slice %18 {offsets = [0, 16], sizes = [16, 8], strides = [1, 1]} : vector<16x64xbf16> to vector<16x8xbf16>
    %59 = vector.extract_strided_slice %20 {offsets = [0, 16], sizes = [16, 8], strides = [1, 1]} : vector<16x64xbf16> to vector<16x8xbf16>
    %cst_24 = arith.constant dense<0.000000e+00> : vector<8x16xf32>
    %60 = tpu.matmul %57, %58, %cst_24 {dimension_numbers = #tpu.dot_dimension_numbers<[1], [1], [0], [0], [0, 0, 1, 0], [], []>} : vector<8x8xbf16>, vector<16x8xbf16>, vector<8x16xf32> -> vector<8x16xf32>
    %cst_25 = arith.constant 0.353553385 : f32
    %61 = vector.broadcast %cst_25 : f32 to vector<8x16xf32>
    %62 = arith.mulf %60, %61 : vector<8x16xf32>
    %cst_26 = arith.constant dense<0xFF800000> : vector<8xf32>
    %63 = vector.multi_reduction <maximumf>, %62, %cst_26 [1] : vector<8x16xf32> to vector<8xf32>
    %64 = vector.shape_cast %63 : vector<8xf32> to vector<8x1xf32>
    %65 = vector.broadcast %64 : vector<8x1xf32> to vector<8x16xf32>
    %66 = arith.subf %62, %65 : vector<8x16xf32>
    %67 = math.exp %66 : vector<8x16xf32>
    %cst_27 = arith.constant dense<0.000000e+00> : vector<8xf32>
    %68 = vector.multi_reduction <add>, %67, %cst_27 [1] : vector<8x16xf32> to vector<8xf32>
    %69 = vector.shape_cast %68 : vector<8xf32> to vector<8x1xf32>
    %70 = tpu.reciprocal %69 {approx = true} : vector<8x1xf32> -> vector<8x1xf32>
    %71 = vector.broadcast %70 : vector<8x1xf32> to vector<8x16xf32>
    %72 = arith.mulf %67, %71 : vector<8x16xf32>
    %73 = arith.truncf %72 : vector<8x16xf32> to vector<8x16xbf16>
    %cst_28 = arith.constant dense<0.000000e+00> : vector<8x8xf32>
    %74 = tpu.matmul %73, %59, %cst_28 {dimension_numbers = #tpu.dot_dimension_numbers<[1], [0], [0], [1], [0, 0, 1, 1], [], []>} : vector<8x16xbf16>, vector<16x8xbf16>, vector<8x8xf32> -> vector<8x8xf32>
    %75 = vector.extract_strided_slice %16 {offsets = [0, 24], sizes = [8, 8], strides = [1, 1]} : vector<8x64xbf16> to vector<8x8xbf16>
    %76 = vector.extract_strided_slice %18 {offsets = [0, 24], sizes = [16, 8], strides = [1, 1]} : vector<16x64xbf16> to vector<16x8xbf16>
    %77 = vector.extract_strided_slice %20 {offsets = [0, 24], sizes = [16, 8], strides = [1, 1]} : vector<16x64xbf16> to vector<16x8xbf16>
    %cst_29 = arith.constant dense<0.000000e+00> : vector<8x16xf32>
    %78 = tpu.matmul %75, %76, %cst_29 {dimension_numbers = #tpu.dot_dimension_numbers<[1], [1], [0], [0], [0, 0, 1, 0], [], []>} : vector<8x8xbf16>, vector<16x8xbf16>, vector<8x16xf32> -> vector<8x16xf32>
    %cst_30 = arith.constant 0.353553385 : f32
    %79 = vector.broadcast %cst_30 : f32 to vector<8x16xf32>
    %80 = arith.mulf %78, %79 : vector<8x16xf32>
    %cst_31 = arith.constant dense<0xFF800000> : vector<8xf32>
    %81 = vector.multi_reduction <maximumf>, %80, %cst_31 [1] : vector<8x16xf32> to vector<8xf32>
    %82 = vector.shape_cast %81 : vector<8xf32> to vector<8x1xf32>
    %83 = vector.broadcast %82 : vector<8x1xf32> to vector<8x16xf32>
    %84 = arith.subf %80, %83 : vector<8x16xf32>
    %85 = math.exp %84 : vector<8x16xf32>
    %cst_32 = arith.constant dense<0.000000e+00> : vector<8xf32>
    %86 = vector.multi_reduction <add>, %85, %cst_32 [1] : vector<8x16xf32> to vector<8xf32>
    %87 = vector.shape_cast %86 : vector<8xf32> to vector<8x1xf32>
    %88 = tpu.reciprocal %87 {approx = true} : vector<8x1xf32> -> vector<8x1xf32>
    %89 = vector.broadcast %88 : vector<8x1xf32> to vector<8x16xf32>
    %90 = arith.mulf %85, %89 : vector<8x16xf32>
    %91 = arith.truncf %90 : vector<8x16xf32> to vector<8x16xbf16>
    %cst_33 = arith.constant dense<0.000000e+00> : vector<8x8xf32>
    %92 = tpu.matmul %91, %77, %cst_33 {dimension_numbers = #tpu.dot_dimension_numbers<[1], [0], [0], [1], [0, 0, 1, 1], [], []>} : vector<8x16xbf16>, vector<16x8xbf16>, vector<8x8xf32> -> vector<8x8xf32>
    %93 = vector.extract_strided_slice %16 {offsets = [0, 32], sizes = [8, 8], strides = [1, 1]} : vector<8x64xbf16> to vector<8x8xbf16>
    %94 = vector.extract_strided_slice %18 {offsets = [0, 32], sizes = [16, 8], strides = [1, 1]} : vector<16x64xbf16> to vector<16x8xbf16>
    %95 = vector.extract_strided_slice %20 {offsets = [0, 32], sizes = [16, 8], strides = [1, 1]} : vector<16x64xbf16> to vector<16x8xbf16>
    %cst_34 = arith.constant dense<0.000000e+00> : vector<8x16xf32>
    %96 = tpu.matmul %93, %94, %cst_34 {dimension_numbers = #tpu.dot_dimension_numbers<[1], [1], [0], [0], [0, 0, 1, 0], [], []>} : vector<8x8xbf16>, vector<16x8xbf16>, vector<8x16xf32> -> vector<8x16xf32>
    %cst_35 = arith.constant 0.353553385 : f32
    %97 = vector.broadcast %cst_35 : f32 to vector<8x16xf32>
    %98 = arith.mulf %96, %97 : vector<8x16xf32>
    %cst_36 = arith.constant dense<0xFF800000> : vector<8xf32>
    %99 = vector.multi_reduction <maximumf>, %98, %cst_36 [1] : vector<8x16xf32> to vector<8xf32>
    %100 = vector.shape_cast %99 : vector<8xf32> to vector<8x1xf32>
    %101 = vector.broadcast %100 : vector<8x1xf32> to vector<8x16xf32>
    %102 = arith.subf %98, %101 : vector<8x16xf32>
    %103 = math.exp %102 : vector<8x16xf32>
    %cst_37 = arith.constant dense<0.000000e+00> : vector<8xf32>
    %104 = vector.multi_reduction <add>, %103, %cst_37 [1] : vector<8x16xf32> to vector<8xf32>
    %105 = vector.shape_cast %104 : vector<8xf32> to vector<8x1xf32>
    %106 = tpu.reciprocal %105 {approx = true} : vector<8x1xf32> -> vector<8x1xf32>
    %107 = vector.broadcast %106 : vector<8x1xf32> to vector<8x16xf32>
    %108 = arith.mulf %103, %107 : vector<8x16xf32>
    %109 = arith.truncf %108 : vector<8x16xf32> to vector<8x16xbf16>
    %cst_38 = arith.constant dense<0.000000e+00> : vector<8x8xf32>
    %110 = tpu.matmul %109, %95, %cst_38 {dimension_numbers = #tpu.dot_dimension_numbers<[1], [0], [0], [1], [0, 0, 1, 1], [], []>} : vector<8x16xbf16>, vector<16x8xbf16>, vector<8x8xf32> -> vector<8x8xf32>
    %111 = vector.extract_strided_slice %16 {offsets = [0, 40], sizes = [8, 8], strides = [1, 1]} : vector<8x64xbf16> to vector<8x8xbf16>
    %112 = vector.extract_strided_slice %18 {offsets = [0, 40], sizes = [16, 8], strides = [1, 1]} : vector<16x64xbf16> to vector<16x8xbf16>
    %113 = vector.extract_strided_slice %20 {offsets = [0, 40], sizes = [16, 8], strides = [1, 1]} : vector<16x64xbf16> to vector<16x8xbf16>
    %cst_39 = arith.constant dense<0.000000e+00> : vector<8x16xf32>
    %114 = tpu.matmul %111, %112, %cst_39 {dimension_numbers = #tpu.dot_dimension_numbers<[1], [1], [0], [0], [0, 0, 1, 0], [], []>} : vector<8x8xbf16>, vector<16x8xbf16>, vector<8x16xf32> -> vector<8x16xf32>
    %cst_40 = arith.constant 0.353553385 : f32
    %115 = vector.broadcast %cst_40 : f32 to vector<8x16xf32>
    %116 = arith.mulf %114, %115 : vector<8x16xf32>
    %cst_41 = arith.constant dense<0xFF800000> : vector<8xf32>
    %117 = vector.multi_reduction <maximumf>, %116, %cst_41 [1] : vector<8x16xf32> to vector<8xf32>
    %118 = vector.shape_cast %117 : vector<8xf32> to vector<8x1xf32>
    %119 = vector.broadcast %118 : vector<8x1xf32> to vector<8x16xf32>
    %120 = arith.subf %116, %119 : vector<8x16xf32>
    %121 = math.exp %120 : vector<8x16xf32>
    %cst_42 = arith.constant dense<0.000000e+00> : vector<8xf32>
    %122 = vector.multi_reduction <add>, %121, %cst_42 [1] : vector<8x16xf32> to vector<8xf32>
    %123 = vector.shape_cast %122 : vector<8xf32> to vector<8x1xf32>
    %124 = tpu.reciprocal %123 {approx = true} : vector<8x1xf32> -> vector<8x1xf32>
    %125 = vector.broadcast %124 : vector<8x1xf32> to vector<8x16xf32>
    %126 = arith.mulf %121, %125 : vector<8x16xf32>
    %127 = arith.truncf %126 : vector<8x16xf32> to vector<8x16xbf16>
    %cst_43 = arith.constant dense<0.000000e+00> : vector<8x8xf32>
    %128 = tpu.matmul %127, %113, %cst_43 {dimension_numbers = #tpu.dot_dimension_numbers<[1], [0], [0], [1], [0, 0, 1, 1], [], []>} : vector<8x16xbf16>, vector<16x8xbf16>, vector<8x8xf32> -> vector<8x8xf32>
    %129 = vector.extract_strided_slice %16 {offsets = [0, 48], sizes = [8, 8], strides = [1, 1]} : vector<8x64xbf16> to vector<8x8xbf16>
    %130 = vector.extract_strided_slice %18 {offsets = [0, 48], sizes = [16, 8], strides = [1, 1]} : vector<16x64xbf16> to vector<16x8xbf16>
    %131 = vector.extract_strided_slice %20 {offsets = [0, 48], sizes = [16, 8], strides = [1, 1]} : vector<16x64xbf16> to vector<16x8xbf16>
    %cst_44 = arith.constant dense<0.000000e+00> : vector<8x16xf32>
    %132 = tpu.matmul %129, %130, %cst_44 {dimension_numbers = #tpu.dot_dimension_numbers<[1], [1], [0], [0], [0, 0, 1, 0], [], []>} : vector<8x8xbf16>, vector<16x8xbf16>, vector<8x16xf32> -> vector<8x16xf32>
    %cst_45 = arith.constant 0.353553385 : f32
    %133 = vector.broadcast %cst_45 : f32 to vector<8x16xf32>
    %134 = arith.mulf %132, %133 : vector<8x16xf32>
    %cst_46 = arith.constant dense<0xFF800000> : vector<8xf32>
    %135 = vector.multi_reduction <maximumf>, %134, %cst_46 [1] : vector<8x16xf32> to vector<8xf32>
    %136 = vector.shape_cast %135 : vector<8xf32> to vector<8x1xf32>
    %137 = vector.broadcast %136 : vector<8x1xf32> to vector<8x16xf32>
    %138 = arith.subf %134, %137 : vector<8x16xf32>
    %139 = math.exp %138 : vector<8x16xf32>
    %cst_47 = arith.constant dense<0.000000e+00> : vector<8xf32>
    %140 = vector.multi_reduction <add>, %139, %cst_47 [1] : vector<8x16xf32> to vector<8xf32>
    %141 = vector.shape_cast %140 : vector<8xf32> to vector<8x1xf32>
    %142 = tpu.reciprocal %141 {approx = true} : vector<8x1xf32> -> vector<8x1xf32>
    %143 = vector.broadcast %142 : vector<8x1xf32> to vector<8x16xf32>
    %144 = arith.mulf %139, %143 : vector<8x16xf32>
    %145 = arith.truncf %144 : vector<8x16xf32> to vector<8x16xbf16>
    %cst_48 = arith.constant dense<0.000000e+00> : vector<8x8xf32>
    %146 = tpu.matmul %145, %131, %cst_48 {dimension_numbers = #tpu.dot_dimension_numbers<[1], [0], [0], [1], [0, 0, 1, 1], [], []>} : vector<8x16xbf16>, vector<16x8xbf16>, vector<8x8xf32> -> vector<8x8xf32>
    %147 = vector.extract_strided_slice %16 {offsets = [0, 56], sizes = [8, 8], strides = [1, 1]} : vector<8x64xbf16> to vector<8x8xbf16>
    %148 = vector.extract_strided_slice %18 {offsets = [0, 56], sizes = [16, 8], strides = [1, 1]} : vector<16x64xbf16> to vector<16x8xbf16>
    %149 = vector.extract_strided_slice %20 {offsets = [0, 56], sizes = [16, 8], strides = [1, 1]} : vector<16x64xbf16> to vector<16x8xbf16>
    %cst_49 = arith.constant dense<0.000000e+00> : vector<8x16xf32>
    %150 = tpu.matmul %147, %148, %cst_49 {dimension_numbers = #tpu.dot_dimension_numbers<[1], [1], [0], [0], [0, 0, 1, 0], [], []>} : vector<8x8xbf16>, vector<16x8xbf16>, vector<8x16xf32> -> vector<8x16xf32>
    %cst_50 = arith.constant 0.353553385 : f32
    %151 = vector.broadcast %cst_50 : f32 to vector<8x16xf32>
    %152 = arith.mulf %150, %151 : vector<8x16xf32>
    %cst_51 = arith.constant dense<0xFF800000> : vector<8xf32>
    %153 = vector.multi_reduction <maximumf>, %152, %cst_51 [1] : vector<8x16xf32> to vector<8xf32>
    %154 = vector.shape_cast %153 : vector<8xf32> to vector<8x1xf32>
    %155 = vector.broadcast %154 : vector<8x1xf32> to vector<8x16xf32>
    %156 = arith.subf %152, %155 : vector<8x16xf32>
    %157 = math.exp %156 : vector<8x16xf32>
    %cst_52 = arith.constant dense<0.000000e+00> : vector<8xf32>
    %158 = vector.multi_reduction <add>, %157, %cst_52 [1] : vector<8x16xf32> to vector<8xf32>
    %159 = vector.shape_cast %158 : vector<8xf32> to vector<8x1xf32>
    %160 = tpu.reciprocal %159 {approx = true} : vector<8x1xf32> -> vector<8x1xf32>
    %161 = vector.broadcast %160 : vector<8x1xf32> to vector<8x16xf32>
    %162 = arith.mulf %157, %161 : vector<8x16xf32>
    %163 = arith.truncf %162 : vector<8x16xf32> to vector<8x16xbf16>
    %cst_53 = arith.constant dense<0.000000e+00> : vector<8x8xf32>
    %164 = tpu.matmul %163, %149, %cst_53 {dimension_numbers = #tpu.dot_dimension_numbers<[1], [0], [0], [1], [0, 0, 1, 1], [], []>} : vector<8x16xbf16>, vector<16x8xbf16>, vector<8x8xf32> -> vector<8x8xf32>
    %165 = tpu.concatenate %38, %56, %74, %92, %110, %128, %146, %164 in 1 : vector<8x8xf32>, vector<8x8xf32>, vector<8x8xf32>, vector<8x8xf32>, vector<8x8xf32>, vector<8x8xf32>, vector<8x8xf32>, vector<8x8xf32> -> vector<8x64xf32>
    %166 = arith.truncf %165 : vector<8x64xf32> to vector<8x64xbf16>
    %c0_54 = arith.constant 0 : index
    %c0_55 = arith.constant 0 : index
    %167 = vector.load %arg7[%c0_54, %c0_55] : memref<64x64xbf16, #tpu.memory_space<vmem>>, vector<64x64xbf16>
    %cst_56 = arith.constant dense<0.000000e+00> : vector<8x64xf32>
    %168 = tpu.matmul %166, %167, %cst_56 {dimension_numbers = #tpu.dot_dimension_numbers<[1], [0], [0], [1], [0, 0, 1, 1], [], []>} : vector<8x64xbf16>, vector<64x64xbf16>, vector<8x64xf32> -> vector<8x64xf32>
    %c0_57 = arith.constant 0 : index
    %c0_58 = arith.constant 0 : index
    %169 = vector.load %arg8[%c0_57, %c0_58] : memref<1x64xf32, #tpu.memory_space<vmem>>, vector<1x64xf32>
    %170 = vector.broadcast %169 : vector<1x64xf32> to vector<8x64xf32>
    %171 = arith.addf %168, %170 : vector<8x64xf32>
    %c0_59 = arith.constant 0 : index
    %c0_60 = arith.constant 0 : index
    %c0_61 = arith.constant 0 : index
    %172 = vector.load %arg9[%c0_59, %c0_60, %c0_61] : memref<1x8x64xf32, #tpu.memory_space<vmem>>, vector<1x8x64xf32>
    %173 = vector.shape_cast %172 : vector<1x8x64xf32> to vector<8x64xf32>
    %174 = vector.shape_cast %171 : vector<8x64xf32> to vector<1x8x64xf32>
    tpu.vector_store %arg9[%c0_59, %c0_60, %c0_61], %174 {strides = array<i32>} : memref<1x8x64xf32, #tpu.memory_space<vmem>>, vector<1x8x64xf32>,
    return
  }
  func.func @transform_0(%arg0: i32) -> (i32, i32, i32) {
    %c0_i32 = arith.constant 0 : i32
    %c0_i32_0 = arith.constant 0 : i32
    %c0_i32_1 = arith.constant 0 : i32
    return %arg0, %c0_i32, %c0_i32_0 : i32, i32, i32
  }
  func.func @transform_1(%arg0: i32) -> (i32, i32, i32) {
    %c0_i32 = arith.constant 0 : i32
    %c0_i32_0 = arith.constant 0 : i32
    %c0_i32_1 = arith.constant 0 : i32
    return %arg0, %c0_i32, %c0_i32_0 : i32, i32, i32
  }
  func.func @transform_2(%arg0: i32) -> (i32, i32) {
    %c0_i32 = arith.constant 0 : i32
    %c0_i32_0 = arith.constant 0 : i32
    %c0_i32_1 = arith.constant 0 : i32
    return %c0_i32, %c0_i32_0 : i32, i32
  }
  func.func @transform_3(%arg0: i32) -> (i32, i32) {
    %c0_i32 = arith.constant 0 : i32
    %c0_i32_0 = arith.constant 0 : i32
    %c0_i32_1 = arith.constant 0 : i32
    return %c0_i32, %c0_i32_0 : i32, i32
  }
  func.func @transform_4(%arg0: i32) -> (i32, i32) {
    %c0_i32 = arith.constant 0 : i32
    %c0_i32_0 = arith.constant 0 : i32
    %c0_i32_1 = arith.constant 0 : i32
    return %c0_i32, %c0_i32_0 : i32, i32
  }
  func.func @transform_5(%arg0: i32) -> (i32, i32) {
    %c0_i32 = arith.constant 0 : i32
    %c0_i32_0 = arith.constant 0 : i32
    %c0_i32_1 = arith.constant 0 : i32
    return %c0_i32, %c0_i32_0 : i32, i32
  }
  func.func @transform_6(%arg0: i32) -> (i32, i32) {
    %c0_i32 = arith.constant 0 : i32
    %c0_i32_0 = arith.constant 0 : i32
    %c0_i32_1 = arith.constant 0 : i32
    return %c0_i32, %c0_i32_0 : i32, i32
  }
  func.func @transform_7(%arg0: i32) -> (i32, i32) {
    %c0_i32 = arith.constant 0 : i32
    %c0_i32_0 = arith.constant 0 : i32
    %c0_i32_1 = arith.constant 0 : i32
    return %c0_i32, %c0_i32_0 : i32, i32
  }
  func.func @transform_8(%arg0: i32) -> (i32, i32, i32) {
    %c0_i32 = arith.constant 0 : i32
    %c0_i32_0 = arith.constant 0 : i32
    %c0_i32_1 = arith.constant 0 : i32
    return %arg0, %c0_i32, %c0_i32_0 : i32, i32, i32
  }
}

module attributes {stable_mosaic.version = 11 : i64} {
  func.func @_encoder_layer_kernel(%arg0: i32, %arg1: memref<1x8x64xf32, #tpu.memory_space<vmem>>, %arg2: memref<64x192xbf16, #tpu.memory_space<vmem>>, %arg3: memref<1x192xf32, #tpu.memory_space<vmem>>, %arg4: memref<64x64xbf16, #tpu.memory_space<vmem>>, %arg5: memref<1x64xf32, #tpu.memory_space<vmem>>, %arg6: memref<1x64xf32, #tpu.memory_space<vmem>>, %arg7: memref<1x64xf32, #tpu.memory_space<vmem>>, %arg8: memref<64x2048xbf16, #tpu.memory_space<vmem>>, %arg9: memref<1x2048xf32, #tpu.memory_space<vmem>>, %arg10: memref<2048x64xbf16, #tpu.memory_space<vmem>>, %arg11: memref<1x64xf32, #tpu.memory_space<vmem>>, %arg12: memref<1x64xf32, #tpu.memory_space<vmem>>, %arg13: memref<1x64xf32, #tpu.memory_space<vmem>>, %arg14: memref<1x8x64xf32, #tpu.memory_space<vmem>>) attributes {dimension_semantics = [#tpu.dimension_semantics<parallel>], iteration_bounds = array<i64: 2>, scalar_prefetch = 0 : i64, scratch_operands = 0 : i64, tpu.core_type = #tpu.core_type<tc>, window_params = [{transform_indices = @transform_0, window_bounds = array<i64: 1, 8, 64>}, {pipeline_mode = #tpu.pipeline_mode<synchronous>, transform_indices = @transform_1, window_bounds = array<i64: 64, 192>}, {pipeline_mode = #tpu.pipeline_mode<synchronous>, transform_indices = @transform_2, window_bounds = array<i64: 1, 192>}, {pipeline_mode = #tpu.pipeline_mode<synchronous>, transform_indices = @transform_3, window_bounds = array<i64: 64, 64>}, {pipeline_mode = #tpu.pipeline_mode<synchronous>, transform_indices = @transform_4, window_bounds = array<i64: 1, 64>}, {pipeline_mode = #tpu.pipeline_mode<synchronous>, transform_indices = @transform_5, window_bounds = array<i64: 1, 64>}, {pipeline_mode = #tpu.pipeline_mode<synchronous>, transform_indices = @transform_6, window_bounds = array<i64: 1, 64>}, {pipeline_mode = #tpu.pipeline_mode<synchronous>, transform_indices = @transform_7, window_bounds = array<i64: 64, 2048>}, {pipeline_mode = #tpu.pipeline_mode<synchronous>, transform_indices = @transform_8, window_bounds = array<i64: 1, 2048>}, {pipeline_mode = #tpu.pipeline_mode<synchronous>, transform_indices = @transform_9, window_bounds = array<i64: 2048, 64>}, {pipeline_mode = #tpu.pipeline_mode<synchronous>, transform_indices = @transform_10, window_bounds = array<i64: 1, 64>}, {pipeline_mode = #tpu.pipeline_mode<synchronous>, transform_indices = @transform_11, window_bounds = array<i64: 1, 64>}, {pipeline_mode = #tpu.pipeline_mode<synchronous>, transform_indices = @transform_12, window_bounds = array<i64: 1, 64>}, {transform_indices = @transform_13, window_bounds = array<i64: 1, 8, 64>}]} {
    %c0 = arith.constant 0 : index
    %c0_0 = arith.constant 0 : index
    %c0_1 = arith.constant 0 : index
    %0 = vector.load %arg1[%c0, %c0_0, %c0_1] : memref<1x8x64xf32, #tpu.memory_space<vmem>>, vector<1x8x64xf32>
    %1 = vector.shape_cast %0 : vector<1x8x64xf32> to vector<8x64xf32>
    %2 = arith.truncf %1 : vector<8x64xf32> to vector<8x64xbf16>
    %c0_2 = arith.constant 0 : index
    %c0_3 = arith.constant 0 : index
    %3 = vector.load %arg2[%c0_2, %c0_3] : memref<64x192xbf16, #tpu.memory_space<vmem>>, vector<64x192xbf16>
    %cst = arith.constant dense<0.000000e+00> : vector<8x192xf32>
    %4 = tpu.matmul %2, %3, %cst {dimension_numbers = #tpu.dot_dimension_numbers<[1], [0], [0], [1], [0, 0, 1, 1], [], []>} : vector<8x64xbf16>, vector<64x192xbf16>, vector<8x192xf32> -> vector<8x192xf32>
    %c0_4 = arith.constant 0 : index
    %c0_5 = arith.constant 0 : index
    %5 = vector.load %arg3[%c0_4, %c0_5] : memref<1x192xf32, #tpu.memory_space<vmem>>, vector<1x192xf32>
    %6 = vector.broadcast %5 : vector<1x192xf32> to vector<8x192xf32>
    %7 = arith.addf %4, %6 : vector<8x192xf32>
    %8 = arith.truncf %7 : vector<8x192xf32> to vector<8x192xbf16>
    %9 = vector.extract_strided_slice %8 {offsets = [0, 0], sizes = [8, 64], strides = [1, 1]} : vector<8x192xbf16> to vector<8x64xbf16>
    %10 = vector.extract_strided_slice %8 {offsets = [0, 64], sizes = [8, 64], strides = [1, 1]} : vector<8x192xbf16> to vector<8x64xbf16>
    %11 = vector.extract_strided_slice %8 {offsets = [0, 128], sizes = [8, 64], strides = [1, 1]} : vector<8x192xbf16> to vector<8x64xbf16>
    %12 = vector.extract_strided_slice %9 {offsets = [0, 0], sizes = [8, 8], strides = [1, 1]} : vector<8x64xbf16> to vector<8x8xbf16>
    %13 = vector.extract_strided_slice %10 {offsets = [0, 0], sizes = [8, 8], strides = [1, 1]} : vector<8x64xbf16> to vector<8x8xbf16>
    %14 = vector.extract_strided_slice %11 {offsets = [0, 0], sizes = [8, 8], strides = [1, 1]} : vector<8x64xbf16> to vector<8x8xbf16>
    %cst_6 = arith.constant dense<0.000000e+00> : vector<8x8xf32>
    %15 = tpu.matmul %12, %13, %cst_6 {dimension_numbers = #tpu.dot_dimension_numbers<[1], [1], [0], [0], [0, 0, 1, 0], [], []>} : vector<8x8xbf16>, vector<8x8xbf16>, vector<8x8xf32> -> vector<8x8xf32>
    %cst_7 = arith.constant 0.353553385 : f32
    %16 = vector.broadcast %cst_7 : f32 to vector<8x8xf32>
    %17 = arith.mulf %15, %16 : vector<8x8xf32>
    %cst_8 = arith.constant dense<0xFF800000> : vector<8xf32>
    %18 = vector.multi_reduction <maximumf>, %17, %cst_8 [1] : vector<8x8xf32> to vector<8xf32>
    %19 = vector.shape_cast %18 : vector<8xf32> to vector<8x1xf32>
    %20 = vector.broadcast %19 : vector<8x1xf32> to vector<8x8xf32>
    %21 = arith.subf %17, %20 : vector<8x8xf32>
    %22 = math.exp %21 : vector<8x8xf32>
    %cst_9 = arith.constant dense<0.000000e+00> : vector<8xf32>
    %23 = vector.multi_reduction <add>, %22, %cst_9 [1] : vector<8x8xf32> to vector<8xf32>
    %24 = vector.shape_cast %23 : vector<8xf32> to vector<8x1xf32>
    %25 = tpu.reciprocal %24 {approx = true} : vector<8x1xf32> -> vector<8x1xf32>
    %26 = vector.broadcast %25 : vector<8x1xf32> to vector<8x8xf32>
    %27 = arith.mulf %22, %26 : vector<8x8xf32>
    %28 = arith.truncf %27 : vector<8x8xf32> to vector<8x8xbf16>
    %cst_10 = arith.constant dense<0.000000e+00> : vector<8x8xf32>
    %29 = tpu.matmul %28, %14, %cst_10 {dimension_numbers = #tpu.dot_dimension_numbers<[1], [0], [0], [1], [0, 0, 1, 1], [], []>} : vector<8x8xbf16>, vector<8x8xbf16>, vector<8x8xf32> -> vector<8x8xf32>
    %30 = vector.extract_strided_slice %9 {offsets = [0, 8], sizes = [8, 8], strides = [1, 1]} : vector<8x64xbf16> to vector<8x8xbf16>
    %31 = vector.extract_strided_slice %10 {offsets = [0, 8], sizes = [8, 8], strides = [1, 1]} : vector<8x64xbf16> to vector<8x8xbf16>
    %32 = vector.extract_strided_slice %11 {offsets = [0, 8], sizes = [8, 8], strides = [1, 1]} : vector<8x64xbf16> to vector<8x8xbf16>
    %cst_11 = arith.constant dense<0.000000e+00> : vector<8x8xf32>
    %33 = tpu.matmul %30, %31, %cst_11 {dimension_numbers = #tpu.dot_dimension_numbers<[1], [1], [0], [0], [0, 0, 1, 0], [], []>} : vector<8x8xbf16>, vector<8x8xbf16>, vector<8x8xf32> -> vector<8x8xf32>
    %cst_12 = arith.constant 0.353553385 : f32
    %34 = vector.broadcast %cst_12 : f32 to vector<8x8xf32>
    %35 = arith.mulf %33, %34 : vector<8x8xf32>
    %cst_13 = arith.constant dense<0xFF800000> : vector<8xf32>
    %36 = vector.multi_reduction <maximumf>, %35, %cst_13 [1] : vector<8x8xf32> to vector<8xf32>
    %37 = vector.shape_cast %36 : vector<8xf32> to vector<8x1xf32>
    %38 = vector.broadcast %37 : vector<8x1xf32> to vector<8x8xf32>
    %39 = arith.subf %35, %38 : vector<8x8xf32>
    %40 = math.exp %39 : vector<8x8xf32>
    %cst_14 = arith.constant dense<0.000000e+00> : vector<8xf32>
    %41 = vector.multi_reduction <add>, %40, %cst_14 [1] : vector<8x8xf32> to vector<8xf32>
    %42 = vector.shape_cast %41 : vector<8xf32> to vector<8x1xf32>
    %43 = tpu.reciprocal %42 {approx = true} : vector<8x1xf32> -> vector<8x1xf32>
    %44 = vector.broadcast %43 : vector<8x1xf32> to vector<8x8xf32>
    %45 = arith.mulf %40, %44 : vector<8x8xf32>
    %46 = arith.truncf %45 : vector<8x8xf32> to vector<8x8xbf16>
    %cst_15 = arith.constant dense<0.000000e+00> : vector<8x8xf32>
    %47 = tpu.matmul %46, %32, %cst_15 {dimension_numbers = #tpu.dot_dimension_numbers<[1], [0], [0], [1], [0, 0, 1, 1], [], []>} : vector<8x8xbf16>, vector<8x8xbf16>, vector<8x8xf32> -> vector<8x8xf32>
    %48 = vector.extract_strided_slice %9 {offsets = [0, 16], sizes = [8, 8], strides = [1, 1]} : vector<8x64xbf16> to vector<8x8xbf16>
    %49 = vector.extract_strided_slice %10 {offsets = [0, 16], sizes = [8, 8], strides = [1, 1]} : vector<8x64xbf16> to vector<8x8xbf16>
    %50 = vector.extract_strided_slice %11 {offsets = [0, 16], sizes = [8, 8], strides = [1, 1]} : vector<8x64xbf16> to vector<8x8xbf16>
    %cst_16 = arith.constant dense<0.000000e+00> : vector<8x8xf32>
    %51 = tpu.matmul %48, %49, %cst_16 {dimension_numbers = #tpu.dot_dimension_numbers<[1], [1], [0], [0], [0, 0, 1, 0], [], []>} : vector<8x8xbf16>, vector<8x8xbf16>, vector<8x8xf32> -> vector<8x8xf32>
    %cst_17 = arith.constant 0.353553385 : f32
    %52 = vector.broadcast %cst_17 : f32 to vector<8x8xf32>
    %53 = arith.mulf %51, %52 : vector<8x8xf32>
    %cst_18 = arith.constant dense<0xFF800000> : vector<8xf32>
    %54 = vector.multi_reduction <maximumf>, %53, %cst_18 [1] : vector<8x8xf32> to vector<8xf32>
    %55 = vector.shape_cast %54 : vector<8xf32> to vector<8x1xf32>
    %56 = vector.broadcast %55 : vector<8x1xf32> to vector<8x8xf32>
    %57 = arith.subf %53, %56 : vector<8x8xf32>
    %58 = math.exp %57 : vector<8x8xf32>
    %cst_19 = arith.constant dense<0.000000e+00> : vector<8xf32>
    %59 = vector.multi_reduction <add>, %58, %cst_19 [1] : vector<8x8xf32> to vector<8xf32>
    %60 = vector.shape_cast %59 : vector<8xf32> to vector<8x1xf32>
    %61 = tpu.reciprocal %60 {approx = true} : vector<8x1xf32> -> vector<8x1xf32>
    %62 = vector.broadcast %61 : vector<8x1xf32> to vector<8x8xf32>
    %63 = arith.mulf %58, %62 : vector<8x8xf32>
    %64 = arith.truncf %63 : vector<8x8xf32> to vector<8x8xbf16>
    %cst_20 = arith.constant dense<0.000000e+00> : vector<8x8xf32>
    %65 = tpu.matmul %64, %50, %cst_20 {dimension_numbers = #tpu.dot_dimension_numbers<[1], [0], [0], [1], [0, 0, 1, 1], [], []>} : vector<8x8xbf16>, vector<8x8xbf16>, vector<8x8xf32> -> vector<8x8xf32>
    %66 = vector.extract_strided_slice %9 {offsets = [0, 24], sizes = [8, 8], strides = [1, 1]} : vector<8x64xbf16> to vector<8x8xbf16>
    %67 = vector.extract_strided_slice %10 {offsets = [0, 24], sizes = [8, 8], strides = [1, 1]} : vector<8x64xbf16> to vector<8x8xbf16>
    %68 = vector.extract_strided_slice %11 {offsets = [0, 24], sizes = [8, 8], strides = [1, 1]} : vector<8x64xbf16> to vector<8x8xbf16>
    %cst_21 = arith.constant dense<0.000000e+00> : vector<8x8xf32>
    %69 = tpu.matmul %66, %67, %cst_21 {dimension_numbers = #tpu.dot_dimension_numbers<[1], [1], [0], [0], [0, 0, 1, 0], [], []>} : vector<8x8xbf16>, vector<8x8xbf16>, vector<8x8xf32> -> vector<8x8xf32>
    %cst_22 = arith.constant 0.353553385 : f32
    %70 = vector.broadcast %cst_22 : f32 to vector<8x8xf32>
    %71 = arith.mulf %69, %70 : vector<8x8xf32>
    %cst_23 = arith.constant dense<0xFF800000> : vector<8xf32>
    %72 = vector.multi_reduction <maximumf>, %71, %cst_23 [1] : vector<8x8xf32> to vector<8xf32>
    %73 = vector.shape_cast %72 : vector<8xf32> to vector<8x1xf32>
    %74 = vector.broadcast %73 : vector<8x1xf32> to vector<8x8xf32>
    %75 = arith.subf %71, %74 : vector<8x8xf32>
    %76 = math.exp %75 : vector<8x8xf32>
    %cst_24 = arith.constant dense<0.000000e+00> : vector<8xf32>
    %77 = vector.multi_reduction <add>, %76, %cst_24 [1] : vector<8x8xf32> to vector<8xf32>
    %78 = vector.shape_cast %77 : vector<8xf32> to vector<8x1xf32>
    %79 = tpu.reciprocal %78 {approx = true} : vector<8x1xf32> -> vector<8x1xf32>
    %80 = vector.broadcast %79 : vector<8x1xf32> to vector<8x8xf32>
    %81 = arith.mulf %76, %80 : vector<8x8xf32>
    %82 = arith.truncf %81 : vector<8x8xf32> to vector<8x8xbf16>
    %cst_25 = arith.constant dense<0.000000e+00> : vector<8x8xf32>
    %83 = tpu.matmul %82, %68, %cst_25 {dimension_numbers = #tpu.dot_dimension_numbers<[1], [0], [0], [1], [0, 0, 1, 1], [], []>} : vector<8x8xbf16>, vector<8x8xbf16>, vector<8x8xf32> -> vector<8x8xf32>
    %84 = vector.extract_strided_slice %9 {offsets = [0, 32], sizes = [8, 8], strides = [1, 1]} : vector<8x64xbf16> to vector<8x8xbf16>
    %85 = vector.extract_strided_slice %10 {offsets = [0, 32], sizes = [8, 8], strides = [1, 1]} : vector<8x64xbf16> to vector<8x8xbf16>
    %86 = vector.extract_strided_slice %11 {offsets = [0, 32], sizes = [8, 8], strides = [1, 1]} : vector<8x64xbf16> to vector<8x8xbf16>
    %cst_26 = arith.constant dense<0.000000e+00> : vector<8x8xf32>
    %87 = tpu.matmul %84, %85, %cst_26 {dimension_numbers = #tpu.dot_dimension_numbers<[1], [1], [0], [0], [0, 0, 1, 0], [], []>} : vector<8x8xbf16>, vector<8x8xbf16>, vector<8x8xf32> -> vector<8x8xf32>
    %cst_27 = arith.constant 0.353553385 : f32
    %88 = vector.broadcast %cst_27 : f32 to vector<8x8xf32>
    %89 = arith.mulf %87, %88 : vector<8x8xf32>
    %cst_28 = arith.constant dense<0xFF800000> : vector<8xf32>
    %90 = vector.multi_reduction <maximumf>, %89, %cst_28 [1] : vector<8x8xf32> to vector<8xf32>
    %91 = vector.shape_cast %90 : vector<8xf32> to vector<8x1xf32>
    %92 = vector.broadcast %91 : vector<8x1xf32> to vector<8x8xf32>
    %93 = arith.subf %89, %92 : vector<8x8xf32>
    %94 = math.exp %93 : vector<8x8xf32>
    %cst_29 = arith.constant dense<0.000000e+00> : vector<8xf32>
    %95 = vector.multi_reduction <add>, %94, %cst_29 [1] : vector<8x8xf32> to vector<8xf32>
    %96 = vector.shape_cast %95 : vector<8xf32> to vector<8x1xf32>
    %97 = tpu.reciprocal %96 {approx = true} : vector<8x1xf32> -> vector<8x1xf32>
    %98 = vector.broadcast %97 : vector<8x1xf32> to vector<8x8xf32>
    %99 = arith.mulf %94, %98 : vector<8x8xf32>
    %100 = arith.truncf %99 : vector<8x8xf32> to vector<8x8xbf16>
    %cst_30 = arith.constant dense<0.000000e+00> : vector<8x8xf32>
    %101 = tpu.matmul %100, %86, %cst_30 {dimension_numbers = #tpu.dot_dimension_numbers<[1], [0], [0], [1], [0, 0, 1, 1], [], []>} : vector<8x8xbf16>, vector<8x8xbf16>, vector<8x8xf32> -> vector<8x8xf32>
    %102 = vector.extract_strided_slice %9 {offsets = [0, 40], sizes = [8, 8], strides = [1, 1]} : vector<8x64xbf16> to vector<8x8xbf16>
    %103 = vector.extract_strided_slice %10 {offsets = [0, 40], sizes = [8, 8], strides = [1, 1]} : vector<8x64xbf16> to vector<8x8xbf16>
    %104 = vector.extract_strided_slice %11 {offsets = [0, 40], sizes = [8, 8], strides = [1, 1]} : vector<8x64xbf16> to vector<8x8xbf16>
    %cst_31 = arith.constant dense<0.000000e+00> : vector<8x8xf32>
    %105 = tpu.matmul %102, %103, %cst_31 {dimension_numbers = #tpu.dot_dimension_numbers<[1], [1], [0], [0], [0, 0, 1, 0], [], []>} : vector<8x8xbf16>, vector<8x8xbf16>, vector<8x8xf32> -> vector<8x8xf32>
    %cst_32 = arith.constant 0.353553385 : f32
    %106 = vector.broadcast %cst_32 : f32 to vector<8x8xf32>
    %107 = arith.mulf %105, %106 : vector<8x8xf32>
    %cst_33 = arith.constant dense<0xFF800000> : vector<8xf32>
    %108 = vector.multi_reduction <maximumf>, %107, %cst_33 [1] : vector<8x8xf32> to vector<8xf32>
    %109 = vector.shape_cast %108 : vector<8xf32> to vector<8x1xf32>
    %110 = vector.broadcast %109 : vector<8x1xf32> to vector<8x8xf32>
    %111 = arith.subf %107, %110 : vector<8x8xf32>
    %112 = math.exp %111 : vector<8x8xf32>
    %cst_34 = arith.constant dense<0.000000e+00> : vector<8xf32>
    %113 = vector.multi_reduction <add>, %112, %cst_34 [1] : vector<8x8xf32> to vector<8xf32>
    %114 = vector.shape_cast %113 : vector<8xf32> to vector<8x1xf32>
    %115 = tpu.reciprocal %114 {approx = true} : vector<8x1xf32> -> vector<8x1xf32>
    %116 = vector.broadcast %115 : vector<8x1xf32> to vector<8x8xf32>
    %117 = arith.mulf %112, %116 : vector<8x8xf32>
    %118 = arith.truncf %117 : vector<8x8xf32> to vector<8x8xbf16>
    %cst_35 = arith.constant dense<0.000000e+00> : vector<8x8xf32>
    %119 = tpu.matmul %118, %104, %cst_35 {dimension_numbers = #tpu.dot_dimension_numbers<[1], [0], [0], [1], [0, 0, 1, 1], [], []>} : vector<8x8xbf16>, vector<8x8xbf16>, vector<8x8xf32> -> vector<8x8xf32>
    %120 = vector.extract_strided_slice %9 {offsets = [0, 48], sizes = [8, 8], strides = [1, 1]} : vector<8x64xbf16> to vector<8x8xbf16>
    %121 = vector.extract_strided_slice %10 {offsets = [0, 48], sizes = [8, 8], strides = [1, 1]} : vector<8x64xbf16> to vector<8x8xbf16>
    %122 = vector.extract_strided_slice %11 {offsets = [0, 48], sizes = [8, 8], strides = [1, 1]} : vector<8x64xbf16> to vector<8x8xbf16>
    %cst_36 = arith.constant dense<0.000000e+00> : vector<8x8xf32>
    %123 = tpu.matmul %120, %121, %cst_36 {dimension_numbers = #tpu.dot_dimension_numbers<[1], [1], [0], [0], [0, 0, 1, 0], [], []>} : vector<8x8xbf16>, vector<8x8xbf16>, vector<8x8xf32> -> vector<8x8xf32>
    %cst_37 = arith.constant 0.353553385 : f32
    %124 = vector.broadcast %cst_37 : f32 to vector<8x8xf32>
    %125 = arith.mulf %123, %124 : vector<8x8xf32>
    %cst_38 = arith.constant dense<0xFF800000> : vector<8xf32>
    %126 = vector.multi_reduction <maximumf>, %125, %cst_38 [1] : vector<8x8xf32> to vector<8xf32>
    %127 = vector.shape_cast %126 : vector<8xf32> to vector<8x1xf32>
    %128 = vector.broadcast %127 : vector<8x1xf32> to vector<8x8xf32>
    %129 = arith.subf %125, %128 : vector<8x8xf32>
    %130 = math.exp %129 : vector<8x8xf32>
    %cst_39 = arith.constant dense<0.000000e+00> : vector<8xf32>
    %131 = vector.multi_reduction <add>, %130, %cst_39 [1] : vector<8x8xf32> to vector<8xf32>
    %132 = vector.shape_cast %131 : vector<8xf32> to vector<8x1xf32>
    %133 = tpu.reciprocal %132 {approx = true} : vector<8x1xf32> -> vector<8x1xf32>
    %134 = vector.broadcast %133 : vector<8x1xf32> to vector<8x8xf32>
    %135 = arith.mulf %130, %134 : vector<8x8xf32>
    %136 = arith.truncf %135 : vector<8x8xf32> to vector<8x8xbf16>
    %cst_40 = arith.constant dense<0.000000e+00> : vector<8x8xf32>
    %137 = tpu.matmul %136, %122, %cst_40 {dimension_numbers = #tpu.dot_dimension_numbers<[1], [0], [0], [1], [0, 0, 1, 1], [], []>} : vector<8x8xbf16>, vector<8x8xbf16>, vector<8x8xf32> -> vector<8x8xf32>
    %138 = vector.extract_strided_slice %9 {offsets = [0, 56], sizes = [8, 8], strides = [1, 1]} : vector<8x64xbf16> to vector<8x8xbf16>
    %139 = vector.extract_strided_slice %10 {offsets = [0, 56], sizes = [8, 8], strides = [1, 1]} : vector<8x64xbf16> to vector<8x8xbf16>
    %140 = vector.extract_strided_slice %11 {offsets = [0, 56], sizes = [8, 8], strides = [1, 1]} : vector<8x64xbf16> to vector<8x8xbf16>
    %cst_41 = arith.constant dense<0.000000e+00> : vector<8x8xf32>
    %141 = tpu.matmul %138, %139, %cst_41 {dimension_numbers = #tpu.dot_dimension_numbers<[1], [1], [0], [0], [0, 0, 1, 0], [], []>} : vector<8x8xbf16>, vector<8x8xbf16>, vector<8x8xf32> -> vector<8x8xf32>
    %cst_42 = arith.constant 0.353553385 : f32
    %142 = vector.broadcast %cst_42 : f32 to vector<8x8xf32>
    %143 = arith.mulf %141, %142 : vector<8x8xf32>
    %cst_43 = arith.constant dense<0xFF800000> : vector<8xf32>
    %144 = vector.multi_reduction <maximumf>, %143, %cst_43 [1] : vector<8x8xf32> to vector<8xf32>
    %145 = vector.shape_cast %144 : vector<8xf32> to vector<8x1xf32>
    %146 = vector.broadcast %145 : vector<8x1xf32> to vector<8x8xf32>
    %147 = arith.subf %143, %146 : vector<8x8xf32>
    %148 = math.exp %147 : vector<8x8xf32>
    %cst_44 = arith.constant dense<0.000000e+00> : vector<8xf32>
    %149 = vector.multi_reduction <add>, %148, %cst_44 [1] : vector<8x8xf32> to vector<8xf32>
    %150 = vector.shape_cast %149 : vector<8xf32> to vector<8x1xf32>
    %151 = tpu.reciprocal %150 {approx = true} : vector<8x1xf32> -> vector<8x1xf32>
    %152 = vector.broadcast %151 : vector<8x1xf32> to vector<8x8xf32>
    %153 = arith.mulf %148, %152 : vector<8x8xf32>
    %154 = arith.truncf %153 : vector<8x8xf32> to vector<8x8xbf16>
    %cst_45 = arith.constant dense<0.000000e+00> : vector<8x8xf32>
    %155 = tpu.matmul %154, %140, %cst_45 {dimension_numbers = #tpu.dot_dimension_numbers<[1], [0], [0], [1], [0, 0, 1, 1], [], []>} : vector<8x8xbf16>, vector<8x8xbf16>, vector<8x8xf32> -> vector<8x8xf32>
    %156 = tpu.concatenate %29, %47, %65, %83, %101, %119, %137, %155 in 1 : vector<8x8xf32>, vector<8x8xf32>, vector<8x8xf32>, vector<8x8xf32>, vector<8x8xf32>, vector<8x8xf32>, vector<8x8xf32>, vector<8x8xf32> -> vector<8x64xf32>
    %157 = arith.truncf %156 : vector<8x64xf32> to vector<8x64xbf16>
    %c0_46 = arith.constant 0 : index
    %c0_47 = arith.constant 0 : index
    %158 = vector.load %arg4[%c0_46, %c0_47] : memref<64x64xbf16, #tpu.memory_space<vmem>>, vector<64x64xbf16>
    %cst_48 = arith.constant dense<0.000000e+00> : vector<8x64xf32>
    %159 = tpu.matmul %157, %158, %cst_48 {dimension_numbers = #tpu.dot_dimension_numbers<[1], [0], [0], [1], [0, 0, 1, 1], [], []>} : vector<8x64xbf16>, vector<64x64xbf16>, vector<8x64xf32> -> vector<8x64xf32>
    %c0_49 = arith.constant 0 : index
    %c0_50 = arith.constant 0 : index
    %160 = vector.load %arg5[%c0_49, %c0_50] : memref<1x64xf32, #tpu.memory_space<vmem>>, vector<1x64xf32>
    %161 = vector.broadcast %160 : vector<1x64xf32> to vector<8x64xf32>
    %162 = arith.addf %159, %161 : vector<8x64xf32>
    %163 = arith.addf %1, %162 : vector<8x64xf32>
    %c0_51 = arith.constant 0 : index
    %c0_52 = arith.constant 0 : index
    %164 = vector.load %arg6[%c0_51, %c0_52] : memref<1x64xf32, #tpu.memory_space<vmem>>, vector<1x64xf32>
    %c0_53 = arith.constant 0 : index
    %c0_54 = arith.constant 0 : index
    %165 = vector.load %arg7[%c0_53, %c0_54] : memref<1x64xf32, #tpu.memory_space<vmem>>, vector<1x64xf32>
    %cst_55 = arith.constant dense<0.000000e+00> : vector<8xf32>
    %166 = vector.multi_reduction <add>, %163, %cst_55 [1] : vector<8x64xf32> to vector<8xf32>
    %167 = vector.shape_cast %166 : vector<8xf32> to vector<8x1xf32>
    %cst_56 = arith.constant 6.400000e+01 : f32
    %168 = vector.broadcast %cst_56 : f32 to vector<8x1xf32>
    %169 = arith.divf %167, %168 : vector<8x1xf32>
    %170 = vector.broadcast %169 : vector<8x1xf32> to vector<8x64xf32>
    %171 = arith.subf %163, %170 : vector<8x64xf32>
    %172 = vector.broadcast %169 : vector<8x1xf32> to vector<8x64xf32>
    %173 = arith.subf %163, %172 : vector<8x64xf32>
    %174 = arith.mulf %171, %173 : vector<8x64xf32>
    %cst_57 = arith.constant dense<0.000000e+00> : vector<8xf32>
    %175 = vector.multi_reduction <add>, %174, %cst_57 [1] : vector<8x64xf32> to vector<8xf32>
    %176 = vector.shape_cast %175 : vector<8xf32> to vector<8x1xf32>
    %cst_58 = arith.constant 6.400000e+01 : f32
    %177 = vector.broadcast %cst_58 : f32 to vector<8x1xf32>
    %178 = arith.divf %176, %177 : vector<8x1xf32>
    %179 = vector.broadcast %169 : vector<8x1xf32> to vector<8x64xf32>
    %180 = arith.subf %163, %179 : vector<8x64xf32>
    %cst_59 = arith.constant 9.99999974E-6 : f32
    %181 = vector.broadcast %cst_59 : f32 to vector<8x1xf32>
    %182 = arith.addf %178, %181 : vector<8x1xf32>
    %183 = math.rsqrt %182 : vector<8x1xf32>
    %184 = vector.broadcast %183 : vector<8x1xf32> to vector<8x64xf32>
    %185 = arith.mulf %180, %184 : vector<8x64xf32>
    %186 = vector.broadcast %164 : vector<1x64xf32> to vector<8x64xf32>
    %187 = arith.mulf %185, %186 : vector<8x64xf32>
    %188 = vector.broadcast %165 : vector<1x64xf32> to vector<8x64xf32>
    %189 = arith.addf %187, %188 : vector<8x64xf32>
    %190 = arith.truncf %189 : vector<8x64xf32> to vector<8x64xbf16>
    %c0_60 = arith.constant 0 : index
    %c0_61 = arith.constant 0 : index
    %191 = vector.load %arg8[%c0_60, %c0_61] : memref<64x2048xbf16, #tpu.memory_space<vmem>>, vector<64x2048xbf16>
    %cst_62 = arith.constant dense<0.000000e+00> : vector<8x2048xf32>
    %192 = tpu.matmul %190, %191, %cst_62 {dimension_numbers = #tpu.dot_dimension_numbers<[1], [0], [0], [1], [0, 0, 1, 1], [], []>} : vector<8x64xbf16>, vector<64x2048xbf16>, vector<8x2048xf32> -> vector<8x2048xf32>
    %c0_63 = arith.constant 0 : index
    %c0_64 = arith.constant 0 : index
    %193 = vector.load %arg9[%c0_63, %c0_64] : memref<1x2048xf32, #tpu.memory_space<vmem>>, vector<1x2048xf32>
    %194 = vector.broadcast %193 : vector<1x2048xf32> to vector<8x2048xf32>
    %195 = arith.addf %192, %194 : vector<8x2048xf32>
    %cst_65 = arith.constant 0.000000e+00 : f32
    %196 = vector.broadcast %cst_65 : f32 to vector<8x2048xf32>
    %197 = arith.maximumf %195, %196 : vector<8x2048xf32>
    %198 = arith.truncf %197 : vector<8x2048xf32> to vector<8x2048xbf16>
    %c0_66 = arith.constant 0 : index
    %c0_67 = arith.constant 0 : index
    %199 = vector.load %arg10[%c0_66, %c0_67] : memref<2048x64xbf16, #tpu.memory_space<vmem>>, vector<2048x64xbf16>
    %cst_68 = arith.constant dense<0.000000e+00> : vector<8x64xf32>
    %200 = tpu.matmul %198, %199, %cst_68 {dimension_numbers = #tpu.dot_dimension_numbers<[1], [0], [0], [1], [0, 0, 1, 1], [], []>} : vector<8x2048xbf16>, vector<2048x64xbf16>, vector<8x64xf32> -> vector<8x64xf32>
    %c0_69 = arith.constant 0 : index
    %c0_70 = arith.constant 0 : index
    %201 = vector.load %arg11[%c0_69, %c0_70] : memref<1x64xf32, #tpu.memory_space<vmem>>, vector<1x64xf32>
    %202 = vector.broadcast %201 : vector<1x64xf32> to vector<8x64xf32>
    %203 = arith.addf %200, %202 : vector<8x64xf32>
    %204 = arith.addf %189, %203 : vector<8x64xf32>
    %c0_71 = arith.constant 0 : index
    %c0_72 = arith.constant 0 : index
    %205 = vector.load %arg12[%c0_71, %c0_72] : memref<1x64xf32, #tpu.memory_space<vmem>>, vector<1x64xf32>
    %c0_73 = arith.constant 0 : index
    %c0_74 = arith.constant 0 : index
    %206 = vector.load %arg13[%c0_73, %c0_74] : memref<1x64xf32, #tpu.memory_space<vmem>>, vector<1x64xf32>
    %cst_75 = arith.constant dense<0.000000e+00> : vector<8xf32>
    %207 = vector.multi_reduction <add>, %204, %cst_75 [1] : vector<8x64xf32> to vector<8xf32>
    %208 = vector.shape_cast %207 : vector<8xf32> to vector<8x1xf32>
    %cst_76 = arith.constant 6.400000e+01 : f32
    %209 = vector.broadcast %cst_76 : f32 to vector<8x1xf32>
    %210 = arith.divf %208, %209 : vector<8x1xf32>
    %211 = vector.broadcast %210 : vector<8x1xf32> to vector<8x64xf32>
    %212 = arith.subf %204, %211 : vector<8x64xf32>
    %213 = vector.broadcast %210 : vector<8x1xf32> to vector<8x64xf32>
    %214 = arith.subf %204, %213 : vector<8x64xf32>
    %215 = arith.mulf %212, %214 : vector<8x64xf32>
    %cst_77 = arith.constant dense<0.000000e+00> : vector<8xf32>
    %216 = vector.multi_reduction <add>, %215, %cst_77 [1] : vector<8x64xf32> to vector<8xf32>
    %217 = vector.shape_cast %216 : vector<8xf32> to vector<8x1xf32>
    %cst_78 = arith.constant 6.400000e+01 : f32
    %218 = vector.broadcast %cst_78 : f32 to vector<8x1xf32>
    %219 = arith.divf %217, %218 : vector<8x1xf32>
    %220 = vector.broadcast %210 : vector<8x1xf32> to vector<8x64xf32>
    %221 = arith.subf %204, %220 : vector<8x64xf32>
    %cst_79 = arith.constant 9.99999974E-6 : f32
    %222 = vector.broadcast %cst_79 : f32 to vector<8x1xf32>
    %223 = arith.addf %219, %222 : vector<8x1xf32>
    %224 = math.rsqrt %223 : vector<8x1xf32>
    %225 = vector.broadcast %224 : vector<8x1xf32> to vector<8x64xf32>
    %226 = arith.mulf %221, %225 : vector<8x64xf32>
    %227 = vector.broadcast %205 : vector<1x64xf32> to vector<8x64xf32>
    %228 = arith.mulf %226, %227 : vector<8x64xf32>
    %229 = vector.broadcast %206 : vector<1x64xf32> to vector<8x64xf32>
    %230 = arith.addf %228, %229 : vector<8x64xf32>
    %c0_80 = arith.constant 0 : index
    %c0_81 = arith.constant 0 : index
    %c0_82 = arith.constant 0 : index
    %231 = vector.load %arg14[%c0_80, %c0_81, %c0_82] : memref<1x8x64xf32, #tpu.memory_space<vmem>>, vector<1x8x64xf32>
    %232 = vector.shape_cast %231 : vector<1x8x64xf32> to vector<8x64xf32>
    %233 = vector.shape_cast %230 : vector<8x64xf32> to vector<1x8x64xf32>
    tpu.vector_store %arg14[%c0_80, %c0_81, %c0_82], %233 {strides = array<i32>} : memref<1x8x64xf32, #tpu.memory_space<vmem>>, vector<1x8x64xf32>,
    return
  }
  func.func @transform_0(%arg0: i32) -> (i32, i32, i32) {
    %c0_i32 = arith.constant 0 : i32
    %c0_i32_0 = arith.constant 0 : i32
    %c0_i32_1 = arith.constant 0 : i32
    return %arg0, %c0_i32, %c0_i32_0 : i32, i32, i32
  }
  func.func @transform_1(%arg0: i32) -> (i32, i32) {
    %c0_i32 = arith.constant 0 : i32
    %c0_i32_0 = arith.constant 0 : i32
    %c0_i32_1 = arith.constant 0 : i32
    return %c0_i32, %c0_i32_0 : i32, i32
  }
  func.func @transform_2(%arg0: i32) -> (i32, i32) {
    %c0_i32 = arith.constant 0 : i32
    %c0_i32_0 = arith.constant 0 : i32
    %c0_i32_1 = arith.constant 0 : i32
    return %c0_i32, %c0_i32_0 : i32, i32
  }
  func.func @transform_3(%arg0: i32) -> (i32, i32) {
    %c0_i32 = arith.constant 0 : i32
    %c0_i32_0 = arith.constant 0 : i32
    %c0_i32_1 = arith.constant 0 : i32
    return %c0_i32, %c0_i32_0 : i32, i32
  }
  func.func @transform_4(%arg0: i32) -> (i32, i32) {
    %c0_i32 = arith.constant 0 : i32
    %c0_i32_0 = arith.constant 0 : i32
    %c0_i32_1 = arith.constant 0 : i32
    return %c0_i32, %c0_i32_0 : i32, i32
  }
  func.func @transform_5(%arg0: i32) -> (i32, i32) {
    %c0_i32 = arith.constant 0 : i32
    %c0_i32_0 = arith.constant 0 : i32
    %c0_i32_1 = arith.constant 0 : i32
    return %c0_i32, %c0_i32_0 : i32, i32
  }
  func.func @transform_6(%arg0: i32) -> (i32, i32) {
    %c0_i32 = arith.constant 0 : i32
    %c0_i32_0 = arith.constant 0 : i32
    %c0_i32_1 = arith.constant 0 : i32
    return %c0_i32, %c0_i32_0 : i32, i32
  }
  func.func @transform_7(%arg0: i32) -> (i32, i32) {
    %c0_i32 = arith.constant 0 : i32
    %c0_i32_0 = arith.constant 0 : i32
    %c0_i32_1 = arith.constant 0 : i32
    return %c0_i32, %c0_i32_0 : i32, i32
  }
  func.func @transform_8(%arg0: i32) -> (i32, i32) {
    %c0_i32 = arith.constant 0 : i32
    %c0_i32_0 = arith.constant 0 : i32
    %c0_i32_1 = arith.constant 0 : i32
    return %c0_i32, %c0_i32_0 : i32, i32
  }
  func.func @transform_9(%arg0: i32) -> (i32, i32) {
    %c0_i32 = arith.constant 0 : i32
    %c0_i32_0 = arith.constant 0 : i32
    %c0_i32_1 = arith.constant 0 : i32
    return %c0_i32, %c0_i32_0 : i32, i32
  }
  func.func @transform_10(%arg0: i32) -> (i32, i32) {
    %c0_i32 = arith.constant 0 : i32
    %c0_i32_0 = arith.constant 0 : i32
    %c0_i32_1 = arith.constant 0 : i32
    return %c0_i32, %c0_i32_0 : i32, i32
  }
  func.func @transform_11(%arg0: i32) -> (i32, i32) {
    %c0_i32 = arith.constant 0 : i32
    %c0_i32_0 = arith.constant 0 : i32
    %c0_i32_1 = arith.constant 0 : i32
    return %c0_i32, %c0_i32_0 : i32, i32
  }
  func.func @transform_12(%arg0: i32) -> (i32, i32) {
    %c0_i32 = arith.constant 0 : i32
    %c0_i32_0 = arith.constant 0 : i32
    %c0_i32_1 = arith.constant 0 : i32
    return %c0_i32, %c0_i32_0 : i32, i32
  }
  func.func @transform_13(%arg0: i32) -> (i32, i32, i32) {
    %c0_i32 = arith.constant 0 : i32
    %c0_i32_0 = arith.constant 0 : i32
    %c0_i32_1 = arith.constant 0 : i32
    return %arg0, %c0_i32, %c0_i32_0 : i32, i32, i32
  }
}

</mosaic_0001>

<llo_original>
// kernel: multimodal_interaction.3
$region0: #{multimodal_interaction.3}
  #allocation0 [shape = 'u32[]', space=smem, size = 0x4, offset = 0x4, fixed_abs, tag = 'smem constant byte address 0x4 - core index']
  #allocation1 [shape = 'u32[72,128]{1,0:T(1,128)}', space=vmem, size = 0x9000, scoped, tag = 'internal scratch']
  %s0 = inlined_call_operand.hbm [shape: f32[2,8,64], index: 0, kind: input, shape index: {}]
  %s1 = inlined_call_operand.hbm [shape: f32[2,16,64], index: 1, kind: input, shape index: {}]
  %s2 = inlined_call_operand.hbm [shape: bf16[64,64], index: 2, kind: input, shape index: {}]
  %s3 = inlined_call_operand.vmem [shape: f32[1,64], index: 3, kind: input, shape index: {}]
  %s4 = inlined_call_operand.hbm [shape: bf16[64,128], index: 4, kind: input, shape index: {}]
  %s5 = inlined_call_operand.vmem [shape: f32[1,128], index: 5, kind: input, shape index: {}]
  %s6 = inlined_call_operand.hbm [shape: bf16[64,64], index: 6, kind: input, shape index: {}]
  %s7 = inlined_call_operand.vmem [shape: f32[1,64], index: 7, kind: input, shape index: {}]
  %s8 = inlined_call_operand.vmem [shape: f32[2,8,64], index: 8, kind: output, shape index: {}]
  %s9 = sld [smem:[#allocation0]]
  $region85: #{multimodal_interaction.3} parent=0
    _
  %s11 = ssub.s32 1, %s9
  %s12 = scalar_select 0, %s11, %s9
  $region1: #{multimodal_interaction.3} parent=0
    #allocation2 [shape = 'u8[8192]{0}', space=vmem, size = 0x2000, scoped, tag = 'input window, operand 0']
    #allocation3 [shape = 's32[2]{0}', space=sflag, size = 0x8, scoped, tag = 'scoped memory for multimodal_interaction.3']
    #allocation4 [shape = 'u8[16384]{0}', space=vmem, size = 0x4000, scoped, tag = 'input window, operand 1']
    #allocation5 [shape = 's32[2]{0}', space=sflag, size = 0x8, scoped, tag = 'scoped memory for multimodal_interaction.3']
    #allocation6 [shape = 'u8[16384]{0}', space=vmem, size = 0x4000, scoped, tag = 'input window, operand 2, single buffered']
    #allocation7 [shape = 'u8[16384]{0}', space=vmem, size = 0x4000, scoped, tag = 'input window, operand 4, single buffered']
    #allocation8 [shape = 's32[1]{0}', space=sflag, size = 0x4, scoped, tag = 'scoped memory for multimodal_interaction.3']
    #allocation9 [shape = 'u8[16384]{0}', space=vmem, size = 0x4000, scoped, tag = 'input window, operand 6, single buffered']
    %13 = vsyncpa [#allocation3], 0
    %s14 = scalar_lea.sflag [#allocation3], 1
    %15 = vsyncpa %s14, 0
    %16 = vsyncpa [#allocation5], 0
    %s17 = scalar_lea.sflag [#allocation5], 1
    %18 = vsyncpa %s17, 0
    %19 = vsyncpa [#allocation8], 0
    loop: start=0, step=1, limit=4
    $region2: #{multimodal_interaction.3} parent=1 // loop_pre_header
      _
    $region3: #{multimodal_interaction.3} parent=1 // loop_header
      %s21 = sphi 0, %s25
      %p22 = scmp.ge.s32.totalorder %s21, 4
      %s31 = sphi 0, %s33
      %s34 = sphi 0, %s31
      %s35 = sphi 0, %s34
      %s51 = sphi 0, %s35
      %s57 = sphi 0, %s59
      %s60 = sphi 0, %s57
      %s61 = sphi 0, %s60
      %s77 = sphi 0, %s61
      %s81 = sphi 0, %s81
      %s83 = sphi 0, %s81
      %s84 = sphi 0, %s83
      %s98 = sphi 0, %s84
      %s102 = sphi 0, %s102
      %s104 = sphi 0, %s102
      %s105 = sphi 0, %s104
      %s119 = sphi 0, %s105
      %s123 = sphi 0, %s123
      %s125 = sphi 0, %s123
      %s126 = sphi 0, %s125
      %s140 = sphi 0, %s126
      %s144 = sphi 0, %s144
      %s146 = sphi 0, %s144
      %s147 = sphi 0, %s146
      %s161 = sphi 0, %s147
      %s165 = sphi 0, %s165
      %s167 = sphi 0, %s165
      %s168 = sphi 0, %s167
      %s182 = sphi 0, %s168
      %s186 = sphi 0, %s186
      %s188 = sphi 0, %s186
      %s189 = sphi 0, %s188
      %s203 = sphi 0, %s189
      %s209 = sphi 0, %s211
      %s212 = sphi 0, %s209
      %s213 = sphi 0, %s212
      %s229 = sphi 0, %s213
    $region4: #{multimodal_interaction.3} parent=1 // loop_header_branch
      %24 = sbr.rel (%p22) target = $region8
    $region5: #{multimodal_interaction.3} parent=1 // loop_body
      %s26 = ssub.s32 %s21, 1
      %s27 = ssub.s32 %s21, 2
      %s28 = sadd.s32 %s21, 1
      %s29 = ssub.s32 %s21, %s28
      %p30 = scmp.eq.s32.totalorder %s29, 0
      %s32 = sadd.s32 %s31, 1
      %s33 = scalar_select %p30, %s31, %s32
      %p36 = pneg %p30
      %p37 = scmp.eq.s32.totalorder %s21, 1
      %p38 = por %p36, %p37
      %p39 = scmp.ne.s32.totalorder %s31, %s34
      %p40 = scmp.eq.s32.totalorder %s21, 0
      %p41 = por %p39, %p40
      %p42 = scmp.ne.s32.totalorder %s31, %s34
      %p43 = scmp.eq.s32.totalorder %s26, 1
      %p44 = por %p42, %p43
      %p45 = scmp.ne.s32.totalorder %s34, %s35
      %p46 = scmp.eq.s32.totalorder %s26, 0
      %p47 = por %p45, %p46
      %p48 = scmp.ne.s32.totalorder %s34, %s35
      %p49 = scmp.eq.s32.totalorder %s27, 1
      %p50 = por %p48, %p49
      %p52 = scmp.ne.s32.totalorder %s35, %s51
      %p53 = scmp.eq.s32.totalorder %s27, 0
      %p54 = por %p52, %p53
      %s55 = ssub.s32 %s21, %s28
      %p56 = scmp.eq.s32.totalorder %s55, 0
      %s58 = sadd.s32 %s57, 1
      %s59 = scalar_select %p56, %s57, %s58
      %p62 = pneg %p56
      %p63 = scmp.eq.s32.totalorder %s21, 1
      %p64 = por %p62, %p63
      %p65 = scmp.ne.s32.totalorder %s57, %s60
      %p66 = scmp.eq.s32.totalorder %s21, 0
      %p67 = por %p65, %p66
      %p68 = scmp.ne.s32.totalorder %s57, %s60
      %p69 = scmp.eq.s32.totalorder %s26, 1
      %p70 = por %p68, %p69
      %p71 = scmp.ne.s32.totalorder %s60, %s61
      %p72 = scmp.eq.s32.totalorder %s26, 0
      %p73 = por %p71, %p72
      %p74 = scmp.ne.s32.totalorder %s60, %s61
      %p75 = scmp.eq.s32.totalorder %s27, 1
      %p76 = por %p74, %p75
      %p78 = scmp.ne.s32.totalorder %s61, %s77
      %p79 = scmp.eq.s32.totalorder %s27, 0
      %p80 = por %p78, %p79
      %s82 = sadd.s32 %s81, 1
      %p85 = scmp.eq.s32.totalorder %s21, 1
      %p86 = scmp.ne.s32.totalorder %s81, %s83
      %p87 = scmp.eq.s32.totalorder %s21, 0
      %p88 = por %p86, %p87
      %p89 = scmp.ne.s32.totalorder %s81, %s83
      %p90 = scmp.eq.s32.totalorder %s26, 1
      %p91 = por %p89, %p90
      %p92 = scmp.ne.s32.totalorder %s83, %s84
      %p93 = scmp.eq.s32.totalorder %s26, 0
      %p94 = por %p92, %p93
      %p95 = scmp.ne.s32.totalorder %s83, %s84
      %p96 = scmp.eq.s32.totalorder %s27, 1
      %p97 = por %p95, %p96
      %p99 = scmp.ne.s32.totalorder %s84, %s98
      %p100 = scmp.eq.s32.totalorder %s27, 0
      %p101 = por %p99, %p100
      %s103 = sadd.s32 %s102, 1
      %p106 = scmp.eq.s32.totalorder %s21, 1
      %p107 = scmp.ne.s32.totalorder %s102, %s104
      %p108 = scmp.eq.s32.totalorder %s21, 0
      %p109 = por %p107, %p108
      %p110 = scmp.ne.s32.totalorder %s102, %s104
      %p111 = scmp.eq.s32.totalorder %s26, 1
      %p112 = por %p110, %p111
      %p113 = scmp.ne.s32.totalorder %s104, %s105
      %p114 = scmp.eq.s32.totalorder %s26, 0
      %p115 = por %p113, %p114
      %p116 = scmp.ne.s32.totalorder %s104, %s105
      %p117 = scmp.eq.s32.totalorder %s27, 1
      %p118 = por %p116, %p117
      %p120 = scmp.ne.s32.totalorder %s105, %s119
      %p121 = scmp.eq.s32.totalorder %s27, 0
      %p122 = por %p120, %p121
      %s124 = sadd.s32 %s123, 1
      %p127 = scmp.eq.s32.totalorder %s21, 1
      %p128 = scmp.ne.s32.totalorder %s123, %s125
      %p129 = scmp.eq.s32.totalorder %s21, 0
      %p130 = por %p128, %p129
      %p131 = scmp.ne.s32.totalorder %s123, %s125
      %p132 = scmp.eq.s32.totalorder %s26, 1
      %p133 = por %p131, %p132
      %p134 = scmp.ne.s32.totalorder %s125, %s126
      %p135 = scmp.eq.s32.totalorder %s26, 0
      %p136 = por %p134, %p135
      %p137 = scmp.ne.s32.totalorder %s125, %s126
      %p138 = scmp.eq.s32.totalorder %s27, 1
      %p139 = por %p137, %p138
      %p141 = scmp.ne.s32.totalorder %s126, %s140
      %p142 = scmp.eq.s32.totalorder %s27, 0
      %p143 = por %p141, %p142
      %s145 = sadd.s32 %s144, 1
      %p148 = scmp.eq.s32.totalorder %s21, 1
      %p149 = scmp.ne.s32.totalorder %s144, %s146
      %p150 = scmp.eq.s32.totalorder %s21, 0
      %p151 = por %p149, %p150
      %p152 = scmp.ne.s32.totalorder %s144, %s146
      %p153 = scmp.eq.s32.totalorder %s26, 1
      %p154 = por %p152, %p153
      %p155 = scmp.ne.s32.totalorder %s146, %s147
      %p156 = scmp.eq.s32.totalorder %s26, 0
      %p157 = por %p155, %p156
      %p158 = scmp.ne.s32.totalorder %s146, %s147
      %p159 = scmp.eq.s32.totalorder %s27, 1
      %p160 = por %p158, %p159
      %p162 = scmp.ne.s32.totalorder %s147, %s161
      %p163 = scmp.eq.s32.totalorder %s27, 0
      %p164 = por %p162, %p163
      %s166 = sadd.s32 %s165, 1
      %p169 = scmp.eq.s32.totalorder %s21, 1
      %p170 = scmp.ne.s32.totalorder %s165, %s167
      %p171 = scmp.eq.s32.totalorder %s21, 0
      %p172 = por %p170, %p171
      %p173 = scmp.ne.s32.totalorder %s165, %s167
      %p174 = scmp.eq.s32.totalorder %s26, 1
      %p175 = por %p173, %p174
      %p176 = scmp.ne.s32.totalorder %s167, %s168
      %p177 = scmp.eq.s32.totalorder %s26, 0
      %p178 = por %p176, %p177
      %p179 = scmp.ne.s32.totalorder %s167, %s168
      %p180 = scmp.eq.s32.totalorder %s27, 1
      %p181 = por %p179, %p180
      %p183 = scmp.ne.s32.totalorder %s168, %s182
      %p184 = scmp.eq.s32.totalorder %s27, 0
      %p185 = por %p183, %p184
      %s187 = sadd.s32 %s186, 1
      %p190 = scmp.eq.s32.totalorder %s21, 1
      %p191 = scmp.ne.s32.totalorder %s186, %s188
      %p192 = scmp.eq.s32.totalorder %s21, 0
      %p193 = por %p191, %p192
      %p194 = scmp.ne.s32.totalorder %s186, %s188
      %p195 = scmp.eq.s32.totalorder %s26, 1
      %p196 = por %p194, %p195
      %p197 = scmp.ne.s32.totalorder %s188, %s189
      %p198 = scmp.eq.s32.totalorder %s26, 0
      %p199 = por %p197, %p198
      %p200 = scmp.ne.s32.totalorder %s188, %s189
      %p201 = scmp.eq.s32.totalorder %s27, 1
      %p202 = por %p200, %p201
      %p204 = scmp.ne.s32.totalorder %s189, %s203
      %p205 = scmp.eq.s32.totalorder %s27, 0
      %p206 = por %p204, %p205
      %s207 = ssub.s32 %s21, %s28
      %p208 = scmp.eq.s32.totalorder %s207, 0
      %s210 = sadd.s32 %s209, 1
      %s211 = scalar_select %p208, %s209, %s210
      %p214 = pneg %p208
      %p215 = scmp.eq.s32.totalorder %s21, 1
      %p216 = por %p214, %p215
      %p217 = scmp.ne.s32.totalorder %s209, %s212
      %p218 = scmp.eq.s32.totalorder %s21, 0
      %p219 = por %p217, %p218
      %p220 = scmp.ne.s32.totalorder %s209, %s212
      %p221 = scmp.eq.s32.totalorder %s26, 1
      %p222 = por %p220, %p221
      %p223 = scmp.ne.s32.totalorder %s212, %s213
      %p224 = scmp.eq.s32.totalorder %s26, 0
      %p225 = por %p223, %p224
      %p226 = scmp.ne.s32.totalorder %s212, %s213
      %p227 = scmp.eq.s32.totalorder %s27, 1
      %p228 = por %p226, %p227
      %p230 = scmp.ne.s32.totalorder %s213, %s229
      %p231 = scmp.eq.s32.totalorder %s27, 0
      %p232 = por %p230, %p231
      %p233 = scmp.le.s32.totalorder 1, %s21
      %p234 = scmp.lt.s32.totalorder %s21, 3
      %p235 = pnand %p233, %p234
      %p236 = pneg %p235
      // Predicated region
      $region9: #{multimodal_interaction.3} parent=5 // pred_check
        _
      $region10: #{multimodal_interaction.3} parent=5 // pred_check_branch
        %238 = sbr.rel (%p235) target = $region12
      $region11: #{multimodal_interaction.3} parent=5 // pred_region
        %s239 = ssub.s32 %s21, 1
        // Predicated region
        $region13: #{multimodal_interaction.3} parent=11 // pred_check
          %p240 = pneg %p94
        $region14: #{multimodal_interaction.3} parent=11 // pred_check_branch
          %242 = sbr.rel (%p240) target = $region16
        $region15: #{multimodal_interaction.3} parent=11 // pred_region
          %244 = vsyncadd [#allocation5], 0
          %s245 = sshll.u32 %s2, 4
          %s246 = int_to_ptr.hbm [resolvable:$true] %s245
          %s247 = sshll.u32 [#allocation6], 4
          %s248 = int_to_ptr.vmem [resolvable:$true] %s247
          %253 = dma.hbm_to_vmem [thread:$0]  %s246, 512, %s248, [#allocation5], 64, 64, 4
        $region16: #{multimodal_interaction.3} parent=11 // pred_fallthru
          _
        // Predicated region
        $region17: #{multimodal_interaction.3} parent=11 // pred_check
          %p254 = pneg %p115
        $region18: #{multimodal_interaction.3} parent=11 // pred_check_branch
          %256 = sbr.rel (%p254) target = $region20
        $region19: #{multimodal_interaction.3} parent=11 // pred_region
          _
        $region20: #{multimodal_interaction.3} parent=11 // pred_fallthru
          _
        // Predicated region
        $region21: #{multimodal_interaction.3} parent=11 // pred_check
          %p257 = pneg %p136
        $region22: #{multimodal_interaction.3} parent=11 // pred_check_branch
          %259 = sbr.rel (%p257) target = $region24
        $region23: #{multimodal_interaction.3} parent=11 // pred_region
          %261 = vsyncadd [#allocation8], 0
          %s262 = sshll.u32 %s4, 4
          %s263 = int_to_ptr.hbm [resolvable:$true] %s262
          %s264 = sshll.u32 [#allocation7], 4
          %s265 = int_to_ptr.vmem [resolvable:$true] %s264
          %270 = dma.hbm_to_vmem [thread:$0]  %s263, 512, %s265, [#allocation8], 64, 64, 4
        $region24: #{multimodal_interaction.3} parent=11 // pred_fallthru
          _
        // Predicated region
        $region25: #{multimodal_interaction.3} parent=11 // pred_check
          %p271 = pneg %p157
        $region26: #{multimodal_interaction.3} parent=11 // pred_check_branch
          %273 = sbr.rel (%p271) target = $region28
        $region27: #{multimodal_interaction.3} parent=11 // pred_region
          _
        $region28: #{multimodal_interaction.3} parent=11 // pred_fallthru
          _
        // Predicated region
        $region29: #{multimodal_interaction.3} parent=11 // pred_check
          %p274 = pneg %p178
        $region30: #{multimodal_interaction.3} parent=11 // pred_check_branch
          %276 = sbr.rel (%p274) target = $region32
        $region31: #{multimodal_interaction.3} parent=11 // pred_region
          %278 = vsyncadd [#allocation8], 0
          %s279 = sshll.u32 %s6, 4
          %s280 = int_to_ptr.hbm [resolvable:$true] %s279
          %s281 = sshll.u32 [#allocation9], 4
          %s282 = int_to_ptr.vmem [resolvable:$true] %s281
          %287 = dma.hbm_to_vmem [thread:$0]  %s280, 512, %s282, [#allocation8], 64, 64, 4
        $region32: #{multimodal_interaction.3} parent=11 // pred_fallthru
          _
        // Predicated region
        $region33: #{multimodal_interaction.3} parent=11 // pred_check
          %p288 = pneg %p199
        $region34: #{multimodal_interaction.3} parent=11 // pred_check_branch
          %290 = sbr.rel (%p288) target = $region36
        $region35: #{multimodal_interaction.3} parent=11 // pred_region
          _
        $region36: #{multimodal_interaction.3} parent=11 // pred_fallthru
          _
      $region12: #{multimodal_interaction.3} parent=5 // pred_fallthru
        _
      %p291 = scmp.lt.s32.totalorder %s21, 2
      // Predicated region
      $region37: #{multimodal_interaction.3} parent=5 // pred_check
        %p292 = pneg %p291
      $region38: #{multimodal_interaction.3} parent=5 // pred_check_branch
        %294 = sbr.rel (%p292) target = $region40
      $region39: #{multimodal_interaction.3} parent=5 // pred_region
        // Predicated region
        $region41: #{multimodal_interaction.3} parent=39 // pred_check
          %p295 = pneg %p41
        $region42: #{multimodal_interaction.3} parent=39 // pred_check_branch
          %297 = sbr.rel (%p295) target = $region44
        $region43: #{multimodal_interaction.3} parent=39 // pred_region
          %s298 = sand.u32 %s31, 1
          %s299 = scalar_lea.sflag [#allocation3], %s298
          %s300 = sand.u32 %s31, 1
          %s301 = smul.addr %s300, 8
          %s302 = scalar_lea.vmem [#allocation2], %s301
          %304 = vsyncadd %s299, 0
          %s305 = smul.addr %s21, 8
          %s306 = scalar_lea.hbm %s0, %s305
          %s308 = sshll.u32 %s306, 4
          %s309 = int_to_ptr.hbm [resolvable:$true] %s308
          %s310 = sshll.u32 %s302, 4
          %s311 = int_to_ptr.vmem [resolvable:$true] %s310
          %313 = dma.hbm_to_vmem [thread:$0]  %s309, 128, %s311, %s299
        $region44: #{multimodal_interaction.3} parent=39 // pred_fallthru
          _
        // Predicated region
        $region45: #{multimodal_interaction.3} parent=39 // pred_check
          %p314 = pneg %p67
        $region46: #{multimodal_interaction.3} parent=39 // pred_check_branch
          %316 = sbr.rel (%p314) target = $region48
        $region47: #{multimodal_interaction.3} parent=39 // pred_region
          %s317 = sand.u32 %s21, 1
          %s318 = scalar_lea.sflag [#allocation5], %s317
          %s319 = sand.u32 %s57, 1
          %s320 = smul.addr %s319, 16
          %s321 = scalar_lea.vmem [#allocation4], %s320
          %323 = vsyncadd %s318, 0
          %s324 = smul.addr %s21, 2
          %s325 = smul.addr %s324, 8
          %s326 = scalar_lea.hbm %s1, %s325
          %s327 = sshll.u32 %s326, 4
          %s328 = int_to_ptr.hbm [resolvable:$true] %s327
          %s329 = sshll.u32 %s321, 4
          %s330 = int_to_ptr.vmem [resolvable:$true] %s329
          %335 = dma.hbm_to_vmem [thread:$0]  %s328, 256, %s330, %s318, 128, 128, 8
        $region48: #{multimodal_interaction.3} parent=39 // pred_fallthru
          _
      $region40: #{multimodal_interaction.3} parent=5 // pred_fallthru
        _
      %p336 = scmp.le.s32.totalorder 1, %s21
      %p337 = scmp.lt.s32.totalorder %s21, 3
      %p338 = pnand %p336, %p337
      %p339 = pneg %p338
      // Predicated region
      $region49: #{multimodal_interaction.3} parent=5 // pred_check
        _
      $region50: #{multimodal_interaction.3} parent=5 // pred_check_branch
        %341 = sbr.rel (%p338) target = $region52
      $region51: #{multimodal_interaction.3} parent=5 // pred_region
        %s342 = ssub.s32 %s21, 1
        %s343 = sand.u32 %s34, 1
        %s344 = scalar_lea.sflag [#allocation3], %s343
        %s345 = sand.u32 %s34, 1
        %s346 = smul.addr %s345, 8
        %s347 = scalar_lea.vmem [#allocation2], %s346
        // Predicated region
        $region53: #{multimodal_interaction.3} parent=51 // pred_check
          %p348 = pneg %p47
        $region54: #{multimodal_interaction.3} parent=51 // pred_check_branch
          %350 = sbr.rel (%p348) target = $region56
        $region55: #{multimodal_interaction.3} parent=51 // pred_region
          %352 = dma.done %s344, 128
        $region56: #{multimodal_interaction.3} parent=51 // pred_fallthru
          _
        %s353 = sand.u32 %s26, 1
        %s354 = scalar_lea.sflag [#allocation5], %s353
        %s355 = sand.u32 %s60, 1
        %s356 = smul.addr %s355, 16
        %s357 = scalar_lea.vmem [#allocation4], %s356
        // Predicated region
        $region57: #{multimodal_interaction.3} parent=51 // pred_check
          %p358 = pneg %p73
        $region58: #{multimodal_interaction.3} parent=51 // pred_check_branch
          %360 = sbr.rel (%p358) target = $region60
        $region59: #{multimodal_interaction.3} parent=51 // pred_region
          %362 = dma.done %s354, 256
        $region60: #{multimodal_interaction.3} parent=51 // pred_fallthru
          _
        // Predicated region
        $region61: #{multimodal_interaction.3} parent=51 // pred_check
          %p363 = pneg %p94
        $region62: #{multimodal_interaction.3} parent=51 // pred_check_branch
          %365 = sbr.rel (%p363) target = $region64
        $region63: #{multimodal_interaction.3} parent=51 // pred_region
          %367 = dma.done [#allocation5], 512
        $region64: #{multimodal_interaction.3} parent=51 // pred_fallthru
          _
        // Predicated region
        $region65: #{multimodal_interaction.3} parent=51 // pred_check
          %p368 = pneg %p136
        $region66: #{multimodal_interaction.3} parent=51 // pred_check_branch
          %370 = sbr.rel (%p368) target = $region68
        $region67: #{multimodal_interaction.3} parent=51 // pred_region
          %372 = dma.done [#allocation8], 512
        $region68: #{multimodal_interaction.3} parent=51 // pred_fallthru
          _
        // Predicated region
        $region69: #{multimodal_interaction.3} parent=51 // pred_check
          %p373 = pneg %p178
        $region70: #{multimodal_interaction.3} parent=51 // pred_check_branch
          %375 = sbr.rel (%p373) target = $region72
        $region71: #{multimodal_interaction.3} parent=51 // pred_region
          %377 = dma.done [#allocation8], 512
        $region72: #{multimodal_interaction.3} parent=51 // pred_fallthru
          _
        %s378 = sand.u32 %s34, 1
        %s379 = scalar_lea.sflag [#allocation3], %s378
        %s380 = sand.u32 %s34, 1
        %s381 = smul.addr %s380, 8
        %s382 = scalar_lea.vmem [#allocation2], %s381
        %p383 = pneg %p47
        %p384 = pneg %p44
        %s385 = sand.u32 %s26, 1
        %s386 = scalar_lea.sflag [#allocation5], %s385
        %s387 = sand.u32 %s60, 1
        %s388 = smul.addr %s387, 16
        %s389 = scalar_lea.vmem [#allocation4], %s388
        %p390 = pneg %p73
        %p391 = pneg %p70
        %p392 = pneg %p94
        %p393 = pneg %p91
        %p394 = pneg %p115
        %p395 = pneg %p112
        %p396 = pneg %p136
        %p397 = pneg %p133
        %p398 = pneg %p157
        %p399 = pneg %p154
        %p400 = pneg %p178
        %p401 = pneg %p175
        %p402 = pneg %p199
        %p403 = pneg %p196
        %p404 = pneg %p225
        %p405 = pneg %p222
        %p406 = scmp.lt.s32.totalorder %s26, 1
        %s407 = scalar_select %p406, %s26, 1
        %s408 = smul.addr %s407, 8
        %s409 = scalar_lea.vmem %s8, %s408
        %p410 = scmp.lt.s32.totalorder %s26, 1
        %s411 = scalar_select %p410, %s26, 1
        %s412 = smul.addr %s411, 8
        %s413 = scalar_lea.vmem %s8, %s412
        %v415 = vld [vmem:[%s347] sm:$0xff]
        %v416 = vld [vmem:[%s357] sm:$0xff]
        %v417 = vld [vmem:[%s357 + $0x8] sm:$0xff]
        %v418 = vpack.c.bf16 %v415, %v415
        %v419 = vld [vmem:[#allocation6] sm:$0xf]
        %v420 = vld [vmem:[#allocation6 + $0x4] sm:$0xf]
        %v421 = vld [vmem:[#allocation6 + $0x8] sm:$0xf]
        %v422 = vld [vmem:[#allocation6 + $0xc] sm:$0xf]
        %v423 = vld [vmem:[#allocation6 + $0x10] sm:$0xf]
        %v424 = vld [vmem:[#allocation6 + $0x14] sm:$0xf]
        %v425 = vld [vmem:[#allocation6 + $0x18] sm:$0xf]
        %v426 = vld [vmem:[#allocation6 + $0x1c] sm:$0xf]
        %v427 = vld [vmem:[%s3] sm:$0x1]
        %v429 = vperm.slane %v427, 0
        %v439 = vunpack.c.l.b16 %v419
        %v440 = vunpack.c.l.b16 %v420
        %v441 = vunpack.c.l.b16 %v421
        %v442 = vunpack.c.l.b16 %v422
        %v443 = vunpack.c.l.b16 %v423
        %v444 = vunpack.c.l.b16 %v424
        %v445 = vunpack.c.l.b16 %v425
        %v446 = vunpack.c.l.b16 %v426
        %v447 = vpack.c.b16 %v440, %v439
        %v448 = vpack.c.b16 %v442, %v441
        %v449 = vpack.c.b16 %v444, %v443
        %v450 = vpack.c.b16 %v446, %v445
        %vm455 = vcmask 523264
        %v457 = vsel %vm455, %v418, 0
        %459 = vmatpush.bf16.msra.mxu0 0
        %460 = vmatpush.bf16.msra.mxu0 0
        %461 = vmatpush.bf16.msra.mxu0 0
        %462 = vmatpush.bf16.msra.mxu0 0
        %463 = vmatpush.bf16.msra.mxu0 %v450
        %464 = vmatpush.bf16.msra.mxu0 %v449
        %465 = vmatpush.bf16.msra.mxu0 %v448
        %466 = vmatpush.bf16.msra.mxu0 %v447
        %467 = vmatmul.bf16.gmra.mxu0 %v457
        %v468 = vpop.f32.mrf.mxu0
        %v469 = vadd.f32 %v429, %v468
        %v470 = vpop.f32.mrf.mxu0
        %471 = vdwg.mxu0
        %v472 = vpack.c.bf16 %v417, %v416
        %v473 = vld [vmem:[#allocation7] sm:$0xf]
        %v474 = vld [vmem:[#allocation7 + $0x4] sm:$0xf]
        %v475 = vld [vmem:[#allocation7 + $0x8] sm:$0xf]
        %v476 = vld [vmem:[#allocation7 + $0xc] sm:$0xf]
        %v477 = vld [vmem:[#allocation7 + $0x10] sm:$0xf]
        %v478 = vld [vmem:[#allocation7 + $0x14] sm:$0xf]
        %v479 = vld [vmem:[#allocation7 + $0x18] sm:$0xf]
        %v480 = vld [vmem:[#allocation7 + $0x1c] sm:$0xf]
        %v481 = vld [vmem:[%s5] sm:$0x1]
        %v483 = vperm.slane %v481, 0
        %v493 = vunpack.c.l.b16 %v473
        %v494 = vunpack.c.l.b16 %v474
        %v495 = vunpack.c.l.b16 %v475
        %v496 = vunpack.c.l.b16 %v476
        %v497 = vunpack.c.l.b16 %v477
        %v498 = vunpack.c.l.b16 %v478
        %v499 = vunpack.c.l.b16 %v479
        %v500 = vunpack.c.l.b16 %v480
        %v501 = vpack.c.b16 %v494, %v493
        %v502 = vpack.c.b16 %v496, %v495
        %v503 = vpack.c.b16 %v498, %v497
        %v504 = vpack.c.b16 %v500, %v499
        %v510 = vsel %vm455, %v472, 0
        %512 = vmatpush.bf16.msra.mxu0 0
        %513 = vmatpush.bf16.msra.mxu0 0
        %514 = vmatpush.bf16.msra.mxu0 0
        %515 = vmatpush.bf16.msra.mxu0 0
        %516 = vmatpush.bf16.msra.mxu0 %v504
        %517 = vmatpush.bf16.msra.mxu0 %v503
        %518 = vmatpush.bf16.msra.mxu0 %v502
        %519 = vmatpush.bf16.msra.mxu0 %v501
        %520 = vmatmul.bf16.gmra.mxu0 %v510
        %v521 = vpop.f32.mrf.mxu0
        %v522 = vadd.f32 %v483, %v521
        %v523 = vpop.f32.mrf.mxu0
        %v524 = vadd.f32 %v483, %v523
        %525 = vdwg.mxu0
        %v526 = vpack.c.bf16 %v469, %v469
        %v527 = vpack.c.bf16 %v522, %v522
        %v528 = vpack.c.bf16 %v524, %v524
        %v531 = vunpack.c.l.b16 %v527
        %v532 = vunpack.c.l.b16 %v528
        %v533 = vpack.c.b16 %v532, %v531
        %vm534 = vcmask 64512
        %v536 = vsel %vm534, %v526, 0
        %v539 = vsel %vm534, %v533, 0
        %541 = vmatpush.bf16.xpose.msra.mxu0 0
        %542 = vmatpush.bf16.xpose.msra.mxu0 0
        %543 = vmatpush.bf16.xpose.msra.mxu0 0
        %544 = vmatpush.bf16.xpose.msra.mxu0 0
        %545 = vmatpush.bf16.xpose.msra.mxu0 0
        %546 = vmatpush.bf16.xpose.msra.mxu0 0
        %547 = vmatpush.bf16.xpose.msra.mxu0 0
        %548 = vmatpush.bf16.xpose.msra.mxu0 %v539
        %549 = vmatmul.bf16.gmra.mxu0 %v536
        %v550 = vpop.f32.mrf.mxu0
        %v551 = vadd.f32 0.0, %v550
        %v552 = vpop.f32.mrf.mxu0
        %553 = vdwg.mxu0
        %v554 = vmul.f32 %v551, 0.35355338
        %vm555 = vcmask 130048
        %v556 = vsel %vm555, %v554, -inf
        %557 = vmax.xlane.f32.xlu0 %v556
        %v558 = vpop.xlane.xlu0 %557
        %v559 = vsub.f32 %v554, %v558
        %v560 = vmul.f32 %v559, 1.442695
        %v561 = vpow.pop %v560
        %v562 = vsel %vm555, %v561, 0.0
        %563 = vadd.xlane.f32.xlu0 %v562
        %v564 = vpop.xlane.xlu0 %563
        %v565 = vrcp.pop %v564
        %v566 = vmul.f32 %v561, %v565
        %v567 = vpack.c.bf16 %v566, %v566
        %568 = vrot.lane.b32.xlu0 %v533, 64
        %v569 = vpop.permute.xlu0 %568
        %v572 = vsel %vm555, %v567, 0
        %574 = vmatpush.bf16.msra.mxu0 0
        %575 = vmatpush.bf16.msra.mxu0 0
        %576 = vmatpush.bf16.msra.mxu0 0
        %577 = vmatpush.bf16.msra.mxu0 0
        %578 = vmatpush.bf16.msra.mxu0 0
        %579 = vmatpush.bf16.msra.mxu0 0
        %580 = vmatpush.bf16.msra.mxu0 0
        %581 = vmatpush.bf16.msra.mxu0 %v569
        %582 = vmatmul.bf16.gmra.mxu0 %v572
        %v583 = vpop.f32.mrf.mxu0
        %v584 = vadd.f32 0.0, %v583
        %v585 = vpop.f32.mrf.mxu0
        %586 = vdwg.mxu0
        %v588 = vunpack.c.l.b16 %v526
        %v589 = vpack.c.b16 %v588, %v588
        %590 = vrot.lane.b32.xlu0 %v589, 120
        %v591 = vpop.permute.xlu0 %590
        %592 = vrot.lane.b32.xlu0 %v533, 120
        %v593 = vpop.permute.xlu0 %592
        %v595 = vsel %vm534, %v591, 0
        %v598 = vsel %vm534, %v593, 0
        %600 = vmatpush.bf16.xpose.msra.mxu0 0
        %601 = vmatpush.bf16.xpose.msra.mxu0 0
        %602 = vmatpush.bf16.xpose.msra.mxu0 0
        %603 = vmatpush.bf16.xpose.msra.mxu0 0
        %604 = vmatpush.bf16.xpose.msra.mxu0 0
        %605 = vmatpush.bf16.xpose.msra.mxu0 0
        %606 = vmatpush.bf16.xpose.msra.mxu0 0
        %607 = vmatpush.bf16.xpose.msra.mxu0 %v598
        %608 = vmatmul.bf16.gmra.mxu0 %v595
        %v609 = vpop.f32.mrf.mxu0
        %v610 = vadd.f32 0.0, %v609
        %v611 = vpop.f32.mrf.mxu0
        %612 = vdwg.mxu0
        %v613 = vmul.f32 %v610, 0.35355338
        %v614 = vsel %vm555, %v613, -inf
        %615 = vmax.xlane.f32.xlu0 %v614
        %v616 = vpop.xlane.xlu0 %615
        %v617 = vsub.f32 %v613, %v616
        %v618 = vmul.f32 %v617, 1.442695
        %v619 = vpow.pop %v618
        %v620 = vsel %vm555, %v619, 0.0
        %621 = vadd.xlane.f32.xlu0 %v620
        %v622 = vpop.xlane.xlu0 %621
        %v623 = vrcp.pop %v622
        %v624 = vmul.f32 %v619, %v623
        %v625 = vpack.c.bf16 %v624, %v624
        %626 = vrot.lane.b32.xlu0 %v533, 56
        %v627 = vpop.permute.xlu0 %626
        %v630 = vsel %vm555, %v625, 0
        %632 = vmatpush.bf16.msra.mxu0 0
        %633 = vmatpush.bf16.msra.mxu0 0
        %634 = vmatpush.bf16.msra.mxu0 0
        %635 = vmatpush.bf16.msra.mxu0 0
        %636 = vmatpush.bf16.msra.mxu0 0
        %637 = vmatpush.bf16.msra.mxu0 0
        %638 = vmatpush.bf16.msra.mxu0 0
        %639 = vmatpush.bf16.msra.mxu0 %v627
        %640 = vmatmul.bf16.gmra.mxu0 %v630
        %v641 = vpop.f32.mrf.mxu0
        %v642 = vadd.f32 0.0, %v641
        %v643 = vpop.f32.mrf.mxu0
        %644 = vdwg.mxu0
        %645 = vrot.lane.b32.xlu0 %v589, 112
        %v646 = vpop.permute.xlu0 %645
        %647 = vrot.lane.b32.xlu0 %v533, 112
        %v648 = vpop.permute.xlu0 %647
        %v650 = vsel %vm534, %v646, 0
        %v653 = vsel %vm534, %v648, 0
        %655 = vmatpush.bf16.xpose.msra.mxu0 0
        %656 = vmatpush.bf16.xpose.msra.mxu0 0
        %657 = vmatpush.bf16.xpose.msra.mxu0 0
        %658 = vmatpush.bf16.xpose.msra.mxu0 0
        %659 = vmatpush.bf16.xpose.msra.mxu0 0
        %660 = vmatpush.bf16.xpose.msra.mxu0 0
        %661 = vmatpush.bf16.xpose.msra.mxu0 0
        %662 = vmatpush.bf16.xpose.msra.mxu0 %v653
        %663 = vmatmul.bf16.gmra.mxu0 %v650
        %v664 = vpop.f32.mrf.mxu0
        %v665 = vadd.f32 0.0, %v664
        %v666 = vpop.f32.mrf.mxu0
        %667 = vdwg.mxu0
        %v668 = vmul.f32 %v665, 0.35355338
        %v669 = vsel %vm555, %v668, -inf
        %670 = vmax.xlane.f32.xlu0 %v669
        %v671 = vpop.xlane.xlu0 %670
        %v672 = vsub.f32 %v668, %v671
        %v673 = vmul.f32 %v672, 1.442695
        %v674 = vpow.pop %v673
        %v675 = vsel %vm555, %v674, 0.0
        %676 = vadd.xlane.f32.xlu0 %v675
        %v677 = vpop.xlane.xlu0 %676
        %v678 = vrcp.pop %v677
        %v679 = vmul.f32 %v674, %v678
        %v680 = vpack.c.bf16 %v679, %v679
        %681 = vrot.lane.b32.xlu0 %v533, 48
        %v682 = vpop.permute.xlu0 %681
        %v685 = vsel %vm555, %v680, 0
        %687 = vmatpush.bf16.msra.mxu0 0
        %688 = vmatpush.bf16.msra.mxu0 0
        %689 = vmatpush.bf16.msra.mxu0 0
        %690 = vmatpush.bf16.msra.mxu0 0
        %691 = vmatpush.bf16.msra.mxu0 0
        %692 = vmatpush.bf16.msra.mxu0 0
        %693 = vmatpush.bf16.msra.mxu0 0
        %694 = vmatpush.bf16.msra.mxu0 %v682
        %695 = vmatmul.bf16.gmra.mxu0 %v685
        %v696 = vpop.f32.mrf.mxu0
        %v697 = vadd.f32 0.0, %v696
        %v698 = vpop.f32.mrf.mxu0
        %699 = vdwg.mxu0
        %700 = vrot.lane.b32.xlu0 %v589, 104
        %v701 = vpop.permute.xlu0 %700
        %702 = vrot.lane.b32.xlu0 %v533, 104
        %v703 = vpop.permute.xlu0 %702
        %v705 = vsel %vm534, %v701, 0
        %v708 = vsel %vm534, %v703, 0
        %710 = vmatpush.bf16.xpose.msra.mxu0 0
        %711 = vmatpush.bf16.xpose.msra.mxu0 0
        %712 = vmatpush.bf16.xpose.msra.mxu0 0
        %713 = vmatpush.bf16.xpose.msra.mxu0 0
        %714 = vmatpush.bf16.xpose.msra.mxu0 0
        %715 = vmatpush.bf16.xpose.msra.mxu0 0
        %716 = vmatpush.bf16.xpose.msra.mxu0 0
        %717 = vmatpush.bf16.xpose.msra.mxu0 %v708
        %718 = vmatmul.bf16.gmra.mxu0 %v705
        %v719 = vpop.f32.mrf.mxu0
        %v720 = vadd.f32 0.0, %v719
        %v721 = vpop.f32.mrf.mxu0
        %722 = vdwg.mxu0
        %v723 = vmul.f32 %v720, 0.35355338
        %v724 = vsel %vm555, %v723, -inf
        %725 = vmax.xlane.f32.xlu0 %v724
        %v726 = vpop.xlane.xlu0 %725
        %v727 = vsub.f32 %v723, %v726
        %v728 = vmul.f32 %v727, 1.442695
        %v729 = vpow.pop %v728
        %v730 = vsel %vm555, %v729, 0.0
        %731 = vadd.xlane.f32.xlu0 %v730
        %v732 = vpop.xlane.xlu0 %731
        %v733 = vrcp.pop %v732
        %v734 = vmul.f32 %v729, %v733
        %v735 = vpack.c.bf16 %v734, %v734
        %736 = vrot.lane.b32.xlu0 %v533, 40
        %v737 = vpop.permute.xlu0 %736
        %v740 = vsel %vm555, %v735, 0
        %742 = vmatpush.bf16.msra.mxu0 0
        %743 = vmatpush.bf16.msra.mxu0 0
        %744 = vmatpush.bf16.msra.mxu0 0
        %745 = vmatpush.bf16.msra.mxu0 0
        %746 = vmatpush.bf16.msra.mxu0 0
        %747 = vmatpush.bf16.msra.mxu0 0
        %748 = vmatpush.bf16.msra.mxu0 0
        %749 = vmatpush.bf16.msra.mxu0 %v737
        %750 = vmatmul.bf16.gmra.mxu0 %v740
        %v751 = vpop.f32.mrf.mxu0
        %v752 = vadd.f32 0.0, %v751
        %v753 = vpop.f32.mrf.mxu0
        %754 = vdwg.mxu0
        %755 = vrot.lane.b32.xlu0 %v589, 96
        %v756 = vpop.permute.xlu0 %755
        %757 = vrot.lane.b32.xlu0 %v533, 96
        %v758 = vpop.permute.xlu0 %757
        %v760 = vsel %vm534, %v756, 0
        %v763 = vsel %vm534, %v758, 0
        %765 = vmatpush.bf16.xpose.msra.mxu0 0
        %766 = vmatpush.bf16.xpose.msra.mxu0 0
        %767 = vmatpush.bf16.xpose.msra.mxu0 0
        %768 = vmatpush.bf16.xpose.msra.mxu0 0
        %769 = vmatpush.bf16.xpose.msra.mxu0 0
        %770 = vmatpush.bf16.xpose.msra.mxu0 0
        %771 = vmatpush.bf16.xpose.msra.mxu0 0
        %772 = vmatpush.bf16.xpose.msra.mxu0 %v763
        %773 = vmatmul.bf16.gmra.mxu0 %v760
        %v774 = vpop.f32.mrf.mxu0
        %v775 = vadd.f32 0.0, %v774
        %v776 = vpop.f32.mrf.mxu0
        %777 = vdwg.mxu0
        %v778 = vmul.f32 %v775, 0.35355338
        %v779 = vsel %vm555, %v778, -inf
        %780 = vmax.xlane.f32.xlu0 %v779
        %v781 = vpop.xlane.xlu0 %780
        %v782 = vsub.f32 %v778, %v781
        %v783 = vmul.f32 %v782, 1.442695
        %v784 = vpow.pop %v783
        %v785 = vsel %vm555, %v784, 0.0
        %786 = vadd.xlane.f32.xlu0 %v785
        %v787 = vpop.xlane.xlu0 %786
        %v788 = vrcp.pop %v787
        %v789 = vmul.f32 %v784, %v788
        %v790 = vpack.c.bf16 %v789, %v789
        %791 = vrot.lane.b32.xlu0 %v533, 32
        %v792 = vpop.permute.xlu0 %791
        %v795 = vsel %vm555, %v790, 0
        %797 = vmatpush.bf16.msra.mxu0 0
        %798 = vmatpush.bf16.msra.mxu0 0
        %799 = vmatpush.bf16.msra.mxu0 0
        %800 = vmatpush.bf16.msra.mxu0 0
        %801 = vmatpush.bf16.msra.mxu0 0
        %802 = vmatpush.bf16.msra.mxu0 0
        %803 = vmatpush.bf16.msra.mxu0 0
        %804 = vmatpush.bf16.msra.mxu0 %v792
        %805 = vmatmul.bf16.gmra.mxu0 %v795
        %v806 = vpop.f32.mrf.mxu0
        %v807 = vadd.f32 0.0, %v806
        %v808 = vpop.f32.mrf.mxu0
        %809 = vdwg.mxu0
        %810 = vrot.lane.b32.xlu0 %v589, 88
        %v811 = vpop.permute.xlu0 %810
        %812 = vrot.lane.b32.xlu0 %v533, 88
        %v813 = vpop.permute.xlu0 %812
        %v815 = vsel %vm534, %v811, 0
        %v818 = vsel %vm534, %v813, 0
        %820 = vmatpush.bf16.xpose.msra.mxu0 0
        %821 = vmatpush.bf16.xpose.msra.mxu0 0
        %822 = vmatpush.bf16.xpose.msra.mxu0 0
        %823 = vmatpush.bf16.xpose.msra.mxu0 0
        %824 = vmatpush.bf16.xpose.msra.mxu0 0
        %825 = vmatpush.bf16.xpose.msra.mxu0 0
        %826 = vmatpush.bf16.xpose.msra.mxu0 0
        %827 = vmatpush.bf16.xpose.msra.mxu0 %v818
        %828 = vmatmul.bf16.gmra.mxu0 %v815
        %v829 = vpop.f32.mrf.mxu0
        %v830 = vadd.f32 0.0, %v829
        %v831 = vpop.f32.mrf.mxu0
        %832 = vdwg.mxu0
        %v833 = vmul.f32 %v830, 0.35355338
        %v834 = vsel %vm555, %v833, -inf
        %835 = vmax.xlane.f32.xlu0 %v834
        %v836 = vpop.xlane.xlu0 %835
        %v837 = vsub.f32 %v833, %v836
        %v838 = vmul.f32 %v837, 1.442695
        %v839 = vpow.pop %v838
        %v840 = vsel %vm555, %v839, 0.0
        %841 = vadd.xlane.f32.xlu0 %v840
        %v842 = vpop.xlane.xlu0 %841
        %v843 = vrcp.pop %v842
        %v844 = vmul.f32 %v839, %v843
        %v845 = vpack.c.bf16 %v844, %v844
        %846 = vrot.lane.b32.xlu0 %v533, 24
        %v847 = vpop.permute.xlu0 %846
        %v850 = vsel %vm555, %v845, 0
        %852 = vmatpush.bf16.msra.mxu0 0
        %853 = vmatpush.bf16.msra.mxu0 0
        %854 = vmatpush.bf16.msra.mxu0 0
        %855 = vmatpush.bf16.msra.mxu0 0
        %856 = vmatpush.bf16.msra.mxu0 0
        %857 = vmatpush.bf16.msra.mxu0 0
        %858 = vmatpush.bf16.msra.mxu0 0
        %859 = vmatpush.bf16.msra.mxu0 %v847
        %860 = vmatmul.bf16.gmra.mxu0 %v850
        %v861 = vpop.f32.mrf.mxu0
        %v862 = vadd.f32 0.0, %v861
        %v863 = vpop.f32.mrf.mxu0
        %864 = vdwg.mxu0
        %865 = vrot.lane.b32.xlu0 %v589, 80
        %v866 = vpop.permute.xlu0 %865
        %867 = vrot.lane.b32.xlu0 %v533, 80
        %v868 = vpop.permute.xlu0 %867
        %v870 = vsel %vm534, %v866, 0
        %v873 = vsel %vm534, %v868, 0
        %875 = vmatpush.bf16.xpose.msra.mxu0 0
        %876 = vmatpush.bf16.xpose.msra.mxu0 0
        %877 = vmatpush.bf16.xpose.msra.mxu0 0
        %878 = vmatpush.bf16.xpose.msra.mxu0 0
        %879 = vmatpush.bf16.xpose.msra.mxu0 0
        %880 = vmatpush.bf16.xpose.msra.mxu0 0
        %881 = vmatpush.bf16.xpose.msra.mxu0 0
        %882 = vmatpush.bf16.xpose.msra.mxu0 %v873
        %883 = vmatmul.bf16.gmra.mxu0 %v870
        %v884 = vpop.f32.mrf.mxu0
        %v885 = vadd.f32 0.0, %v884
        %v886 = vpop.f32.mrf.mxu0
        %887 = vdwg.mxu0
        %v888 = vmul.f32 %v885, 0.35355338
        %v889 = vsel %vm555, %v888, -inf
        %890 = vmax.xlane.f32.xlu0 %v889
        %v891 = vpop.xlane.xlu0 %890
        %v892 = vsub.f32 %v888, %v891
        %v893 = vmul.f32 %v892, 1.442695
        %v894 = vpow.pop %v893
        %v895 = vsel %vm555, %v894, 0.0
        %896 = vadd.xlane.f32.xlu0 %v895
        %v897 = vpop.xlane.xlu0 %896
        %v898 = vrcp.pop %v897
        %v899 = vmul.f32 %v894, %v898
        %v900 = vpack.c.bf16 %v899, %v899
        %901 = vrot.lane.b32.xlu0 %v533, 16
        %v902 = vpop.permute.xlu0 %901
        %v905 = vsel %vm555, %v900, 0
        %907 = vmatpush.bf16.msra.mxu0 0
        %908 = vmatpush.bf16.msra.mxu0 0
        %909 = vmatpush.bf16.msra.mxu0 0
        %910 = vmatpush.bf16.msra.mxu0 0
        %911 = vmatpush.bf16.msra.mxu0 0
        %912 = vmatpush.bf16.msra.mxu0 0
        %913 = vmatpush.bf16.msra.mxu0 0
        %914 = vmatpush.bf16.msra.mxu0 %v902
        %915 = vmatmul.bf16.gmra.mxu0 %v905
        %v916 = vpop.f32.mrf.mxu0
        %v917 = vadd.f32 0.0, %v916
        %v918 = vpop.f32.mrf.mxu0
        %919 = vdwg.mxu0
        %920 = vrot.lane.b32.xlu0 %v589, 72
        %v921 = vpop.permute.xlu0 %920
        %922 = vrot.lane.b32.xlu0 %v533, 72
        %v923 = vpop.permute.xlu0 %922
        %v925 = vsel %vm534, %v921, 0
        %v928 = vsel %vm534, %v923, 0
        %930 = vmatpush.bf16.xpose.msra.mxu0 0
        %931 = vmatpush.bf16.xpose.msra.mxu0 0
        %932 = vmatpush.bf16.xpose.msra.mxu0 0
        %933 = vmatpush.bf16.xpose.msra.mxu0 0
        %934 = vmatpush.bf16.xpose.msra.mxu0 0
        %935 = vmatpush.bf16.xpose.msra.mxu0 0
        %936 = vmatpush.bf16.xpose.msra.mxu0 0
        %937 = vmatpush.bf16.xpose.msra.mxu0 %v928
        %938 = vmatmul.bf16.gmra.mxu0 %v925
        %v939 = vpop.f32.mrf.mxu0
        %v940 = vadd.f32 0.0, %v939
        %v941 = vpop.f32.mrf.mxu0
        %942 = vdwg.mxu0
        %v943 = vmul.f32 %v940, 0.35355338
        %v944 = vsel %vm555, %v943, -inf
        %945 = vmax.xlane.f32.xlu0 %v944
        %v946 = vpop.xlane.xlu0 %945
        %v947 = vsub.f32 %v943, %v946
        %v948 = vmul.f32 %v947, 1.442695
        %v949 = vpow.pop %v948
        %v950 = vsel %vm555, %v949, 0.0
        %951 = vadd.xlane.f32.xlu0 %v950
        %v952 = vpop.xlane.xlu0 %951
        %v953 = vrcp.pop %v952
        %v954 = vmul.f32 %v949, %v953
        %v955 = vpack.c.bf16 %v954, %v954
        %956 = vrot.lane.b32.xlu0 %v533, 8
        %v957 = vpop.permute.xlu0 %956
        %v960 = vsel %vm555, %v955, 0
        %962 = vmatpush.bf16.msra.mxu0 0
        %963 = vmatpush.bf16.msra.mxu0 0
        %964 = vmatpush.bf16.msra.mxu0 0
        %965 = vmatpush.bf16.msra.mxu0 0
        %966 = vmatpush.bf16.msra.mxu0 0
        %967 = vmatpush.bf16.msra.mxu0 0
        %968 = vmatpush.bf16.msra.mxu0 0
        %969 = vmatpush.bf16.msra.mxu0 %v957
        %970 = vmatmul.bf16.gmra.mxu0 %v960
        %v971 = vpop.f32.mrf.mxu0
        %v972 = vadd.f32 0.0, %v971
        %v973 = vpop.f32.mrf.mxu0
        %974 = vdwg.mxu0
        %976 = vrot.lane.b32.xlu0 %v642, 8
        %v977 = vpop.permute.xlu0 %976
        %980 = vrot.lane.b32.xlu0 %v697, 16
        %v981 = vpop.permute.xlu0 %980
        %984 = vrot.lane.b32.xlu0 %v752, 24
        %v985 = vpop.permute.xlu0 %984
        %988 = vrot.lane.b32.xlu0 %v807, 32
        %v989 = vpop.permute.xlu0 %988
        %992 = vrot.lane.b32.xlu0 %v862, 40
        %v993 = vpop.permute.xlu0 %992
        %996 = vrot.lane.b32.xlu0 %v917, 48
        %v997 = vpop.permute.xlu0 %996
        %1000 = vrot.lane.b32.xlu0 %v972, 56
        %v1001 = vpop.permute.xlu0 %1000
        %v1003 = vsel %vm534, %v584, %v977
        %v1004 = vsel %vm555, %v1003, %v981
        %vm1005 = vcmask 195584
        %v1006 = vsel %vm1005, %v1004, %v985
        %vm1007 = vcmask 261120
        %v1008 = vsel %vm1007, %v1006, %v989
        %vm1009 = vcmask 326656
        %v1010 = vsel %vm1009, %v1008, %v993
        %vm1011 = vcmask 392192
        %v1012 = vsel %vm1011, %v1010, %v997
        %vm1013 = vcmask 457728
        %v1014 = vsel %vm1013, %v1012, %v1001
        %v1015 = vpack.c.bf16 %v1014, %v1014
        %v1016 = vld [vmem:[#allocation9] sm:$0xf]
        %v1017 = vld [vmem:[#allocation9 + $0x4] sm:$0xf]
        %v1018 = vld [vmem:[#allocation9 + $0x8] sm:$0xf]
        %v1019 = vld [vmem:[#allocation9 + $0xc] sm:$0xf]
        %v1020 = vld [vmem:[#allocation9 + $0x10] sm:$0xf]
        %v1021 = vld [vmem:[#allocation9 + $0x14] sm:$0xf]
        %v1022 = vld [vmem:[#allocation9 + $0x18] sm:$0xf]
        %v1023 = vld [vmem:[#allocation9 + $0x1c] sm:$0xf]
        %v1024 = vld [vmem:[%s7] sm:$0x1]
        %v1026 = vperm.slane %v1024, 0
        %v1036 = vunpack.c.l.b16 %v1016
        %v1037 = vunpack.c.l.b16 %v1017
        %v1038 = vunpack.c.l.b16 %v1018
        %v1039 = vunpack.c.l.b16 %v1019
        %v1040 = vunpack.c.l.b16 %v1020
        %v1041 = vunpack.c.l.b16 %v1021
        %v1042 = vunpack.c.l.b16 %v1022
        %v1043 = vunpack.c.l.b16 %v1023
        %v1044 = vpack.c.b16 %v1037, %v1036
        %v1045 = vpack.c.b16 %v1039, %v1038
        %v1046 = vpack.c.b16 %v1041, %v1040
        %v1047 = vpack.c.b16 %v1043, %v1042
        %v1053 = vsel %vm455, %v1015, 0
        %1055 = vmatpush.bf16.msra.mxu0 0
        %1056 = vmatpush.bf16.msra.mxu0 0
        %1057 = vmatpush.bf16.msra.mxu0 0
        %1058 = vmatpush.bf16.msra.mxu0 0
        %1059 = vmatpush.bf16.msra.mxu0 %v1047
        %1060 = vmatpush.bf16.msra.mxu0 %v1046
        %1061 = vmatpush.bf16.msra.mxu0 %v1045
        %1062 = vmatpush.bf16.msra.mxu0 %v1044
        %1063 = vmatmul.bf16.gmra.mxu0 %v1053
        %v1064 = vpop.f32.mrf.mxu0
        %v1065 = vadd.f32 %v1026, %v1064
        %v1066 = vpop.f32.mrf.mxu0
        %1067 = vdwg.mxu0
        %1068 = vst.msk [vmem:[%s413] sm:$0xff] %vm455, %v1065
        %p1069 = scmp.lt.s32.totalorder %s26, 1
        %s1070 = scalar_select %p1069, %s26, 1
        %s1071 = smul.addr %s1070, 8
        %s1072 = scalar_lea.vmem %s8, %s1071
        // Predicated region
        $region73: #{multimodal_interaction.3} parent=51 // pred_check
          %p1073 = pneg %p222
        $region74: #{multimodal_interaction.3} parent=51 // pred_check_branch
          %1075 = sbr.rel (%p1073) target = $region76
        $region75: #{multimodal_interaction.3} parent=51 // pred_region
          _
        $region76: #{multimodal_interaction.3} parent=51 // pred_fallthru
          _
      $region52: #{multimodal_interaction.3} parent=5 // pred_fallthru
        _
      %p1076 = scmp.le.s32.totalorder 2, %s21
      // Predicated region
      $region77: #{multimodal_interaction.3} parent=5 // pred_check
        %p1077 = pneg %p1076
      $region78: #{multimodal_interaction.3} parent=5 // pred_check_branch
        %1079 = sbr.rel (%p1077) target = $region80
      $region79: #{multimodal_interaction.3} parent=5 // pred_region
        %s1080 = ssub.s32 %s21, 2
        // Predicated region
        $region81: #{multimodal_interaction.3} parent=79 // pred_check
          %p1081 = pneg %p228
        $region82: #{multimodal_interaction.3} parent=79 // pred_check_branch
          %1083 = sbr.rel (%p1081) target = $region84
        $region83: #{multimodal_interaction.3} parent=79 // pred_region
          %p1084 = scmp.lt.s32.totalorder %s27, 1
          %s1085 = scalar_select %p1084, %s27, 1
          %s1086 = smul.addr %s1085, 8
          %s1087 = scalar_lea.vmem %s8, %s1086
        $region84: #{multimodal_interaction.3} parent=79 // pred_fallthru
          _
      $region80: #{multimodal_interaction.3} parent=5 // pred_fallthru
        _
    $region6: #{multimodal_interaction.3} parent=1 // loop_footer
      %s25 = sadd.s32 1, %s21
    $region7: #{multimodal_interaction.3} parent=1 // loop_footer_branch
      %20 = sbr.rel target = $region3
    $region8: #{multimodal_interaction.3} parent=1 // loop_exit
      _
    %1088 = vsyncpa [#allocation3], 1
    %s1089 = scalar_lea.sflag [#allocation3], 1
    %1090 = vsyncpa %s1089, 1
    %1091 = vsyncpa [#allocation5], 1
    %s1092 = scalar_lea.sflag [#allocation5], 1
    %1093 = vsyncpa %s1092, 1
    %1094 = vsyncpa [#allocation8], 1

// kernel: multimodal_interaction.4
$region0: #{multimodal_interaction.4}
  #allocation0 [shape = 'u32[]', space=smem, size = 0x4, offset = 0x4, fixed_abs, tag = 'smem constant byte address 0x4 - core index']
  #allocation1 [shape = 'u32[72,128]{1,0:T(1,128)}', space=vmem, size = 0x9000, scoped, tag = 'internal scratch']
  %s0 = inlined_call_operand.vmem [shape: f32[2,8,64], index: 0, kind: input, shape index: {}]
  %s1 = inlined_call_operand.vmem [shape: bf16[64,192], index: 1, kind: input, shape index: {}]
  %s2 = inlined_call_operand.vmem [shape: f32[1,192], index: 2, kind: input, shape index: {}]
  %s3 = inlined_call_operand.vmem [shape: bf16[64,64], index: 3, kind: input, shape index: {}]
  %s4 = inlined_call_operand.vmem [shape: f32[1,64], index: 4, kind: input, shape index: {}]
  %s5 = inlined_call_operand.vmem [shape: f32[1,64], index: 5, kind: input, shape index: {}]
  %s6 = inlined_call_operand.vmem [shape: f32[1,64], index: 6, kind: input, shape index: {}]
  %s7 = inlined_call_operand.vmem [shape: bf16[64,2048], index: 7, kind: input, shape index: {}]
  %s8 = inlined_call_operand.vmem [shape: f32[1,2048], index: 8, kind: input, shape index: {}]
  %s9 = inlined_call_operand.vmem [shape: bf16[2048,64], index: 9, kind: input, shape index: {}]
  %s10 = inlined_call_operand.vmem [shape: f32[1,64], index: 10, kind: input, shape index: {}]
  %s11 = inlined_call_operand.vmem [shape: f32[1,64], index: 11, kind: input, shape index: {}]
  %s12 = inlined_call_operand.vmem [shape: f32[1,64], index: 12, kind: input, shape index: {}]
  %s13 = inlined_call_operand.vmem [shape: f32[2,8,64], index: 13, kind: output, shape index: {}]
  %s14 = sld [smem:[#allocation0]]
  $region85: #{multimodal_interaction.4} parent=0
    _
  %s16 = ssub.s32 1, %s14
  %s17 = scalar_select 0, %s16, %s14
  loop: start=0, step=1, limit=4
  $region2: #{multimodal_interaction.4} parent=0 // loop_pre_header
    _
  $region3: #{multimodal_interaction.4} parent=0 // loop_header
    %s19 = sphi 0, %s23
    %p20 = scmp.ge.s32.totalorder %s19, 4
    %s29 = sphi 0, %s31
    %s32 = sphi 0, %s29
    %s33 = sphi 0, %s32
    %s49 = sphi 0, %s33
    %s53 = sphi 0, %s53
    %s55 = sphi 0, %s53
    %s56 = sphi 0, %s55
    %s70 = sphi 0, %s56
    %s74 = sphi 0, %s74
    %s76 = sphi 0, %s74
    %s77 = sphi 0, %s76
    %s91 = sphi 0, %s77
    %s95 = sphi 0, %s95
    %s97 = sphi 0, %s95
    %s98 = sphi 0, %s97
    %s112 = sphi 0, %s98
    %s116 = sphi 0, %s116
    %s118 = sphi 0, %s116
    %s119 = sphi 0, %s118
    %s133 = sphi 0, %s119
    %s137 = sphi 0, %s137
    %s139 = sphi 0, %s137
    %s140 = sphi 0, %s139
    %s154 = sphi 0, %s140
    %s158 = sphi 0, %s158
    %s160 = sphi 0, %s158
    %s161 = sphi 0, %s160
    %s175 = sphi 0, %s161
    %s179 = sphi 0, %s179
    %s181 = sphi 0, %s179
    %s182 = sphi 0, %s181
    %s196 = sphi 0, %s182
    %s200 = sphi 0, %s200
    %s202 = sphi 0, %s200
    %s203 = sphi 0, %s202
    %s217 = sphi 0, %s203
    %s221 = sphi 0, %s221
    %s223 = sphi 0, %s221
    %s224 = sphi 0, %s223
    %s238 = sphi 0, %s224
    %s242 = sphi 0, %s242
    %s244 = sphi 0, %s242
    %s245 = sphi 0, %s244
    %s259 = sphi 0, %s245
    %s263 = sphi 0, %s263
    %s265 = sphi 0, %s263
    %s266 = sphi 0, %s265
    %s280 = sphi 0, %s266
    %s284 = sphi 0, %s284
    %s286 = sphi 0, %s284
    %s287 = sphi 0, %s286
    %s301 = sphi 0, %s287
    %s307 = sphi 0, %s309
    %s310 = sphi 0, %s307
    %s311 = sphi 0, %s310
    %s327 = sphi 0, %s311
  $region4: #{multimodal_interaction.4} parent=0 // loop_header_branch
    %22 = sbr.rel (%p20) target = $region8
  $region5: #{multimodal_interaction.4} parent=0 // loop_body
    %s24 = ssub.s32 %s19, 1
    %s25 = ssub.s32 %s19, 2
    %s26 = sadd.s32 %s19, 1
    %s27 = ssub.s32 %s19, %s26
    %p28 = scmp.eq.s32.totalorder %s27, 0
    %s30 = sadd.s32 %s29, 1
    %s31 = scalar_select %p28, %s29, %s30
    %p34 = pneg %p28
    %p35 = scmp.eq.s32.totalorder %s19, 1
    %p36 = por %p34, %p35
    %p37 = scmp.ne.s32.totalorder %s29, %s32
    %p38 = scmp.eq.s32.totalorder %s19, 0
    %p39 = por %p37, %p38
    %p40 = scmp.ne.s32.totalorder %s29, %s32
    %p41 = scmp.eq.s32.totalorder %s24, 1
    %p42 = por %p40, %p41
    %p43 = scmp.ne.s32.totalorder %s32, %s33
    %p44 = scmp.eq.s32.totalorder %s24, 0
    %p45 = por %p43, %p44
    %p46 = scmp.ne.s32.totalorder %s32, %s33
    %p47 = scmp.eq.s32.totalorder %s25, 1
    %p48 = por %p46, %p47
    %p50 = scmp.ne.s32.totalorder %s33, %s49
    %p51 = scmp.eq.s32.totalorder %s25, 0
    %p52 = por %p50, %p51
    %s54 = sadd.s32 %s53, 1
    %p57 = scmp.eq.s32.totalorder %s19, 1
    %p58 = scmp.ne.s32.totalorder %s53, %s55
    %p59 = scmp.eq.s32.totalorder %s19, 0
    %p60 = por %p58, %p59
    %p61 = scmp.ne.s32.totalorder %s53, %s55
    %p62 = scmp.eq.s32.totalorder %s24, 1
    %p63 = por %p61, %p62
    %p64 = scmp.ne.s32.totalorder %s55, %s56
    %p65 = scmp.eq.s32.totalorder %s24, 0
    %p66 = por %p64, %p65
    %p67 = scmp.ne.s32.totalorder %s55, %s56
    %p68 = scmp.eq.s32.totalorder %s25, 1
    %p69 = por %p67, %p68
    %p71 = scmp.ne.s32.totalorder %s56, %s70
    %p72 = scmp.eq.s32.totalorder %s25, 0
    %p73 = por %p71, %p72
    %s75 = sadd.s32 %s74, 1
    %p78 = scmp.eq.s32.totalorder %s19, 1
    %p79 = scmp.ne.s32.totalorder %s74, %s76
    %p80 = scmp.eq.s32.totalorder %s19, 0
    %p81 = por %p79, %p80
    %p82 = scmp.ne.s32.totalorder %s74, %s76
    %p83 = scmp.eq.s32.totalorder %s24, 1
    %p84 = por %p82, %p83
    %p85 = scmp.ne.s32.totalorder %s76, %s77
    %p86 = scmp.eq.s32.totalorder %s24, 0
    %p87 = por %p85, %p86
    %p88 = scmp.ne.s32.totalorder %s76, %s77
    %p89 = scmp.eq.s32.totalorder %s25, 1
    %p90 = por %p88, %p89
    %p92 = scmp.ne.s32.totalorder %s77, %s91
    %p93 = scmp.eq.s32.totalorder %s25, 0
    %p94 = por %p92, %p93
    %s96 = sadd.s32 %s95, 1
    %p99 = scmp.eq.s32.totalorder %s19, 1
    %p100 = scmp.ne.s32.totalorder %s95, %s97
    %p101 = scmp.eq.s32.totalorder %s19, 0
    %p102 = por %p100, %p101
    %p103 = scmp.ne.s32.totalorder %s95, %s97
    %p104 = scmp.eq.s32.totalorder %s24, 1
    %p105 = por %p103, %p104
    %p106 = scmp.ne.s32.totalorder %s97, %s98
    %p107 = scmp.eq.s32.totalorder %s24, 0
    %p108 = por %p106, %p107
    %p109 = scmp.ne.s32.totalorder %s97, %s98
    %p110 = scmp.eq.s32.totalorder %s25, 1
    %p111 = por %p109, %p110
    %p113 = scmp.ne.s32.totalorder %s98, %s112
    %p114 = scmp.eq.s32.totalorder %s25, 0
    %p115 = por %p113, %p114
    %s117 = sadd.s32 %s116, 1
    %p120 = scmp.eq.s32.totalorder %s19, 1
    %p121 = scmp.ne.s32.totalorder %s116, %s118
    %p122 = scmp.eq.s32.totalorder %s19, 0
    %p123 = por %p121, %p122
    %p124 = scmp.ne.s32.totalorder %s116, %s118
    %p125 = scmp.eq.s32.totalorder %s24, 1
    %p126 = por %p124, %p125
    %p127 = scmp.ne.s32.totalorder %s118, %s119
    %p128 = scmp.eq.s32.totalorder %s24, 0
    %p129 = por %p127, %p128
    %p130 = scmp.ne.s32.totalorder %s118, %s119
    %p131 = scmp.eq.s32.totalorder %s25, 1
    %p132 = por %p130, %p131
    %p134 = scmp.ne.s32.totalorder %s119, %s133
    %p135 = scmp.eq.s32.totalorder %s25, 0
    %p136 = por %p134, %p135
    %s138 = sadd.s32 %s137, 1
    %p141 = scmp.eq.s32.totalorder %s19, 1
    %p142 = scmp.ne.s32.totalorder %s137, %s139
    %p143 = scmp.eq.s32.totalorder %s19, 0
    %p144 = por %p142, %p143
    %p145 = scmp.ne.s32.totalorder %s137, %s139
    %p146 = scmp.eq.s32.totalorder %s24, 1
    %p147 = por %p145, %p146
    %p148 = scmp.ne.s32.totalorder %s139, %s140
    %p149 = scmp.eq.s32.totalorder %s24, 0
    %p150 = por %p148, %p149
    %p151 = scmp.ne.s32.totalorder %s139, %s140
    %p152 = scmp.eq.s32.totalorder %s25, 1
    %p153 = por %p151, %p152
    %p155 = scmp.ne.s32.totalorder %s140, %s154
    %p156 = scmp.eq.s32.totalorder %s25, 0
    %p157 = por %p155, %p156
    %s159 = sadd.s32 %s158, 1
    %p162 = scmp.eq.s32.totalorder %s19, 1
    %p163 = scmp.ne.s32.totalorder %s158, %s160
    %p164 = scmp.eq.s32.totalorder %s19, 0
    %p165 = por %p163, %p164
    %p166 = scmp.ne.s32.totalorder %s158, %s160
    %p167 = scmp.eq.s32.totalorder %s24, 1
    %p168 = por %p166, %p167
    %p169 = scmp.ne.s32.totalorder %s160, %s161
    %p170 = scmp.eq.s32.totalorder %s24, 0
    %p171 = por %p169, %p170
    %p172 = scmp.ne.s32.totalorder %s160, %s161
    %p173 = scmp.eq.s32.totalorder %s25, 1
    %p174 = por %p172, %p173
    %p176 = scmp.ne.s32.totalorder %s161, %s175
    %p177 = scmp.eq.s32.totalorder %s25, 0
    %p178 = por %p176, %p177
    %s180 = sadd.s32 %s179, 1
    %p183 = scmp.eq.s32.totalorder %s19, 1
    %p184 = scmp.ne.s32.totalorder %s179, %s181
    %p185 = scmp.eq.s32.totalorder %s19, 0
    %p186 = por %p184, %p185
    %p187 = scmp.ne.s32.totalorder %s179, %s181
    %p188 = scmp.eq.s32.totalorder %s24, 1
    %p189 = por %p187, %p188
    %p190 = scmp.ne.s32.totalorder %s181, %s182
    %p191 = scmp.eq.s32.totalorder %s24, 0
    %p192 = por %p190, %p191
    %p193 = scmp.ne.s32.totalorder %s181, %s182
    %p194 = scmp.eq.s32.totalorder %s25, 1
    %p195 = por %p193, %p194
    %p197 = scmp.ne.s32.totalorder %s182, %s196
    %p198 = scmp.eq.s32.totalorder %s25, 0
    %p199 = por %p197, %p198
    %s201 = sadd.s32 %s200, 1
    %p204 = scmp.eq.s32.totalorder %s19, 1
    %p205 = scmp.ne.s32.totalorder %s200, %s202
    %p206 = scmp.eq.s32.totalorder %s19, 0
    %p207 = por %p205, %p206
    %p208 = scmp.ne.s32.totalorder %s200, %s202
    %p209 = scmp.eq.s32.totalorder %s24, 1
    %p210 = por %p208, %p209
    %p211 = scmp.ne.s32.totalorder %s202, %s203
    %p212 = scmp.eq.s32.totalorder %s24, 0
    %p213 = por %p211, %p212
    %p214 = scmp.ne.s32.totalorder %s202, %s203
    %p215 = scmp.eq.s32.totalorder %s25, 1
    %p216 = por %p214, %p215
    %p218 = scmp.ne.s32.totalorder %s203, %s217
    %p219 = scmp.eq.s32.totalorder %s25, 0
    %p220 = por %p218, %p219
    %s222 = sadd.s32 %s221, 1
    %p225 = scmp.eq.s32.totalorder %s19, 1
    %p226 = scmp.ne.s32.totalorder %s221, %s223
    %p227 = scmp.eq.s32.totalorder %s19, 0
    %p228 = por %p226, %p227
    %p229 = scmp.ne.s32.totalorder %s221, %s223
    %p230 = scmp.eq.s32.totalorder %s24, 1
    %p231 = por %p229, %p230
    %p232 = scmp.ne.s32.totalorder %s223, %s224
    %p233 = scmp.eq.s32.totalorder %s24, 0
    %p234 = por %p232, %p233
    %p235 = scmp.ne.s32.totalorder %s223, %s224
    %p236 = scmp.eq.s32.totalorder %s25, 1
    %p237 = por %p235, %p236
    %p239 = scmp.ne.s32.totalorder %s224, %s238
    %p240 = scmp.eq.s32.totalorder %s25, 0
    %p241 = por %p239, %p240
    %s243 = sadd.s32 %s242, 1
    %p246 = scmp.eq.s32.totalorder %s19, 1
    %p247 = scmp.ne.s32.totalorder %s242, %s244
    %p248 = scmp.eq.s32.totalorder %s19, 0
    %p249 = por %p247, %p248
    %p250 = scmp.ne.s32.totalorder %s242, %s244
    %p251 = scmp.eq.s32.totalorder %s24, 1
    %p252 = por %p250, %p251
    %p253 = scmp.ne.s32.totalorder %s244, %s245
    %p254 = scmp.eq.s32.totalorder %s24, 0
    %p255 = por %p253, %p254
    %p256 = scmp.ne.s32.totalorder %s244, %s245
    %p257 = scmp.eq.s32.totalorder %s25, 1
    %p258 = por %p256, %p257
    %p260 = scmp.ne.s32.totalorder %s245, %s259
    %p261 = scmp.eq.s32.totalorder %s25, 0
    %p262 = por %p260, %p261
    %s264 = sadd.s32 %s263, 1
    %p267 = scmp.eq.s32.totalorder %s19, 1
    %p268 = scmp.ne.s32.totalorder %s263, %s265
    %p269 = scmp.eq.s32.totalorder %s19, 0
    %p270 = por %p268, %p269
    %p271 = scmp.ne.s32.totalorder %s263, %s265
    %p272 = scmp.eq.s32.totalorder %s24, 1
    %p273 = por %p271, %p272
    %p274 = scmp.ne.s32.totalorder %s265, %s266
    %p275 = scmp.eq.s32.totalorder %s24, 0
    %p276 = por %p274, %p275
    %p277 = scmp.ne.s32.totalorder %s265, %s266
    %p278 = scmp.eq.s32.totalorder %s25, 1
    %p279 = por %p277, %p278
    %p281 = scmp.ne.s32.totalorder %s266, %s280
    %p282 = scmp.eq.s32.totalorder %s25, 0
    %p283 = por %p281, %p282
    %s285 = sadd.s32 %s284, 1
    %p288 = scmp.eq.s32.totalorder %s19, 1
    %p289 = scmp.ne.s32.totalorder %s284, %s286
    %p290 = scmp.eq.s32.totalorder %s19, 0
    %p291 = por %p289, %p290
    %p292 = scmp.ne.s32.totalorder %s284, %s286
    %p293 = scmp.eq.s32.totalorder %s24, 1
    %p294 = por %p292, %p293
    %p295 = scmp.ne.s32.totalorder %s286, %s287
    %p296 = scmp.eq.s32.totalorder %s24, 0
    %p297 = por %p295, %p296
    %p298 = scmp.ne.s32.totalorder %s286, %s287
    %p299 = scmp.eq.s32.totalorder %s25, 1
    %p300 = por %p298, %p299
    %p302 = scmp.ne.s32.totalorder %s287, %s301
    %p303 = scmp.eq.s32.totalorder %s25, 0
    %p304 = por %p302, %p303
    %s305 = ssub.s32 %s19, %s26
    %p306 = scmp.eq.s32.totalorder %s305, 0
    %s308 = sadd.s32 %s307, 1
    %s309 = scalar_select %p306, %s307, %s308
    %p312 = pneg %p306
    %p313 = scmp.eq.s32.totalorder %s19, 1
    %p314 = por %p312, %p313
    %p315 = scmp.ne.s32.totalorder %s307, %s310
    %p316 = scmp.eq.s32.totalorder %s19, 0
    %p317 = por %p315, %p316
    %p318 = scmp.ne.s32.totalorder %s307, %s310
    %p319 = scmp.eq.s32.totalorder %s24, 1
    %p320 = por %p318, %p319
    %p321 = scmp.ne.s32.totalorder %s310, %s311
    %p322 = scmp.eq.s32.totalorder %s24, 0
    %p323 = por %p321, %p322
    %p324 = scmp.ne.s32.totalorder %s310, %s311
    %p325 = scmp.eq.s32.totalorder %s25, 1
    %p326 = por %p324, %p325
    %p328 = scmp.ne.s32.totalorder %s311, %s327
    %p329 = scmp.eq.s32.totalorder %s25, 0
    %p330 = por %p328, %p329
    %p331 = scmp.le.s32.totalorder 1, %s19
    %p332 = scmp.lt.s32.totalorder %s19, 3
    %p333 = pnand %p331, %p332
    %p334 = pneg %p333
    // Predicated region
    $region9: #{multimodal_interaction.4} parent=5 // pred_check
      _
    $region10: #{multimodal_interaction.4} parent=5 // pred_check_branch
      %336 = sbr.rel (%p333) target = $region12
    $region11: #{multimodal_interaction.4} parent=5 // pred_region
      %s337 = ssub.s32 %s19, 1
      // Predicated region
      $region13: #{multimodal_interaction.4} parent=11 // pred_check
        %p338 = pneg %p66
      $region14: #{multimodal_interaction.4} parent=11 // pred_check_branch
        %340 = sbr.rel (%p338) target = $region16
      $region15: #{multimodal_interaction.4} parent=11 // pred_region
        _
      $region16: #{multimodal_interaction.4} parent=11 // pred_fallthru
        _
      // Predicated region
      $region17: #{multimodal_interaction.4} parent=11 // pred_check
        %p341 = pneg %p87
      $region18: #{multimodal_interaction.4} parent=11 // pred_check_branch
        %343 = sbr.rel (%p341) target = $region20
      $region19: #{multimodal_interaction.4} parent=11 // pred_region
        _
      $region20: #{multimodal_interaction.4} parent=11 // pred_fallthru
        _
      // Predicated region
      $region21: #{multimodal_interaction.4} parent=11 // pred_check
        %p344 = pneg %p108
      $region22: #{multimodal_interaction.4} parent=11 // pred_check_branch
        %346 = sbr.rel (%p344) target = $region24
      $region23: #{multimodal_interaction.4} parent=11 // pred_region
        _
      $region24: #{multimodal_interaction.4} parent=11 // pred_fallthru
        _
      // Predicated region
      $region25: #{multimodal_interaction.4} parent=11 // pred_check
        %p347 = pneg %p129
      $region26: #{multimodal_interaction.4} parent=11 // pred_check_branch
        %349 = sbr.rel (%p347) target = $region28
      $region27: #{multimodal_interaction.4} parent=11 // pred_region
        _
      $region28: #{multimodal_interaction.4} parent=11 // pred_fallthru
        _
      // Predicated region
      $region29: #{multimodal_interaction.4} parent=11 // pred_check
        %p350 = pneg %p150
      $region30: #{multimodal_interaction.4} parent=11 // pred_check_branch
        %352 = sbr.rel (%p350) target = $region32
      $region31: #{multimodal_interaction.4} parent=11 // pred_region
        _
      $region32: #{multimodal_interaction.4} parent=11 // pred_fallthru
        _
      // Predicated region
      $region33: #{multimodal_interaction.4} parent=11 // pred_check
        %p353 = pneg %p171
      $region34: #{multimodal_interaction.4} parent=11 // pred_check_branch
        %355 = sbr.rel (%p353) target = $region36
      $region35: #{multimodal_interaction.4} parent=11 // pred_region
        _
      $region36: #{multimodal_interaction.4} parent=11 // pred_fallthru
        _
      // Predicated region
      $region37: #{multimodal_interaction.4} parent=11 // pred_check
        %p356 = pneg %p192
      $region38: #{multimodal_interaction.4} parent=11 // pred_check_branch
        %358 = sbr.rel (%p356) target = $region40
      $region39: #{multimodal_interaction.4} parent=11 // pred_region
        _
      $region40: #{multimodal_interaction.4} parent=11 // pred_fallthru
        _
      // Predicated region
      $region41: #{multimodal_interaction.4} parent=11 // pred_check
        %p359 = pneg %p213
      $region42: #{multimodal_interaction.4} parent=11 // pred_check_branch
        %361 = sbr.rel (%p359) target = $region44
      $region43: #{multimodal_interaction.4} parent=11 // pred_region
        _
      $region44: #{multimodal_interaction.4} parent=11 // pred_fallthru
        _
      // Predicated region
      $region45: #{multimodal_interaction.4} parent=11 // pred_check
        %p362 = pneg %p234
      $region46: #{multimodal_interaction.4} parent=11 // pred_check_branch
        %364 = sbr.rel (%p362) target = $region48
      $region47: #{multimodal_interaction.4} parent=11 // pred_region
        _
      $region48: #{multimodal_interaction.4} parent=11 // pred_fallthru
        _
      // Predicated region
      $region49: #{multimodal_interaction.4} parent=11 // pred_check
        %p365 = pneg %p255
      $region50: #{multimodal_interaction.4} parent=11 // pred_check_branch
        %367 = sbr.rel (%p365) target = $region52
      $region51: #{multimodal_interaction.4} parent=11 // pred_region
        _
      $region52: #{multimodal_interaction.4} parent=11 // pred_fallthru
        _
      // Predicated region
      $region53: #{multimodal_interaction.4} parent=11 // pred_check
        %p368 = pneg %p276
      $region54: #{multimodal_interaction.4} parent=11 // pred_check_branch
        %370 = sbr.rel (%p368) target = $region56
      $region55: #{multimodal_interaction.4} parent=11 // pred_region
        _
      $region56: #{multimodal_interaction.4} parent=11 // pred_fallthru
        _
      // Predicated region
      $region57: #{multimodal_interaction.4} parent=11 // pred_check
        %p371 = pneg %p297
      $region58: #{multimodal_interaction.4} parent=11 // pred_check_branch
        %373 = sbr.rel (%p371) target = $region60
      $region59: #{multimodal_interaction.4} parent=11 // pred_region
        _
      $region60: #{multimodal_interaction.4} parent=11 // pred_fallthru
        _
    $region12: #{multimodal_interaction.4} parent=5 // pred_fallthru
      _
    %p374 = scmp.lt.s32.totalorder %s19, 2
    // Predicated region
    $region61: #{multimodal_interaction.4} parent=5 // pred_check
      %p375 = pneg %p374
    $region62: #{multimodal_interaction.4} parent=5 // pred_check_branch
      %377 = sbr.rel (%p375) target = $region64
    $region63: #{multimodal_interaction.4} parent=5 // pred_region
      // Predicated region
      $region65: #{multimodal_interaction.4} parent=63 // pred_check
        %p378 = pneg %p39
      $region66: #{multimodal_interaction.4} parent=63 // pred_check_branch
        %380 = sbr.rel (%p378) target = $region68
      $region67: #{multimodal_interaction.4} parent=63 // pred_region
        %p381 = scmp.lt.s32.totalorder %s19, 1
        %s382 = scalar_select %p381, %s19, 1
        %s383 = smul.addr %s382, 8
        %s384 = scalar_lea.vmem %s0, %s383
      $region68: #{multimodal_interaction.4} parent=63 // pred_fallthru
        _
    $region64: #{multimodal_interaction.4} parent=5 // pred_fallthru
      _
    %p385 = scmp.le.s32.totalorder 1, %s19
    %p386 = scmp.lt.s32.totalorder %s19, 3
    %p387 = pnand %p385, %p386
    %p388 = pneg %p387
    // Predicated region
    $region69: #{multimodal_interaction.4} parent=5 // pred_check
      _
    $region70: #{multimodal_interaction.4} parent=5 // pred_check_branch
      %390 = sbr.rel (%p387) target = $region72
    $region71: #{multimodal_interaction.4} parent=5 // pred_region
      %s391 = ssub.s32 %s19, 1
      %p392 = scmp.lt.s32.totalorder %s24, 1
      %s393 = scalar_select %p392, %s24, 1
      %s394 = smul.addr %s393, 8
      %s395 = scalar_lea.vmem %s0, %s394
      %p396 = pneg %p45
      %p397 = pneg %p42
      %p398 = pneg %p66
      %p399 = pneg %p63
      %p400 = pneg %p87
      %p401 = pneg %p84
      %p402 = pneg %p108
      %p403 = pneg %p105
      %p404 = pneg %p129
      %p405 = pneg %p126
      %p406 = pneg %p150
      %p407 = pneg %p147
      %p408 = pneg %p171
      %p409 = pneg %p168
      %p410 = pneg %p192
      %p411 = pneg %p189
      %p412 = pneg %p213
      %p413 = pneg %p210
      %p414 = pneg %p234
      %p415 = pneg %p231
      %p416 = pneg %p255
      %p417 = pneg %p252
      %p418 = pneg %p276
      %p419 = pneg %p273
      %p420 = pneg %p297
      %p421 = pneg %p294
      %p422 = pneg %p323
      %p423 = pneg %p320
      %p424 = scmp.lt.s32.totalorder %s24, 1
      %s425 = scalar_select %p424, %s24, 1
      %s426 = smul.addr %s425, 8
      %s427 = scalar_lea.vmem %s13, %s426
      %p428 = scmp.lt.s32.totalorder %s24, 1
      %s429 = scalar_select %p428, %s24, 1
      %s430 = smul.addr %s429, 8
      %s431 = scalar_lea.vmem %s0, %s430
      %p432 = scmp.lt.s32.totalorder %s24, 1
      %s433 = scalar_select %p432, %s24, 1
      %s434 = smul.addr %s433, 8
      %s435 = scalar_lea.vmem %s13, %s434
      %v437 = vld [vmem:[%s431] sm:$0xff]
      %v438 = vpack.c.bf16 %v437, %v437
      %v439 = vld [vmem:[%s1] sm:$0xff]
      %v440 = vld [vmem:[%s1 + $0x8] sm:$0xff]
      %v441 = vld [vmem:[%s1 + $0x10] sm:$0xff]
      %v442 = vld [vmem:[%s1 + $0x18] sm:$0xff]
      %v443 = vld [vmem:[%s1 + $0x20] sm:$0xff]
      %v444 = vld [vmem:[%s1 + $0x28] sm:$0xff]
      %v445 = vld [vmem:[%s1 + $0x30] sm:$0xff]
      %v446 = vld [vmem:[%s1 + $0x38] sm:$0xff]
      %v447 = vld [vmem:[%s2] sm:$0x3]
      %v449 = vperm.slane %v447, 0
      %v450 = vperm.slane %v447, 1
      %v461 = vunpack.c.l.b16 %v439
      %v462 = vunpack.c.h.b16 %v439
      %v463 = vunpack.c.l.b16 %v440
      %v464 = vunpack.c.h.b16 %v440
      %v465 = vunpack.c.l.b16 %v441
      %v466 = vunpack.c.h.b16 %v441
      %v467 = vunpack.c.l.b16 %v442
      %v468 = vunpack.c.h.b16 %v442
      %v469 = vunpack.c.l.b16 %v443
      %v470 = vunpack.c.h.b16 %v443
      %v471 = vunpack.c.l.b16 %v444
      %v472 = vunpack.c.h.b16 %v444
      %v473 = vunpack.c.l.b16 %v445
      %v474 = vunpack.c.h.b16 %v445
      %v475 = vunpack.c.l.b16 %v446
      %v476 = vunpack.c.h.b16 %v446
      %v477 = vpack.c.b16 %v463, %v461
      %v478 = vpack.c.b16 %v464, %v462
      %v479 = vpack.c.b16 %v467, %v465
      %v480 = vpack.c.b16 %v468, %v466
      %v481 = vpack.c.b16 %v471, %v469
      %v482 = vpack.c.b16 %v472, %v470
      %v483 = vpack.c.b16 %v475, %v473
      %v484 = vpack.c.b16 %v476, %v474
      %vm493 = vcmask 523264
      %v495 = vsel %vm493, %v438, 0
      %497 = vmatpush.bf16.msra.mxu0 0
      %498 = vmatpush.bf16.msra.mxu0 0
      %499 = vmatpush.bf16.msra.mxu0 0
      %500 = vmatpush.bf16.msra.mxu0 0
      %501 = vmatpush.bf16.msra.mxu0 %v483
      %502 = vmatpush.bf16.msra.mxu0 %v481
      %503 = vmatpush.bf16.msra.mxu0 %v479
      %504 = vmatpush.bf16.msra.mxu0 %v477
      %505 = vmatmul.bf16.gmra.mxu0 %v495
      %v506 = vpop.f32.mrf.mxu0
      %v507 = vadd.f32 %v449, %v506
      %v508 = vpop.f32.mrf.mxu0
      %509 = vdwg.mxu0
      %510 = vmatpush.bf16.msra.mxu0 0
      %511 = vmatpush.bf16.msra.mxu0 0
      %512 = vmatpush.bf16.msra.mxu0 0
      %513 = vmatpush.bf16.msra.mxu0 0
      %514 = vmatpush.bf16.msra.mxu0 %v484
      %515 = vmatpush.bf16.msra.mxu0 %v482
      %516 = vmatpush.bf16.msra.mxu0 %v480
      %517 = vmatpush.bf16.msra.mxu0 %v478
      %518 = vmatmul.bf16.gmra.mxu0 %v495
      %v519 = vpop.f32.mrf.mxu0
      %v520 = vadd.f32 %v450, %v519
      %v521 = vpop.f32.mrf.mxu0
      %522 = vdwg.mxu0
      %v523 = vpack.c.bf16 %v520, %v507
      %v525 = vunpack.c.l.b16 %v523
      %v526 = vpack.c.b16 %v525, %v525
      %527 = vrot.lane.b32.xlu0 %v526, 64
      %v528 = vpop.permute.xlu0 %527
      %vm529 = vcmask 64512
      %v531 = vsel %vm529, %v523, 0
      %v534 = vsel %vm529, %v528, 0
      %536 = vmatpush.bf16.xpose.msra.mxu0 0
      %537 = vmatpush.bf16.xpose.msra.mxu0 0
      %538 = vmatpush.bf16.xpose.msra.mxu0 0
      %539 = vmatpush.bf16.xpose.msra.mxu0 0
      %540 = vmatpush.bf16.xpose.msra.mxu0 0
      %541 = vmatpush.bf16.xpose.msra.mxu0 0
      %542 = vmatpush.bf16.xpose.msra.mxu0 0
      %543 = vmatpush.bf16.xpose.msra.mxu0 %v534
      %544 = vmatmul.bf16.gmra.mxu0 %v531
      %v545 = vpop.f32.mrf.mxu0
      %v546 = vadd.f32 0.0, %v545
      %v547 = vpop.f32.mrf.mxu0
      %548 = vdwg.mxu0
      %v549 = vmul.f32 %v546, 0.35355338
      %v550 = vsel %vm529, %v549, -inf
      %551 = vmax.xlane.f32.xlu0 %v550
      %v552 = vpop.xlane.xlu0 %551
      %v553 = vsub.f32 %v549, %v552
      %v554 = vmul.f32 %v553, 1.442695
      %v555 = vpow.pop %v554
      %v556 = vsel %vm529, %v555, 0.0
      %557 = vadd.xlane.f32.xlu0 %v556
      %v558 = vpop.xlane.xlu0 %557
      %v559 = vrcp.pop %v558
      %v560 = vmul.f32 %v555, %v559
      %v561 = vpack.c.bf16 %v560, %v560
      %v562 = vunpack.c.h.b16 %v523
      %v563 = vpack.c.b16 %v562, %v562
      %v565 = vsel %vm529, %v561, 0
      %vm567 = vcmask 1043456
      %v569 = vsel %vm567, %v563, 0
      %571 = vmatpush.bf16.msra.mxu0 0
      %572 = vmatpush.bf16.msra.mxu0 0
      %573 = vmatpush.bf16.msra.mxu0 0
      %574 = vmatpush.bf16.msra.mxu0 0
      %575 = vmatpush.bf16.msra.mxu0 0
      %576 = vmatpush.bf16.msra.mxu0 0
      %577 = vmatpush.bf16.msra.mxu0 0
      %578 = vmatpush.bf16.msra.mxu0 %v569
      %579 = vmatmul.bf16.gmra.mxu0 %v565
      %v580 = vpop.f32.mrf.mxu0
      %v581 = vadd.f32 0.0, %v580
      %v582 = vpop.f32.mrf.mxu0
      %583 = vdwg.mxu0
      %584 = vrot.lane.b32.xlu0 %v526, 120
      %v585 = vpop.permute.xlu0 %584
      %586 = vrot.lane.b32.xlu0 %v526, 56
      %v587 = vpop.permute.xlu0 %586
      %v589 = vsel %vm529, %v585, 0
      %v592 = vsel %vm529, %v587, 0
      %594 = vmatpush.bf16.xpose.msra.mxu0 0
      %595 = vmatpush.bf16.xpose.msra.mxu0 0
      %596 = vmatpush.bf16.xpose.msra.mxu0 0
      %597 = vmatpush.bf16.xpose.msra.mxu0 0
      %598 = vmatpush.bf16.xpose.msra.mxu0 0
      %599 = vmatpush.bf16.xpose.msra.mxu0 0
      %600 = vmatpush.bf16.xpose.msra.mxu0 0
      %601 = vmatpush.bf16.xpose.msra.mxu0 %v592
      %602 = vmatmul.bf16.gmra.mxu0 %v589
      %v603 = vpop.f32.mrf.mxu0
      %v604 = vadd.f32 0.0, %v603
      %v605 = vpop.f32.mrf.mxu0
      %606 = vdwg.mxu0
      %v607 = vmul.f32 %v604, 0.35355338
      %v608 = vsel %vm529, %v607, -inf
      %609 = vmax.xlane.f32.xlu0 %v608
      %v610 = vpop.xlane.xlu0 %609
      %v611 = vsub.f32 %v607, %v610
      %v612 = vmul.f32 %v611, 1.442695
      %v613 = vpow.pop %v612
      %v614 = vsel %vm529, %v613, 0.0
      %615 = vadd.xlane.f32.xlu0 %v614
      %v616 = vpop.xlane.xlu0 %615
      %v617 = vrcp.pop %v616
      %v618 = vmul.f32 %v613, %v617
      %v619 = vpack.c.bf16 %v618, %v618
      %620 = vrot.lane.b32.xlu0 %v563, 120
      %v621 = vpop.permute.xlu0 %620
      %v623 = vsel %vm529, %v619, 0
      %v626 = vsel %vm567, %v621, 0
      %628 = vmatpush.bf16.msra.mxu0 0
      %629 = vmatpush.bf16.msra.mxu0 0
      %630 = vmatpush.bf16.msra.mxu0 0
      %631 = vmatpush.bf16.msra.mxu0 0
      %632 = vmatpush.bf16.msra.mxu0 0
      %633 = vmatpush.bf16.msra.mxu0 0
      %634 = vmatpush.bf16.msra.mxu0 0
      %635 = vmatpush.bf16.msra.mxu0 %v626
      %636 = vmatmul.bf16.gmra.mxu0 %v623
      %v637 = vpop.f32.mrf.mxu0
      %v638 = vadd.f32 0.0, %v637
      %v639 = vpop.f32.mrf.mxu0
      %640 = vdwg.mxu0
      %641 = vrot.lane.b32.xlu0 %v526, 112
      %v642 = vpop.permute.xlu0 %641
      %643 = vrot.lane.b32.xlu0 %v526, 48
      %v644 = vpop.permute.xlu0 %643
      %v646 = vsel %vm529, %v642, 0
      %v649 = vsel %vm529, %v644, 0
      %651 = vmatpush.bf16.xpose.msra.mxu0 0
      %652 = vmatpush.bf16.xpose.msra.mxu0 0
      %653 = vmatpush.bf16.xpose.msra.mxu0 0
      %654 = vmatpush.bf16.xpose.msra.mxu0 0
      %655 = vmatpush.bf16.xpose.msra.mxu0 0
      %656 = vmatpush.bf16.xpose.msra.mxu0 0
      %657 = vmatpush.bf16.xpose.msra.mxu0 0
      %658 = vmatpush.bf16.xpose.msra.mxu0 %v649
      %659 = vmatmul.bf16.gmra.mxu0 %v646
      %v660 = vpop.f32.mrf.mxu0
      %v661 = vadd.f32 0.0, %v660
      %v662 = vpop.f32.mrf.mxu0
      %663 = vdwg.mxu0
      %v664 = vmul.f32 %v661, 0.35355338
      %v665 = vsel %vm529, %v664, -inf
      %666 = vmax.xlane.f32.xlu0 %v665
      %v667 = vpop.xlane.xlu0 %666
      %v668 = vsub.f32 %v664, %v667
      %v669 = vmul.f32 %v668, 1.442695
      %v670 = vpow.pop %v669
      %v671 = vsel %vm529, %v670, 0.0
      %672 = vadd.xlane.f32.xlu0 %v671
      %v673 = vpop.xlane.xlu0 %672
      %v674 = vrcp.pop %v673
      %v675 = vmul.f32 %v670, %v674
      %v676 = vpack.c.bf16 %v675, %v675
      %677 = vrot.lane.b32.xlu0 %v563, 112
      %v678 = vpop.permute.xlu0 %677
      %v680 = vsel %vm529, %v676, 0
      %v683 = vsel %vm567, %v678, 0
      %685 = vmatpush.bf16.msra.mxu0 0
      %686 = vmatpush.bf16.msra.mxu0 0
      %687 = vmatpush.bf16.msra.mxu0 0
      %688 = vmatpush.bf16.msra.mxu0 0
      %689 = vmatpush.bf16.msra.mxu0 0
      %690 = vmatpush.bf16.msra.mxu0 0
      %691 = vmatpush.bf16.msra.mxu0 0
      %692 = vmatpush.bf16.msra.mxu0 %v683
      %693 = vmatmul.bf16.gmra.mxu0 %v680
      %v694 = vpop.f32.mrf.mxu0
      %v695 = vadd.f32 0.0, %v694
      %v696 = vpop.f32.mrf.mxu0
      %697 = vdwg.mxu0
      %698 = vrot.lane.b32.xlu0 %v526, 104
      %v699 = vpop.permute.xlu0 %698
      %700 = vrot.lane.b32.xlu0 %v526, 40
      %v701 = vpop.permute.xlu0 %700
      %v703 = vsel %vm529, %v699, 0
      %v706 = vsel %vm529, %v701, 0
      %708 = vmatpush.bf16.xpose.msra.mxu0 0
      %709 = vmatpush.bf16.xpose.msra.mxu0 0
      %710 = vmatpush.bf16.xpose.msra.mxu0 0
      %711 = vmatpush.bf16.xpose.msra.mxu0 0
      %712 = vmatpush.bf16.xpose.msra.mxu0 0
      %713 = vmatpush.bf16.xpose.msra.mxu0 0
      %714 = vmatpush.bf16.xpose.msra.mxu0 0
      %715 = vmatpush.bf16.xpose.msra.mxu0 %v706
      %716 = vmatmul.bf16.gmra.mxu0 %v703
      %v717 = vpop.f32.mrf.mxu0
      %v718 = vadd.f32 0.0, %v717
      %v719 = vpop.f32.mrf.mxu0
      %720 = vdwg.mxu0
      %v721 = vmul.f32 %v718, 0.35355338
      %v722 = vsel %vm529, %v721, -inf
      %723 = vmax.xlane.f32.xlu0 %v722
      %v724 = vpop.xlane.xlu0 %723
      %v725 = vsub.f32 %v721, %v724
      %v726 = vmul.f32 %v725, 1.442695
      %v727 = vpow.pop %v726
      %v728 = vsel %vm529, %v727, 0.0
      %729 = vadd.xlane.f32.xlu0 %v728
      %v730 = vpop.xlane.xlu0 %729
      %v731 = vrcp.pop %v730
      %v732 = vmul.f32 %v727, %v731
      %v733 = vpack.c.bf16 %v732, %v732
      %734 = vrot.lane.b32.xlu0 %v563, 104
      %v735 = vpop.permute.xlu0 %734
      %v737 = vsel %vm529, %v733, 0
      %v740 = vsel %vm567, %v735, 0
      %742 = vmatpush.bf16.msra.mxu0 0
      %743 = vmatpush.bf16.msra.mxu0 0
      %744 = vmatpush.bf16.msra.mxu0 0
      %745 = vmatpush.bf16.msra.mxu0 0
      %746 = vmatpush.bf16.msra.mxu0 0
      %747 = vmatpush.bf16.msra.mxu0 0
      %748 = vmatpush.bf16.msra.mxu0 0
      %749 = vmatpush.bf16.msra.mxu0 %v740
      %750 = vmatmul.bf16.gmra.mxu0 %v737
      %v751 = vpop.f32.mrf.mxu0
      %v752 = vadd.f32 0.0, %v751
      %v753 = vpop.f32.mrf.mxu0
      %754 = vdwg.mxu0
      %755 = vrot.lane.b32.xlu0 %v526, 96
      %v756 = vpop.permute.xlu0 %755
      %757 = vrot.lane.b32.xlu0 %v526, 32
      %v758 = vpop.permute.xlu0 %757
      %v760 = vsel %vm529, %v756, 0
      %v763 = vsel %vm529, %v758, 0
      %765 = vmatpush.bf16.xpose.msra.mxu0 0
      %766 = vmatpush.bf16.xpose.msra.mxu0 0
      %767 = vmatpush.bf16.xpose.msra.mxu0 0
      %768 = vmatpush.bf16.xpose.msra.mxu0 0
      %769 = vmatpush.bf16.xpose.msra.mxu0 0
      %770 = vmatpush.bf16.xpose.msra.mxu0 0
      %771 = vmatpush.bf16.xpose.msra.mxu0 0
      %772 = vmatpush.bf16.xpose.msra.mxu0 %v763
      %773 = vmatmul.bf16.gmra.mxu0 %v760
      %v774 = vpop.f32.mrf.mxu0
      %v775 = vadd.f32 0.0, %v774
      %v776 = vpop.f32.mrf.mxu0
      %777 = vdwg.mxu0
      %v778 = vmul.f32 %v775, 0.35355338
      %v779 = vsel %vm529, %v778, -inf
      %780 = vmax.xlane.f32.xlu0 %v779
      %v781 = vpop.xlane.xlu0 %780
      %v782 = vsub.f32 %v778, %v781
      %v783 = vmul.f32 %v782, 1.442695
      %v784 = vpow.pop %v783
      %v785 = vsel %vm529, %v784, 0.0
      %786 = vadd.xlane.f32.xlu0 %v785
      %v787 = vpop.xlane.xlu0 %786
      %v788 = vrcp.pop %v787
      %v789 = vmul.f32 %v784, %v788
      %v790 = vpack.c.bf16 %v789, %v789
      %791 = vrot.lane.b32.xlu0 %v563, 96
      %v792 = vpop.permute.xlu0 %791
      %v794 = vsel %vm529, %v790, 0
      %v797 = vsel %vm567, %v792, 0
      %799 = vmatpush.bf16.msra.mxu0 0
      %800 = vmatpush.bf16.msra.mxu0 0
      %801 = vmatpush.bf16.msra.mxu0 0
      %802 = vmatpush.bf16.msra.mxu0 0
      %803 = vmatpush.bf16.msra.mxu0 0
      %804 = vmatpush.bf16.msra.mxu0 0
      %805 = vmatpush.bf16.msra.mxu0 0
      %806 = vmatpush.bf16.msra.mxu0 %v797
      %807 = vmatmul.bf16.gmra.mxu0 %v794
      %v808 = vpop.f32.mrf.mxu0
      %v809 = vadd.f32 0.0, %v808
      %v810 = vpop.f32.mrf.mxu0
      %811 = vdwg.mxu0
      %812 = vrot.lane.b32.xlu0 %v526, 88
      %v813 = vpop.permute.xlu0 %812
      %814 = vrot.lane.b32.xlu0 %v526, 24
      %v815 = vpop.permute.xlu0 %814
      %v817 = vsel %vm529, %v813, 0
      %v820 = vsel %vm529, %v815, 0
      %822 = vmatpush.bf16.xpose.msra.mxu0 0
      %823 = vmatpush.bf16.xpose.msra.mxu0 0
      %824 = vmatpush.bf16.xpose.msra.mxu0 0
      %825 = vmatpush.bf16.xpose.msra.mxu0 0
      %826 = vmatpush.bf16.xpose.msra.mxu0 0
      %827 = vmatpush.bf16.xpose.msra.mxu0 0
      %828 = vmatpush.bf16.xpose.msra.mxu0 0
      %829 = vmatpush.bf16.xpose.msra.mxu0 %v820
      %830 = vmatmul.bf16.gmra.mxu0 %v817
      %v831 = vpop.f32.mrf.mxu0
      %v832 = vadd.f32 0.0, %v831
      %v833 = vpop.f32.mrf.mxu0
      %834 = vdwg.mxu0
      %v835 = vmul.f32 %v832, 0.35355338
      %v836 = vsel %vm529, %v835, -inf
      %837 = vmax.xlane.f32.xlu0 %v836
      %v838 = vpop.xlane.xlu0 %837
      %v839 = vsub.f32 %v835, %v838
      %v840 = vmul.f32 %v839, 1.442695
      %v841 = vpow.pop %v840
      %v842 = vsel %vm529, %v841, 0.0
      %843 = vadd.xlane.f32.xlu0 %v842
      %v844 = vpop.xlane.xlu0 %843
      %v845 = vrcp.pop %v844
      %v846 = vmul.f32 %v841, %v845
      %v847 = vpack.c.bf16 %v846, %v846
      %848 = vrot.lane.b32.xlu0 %v563, 88
      %v849 = vpop.permute.xlu0 %848
      %v851 = vsel %vm529, %v847, 0
      %v854 = vsel %vm567, %v849, 0
      %856 = vmatpush.bf16.msra.mxu0 0
      %857 = vmatpush.bf16.msra.mxu0 0
      %858 = vmatpush.bf16.msra.mxu0 0
      %859 = vmatpush.bf16.msra.mxu0 0
      %860 = vmatpush.bf16.msra.mxu0 0
      %861 = vmatpush.bf16.msra.mxu0 0
      %862 = vmatpush.bf16.msra.mxu0 0
      %863 = vmatpush.bf16.msra.mxu0 %v854
      %864 = vmatmul.bf16.gmra.mxu0 %v851
      %v865 = vpop.f32.mrf.mxu0
      %v866 = vadd.f32 0.0, %v865
      %v867 = vpop.f32.mrf.mxu0
      %868 = vdwg.mxu0
      %869 = vrot.lane.b32.xlu0 %v526, 80
      %v870 = vpop.permute.xlu0 %869
      %871 = vrot.lane.b32.xlu0 %v526, 16
      %v872 = vpop.permute.xlu0 %871
      %v874 = vsel %vm529, %v870, 0
      %v877 = vsel %vm529, %v872, 0
      %879 = vmatpush.bf16.xpose.msra.mxu0 0
      %880 = vmatpush.bf16.xpose.msra.mxu0 0
      %881 = vmatpush.bf16.xpose.msra.mxu0 0
      %882 = vmatpush.bf16.xpose.msra.mxu0 0
      %883 = vmatpush.bf16.xpose.msra.mxu0 0
      %884 = vmatpush.bf16.xpose.msra.mxu0 0
      %885 = vmatpush.bf16.xpose.msra.mxu0 0
      %886 = vmatpush.bf16.xpose.msra.mxu0 %v877
      %887 = vmatmul.bf16.gmra.mxu0 %v874
      %v888 = vpop.f32.mrf.mxu0
      %v889 = vadd.f32 0.0, %v888
      %v890 = vpop.f32.mrf.mxu0
      %891 = vdwg.mxu0
      %v892 = vmul.f32 %v889, 0.35355338
      %v893 = vsel %vm529, %v892, -inf
      %894 = vmax.xlane.f32.xlu0 %v893
      %v895 = vpop.xlane.xlu0 %894
      %v896 = vsub.f32 %v892, %v895
      %v897 = vmul.f32 %v896, 1.442695
      %v898 = vpow.pop %v897
      %v899 = vsel %vm529, %v898, 0.0
      %900 = vadd.xlane.f32.xlu0 %v899
      %v901 = vpop.xlane.xlu0 %900
      %v902 = vrcp.pop %v901
      %v903 = vmul.f32 %v898, %v902
      %v904 = vpack.c.bf16 %v903, %v903
      %905 = vrot.lane.b32.xlu0 %v563, 80
      %v906 = vpop.permute.xlu0 %905
      %v908 = vsel %vm529, %v904, 0
      %v911 = vsel %vm567, %v906, 0
      %913 = vmatpush.bf16.msra.mxu0 0
      %914 = vmatpush.bf16.msra.mxu0 0
      %915 = vmatpush.bf16.msra.mxu0 0
      %916 = vmatpush.bf16.msra.mxu0 0
      %917 = vmatpush.bf16.msra.mxu0 0
      %918 = vmatpush.bf16.msra.mxu0 0
      %919 = vmatpush.bf16.msra.mxu0 0
      %920 = vmatpush.bf16.msra.mxu0 %v911
      %921 = vmatmul.bf16.gmra.mxu0 %v908
      %v922 = vpop.f32.mrf.mxu0
      %v923 = vadd.f32 0.0, %v922
      %v924 = vpop.f32.mrf.mxu0
      %925 = vdwg.mxu0
      %926 = vrot.lane.b32.xlu0 %v526, 72
      %v927 = vpop.permute.xlu0 %926
      %928 = vrot.lane.b32.xlu0 %v526, 8
      %v929 = vpop.permute.xlu0 %928
      %v931 = vsel %vm529, %v927, 0
      %v934 = vsel %vm529, %v929, 0
      %936 = vmatpush.bf16.xpose.msra.mxu0 0
      %937 = vmatpush.bf16.xpose.msra.mxu0 0
      %938 = vmatpush.bf16.xpose.msra.mxu0 0
      %939 = vmatpush.bf16.xpose.msra.mxu0 0
      %940 = vmatpush.bf16.xpose.msra.mxu0 0
      %941 = vmatpush.bf16.xpose.msra.mxu0 0
      %942 = vmatpush.bf16.xpose.msra.mxu0 0
      %943 = vmatpush.bf16.xpose.msra.mxu0 %v934
      %944 = vmatmul.bf16.gmra.mxu0 %v931
      %v945 = vpop.f32.mrf.mxu0
      %v946 = vadd.f32 0.0, %v945
      %v947 = vpop.f32.mrf.mxu0
      %948 = vdwg.mxu0
      %v949 = vmul.f32 %v946, 0.35355338
      %v950 = vsel %vm529, %v949, -inf
      %951 = vmax.xlane.f32.xlu0 %v950
      %v952 = vpop.xlane.xlu0 %951
      %v953 = vsub.f32 %v949, %v952
      %v954 = vmul.f32 %v953, 1.442695
      %v955 = vpow.pop %v954
      %v956 = vsel %vm529, %v955, 0.0
      %957 = vadd.xlane.f32.xlu0 %v956
      %v958 = vpop.xlane.xlu0 %957
      %v959 = vrcp.pop %v958
      %v960 = vmul.f32 %v955, %v959
      %v961 = vpack.c.bf16 %v960, %v960
      %962 = vrot.lane.b32.xlu0 %v563, 72
      %v963 = vpop.permute.xlu0 %962
      %v965 = vsel %vm529, %v961, 0
      %v968 = vsel %vm567, %v963, 0
      %970 = vmatpush.bf16.msra.mxu0 0
      %971 = vmatpush.bf16.msra.mxu0 0
      %972 = vmatpush.bf16.msra.mxu0 0
      %973 = vmatpush.bf16.msra.mxu0 0
      %974 = vmatpush.bf16.msra.mxu0 0
      %975 = vmatpush.bf16.msra.mxu0 0
      %976 = vmatpush.bf16.msra.mxu0 0
      %977 = vmatpush.bf16.msra.mxu0 %v968
      %978 = vmatmul.bf16.gmra.mxu0 %v965
      %v979 = vpop.f32.mrf.mxu0
      %v980 = vadd.f32 0.0, %v979
      %v981 = vpop.f32.mrf.mxu0
      %982 = vdwg.mxu0
      %984 = vrot.lane.b32.xlu0 %v638, 8
      %v985 = vpop.permute.xlu0 %984
      %988 = vrot.lane.b32.xlu0 %v695, 16
      %v989 = vpop.permute.xlu0 %988
      %992 = vrot.lane.b32.xlu0 %v752, 24
      %v993 = vpop.permute.xlu0 %992
      %996 = vrot.lane.b32.xlu0 %v809, 32
      %v997 = vpop.permute.xlu0 %996
      %1000 = vrot.lane.b32.xlu0 %v866, 40
      %v1001 = vpop.permute.xlu0 %1000
      %1004 = vrot.lane.b32.xlu0 %v923, 48
      %v1005 = vpop.permute.xlu0 %1004
      %1008 = vrot.lane.b32.xlu0 %v980, 56
      %v1009 = vpop.permute.xlu0 %1008
      %v1011 = vsel %vm529, %v581, %v985
      %vm1012 = vcmask 130048
      %v1013 = vsel %vm1012, %v1011, %v989
      %vm1014 = vcmask 195584
      %v1015 = vsel %vm1014, %v1013, %v993
      %vm1016 = vcmask 261120
      %v1017 = vsel %vm1016, %v1015, %v997
      %vm1018 = vcmask 326656
      %v1019 = vsel %vm1018, %v1017, %v1001
      %vm1020 = vcmask 392192
      %v1021 = vsel %vm1020, %v1019, %v1005
      %vm1022 = vcmask 457728
      %v1023 = vsel %vm1022, %v1021, %v1009
      %v1024 = vpack.c.bf16 %v1023, %v1023
      %v1025 = vld [vmem:[%s3] sm:$0xf]
      %v1026 = vld [vmem:[%s3 + $0x4] sm:$0xf]
      %v1027 = vld [vmem:[%s3 + $0x8] sm:$0xf]
      %v1028 = vld [vmem:[%s3 + $0xc] sm:$0xf]
      %v1029 = vld [vmem:[%s3 + $0x10] sm:$0xf]
      %v1030 = vld [vmem:[%s3 + $0x14] sm:$0xf]
      %v1031 = vld [vmem:[%s3 + $0x18] sm:$0xf]
      %v1032 = vld [vmem:[%s3 + $0x1c] sm:$0xf]
      %v1033 = vld [vmem:[%s4] sm:$0x1]
      %v1035 = vperm.slane %v1033, 0
      %v1045 = vunpack.c.l.b16 %v1025
      %v1046 = vunpack.c.l.b16 %v1026
      %v1047 = vunpack.c.l.b16 %v1027
      %v1048 = vunpack.c.l.b16 %v1028
      %v1049 = vunpack.c.l.b16 %v1029
      %v1050 = vunpack.c.l.b16 %v1030
      %v1051 = vunpack.c.l.b16 %v1031
      %v1052 = vunpack.c.l.b16 %v1032
      %v1053 = vpack.c.b16 %v1046, %v1045
      %v1054 = vpack.c.b16 %v1048, %v1047
      %v1055 = vpack.c.b16 %v1050, %v1049
      %v1056 = vpack.c.b16 %v1052, %v1051
      %v1062 = vsel %vm493, %v1024, 0
      %1064 = vmatpush.bf16.msra.mxu0 0
      %1065 = vmatpush.bf16.msra.mxu0 0
      %1066 = vmatpush.bf16.msra.mxu0 0
      %1067 = vmatpush.bf16.msra.mxu0 0
      %1068 = vmatpush.bf16.msra.mxu0 %v1056
      %1069 = vmatpush.bf16.msra.mxu0 %v1055
      %1070 = vmatpush.bf16.msra.mxu0 %v1054
      %1071 = vmatpush.bf16.msra.mxu0 %v1053
      %1072 = vmatmul.bf16.gmra.mxu0 %v1062
      %v1073 = vpop.f32.mrf.mxu0
      %v1074 = vadd.f32 %v1035, %v1073
      %v1075 = vpop.f32.mrf.mxu0
      %1076 = vdwg.mxu0
      %v1077 = vadd.f32 %v437, %v1074
      %v1078 = vld [vmem:[%s5] sm:$0x1]
      %v1079 = vld [vmem:[%s6] sm:$0x1]
      %v1080 = vsel %vm493, %v1077, 0.0
      %1081 = vadd.xlane.f32.xlu0 %v1080
      %v1082 = vpop.xlane.xlu0 %1081
      %v1083 = vrcp.pop 64.0
      %v1084 = vmul.f32 64.0, %v1083
      %v1085 = vsub.f32 1.0, %v1084
      %v1086 = vmul.f32 %v1083, %v1085
      %v1087 = vadd.f32 %v1083, %v1086
      %vm1088 = vweird.f32 %v1083
      %v1089 = vsel %vm1088, %v1083, %v1087
      %v1090 = vmul.f32 %v1082, %v1089
      %v1091 = vsub.f32 %v1077, %v1090
      %v1092 = vmul.f32 %v1091, %v1091
      %v1093 = vsel %vm493, %v1092, 0.0
      %1094 = vadd.xlane.f32.xlu0 %v1093
      %v1095 = vpop.xlane.xlu0 %1094
      %v1096 = vmul.f32 %v1095, %v1089
      %v1097 = vadd.f32 %v1096, 1e-05
      %v1098 = vrsqrt.pop %v1097
      %v1099 = vmul.f32 %v1098, %v1097
      %v1100 = vmul.f32 %v1099, %v1098
      %v1101 = vmul.f32 0.5, %v1100
      %v1102 = vsub.f32 1.5, %v1101
      %v1103 = vmul.f32 %v1098, %v1102
      %vm1104 = vweird.f32 %v1097
      %vm1105 = vweird.f32 %v1098
      %vm1106 = vmor %vm1104, %vm1105
      %v1107 = vsel %vm1106, %v1098, %v1103
      %v1108 = vmul.f32 %v1091, %v1107
      %v1110 = vperm.slane %v1078, 0
      %v1112 = vmul.f32 %v1108, %v1110
      %v1114 = vperm.slane %v1079, 0
      %v1116 = vadd.f32 %v1112, %v1114
      %v1117 = vpack.c.bf16 %v1116, %v1116
      %v1118 = vld [vmem:[%s7] sm:$0xff]
      %v1119 = vld [vmem:[%s7 + $0x8] sm:$0xff]
      %v1120 = vld [vmem:[%s7 + $0x10] sm:$0xff]
      %v1121 = vld [vmem:[%s7 + $0x18] sm:$0xff]
      %v1122 = vld [vmem:[%s7 + $0x20] sm:$0xff]
      %v1123 = vld [vmem:[%s7 + $0x28] sm:$0xff]
      %v1124 = vld [vmem:[%s7 + $0x30] sm:$0xff]
      %v1125 = vld [vmem:[%s7 + $0x38] sm:$0xff]
      %v1126 = vld [vmem:[%s7 + $0x40] sm:$0xff]
      %v1127 = vld [vmem:[%s7 + $0x48] sm:$0xff]
      %v1128 = vld [vmem:[%s7 + $0x50] sm:$0xff]
      %v1129 = vld [vmem:[%s7 + $0x58] sm:$0xff]
      %v1130 = vld [vmem:[%s7 + $0x60] sm:$0xff]
      %v1131 = vld [vmem:[%s7 + $0x68] sm:$0xff]
      %v1132 = vld [vmem:[%s7 + $0x70] sm:$0xff]
      %v1133 = vld [vmem:[%s7 + $0x78] sm:$0xff]
      %v1134 = vld [vmem:[%s7 + $0x80] sm:$0xff]
      %v1135 = vld [vmem:[%s7 + $0x88] sm:$0xff]
      %v1136 = vld [vmem:[%s7 + $0x90] sm:$0xff]
      %v1137 = vld [vmem:[%s7 + $0x98] sm:$0xff]
      %v1138 = vld [vmem:[%s7 + $0xa0] sm:$0xff]
      %v1139 = vld [vmem:[%s7 + $0xa8] sm:$0xff]
      %v1140 = vld [vmem:[%s7 + $0xb0] sm:$0xff]
      %v1141 = vld [vmem:[%s7 + $0xb8] sm:$0xff]
      %v1142 = vld [vmem:[%s7 + $0xc0] sm:$0xff]
      %v1143 = vld [vmem:[%s7 + $0xc8] sm:$0xff]
      %v1144 = vld [vmem:[%s7 + $0xd0] sm:$0xff]
      %v1145 = vld [vmem:[%s7 + $0xd8] sm:$0xff]
      %v1146 = vld [vmem:[%s7 + $0xe0] sm:$0xff]
      %v1147 = vld [vmem:[%s7 + $0xe8] sm:$0xff]
      %v1148 = vld [vmem:[%s7 + $0xf0] sm:$0xff]
      %v1149 = vld [vmem:[%s7 + $0xf8] sm:$0xff]
      %v1150 = vld [vmem:[%s7 + $0x100] sm:$0xff]
      %v1151 = vld [vmem:[%s7 + $0x108] sm:$0xff]
      %v1152 = vld [vmem:[%s7 + $0x110] sm:$0xff]
      %v1153 = vld [vmem:[%s7 + $0x118] sm:$0xff]
      %v1154 = vld [vmem:[%s7 + $0x120] sm:$0xff]
      %v1155 = vld [vmem:[%s7 + $0x128] sm:$0xff]
      %v1156 = vld [vmem:[%s7 + $0x130] sm:$0xff]
      %v1157 = vld [vmem:[%s7 + $0x138] sm:$0xff]
      %v1158 = vld [vmem:[%s7 + $0x140] sm:$0xff]
      %v1159 = vld [vmem:[%s7 + $0x148] sm:$0xff]
      %v1160 = vld [vmem:[%s7 + $0x150] sm:$0xff]
      %v1161 = vld [vmem:[%s7 + $0x158] sm:$0xff]
      %v1162 = vld [vmem:[%s7 + $0x160] sm:$0xff]
      %v1163 = vld [vmem:[%s7 + $0x168] sm:$0xff]
      %v1164 = vld [vmem:[%s7 + $0x170] sm:$0xff]
      %v1165 = vld [vmem:[%s7 + $0x178] sm:$0xff]
      %v1166 = vld [vmem:[%s7 + $0x180] sm:$0xff]
      %v1167 = vld [vmem:[%s7 + $0x188] sm:$0xff]
      %v1168 = vld [vmem:[%s7 + $0x190] sm:$0xff]
      %v1169 = vld [vmem:[%s7 + $0x198] sm:$0xff]
      %v1170 = vld [vmem:[%s7 + $0x1a0] sm:$0xff]
      %v1171 = vld [vmem:[%s7 + $0x1a8] sm:$0xff]
      %v1172 = vld [vmem:[%s7 + $0x1b0] sm:$0xff]
      %v1173 = vld [vmem:[%s7 + $0x1b8] sm:$0xff]
      %v1174 = vld [vmem:[%s7 + $0x1c0] sm:$0xff]
      %v1175 = vld [vmem:[%s7 + $0x1c8] sm:$0xff]
      %v1176 = vld [vmem:[%s7 + $0x1d0] sm:$0xff]
      %v1177 = vld [vmem:[%s7 + $0x1d8] sm:$0xff]
      %v1178 = vld [vmem:[%s7 + $0x1e0] sm:$0xff]
      %v1179 = vld [vmem:[%s7 + $0x1e8] sm:$0xff]
      %v1180 = vld [vmem:[%s7 + $0x1f0] sm:$0xff]
      %v1181 = vld [vmem:[%s7 + $0x1f8] sm:$0xff]
      %v1182 = vld [vmem:[%s8] sm:$0xff]
      %v1183 = vld [vmem:[%s8 + $0x8] sm:$0xff]
      %v1186 = vperm.slane %v1182, 0
      %v1187 = vperm.slane %v1182, 1
      %v1188 = vperm.slane %v1182, 2
      %v1189 = vperm.slane %v1182, 3
      %v1190 = vperm.slane %v1182, 4
      %v1191 = vperm.slane %v1182, 5
      %v1192 = vperm.slane %v1182, 6
      %v1193 = vperm.slane %v1182, 7
      %v1194 = vperm.slane %v1183, 0
      %v1195 = vperm.slane %v1183, 1
      %v1196 = vperm.slane %v1183, 2
      %v1197 = vperm.slane %v1183, 3
      %v1198 = vperm.slane %v1183, 4
      %v1199 = vperm.slane %v1183, 5
      %v1200 = vperm.slane %v1183, 6
      %v1201 = vperm.slane %v1183, 7
      %v1282 = vunpack.c.l.b16 %v1118
      %v1283 = vunpack.c.h.b16 %v1118
      %v1284 = vunpack.c.l.b16 %v1119
      %v1285 = vunpack.c.h.b16 %v1119
      %v1286 = vunpack.c.l.b16 %v1120
      %v1287 = vunpack.c.h.b16 %v1120
      %v1288 = vunpack.c.l.b16 %v1121
      %v1289 = vunpack.c.h.b16 %v1121
      %v1290 = vunpack.c.l.b16 %v1122
      %v1291 = vunpack.c.h.b16 %v1122
      %v1292 = vunpack.c.l.b16 %v1123
      %v1293 = vunpack.c.h.b16 %v1123
      %v1294 = vunpack.c.l.b16 %v1124
      %v1295 = vunpack.c.h.b16 %v1124
      %v1296 = vunpack.c.l.b16 %v1125
      %v1297 = vunpack.c.h.b16 %v1125
      %v1298 = vunpack.c.l.b16 %v1126
      %v1299 = vunpack.c.h.b16 %v1126
      %v1300 = vunpack.c.l.b16 %v1127
      %v1301 = vunpack.c.h.b16 %v1127
      %v1302 = vunpack.c.l.b16 %v1128
      %v1303 = vunpack.c.h.b16 %v1128
      %v1304 = vunpack.c.l.b16 %v1129
      %v1305 = vunpack.c.h.b16 %v1129
      %v1306 = vunpack.c.l.b16 %v1130
      %v1307 = vunpack.c.h.b16 %v1130
      %v1308 = vunpack.c.l.b16 %v1131
      %v1309 = vunpack.c.h.b16 %v1131
      %v1310 = vunpack.c.l.b16 %v1132
      %v1311 = vunpack.c.h.b16 %v1132
      %v1312 = vunpack.c.l.b16 %v1133
      %v1313 = vunpack.c.h.b16 %v1133
      %v1314 = vunpack.c.l.b16 %v1134
      %v1315 = vunpack.c.h.b16 %v1134
      %v1316 = vunpack.c.l.b16 %v1135
      %v1317 = vunpack.c.h.b16 %v1135
      %v1318 = vunpack.c.l.b16 %v1136
      %v1319 = vunpack.c.h.b16 %v1136
      %v1320 = vunpack.c.l.b16 %v1137
      %v1321 = vunpack.c.h.b16 %v1137
      %v1322 = vunpack.c.l.b16 %v1138
      %v1323 = vunpack.c.h.b16 %v1138
      %v1324 = vunpack.c.l.b16 %v1139
      %v1325 = vunpack.c.h.b16 %v1139
      %v1326 = vunpack.c.l.b16 %v1140
      %v1327 = vunpack.c.h.b16 %v1140
      %v1328 = vunpack.c.l.b16 %v1141
      %v1329 = vunpack.c.h.b16 %v1141
      %v1330 = vunpack.c.l.b16 %v1142
      %v1331 = vunpack.c.h.b16 %v1142
      %v1332 = vunpack.c.l.b16 %v1143
      %v1333 = vunpack.c.h.b16 %v1143
      %v1334 = vunpack.c.l.b16 %v1144
      %v1335 = vunpack.c.h.b16 %v1144
      %v1336 = vunpack.c.l.b16 %v1145
      %v1337 = vunpack.c.h.b16 %v1145
      %v1338 = vunpack.c.l.b16 %v1146
      %v1339 = vunpack.c.h.b16 %v1146
      %v1340 = vunpack.c.l.b16 %v1147
      %v1341 = vunpack.c.h.b16 %v1147
      %v1342 = vunpack.c.l.b16 %v1148
      %v1343 = vunpack.c.h.b16 %v1148
      %v1344 = vunpack.c.l.b16 %v1149
      %v1345 = vunpack.c.h.b16 %v1149
      %v1346 = vunpack.c.l.b16 %v1150
      %v1347 = vunpack.c.h.b16 %v1150
      %v1348 = vunpack.c.l.b16 %v1151
      %v1349 = vunpack.c.h.b16 %v1151
      %v1350 = vunpack.c.l.b16 %v1152
      %v1351 = vunpack.c.h.b16 %v1152
      %v1352 = vunpack.c.l.b16 %v1153
      %v1353 = vunpack.c.h.b16 %v1153
      %v1354 = vunpack.c.l.b16 %v1154
      %v1355 = vunpack.c.h.b16 %v1154
      %v1356 = vunpack.c.l.b16 %v1155
      %v1357 = vunpack.c.h.b16 %v1155
      %v1358 = vunpack.c.l.b16 %v1156
      %v1359 = vunpack.c.h.b16 %v1156
      %v1360 = vunpack.c.l.b16 %v1157
      %v1361 = vunpack.c.h.b16 %v1157
      %v1362 = vunpack.c.l.b16 %v1158
      %v1363 = vunpack.c.h.b16 %v1158
      %v1364 = vunpack.c.l.b16 %v1159
      %v1365 = vunpack.c.h.b16 %v1159
      %v1366 = vunpack.c.l.b16 %v1160
      %v1367 = vunpack.c.h.b16 %v1160
      %v1368 = vunpack.c.l.b16 %v1161
      %v1369 = vunpack.c.h.b16 %v1161
      %v1370 = vunpack.c.l.b16 %v1162
      %v1371 = vunpack.c.h.b16 %v1162
      %v1372 = vunpack.c.l.b16 %v1163
      %v1373 = vunpack.c.h.b16 %v1163
      %v1374 = vunpack.c.l.b16 %v1164
      %v1375 = vunpack.c.h.b16 %v1164
      %v1376 = vunpack.c.l.b16 %v1165
      %v1377 = vunpack.c.h.b16 %v1165
      %v1378 = vunpack.c.l.b16 %v1166
      %v1379 = vunpack.c.h.b16 %v1166
      %v1380 = vunpack.c.l.b16 %v1167
      %v1381 = vunpack.c.h.b16 %v1167
      %v1382 = vunpack.c.l.b16 %v1168
      %v1383 = vunpack.c.h.b16 %v1168
      %v1384 = vunpack.c.l.b16 %v1169
      %v1385 = vunpack.c.h.b16 %v1169
      %v1386 = vunpack.c.l.b16 %v1170
      %v1387 = vunpack.c.h.b16 %v1170
      %v1388 = vunpack.c.l.b16 %v1171
      %v1389 = vunpack.c.h.b16 %v1171
      %v1390 = vunpack.c.l.b16 %v1172
      %v1391 = vunpack.c.h.b16 %v1172
      %v1392 = vunpack.c.l.b16 %v1173
      %v1393 = vunpack.c.h.b16 %v1173
      %v1394 = vunpack.c.l.b16 %v1174
      %v1395 = vunpack.c.h.b16 %v1174
      %v1396 = vunpack.c.l.b16 %v1175
      %v1397 = vunpack.c.h.b16 %v1175
      %v1398 = vunpack.c.l.b16 %v1176
      %v1399 = vunpack.c.h.b16 %v1176
      %v1400 = vunpack.c.l.b16 %v1177
      %v1401 = vunpack.c.h.b16 %v1177
      %v1402 = vunpack.c.l.b16 %v1178
      %v1403 = vunpack.c.h.b16 %v1178
      %v1404 = vunpack.c.l.b16 %v1179
      %v1405 = vunpack.c.h.b16 %v1179
      %v1406 = vunpack.c.l.b16 %v1180
      %v1407 = vunpack.c.h.b16 %v1180
      %v1408 = vunpack.c.l.b16 %v1181
      %v1409 = vunpack.c.h.b16 %v1181
      %v1410 = vpack.c.b16 %v1298, %v1282
      %v1411 = vpack.c.b16 %v1299, %v1283
      %v1412 = vpack.c.b16 %v1300, %v1284
      %v1413 = vpack.c.b16 %v1301, %v1285
      %v1414 = vpack.c.b16 %v1302, %v1286
      %v1415 = vpack.c.b16 %v1303, %v1287
      %v1416 = vpack.c.b16 %v1304, %v1288
      %v1417 = vpack.c.b16 %v1305, %v1289
      %v1418 = vpack.c.b16 %v1306, %v1290
      %v1419 = vpack.c.b16 %v1307, %v1291
      %v1420 = vpack.c.b16 %v1308, %v1292
      %v1421 = vpack.c.b16 %v1309, %v1293
      %v1422 = vpack.c.b16 %v1310, %v1294
      %v1423 = vpack.c.b16 %v1311, %v1295
      %v1424 = vpack.c.b16 %v1312, %v1296
      %v1425 = vpack.c.b16 %v1313, %v1297
      %v1426 = vpack.c.b16 %v1330, %v1314
      %v1427 = vpack.c.b16 %v1331, %v1315
      %v1428 = vpack.c.b16 %v1332, %v1316
      %v1429 = vpack.c.b16 %v1333, %v1317
      %v1430 = vpack.c.b16 %v1334, %v1318
      %v1431 = vpack.c.b16 %v1335, %v1319
      %v1432 = vpack.c.b16 %v1336, %v1320
      %v1433 = vpack.c.b16 %v1337, %v1321
      %v1434 = vpack.c.b16 %v1338, %v1322
      %v1435 = vpack.c.b16 %v1339, %v1323
      %v1436 = vpack.c.b16 %v1340, %v1324
      %v1437 = vpack.c.b16 %v1341, %v1325
      %v1438 = vpack.c.b16 %v1342, %v1326
      %v1439 = vpack.c.b16 %v1343, %v1327
      %v1440 = vpack.c.b16 %v1344, %v1328
      %v1441 = vpack.c.b16 %v1345, %v1329
      %v1442 = vpack.c.b16 %v1362, %v1346
      %v1443 = vpack.c.b16 %v1363, %v1347
      %v1444 = vpack.c.b16 %v1364, %v1348
      %v1445 = vpack.c.b16 %v1365, %v1349
      %v1446 = vpack.c.b16 %v1366, %v1350
      %v1447 = vpack.c.b16 %v1367, %v1351
      %v1448 = vpack.c.b16 %v1368, %v1352
      %v1449 = vpack.c.b16 %v1369, %v1353
      %v1450 = vpack.c.b16 %v1370, %v1354
      %v1451 = vpack.c.b16 %v1371, %v1355
      %v1452 = vpack.c.b16 %v1372, %v1356
      %v1453 = vpack.c.b16 %v1373, %v1357
      %v1454 = vpack.c.b16 %v1374, %v1358
      %v1455 = vpack.c.b16 %v1375, %v1359
      %v1456 = vpack.c.b16 %v1376, %v1360
      %v1457 = vpack.c.b16 %v1377, %v1361
      %v1458 = vpack.c.b16 %v1394, %v1378
      %v1459 = vpack.c.b16 %v1395, %v1379
      %v1460 = vpack.c.b16 %v1396, %v1380
      %v1461 = vpack.c.b16 %v1397, %v1381
      %v1462 = vpack.c.b16 %v1398, %v1382
      %v1463 = vpack.c.b16 %v1399, %v1383
      %v1464 = vpack.c.b16 %v1400, %v1384
      %v1465 = vpack.c.b16 %v1401, %v1385
      %v1466 = vpack.c.b16 %v1402, %v1386
      %v1467 = vpack.c.b16 %v1403, %v1387
      %v1468 = vpack.c.b16 %v1404, %v1388
      %v1469 = vpack.c.b16 %v1405, %v1389
      %v1470 = vpack.c.b16 %v1406, %v1390
      %v1471 = vpack.c.b16 %v1407, %v1391
      %v1472 = vpack.c.b16 %v1408, %v1392
      %v1473 = vpack.c.b16 %v1409, %v1393
      %v1539 = vsel %vm493, %v1117, 0
      %1541 = vmatpush.bf16.msra.mxu0 0
      %1542 = vmatpush.bf16.msra.mxu0 0
      %1543 = vmatpush.bf16.msra.mxu0 0
      %1544 = vmatpush.bf16.msra.mxu0 0
      %1545 = vmatpush.bf16.msra.mxu0 %v1458
      %1546 = vmatpush.bf16.msra.mxu0 %v1442
      %1547 = vmatpush.bf16.msra.mxu0 %v1426
      %1548 = vmatpush.bf16.msra.mxu0 %v1410
      %1549 = vmatmul.bf16.gmra.mxu0 %v1539
      %v1550 = vpop.f32.mrf.mxu0
      %v1551 = vadd.f32 %v1186, %v1550
      %v1552 = vpop.f32.mrf.mxu0
      %1553 = vdwg.mxu0
      %1554 = vmatpush.bf16.msra.mxu0 0
      %1555 = vmatpush.bf16.msra.mxu0 0
      %1556 = vmatpush.bf16.msra.mxu0 0
      %1557 = vmatpush.bf16.msra.mxu0 0
      %1558 = vmatpush.bf16.msra.mxu0 %v1459
      %1559 = vmatpush.bf16.msra.mxu0 %v1443
      %1560 = vmatpush.bf16.msra.mxu0 %v1427
      %1561 = vmatpush.bf16.msra.mxu0 %v1411
      %1562 = vmatmul.bf16.gmra.mxu0 %v1539
      %v1563 = vpop.f32.mrf.mxu0
      %v1564 = vadd.f32 %v1187, %v1563
      %v1565 = vpop.f32.mrf.mxu0
      %1566 = vdwg.mxu0
      %1567 = vmatpush.bf16.msra.mxu0 0
      %1568 = vmatpush.bf16.msra.mxu0 0
      %1569 = vmatpush.bf16.msra.mxu0 0
      %1570 = vmatpush.bf16.msra.mxu0 0
      %1571 = vmatpush.bf16.msra.mxu0 %v1460
      %1572 = vmatpush.bf16.msra.mxu0 %v1444
      %1573 = vmatpush.bf16.msra.mxu0 %v1428
      %1574 = vmatpush.bf16.msra.mxu0 %v1412
      %1575 = vmatmul.bf16.gmra.mxu0 %v1539
      %v1576 = vpop.f32.mrf.mxu0
      %v1577 = vadd.f32 %v1188, %v1576
      %v1578 = vpop.f32.mrf.mxu0
      %1579 = vdwg.mxu0
      %1580 = vmatpush.bf16.msra.mxu0 0
      %1581 = vmatpush.bf16.msra.mxu0 0
      %1582 = vmatpush.bf16.msra.mxu0 0
      %1583 = vmatpush.bf16.msra.mxu0 0
      %1584 = vmatpush.bf16.msra.mxu0 %v1461
      %1585 = vmatpush.bf16.msra.mxu0 %v1445
      %1586 = vmatpush.bf16.msra.mxu0 %v1429
      %1587 = vmatpush.bf16.msra.mxu0 %v1413
      %1588 = vmatmul.bf16.gmra.mxu0 %v1539
      %v1589 = vpop.f32.mrf.mxu0
      %v1590 = vadd.f32 %v1189, %v1589
      %v1591 = vpop.f32.mrf.mxu0
      %1592 = vdwg.mxu0
      %1593 = vmatpush.bf16.msra.mxu0 0
      %1594 = vmatpush.bf16.msra.mxu0 0
      %1595 = vmatpush.bf16.msra.mxu0 0
      %1596 = vmatpush.bf16.msra.mxu0 0
      %1597 = vmatpush.bf16.msra.mxu0 %v1462
      %1598 = vmatpush.bf16.msra.mxu0 %v1446
      %1599 = vmatpush.bf16.msra.mxu0 %v1430
      %1600 = vmatpush.bf16.msra.mxu0 %v1414
      %1601 = vmatmul.bf16.gmra.mxu0 %v1539
      %v1602 = vpop.f32.mrf.mxu0
      %v1603 = vadd.f32 %v1190, %v1602
      %v1604 = vpop.f32.mrf.mxu0
      %1605 = vdwg.mxu0
      %1606 = vmatpush.bf16.msra.mxu0 0
      %1607 = vmatpush.bf16.msra.mxu0 0
      %1608 = vmatpush.bf16.msra.mxu0 0
      %1609 = vmatpush.bf16.msra.mxu0 0
      %1610 = vmatpush.bf16.msra.mxu0 %v1463
      %1611 = vmatpush.bf16.msra.mxu0 %v1447
      %1612 = vmatpush.bf16.msra.mxu0 %v1431
      %1613 = vmatpush.bf16.msra.mxu0 %v1415
      %1614 = vmatmul.bf16.gmra.mxu0 %v1539
      %v1615 = vpop.f32.mrf.mxu0
      %v1616 = vadd.f32 %v1191, %v1615
      %v1617 = vpop.f32.mrf.mxu0
      %1618 = vdwg.mxu0
      %1619 = vmatpush.bf16.msra.mxu0 0
      %1620 = vmatpush.bf16.msra.mxu0 0
      %1621 = vmatpush.bf16.msra.mxu0 0
      %1622 = vmatpush.bf16.msra.mxu0 0
      %1623 = vmatpush.bf16.msra.mxu0 %v1464
      %1624 = vmatpush.bf16.msra.mxu0 %v1448
      %1625 = vmatpush.bf16.msra.mxu0 %v1432
      %1626 = vmatpush.bf16.msra.mxu0 %v1416
      %1627 = vmatmul.bf16.gmra.mxu0 %v1539
      %v1628 = vpop.f32.mrf.mxu0
      %v1629 = vadd.f32 %v1192, %v1628
      %v1630 = vpop.f32.mrf.mxu0
      %1631 = vdwg.mxu0
      %1632 = vmatpush.bf16.msra.mxu0 0
      %1633 = vmatpush.bf16.msra.mxu0 0
      %1634 = vmatpush.bf16.msra.mxu0 0
      %1635 = vmatpush.bf16.msra.mxu0 0
      %1636 = vmatpush.bf16.msra.mxu0 %v1465
      %1637 = vmatpush.bf16.msra.mxu0 %v1449
      %1638 = vmatpush.bf16.msra.mxu0 %v1433
      %1639 = vmatpush.bf16.msra.mxu0 %v1417
      %1640 = vmatmul.bf16.gmra.mxu0 %v1539
      %v1641 = vpop.f32.mrf.mxu0
      %v1642 = vadd.f32 %v1193, %v1641
      %v1643 = vpop.f32.mrf.mxu0
      %1644 = vdwg.mxu0
      %1645 = vmatpush.bf16.msra.mxu0 0
      %1646 = vmatpush.bf16.msra.mxu0 0
      %1647 = vmatpush.bf16.msra.mxu0 0
      %1648 = vmatpush.bf16.msra.mxu0 0
      %1649 = vmatpush.bf16.msra.mxu0 %v1466
      %1650 = vmatpush.bf16.msra.mxu0 %v1450
      %1651 = vmatpush.bf16.msra.mxu0 %v1434
      %1652 = vmatpush.bf16.msra.mxu0 %v1418
      %1653 = vmatmul.bf16.gmra.mxu0 %v1539
      %v1654 = vpop.f32.mrf.mxu0
      %v1655 = vadd.f32 %v1194, %v1654
      %v1656 = vpop.f32.mrf.mxu0
      %1657 = vdwg.mxu0
      %1658 = vmatpush.bf16.msra.mxu0 0
      %1659 = vmatpush.bf16.msra.mxu0 0
      %1660 = vmatpush.bf16.msra.mxu0 0
      %1661 = vmatpush.bf16.msra.mxu0 0
      %1662 = vmatpush.bf16.msra.mxu0 %v1467
      %1663 = vmatpush.bf16.msra.mxu0 %v1451
      %1664 = vmatpush.bf16.msra.mxu0 %v1435
      %1665 = vmatpush.bf16.msra.mxu0 %v1419
      %1666 = vmatmul.bf16.gmra.mxu0 %v1539
      %v1667 = vpop.f32.mrf.mxu0
      %v1668 = vadd.f32 %v1195, %v1667
      %v1669 = vpop.f32.mrf.mxu0
      %1670 = vdwg.mxu0
      %1671 = vmatpush.bf16.msra.mxu0 0
      %1672 = vmatpush.bf16.msra.mxu0 0
      %1673 = vmatpush.bf16.msra.mxu0 0
      %1674 = vmatpush.bf16.msra.mxu0 0
      %1675 = vmatpush.bf16.msra.mxu0 %v1468
      %1676 = vmatpush.bf16.msra.mxu0 %v1452
      %1677 = vmatpush.bf16.msra.mxu0 %v1436
      %1678 = vmatpush.bf16.msra.mxu0 %v1420
      %1679 = vmatmul.bf16.gmra.mxu0 %v1539
      %v1680 = vpop.f32.mrf.mxu0
      %v1681 = vadd.f32 %v1196, %v1680
      %v1682 = vpop.f32.mrf.mxu0
      %1683 = vdwg.mxu0
      %1684 = vmatpush.bf16.msra.mxu0 0
      %1685 = vmatpush.bf16.msra.mxu0 0
      %1686 = vmatpush.bf16.msra.mxu0 0
      %1687 = vmatpush.bf16.msra.mxu0 0
      %1688 = vmatpush.bf16.msra.mxu0 %v1469
      %1689 = vmatpush.bf16.msra.mxu0 %v1453
      %1690 = vmatpush.bf16.msra.mxu0 %v1437
      %1691 = vmatpush.bf16.msra.mxu0 %v1421
      %1692 = vmatmul.bf16.gmra.mxu0 %v1539
      %v1693 = vpop.f32.mrf.mxu0
      %v1694 = vadd.f32 %v1197, %v1693
      %v1695 = vpop.f32.mrf.mxu0
      %1696 = vdwg.mxu0
      %1697 = vmatpush.bf16.msra.mxu0 0
      %1698 = vmatpush.bf16.msra.mxu0 0
      %1699 = vmatpush.bf16.msra.mxu0 0
      %1700 = vmatpush.bf16.msra.mxu0 0
      %1701 = vmatpush.bf16.msra.mxu0 %v1470
      %1702 = vmatpush.bf16.msra.mxu0 %v1454
      %1703 = vmatpush.bf16.msra.mxu0 %v1438
      %1704 = vmatpush.bf16.msra.mxu0 %v1422
      %1705 = vmatmul.bf16.gmra.mxu0 %v1539
      %v1706 = vpop.f32.mrf.mxu0
      %v1707 = vadd.f32 %v1198, %v1706
      %v1708 = vpop.f32.mrf.mxu0
      %1709 = vdwg.mxu0
      %1710 = vmatpush.bf16.msra.mxu0 0
      %1711 = vmatpush.bf16.msra.mxu0 0
      %1712 = vmatpush.bf16.msra.mxu0 0
      %1713 = vmatpush.bf16.msra.mxu0 0
      %1714 = vmatpush.bf16.msra.mxu0 %v1471
      %1715 = vmatpush.bf16.msra.mxu0 %v1455
      %1716 = vmatpush.bf16.msra.mxu0 %v1439
      %1717 = vmatpush.bf16.msra.mxu0 %v1423
      %1718 = vmatmul.bf16.gmra.mxu0 %v1539
      %v1719 = vpop.f32.mrf.mxu0
      %v1720 = vadd.f32 %v1199, %v1719
      %v1721 = vpop.f32.mrf.mxu0
      %1722 = vdwg.mxu0
      %1723 = vmatpush.bf16.msra.mxu0 0
      %1724 = vmatpush.bf16.msra.mxu0 0
      %1725 = vmatpush.bf16.msra.mxu0 0
      %1726 = vmatpush.bf16.msra.mxu0 0
      %1727 = vmatpush.bf16.msra.mxu0 %v1472
      %1728 = vmatpush.bf16.msra.mxu0 %v1456
      %1729 = vmatpush.bf16.msra.mxu0 %v1440
      %1730 = vmatpush.bf16.msra.mxu0 %v1424
      %1731 = vmatmul.bf16.gmra.mxu0 %v1539
      %v1732 = vpop.f32.mrf.mxu0
      %v1733 = vadd.f32 %v1200, %v1732
      %v1734 = vpop.f32.mrf.mxu0
      %1735 = vdwg.mxu0
      %1736 = vmatpush.bf16.msra.mxu0 0
      %1737 = vmatpush.bf16.msra.mxu0 0
      %1738 = vmatpush.bf16.msra.mxu0 0
      %1739 = vmatpush.bf16.msra.mxu0 0
      %1740 = vmatpush.bf16.msra.mxu0 %v1473
      %1741 = vmatpush.bf16.msra.mxu0 %v1457
      %1742 = vmatpush.bf16.msra.mxu0 %v1441
      %1743 = vmatpush.bf16.msra.mxu0 %v1425
      %1744 = vmatmul.bf16.gmra.mxu0 %v1539
      %v1745 = vpop.f32.mrf.mxu0
      %v1746 = vadd.f32 %v1201, %v1745
      %v1747 = vpop.f32.mrf.mxu0
      %1748 = vdwg.mxu0
      %v1749 = vmax.f32 %v1551, 0.0
      %v1750 = vmax.f32 %v1564, 0.0
      %v1751 = vmax.f32 %v1577, 0.0
      %v1752 = vmax.f32 %v1590, 0.0
      %v1753 = vmax.f32 %v1603, 0.0
      %v1754 = vmax.f32 %v1616, 0.0
      %v1755 = vmax.f32 %v1629, 0.0
      %v1756 = vmax.f32 %v1642, 0.0
      %v1757 = vmax.f32 %v1655, 0.0
      %v1758 = vmax.f32 %v1668, 0.0
      %v1759 = vmax.f32 %v1681, 0.0
      %v1760 = vmax.f32 %v1694, 0.0
      %v1761 = vmax.f32 %v1707, 0.0
      %v1762 = vmax.f32 %v1720, 0.0
      %v1763 = vmax.f32 %v1733, 0.0
      %v1764 = vmax.f32 %v1746, 0.0
      %v1765 = vpack.c.bf16 %v1749, %v1749
      %v1766 = vpack.c.bf16 %v1750, %v1750
      %v1767 = vpack.c.bf16 %v1751, %v1751
      %v1768 = vpack.c.bf16 %v1752, %v1752
      %v1769 = vpack.c.bf16 %v1753, %v1753
      %v1770 = vpack.c.bf16 %v1754, %v1754
      %v1771 = vpack.c.bf16 %v1755, %v1755
      %v1772 = vpack.c.bf16 %v1756, %v1756
      %v1773 = vpack.c.bf16 %v1757, %v1757
      %v1774 = vpack.c.bf16 %v1758, %v1758
      %v1775 = vpack.c.bf16 %v1759, %v1759
      %v1776 = vpack.c.bf16 %v1760, %v1760
      %v1777 = vpack.c.bf16 %v1761, %v1761
      %v1778 = vpack.c.bf16 %v1762, %v1762
      %v1779 = vpack.c.bf16 %v1763, %v1763
      %v1780 = vpack.c.bf16 %v1764, %v1764
      %v1781 = vld [vmem:[%s9] sm:$0xf]
      %v1782 = vld [vmem:[%s9 + $0x4] sm:$0xf]
      %v1783 = vld [vmem:[%s9 + $0x8] sm:$0xf]
      %v1784 = vld [vmem:[%s9 + $0xc] sm:$0xf]
      %v1785 = vld [vmem:[%s9 + $0x10] sm:$0xf]
      %v1786 = vld [vmem:[%s9 + $0x14] sm:$0xf]
      %v1787 = vld [vmem:[%s9 + $0x18] sm:$0xf]
      %v1788 = vld [vmem:[%s9 + $0x1c] sm:$0xf]
      %v1789 = vld [vmem:[%s9 + $0x20] sm:$0xf]
      %v1790 = vld [vmem:[%s9 + $0x24] sm:$0xf]
      %v1791 = vld [vmem:[%s9 + $0x28] sm:$0xf]
      %v1792 = vld [vmem:[%s9 + $0x2c] sm:$0xf]
      %v1793 = vld [vmem:[%s9 + $0x30] sm:$0xf]
      %v1794 = vld [vmem:[%s9 + $0x34] sm:$0xf]
      %v1795 = vld [vmem:[%s9 + $0x38] sm:$0xf]
      %v1796 = vld [vmem:[%s9 + $0x3c] sm:$0xf]
      %v1797 = vld [vmem:[%s9 + $0x40] sm:$0xf]
      %v1798 = vld [vmem:[%s9 + $0x44] sm:$0xf]
      %v1799 = vld [vmem:[%s9 + $0x48] sm:$0xf]
      %v1800 = vld [vmem:[%s9 + $0x4c] sm:$0xf]
      %v1801 = vld [vmem:[%s9 + $0x50] sm:$0xf]
      %v1802 = vld [vmem:[%s9 + $0x54] sm:$0xf]
      %v1803 = vld [vmem:[%s9 + $0x58] sm:$0xf]
      %v1804 = vld [vmem:[%s9 + $0x5c] sm:$0xf]
      %v1805 = vld [vmem:[%s9 + $0x60] sm:$0xf]
      %v1806 = vld [vmem:[%s9 + $0x64] sm:$0xf]
      %v1807 = vld [vmem:[%s9 + $0x68] sm:$0xf]
      %v1808 = vld [vmem:[%s9 + $0x6c] sm:$0xf]
      %v1809 = vld [vmem:[%s9 + $0x70] sm:$0xf]
      %v1810 = vld [vmem:[%s9 + $0x74] sm:$0xf]
      %v1811 = vld [vmem:[%s9 + $0x78] sm:$0xf]
      %v1812 = vld [vmem:[%s9 + $0x7c] sm:$0xf]
      %v1813 = vld [vmem:[%s9 + $0x80] sm:$0xf]
      %v1814 = vld [vmem:[%s9 + $0x84] sm:$0xf]
      %v1815 = vld [vmem:[%s9 + $0x88] sm:$0xf]
      %v1816 = vld [vmem:[%s9 + $0x8c] sm:$0xf]
      %v1817 = vld [vmem:[%s9 + $0x90] sm:$0xf]
      %v1818 = vld [vmem:[%s9 + $0x94] sm:$0xf]
      %v1819 = vld [vmem:[%s9 + $0x98] sm:$0xf]
      %v1820 = vld [vmem:[%s9 + $0x9c] sm:$0xf]
      %v1821 = vld [vmem:[%s9 + $0xa0] sm:$0xf]
      %v1822 = vld [vmem:[%s9 + $0xa4] sm:$0xf]
      %v1823 = vld [vmem:[%s9 + $0xa8] sm:$0xf]
      %v1824 = vld [vmem:[%s9 + $0xac] sm:$0xf]
      %v1825 = vld [vmem:[%s9 + $0xb0] sm:$0xf]
      %v1826 = vld [vmem:[%s9 + $0xb4] sm:$0xf]
      %v1827 = vld [vmem:[%s9 + $0xb8] sm:$0xf]
      %v1828 = vld [vmem:[%s9 + $0xbc] sm:$0xf]
      %v1829 = vld [vmem:[%s9 + $0xc0] sm:$0xf]
      %v1830 = vld [vmem:[%s9 + $0xc4] sm:$0xf]
      %v1831 = vld [vmem:[%s9 + $0xc8] sm:$0xf]
      %v1832 = vld [vmem:[%s9 + $0xcc] sm:$0xf]
      %v1833 = vld [vmem:[%s9 + $0xd0] sm:$0xf]
      %v1834 = vld [vmem:[%s9 + $0xd4] sm:$0xf]
      %v1835 = vld [vmem:[%s9 + $0xd8] sm:$0xf]
      %v1836 = vld [vmem:[%s9 + $0xdc] sm:$0xf]
      %v1837 = vld [vmem:[%s9 + $0xe0] sm:$0xf]
      %v1838 = vld [vmem:[%s9 + $0xe4] sm:$0xf]
      %v1839 = vld [vmem:[%s9 + $0xe8] sm:$0xf]
      %v1840 = vld [vmem:[%s9 + $0xec] sm:$0xf]
      %v1841 = vld [vmem:[%s9 + $0xf0] sm:$0xf]
      %v1842 = vld [vmem:[%s9 + $0xf4] sm:$0xf]
      %v1843 = vld [vmem:[%s9 + $0xf8] sm:$0xf]
      %v1844 = vld [vmem:[%s9 + $0xfc] sm:$0xf]
      %v1845 = vld [vmem:[%s9 + $0x100] sm:$0xf]
      %v1846 = vld [vmem:[%s9 + $0x104] sm:$0xf]
      %v1847 = vld [vmem:[%s9 + $0x108] sm:$0xf]
      %v1848 = vld [vmem:[%s9 + $0x10c] sm:$0xf]
      %v1849 = vld [vmem:[%s9 + $0x110] sm:$0xf]
      %v1850 = vld [vmem:[%s9 + $0x114] sm:$0xf]
      %v1851 = vld [vmem:[%s9 + $0x118] sm:$0xf]
      %v1852 = vld [vmem:[%s9 + $0x11c] sm:$0xf]
      %v1853 = vld [vmem:[%s9 + $0x120] sm:$0xf]
      %v1854 = vld [vmem:[%s9 + $0x124] sm:$0xf]
      %v1855 = vld [vmem:[%s9 + $0x128] sm:$0xf]
      %v1856 = vld [vmem:[%s9 + $0x12c] sm:$0xf]
      %v1857 = vld [vmem:[%s9 + $0x130] sm:$0xf]
      %v1858 = vld [vmem:[%s9 + $0x134] sm:$0xf]
      %v1859 = vld [vmem:[%s9 + $0x138] sm:$0xf]
      %v1860 = vld [vmem:[%s9 + $0x13c] sm:$0xf]
      %v1861 = vld [vmem:[%s9 + $0x140] sm:$0xf]
      %v1862 = vld [vmem:[%s9 + $0x144] sm:$0xf]
      %v1863 = vld [vmem:[%s9 + $0x148] sm:$0xf]
      %v1864 = vld [vmem:[%s9 + $0x14c] sm:$0xf]
      %v1865 = vld [vmem:[%s9 + $0x150] sm:$0xf]
      %v1866 = vld [vmem:[%s9 + $0x154] sm:$0xf]
      %v1867 = vld [vmem:[%s9 + $0x158] sm:$0xf]
      %v1868 = vld [vmem:[%s9 + $0x15c] sm:$0xf]
      %v1869 = vld [vmem:[%s9 + $0x160] sm:$0xf]
      %v1870 = vld [vmem:[%s9 + $0x164] sm:$0xf]
      %v1871 = vld [vmem:[%s9 + $0x168] sm:$0xf]
      %v1872 = vld [vmem:[%s9 + $0x16c] sm:$0xf]
      %v1873 = vld [vmem:[%s9 + $0x170] sm:$0xf]
      %v1874 = vld [vmem:[%s9 + $0x174] sm:$0xf]
      %v1875 = vld [vmem:[%s9 + $0x178] sm:$0xf]
      %v1876 = vld [vmem:[%s9 + $0x17c] sm:$0xf]
      %v1877 = vld [vmem:[%s9 + $0x180] sm:$0xf]
      %v1878 = vld [vmem:[%s9 + $0x184] sm:$0xf]
      %v1879 = vld [vmem:[%s9 + $0x188] sm:$0xf]
      %v1880 = vld [vmem:[%s9 + $0x18c] sm:$0xf]
      %v1881 = vld [vmem:[%s9 + $0x190] sm:$0xf]
      %v1882 = vld [vmem:[%s9 + $0x194] sm:$0xf]
      %v1883 = vld [vmem:[%s9 + $0x198] sm:$0xf]
      %v1884 = vld [vmem:[%s9 + $0x19c] sm:$0xf]
      %v1885 = vld [vmem:[%s9 + $0x1a0] sm:$0xf]
      %v1886 = vld [vmem:[%s9 + $0x1a4] sm:$0xf]
      %v1887 = vld [vmem:[%s9 + $0x1a8] sm:$0xf]
      %v1888 = vld [vmem:[%s9 + $0x1ac] sm:$0xf]
      %v1889 = vld [vmem:[%s9 + $0x1b0] sm:$0xf]
      %v1890 = vld [vmem:[%s9 + $0x1b4] sm:$0xf]
      %v1891 = vld [vmem:[%s9 + $0x1b8] sm:$0xf]
      %v1892 = vld [vmem:[%s9 + $0x1bc] sm:$0xf]
      %v1893 = vld [vmem:[%s9 + $0x1c0] sm:$0xf]
      %v1894 = vld [vmem:[%s9 + $0x1c4] sm:$0xf]
      %v1895 = vld [vmem:[%s9 + $0x1c8] sm:$0xf]
      %v1896 = vld [vmem:[%s9 + $0x1cc] sm:$0xf]
      %v1897 = vld [vmem:[%s9 + $0x1d0] sm:$0xf]
      %v1898 = vld [vmem:[%s9 + $0x1d4] sm:$0xf]
      %v1899 = vld [vmem:[%s9 + $0x1d8] sm:$0xf]
      %v1900 = vld [vmem:[%s9 + $0x1dc] sm:$0xf]
      %v1901 = vld [vmem:[%s9 + $0x1e0] sm:$0xf]
      %v1902 = vld [vmem:[%s9 + $0x1e4] sm:$0xf]
      %v1903 = vld [vmem:[%s9 + $0x1e8] sm:$0xf]
      %v1904 = vld [vmem:[%s9 + $0x1ec] sm:$0xf]
      %v1905 = vld [vmem:[%s9 + $0x1f0] sm:$0xf]
      %v1906 = vld [vmem:[%s9 + $0x1f4] sm:$0xf]
      %v1907 = vld [vmem:[%s9 + $0x1f8] sm:$0xf]
      %v1908 = vld [vmem:[%s9 + $0x1fc] sm:$0xf]
      %v1909 = vld [vmem:[%s9 + $0x200] sm:$0xf]
      %v1910 = vld [vmem:[%s9 + $0x204] sm:$0xf]
      %v1911 = vld [vmem:[%s9 + $0x208] sm:$0xf]
      %v1912 = vld [vmem:[%s9 + $0x20c] sm:$0xf]
      %v1913 = vld [vmem:[%s9 + $0x210] sm:$0xf]
      %v1914 = vld [vmem:[%s9 + $0x214] sm:$0xf]
      %v1915 = vld [vmem:[%s9 + $0x218] sm:$0xf]
      %v1916 = vld [vmem:[%s9 + $0x21c] sm:$0xf]
      %v1917 = vld [vmem:[%s9 + $0x220] sm:$0xf]
      %v1918 = vld [vmem:[%s9 + $0x224] sm:$0xf]
      %v1919 = vld [vmem:[%s9 + $0x228] sm:$0xf]
      %v1920 = vld [vmem:[%s9 + $0x22c] sm:$0xf]
      %v1921 = vld [vmem:[%s9 + $0x230] sm:$0xf]
      %v1922 = vld [vmem:[%s9 + $0x234] sm:$0xf]
      %v1923 = vld [vmem:[%s9 + $0x238] sm:$0xf]
      %v1924 = vld [vmem:[%s9 + $0x23c] sm:$0xf]
      %v1925 = vld [vmem:[%s9 + $0x240] sm:$0xf]
      %v1926 = vld [vmem:[%s9 + $0x244] sm:$0xf]
      %v1927 = vld [vmem:[%s9 + $0x248] sm:$0xf]
      %v1928 = vld [vmem:[%s9 + $0x24c] sm:$0xf]
      %v1929 = vld [vmem:[%s9 + $0x250] sm:$0xf]
      %v1930 = vld [vmem:[%s9 + $0x254] sm:$0xf]
      %v1931 = vld [vmem:[%s9 + $0x258] sm:$0xf]
      %v1932 = vld [vmem:[%s9 + $0x25c] sm:$0xf]
      %v1933 = vld [vmem:[%s9 + $0x260] sm:$0xf]
      %v1934 = vld [vmem:[%s9 + $0x264] sm:$0xf]
      %v1935 = vld [vmem:[%s9 + $0x268] sm:$0xf]
      %v1936 = vld [vmem:[%s9 + $0x26c] sm:$0xf]
      %v1937 = vld [vmem:[%s9 + $0x270] sm:$0xf]
      %v1938 = vld [vmem:[%s9 + $0x274] sm:$0xf]
      %v1939 = vld [vmem:[%s9 + $0x278] sm:$0xf]
      %v1940 = vld [vmem:[%s9 + $0x27c] sm:$0xf]
      %v1941 = vld [vmem:[%s9 + $0x280] sm:$0xf]
      %v1942 = vld [vmem:[%s9 + $0x284] sm:$0xf]
      %v1943 = vld [vmem:[%s9 + $0x288] sm:$0xf]
      %v1944 = vld [vmem:[%s9 + $0x28c] sm:$0xf]
      %v1945 = vld [vmem:[%s9 + $0x290] sm:$0xf]
      %v1946 = vld [vmem:[%s9 + $0x294] sm:$0xf]
      %v1947 = vld [vmem:[%s9 + $0x298] sm:$0xf]
      %v1948 = vld [vmem:[%s9 + $0x29c] sm:$0xf]
      %v1949 = vld [vmem:[%s9 + $0x2a0] sm:$0xf]
      %v1950 = vld [vmem:[%s9 + $0x2a4] sm:$0xf]
      %v1951 = vld [vmem:[%s9 + $0x2a8] sm:$0xf]
      %v1952 = vld [vmem:[%s9 + $0x2ac] sm:$0xf]
      %v1953 = vld [vmem:[%s9 + $0x2b0] sm:$0xf]
      %v1954 = vld [vmem:[%s9 + $0x2b4] sm:$0xf]
      %v1955 = vld [vmem:[%s9 + $0x2b8] sm:$0xf]
      %v1956 = vld [vmem:[%s9 + $0x2bc] sm:$0xf]
      %v1957 = vld [vmem:[%s9 + $0x2c0] sm:$0xf]
      %v1958 = vld [vmem:[%s9 + $0x2c4] sm:$0xf]
      %v1959 = vld [vmem:[%s9 + $0x2c8] sm:$0xf]
      %v1960 = vld [vmem:[%s9 + $0x2cc] sm:$0xf]
      %v1961 = vld [vmem:[%s9 + $0x2d0] sm:$0xf]
      %v1962 = vld [vmem:[%s9 + $0x2d4] sm:$0xf]
      %v1963 = vld [vmem:[%s9 + $0x2d8] sm:$0xf]
      %v1964 = vld [vmem:[%s9 + $0x2dc] sm:$0xf]
      %v1965 = vld [vmem:[%s9 + $0x2e0] sm:$0xf]
      %v1966 = vld [vmem:[%s9 + $0x2e4] sm:$0xf]
      %v1967 = vld [vmem:[%s9 + $0x2e8] sm:$0xf]
      %v1968 = vld [vmem:[%s9 + $0x2ec] sm:$0xf]
      %v1969 = vld [vmem:[%s9 + $0x2f0] sm:$0xf]
      %v1970 = vld [vmem:[%s9 + $0x2f4] sm:$0xf]
      %v1971 = vld [vmem:[%s9 + $0x2f8] sm:$0xf]
      %v1972 = vld [vmem:[%s9 + $0x2fc] sm:$0xf]
      %v1973 = vld [vmem:[%s9 + $0x300] sm:$0xf]
      %v1974 = vld [vmem:[%s9 + $0x304] sm:$0xf]
      %v1975 = vld [vmem:[%s9 + $0x308] sm:$0xf]
      %v1976 = vld [vmem:[%s9 + $0x30c] sm:$0xf]
      %v1977 = vld [vmem:[%s9 + $0x310] sm:$0xf]
      %v1978 = vld [vmem:[%s9 + $0x314] sm:$0xf]
      %v1979 = vld [vmem:[%s9 + $0x318] sm:$0xf]
      %v1980 = vld [vmem:[%s9 + $0x31c] sm:$0xf]
      %v1981 = vld [vmem:[%s9 + $0x320] sm:$0xf]
      %v1982 = vld [vmem:[%s9 + $0x324] sm:$0xf]
      %v1983 = vld [vmem:[%s9 + $0x328] sm:$0xf]
      %v1984 = vld [vmem:[%s9 + $0x32c] sm:$0xf]
      %v1985 = vld [vmem:[%s9 + $0x330] sm:$0xf]
      %v1986 = vld [vmem:[%s9 + $0x334] sm:$0xf]
      %v1987 = vld [vmem:[%s9 + $0x338] sm:$0xf]
      %v1988 = vld [vmem:[%s9 + $0x33c] sm:$0xf]
      %v1989 = vld [vmem:[%s9 + $0x340] sm:$0xf]
      %v1990 = vld [vmem:[%s9 + $0x344] sm:$0xf]
      %v1991 = vld [vmem:[%s9 + $0x348] sm:$0xf]
      %v1992 = vld [vmem:[%s9 + $0x34c] sm:$0xf]
      %v1993 = vld [vmem:[%s9 + $0x350] sm:$0xf]
      %v1994 = vld [vmem:[%s9 + $0x354] sm:$0xf]
      %v1995 = vld [vmem:[%s9 + $0x358] sm:$0xf]
      %v1996 = vld [vmem:[%s9 + $0x35c] sm:$0xf]
      %v1997 = vld [vmem:[%s9 + $0x360] sm:$0xf]
      %v1998 = vld [vmem:[%s9 + $0x364] sm:$0xf]
      %v1999 = vld [vmem:[%s9 + $0x368] sm:$0xf]
      %v2000 = vld [vmem:[%s9 + $0x36c] sm:$0xf]
      %v2001 = vld [vmem:[%s9 + $0x370] sm:$0xf]
      %v2002 = vld [vmem:[%s9 + $0x374] sm:$0xf]
      %v2003 = vld [vmem:[%s9 + $0x378] sm:$0xf]
      %v2004 = vld [vmem:[%s9 + $0x37c] sm:$0xf]
      %v2005 = vld [vmem:[%s9 + $0x380] sm:$0xf]
      %v2006 = vld [vmem:[%s9 + $0x384] sm:$0xf]
      %v2007 = vld [vmem:[%s9 + $0x388] sm:$0xf]
      %v2008 = vld [vmem:[%s9 + $0x38c] sm:$0xf]
      %v2009 = vld [vmem:[%s9 + $0x390] sm:$0xf]
      %v2010 = vld [vmem:[%s9 + $0x394] sm:$0xf]
      %v2011 = vld [vmem:[%s9 + $0x398] sm:$0xf]
      %v2012 = vld [vmem:[%s9 + $0x39c] sm:$0xf]
      %v2013 = vld [vmem:[%s9 + $0x3a0] sm:$0xf]
      %v2014 = vld [vmem:[%s9 + $0x3a4] sm:$0xf]
      %v2015 = vld [vmem:[%s9 + $0x3a8] sm:$0xf]
      %v2016 = vld [vmem:[%s9 + $0x3ac] sm:$0xf]
      %v2017 = vld [vmem:[%s9 + $0x3b0] sm:$0xf]
      %v2018 = vld [vmem:[%s9 + $0x3b4] sm:$0xf]
      %v2019 = vld [vmem:[%s9 + $0x3b8] sm:$0xf]
      %v2020 = vld [vmem:[%s9 + $0x3bc] sm:$0xf]
      %v2021 = vld [vmem:[%s9 + $0x3c0] sm:$0xf]
      %v2022 = vld [vmem:[%s9 + $0x3c4] sm:$0xf]
      %v2023 = vld [vmem:[%s9 + $0x3c8] sm:$0xf]
      %v2024 = vld [vmem:[%s9 + $0x3cc] sm:$0xf]
      %v2025 = vld [vmem:[%s9 + $0x3d0] sm:$0xf]
      %v2026 = vld [vmem:[%s9 + $0x3d4] sm:$0xf]
      %v2027 = vld [vmem:[%s9 + $0x3d8] sm:$0xf]
      %v2028 = vld [vmem:[%s9 + $0x3dc] sm:$0xf]
      %v2029 = vld [vmem:[%s9 + $0x3e0] sm:$0xf]
      %v2030 = vld [vmem:[%s9 + $0x3e4] sm:$0xf]
      %v2031 = vld [vmem:[%s9 + $0x3e8] sm:$0xf]
      %v2032 = vld [vmem:[%s9 + $0x3ec] sm:$0xf]
      %v2033 = vld [vmem:[%s9 + $0x3f0] sm:$0xf]
      %v2034 = vld [vmem:[%s9 + $0x3f4] sm:$0xf]
      %v2035 = vld [vmem:[%s9 + $0x3f8] sm:$0xf]
      %v2036 = vld [vmem:[%s9 + $0x3fc] sm:$0xf]
      %v2037 = vld [vmem:[%s10] sm:$0x1]
      %v2039 = vperm.slane %v2037, 0
      %v2297 = vunpack.c.l.b16 %v1781
      %v2298 = vunpack.c.l.b16 %v1782
      %v2299 = vunpack.c.l.b16 %v1783
      %v2300 = vunpack.c.l.b16 %v1784
      %v2301 = vunpack.c.l.b16 %v1785
      %v2302 = vunpack.c.l.b16 %v1786
      %v2303 = vunpack.c.l.b16 %v1787
      %v2304 = vunpack.c.l.b16 %v1788
      %v2305 = vunpack.c.l.b16 %v1789
      %v2306 = vunpack.c.l.b16 %v1790
      %v2307 = vunpack.c.l.b16 %v1791
      %v2308 = vunpack.c.l.b16 %v1792
      %v2309 = vunpack.c.l.b16 %v1793
      %v2310 = vunpack.c.l.b16 %v1794
      %v2311 = vunpack.c.l.b16 %v1795
      %v2312 = vunpack.c.l.b16 %v1796
      %v2313 = vunpack.c.l.b16 %v1797
      %v2314 = vunpack.c.l.b16 %v1798
      %v2315 = vunpack.c.l.b16 %v1799
      %v2316 = vunpack.c.l.b16 %v1800
      %v2317 = vunpack.c.l.b16 %v1801
      %v2318 = vunpack.c.l.b16 %v1802
      %v2319 = vunpack.c.l.b16 %v1803
      %v2320 = vunpack.c.l.b16 %v1804
      %v2321 = vunpack.c.l.b16 %v1805
      %v2322 = vunpack.c.l.b16 %v1806
      %v2323 = vunpack.c.l.b16 %v1807
      %v2324 = vunpack.c.l.b16 %v1808
      %v2325 = vunpack.c.l.b16 %v1809
      %v2326 = vunpack.c.l.b16 %v1810
      %v2327 = vunpack.c.l.b16 %v1811
      %v2328 = vunpack.c.l.b16 %v1812
      %v2329 = vunpack.c.l.b16 %v1813
      %v2330 = vunpack.c.l.b16 %v1814
      %v2331 = vunpack.c.l.b16 %v1815
      %v2332 = vunpack.c.l.b16 %v1816
      %v2333 = vunpack.c.l.b16 %v1817
      %v2334 = vunpack.c.l.b16 %v1818
      %v2335 = vunpack.c.l.b16 %v1819
      %v2336 = vunpack.c.l.b16 %v1820
      %v2337 = vunpack.c.l.b16 %v1821
      %v2338 = vunpack.c.l.b16 %v1822
      %v2339 = vunpack.c.l.b16 %v1823
      %v2340 = vunpack.c.l.b16 %v1824
      %v2341 = vunpack.c.l.b16 %v1825
      %v2342 = vunpack.c.l.b16 %v1826
      %v2343 = vunpack.c.l.b16 %v1827
      %v2344 = vunpack.c.l.b16 %v1828
      %v2345 = vunpack.c.l.b16 %v1829
      %v2346 = vunpack.c.l.b16 %v1830
      %v2347 = vunpack.c.l.b16 %v1831
      %v2348 = vunpack.c.l.b16 %v1832
      %v2349 = vunpack.c.l.b16 %v1833
      %v2350 = vunpack.c.l.b16 %v1834
      %v2351 = vunpack.c.l.b16 %v1835
      %v2352 = vunpack.c.l.b16 %v1836
      %v2353 = vunpack.c.l.b16 %v1837
      %v2354 = vunpack.c.l.b16 %v1838
      %v2355 = vunpack.c.l.b16 %v1839
      %v2356 = vunpack.c.l.b16 %v1840
      %v2357 = vunpack.c.l.b16 %v1841
      %v2358 = vunpack.c.l.b16 %v1842
      %v2359 = vunpack.c.l.b16 %v1843
      %v2360 = vunpack.c.l.b16 %v1844
      %v2361 = vunpack.c.l.b16 %v1845
      %v2362 = vunpack.c.l.b16 %v1846
      %v2363 = vunpack.c.l.b16 %v1847
      %v2364 = vunpack.c.l.b16 %v1848
      %v2365 = vunpack.c.l.b16 %v1849
      %v2366 = vunpack.c.l.b16 %v1850
      %v2367 = vunpack.c.l.b16 %v1851
      %v2368 = vunpack.c.l.b16 %v1852
      %v2369 = vunpack.c.l.b16 %v1853
      %v2370 = vunpack.c.l.b16 %v1854
      %v2371 = vunpack.c.l.b16 %v1855
      %v2372 = vunpack.c.l.b16 %v1856
      %v2373 = vunpack.c.l.b16 %v1857
      %v2374 = vunpack.c.l.b16 %v1858
      %v2375 = vunpack.c.l.b16 %v1859
      %v2376 = vunpack.c.l.b16 %v1860
      %v2377 = vunpack.c.l.b16 %v1861
      %v2378 = vunpack.c.l.b16 %v1862
      %v2379 = vunpack.c.l.b16 %v1863
      %v2380 = vunpack.c.l.b16 %v1864
      %v2381 = vunpack.c.l.b16 %v1865
      %v2382 = vunpack.c.l.b16 %v1866
      %v2383 = vunpack.c.l.b16 %v1867
      %v2384 = vunpack.c.l.b16 %v1868
      %v2385 = vunpack.c.l.b16 %v1869
      %v2386 = vunpack.c.l.b16 %v1870
      %v2387 = vunpack.c.l.b16 %v1871
      %v2388 = vunpack.c.l.b16 %v1872
      %v2389 = vunpack.c.l.b16 %v1873
      %v2390 = vunpack.c.l.b16 %v1874
      %v2391 = vunpack.c.l.b16 %v1875
      %v2392 = vunpack.c.l.b16 %v1876
      %v2393 = vunpack.c.l.b16 %v1877
      %v2394 = vunpack.c.l.b16 %v1878
      %v2395 = vunpack.c.l.b16 %v1879
      %v2396 = vunpack.c.l.b16 %v1880
      %v2397 = vunpack.c.l.b16 %v1881
      %v2398 = vunpack.c.l.b16 %v1882
      %v2399 = vunpack.c.l.b16 %v1883
      %v2400 = vunpack.c.l.b16 %v1884
      %v2401 = vunpack.c.l.b16 %v1885
      %v2402 = vunpack.c.l.b16 %v1886
      %v2403 = vunpack.c.l.b16 %v1887
      %v2404 = vunpack.c.l.b16 %v1888
      %v2405 = vunpack.c.l.b16 %v1889
      %v2406 = vunpack.c.l.b16 %v1890
      %v2407 = vunpack.c.l.b16 %v1891
      %v2408 = vunpack.c.l.b16 %v1892
      %v2409 = vunpack.c.l.b16 %v1893
      %v2410 = vunpack.c.l.b16 %v1894
      %v2411 = vunpack.c.l.b16 %v1895
      %v2412 = vunpack.c.l.b16 %v1896
      %v2413 = vunpack.c.l.b16 %v1897
      %v2414 = vunpack.c.l.b16 %v1898
      %v2415 = vunpack.c.l.b16 %v1899
      %v2416 = vunpack.c.l.b16 %v1900
      %v2417 = vunpack.c.l.b16 %v1901
      %v2418 = vunpack.c.l.b16 %v1902
      %v2419 = vunpack.c.l.b16 %v1903
      %v2420 = vunpack.c.l.b16 %v1904
      %v2421 = vunpack.c.l.b16 %v1905
      %v2422 = vunpack.c.l.b16 %v1906
      %v2423 = vunpack.c.l.b16 %v1907
      %v2424 = vunpack.c.l.b16 %v1908
      %v2425 = vunpack.c.l.b16 %v1909
      %v2426 = vunpack.c.l.b16 %v1910
      %v2427 = vunpack.c.l.b16 %v1911
      %v2428 = vunpack.c.l.b16 %v1912
      %v2429 = vunpack.c.l.b16 %v1913
      %v2430 = vunpack.c.l.b16 %v1914
      %v2431 = vunpack.c.l.b16 %v1915
      %v2432 = vunpack.c.l.b16 %v1916
      %v2433 = vunpack.c.l.b16 %v1917
      %v2434 = vunpack.c.l.b16 %v1918
      %v2435 = vunpack.c.l.b16 %v1919
      %v2436 = vunpack.c.l.b16 %v1920
      %v2437 = vunpack.c.l.b16 %v1921
      %v2438 = vunpack.c.l.b16 %v1922
      %v2439 = vunpack.c.l.b16 %v1923
      %v2440 = vunpack.c.l.b16 %v1924
      %v2441 = vunpack.c.l.b16 %v1925
      %v2442 = vunpack.c.l.b16 %v1926
      %v2443 = vunpack.c.l.b16 %v1927
      %v2444 = vunpack.c.l.b16 %v1928
      %v2445 = vunpack.c.l.b16 %v1929
      %v2446 = vunpack.c.l.b16 %v1930
      %v2447 = vunpack.c.l.b16 %v1931
      %v2448 = vunpack.c.l.b16 %v1932
      %v2449 = vunpack.c.l.b16 %v1933
      %v2450 = vunpack.c.l.b16 %v1934
      %v2451 = vunpack.c.l.b16 %v1935
      %v2452 = vunpack.c.l.b16 %v1936
      %v2453 = vunpack.c.l.b16 %v1937
      %v2454 = vunpack.c.l.b16 %v1938
      %v2455 = vunpack.c.l.b16 %v1939
      %v2456 = vunpack.c.l.b16 %v1940
      %v2457 = vunpack.c.l.b16 %v1941
      %v2458 = vunpack.c.l.b16 %v1942
      %v2459 = vunpack.c.l.b16 %v1943
      %v2460 = vunpack.c.l.b16 %v1944
      %v2461 = vunpack.c.l.b16 %v1945
      %v2462 = vunpack.c.l.b16 %v1946
      %v2463 = vunpack.c.l.b16 %v1947
      %v2464 = vunpack.c.l.b16 %v1948
      %v2465 = vunpack.c.l.b16 %v1949
      %v2466 = vunpack.c.l.b16 %v1950
      %v2467 = vunpack.c.l.b16 %v1951
      %v2468 = vunpack.c.l.b16 %v1952
      %v2469 = vunpack.c.l.b16 %v1953
      %v2470 = vunpack.c.l.b16 %v1954
      %v2471 = vunpack.c.l.b16 %v1955
      %v2472 = vunpack.c.l.b16 %v1956
      %v2473 = vunpack.c.l.b16 %v1957
      %v2474 = vunpack.c.l.b16 %v1958
      %v2475 = vunpack.c.l.b16 %v1959
      %v2476 = vunpack.c.l.b16 %v1960
      %v2477 = vunpack.c.l.b16 %v1961
      %v2478 = vunpack.c.l.b16 %v1962
      %v2479 = vunpack.c.l.b16 %v1963
      %v2480 = vunpack.c.l.b16 %v1964
      %v2481 = vunpack.c.l.b16 %v1965
      %v2482 = vunpack.c.l.b16 %v1966
      %v2483 = vunpack.c.l.b16 %v1967
      %v2484 = vunpack.c.l.b16 %v1968
      %v2485 = vunpack.c.l.b16 %v1969
      %v2486 = vunpack.c.l.b16 %v1970
      %v2487 = vunpack.c.l.b16 %v1971
      %v2488 = vunpack.c.l.b16 %v1972
      %v2489 = vunpack.c.l.b16 %v1973
      %v2490 = vunpack.c.l.b16 %v1974
      %v2491 = vunpack.c.l.b16 %v1975
      %v2492 = vunpack.c.l.b16 %v1976
      %v2493 = vunpack.c.l.b16 %v1977
      %v2494 = vunpack.c.l.b16 %v1978
      %v2495 = vunpack.c.l.b16 %v1979
      %v2496 = vunpack.c.l.b16 %v1980
      %v2497 = vunpack.c.l.b16 %v1981
      %v2498 = vunpack.c.l.b16 %v1982
      %v2499 = vunpack.c.l.b16 %v1983
      %v2500 = vunpack.c.l.b16 %v1984
      %v2501 = vunpack.c.l.b16 %v1985
      %v2502 = vunpack.c.l.b16 %v1986
      %v2503 = vunpack.c.l.b16 %v1987
      %v2504 = vunpack.c.l.b16 %v1988
      %v2505 = vunpack.c.l.b16 %v1989
      %v2506 = vunpack.c.l.b16 %v1990
      %v2507 = vunpack.c.l.b16 %v1991
      %v2508 = vunpack.c.l.b16 %v1992
      %v2509 = vunpack.c.l.b16 %v1993
      %v2510 = vunpack.c.l.b16 %v1994
      %v2511 = vunpack.c.l.b16 %v1995
      %v2512 = vunpack.c.l.b16 %v1996
      %v2513 = vunpack.c.l.b16 %v1997
      %v2514 = vunpack.c.l.b16 %v1998
      %v2515 = vunpack.c.l.b16 %v1999
      %v2516 = vunpack.c.l.b16 %v2000
      %v2517 = vunpack.c.l.b16 %v2001
      %v2518 = vunpack.c.l.b16 %v2002
      %v2519 = vunpack.c.l.b16 %v2003
      %v2520 = vunpack.c.l.b16 %v2004
      %v2521 = vunpack.c.l.b16 %v2005
      %v2522 = vunpack.c.l.b16 %v2006
      %v2523 = vunpack.c.l.b16 %v2007
      %v2524 = vunpack.c.l.b16 %v2008
      %v2525 = vunpack.c.l.b16 %v2009
      %v2526 = vunpack.c.l.b16 %v2010
      %v2527 = vunpack.c.l.b16 %v2011
      %v2528 = vunpack.c.l.b16 %v2012
      %v2529 = vunpack.c.l.b16 %v2013
      %v2530 = vunpack.c.l.b16 %v2014
      %v2531 = vunpack.c.l.b16 %v2015
      %v2532 = vunpack.c.l.b16 %v2016
      %v2533 = vunpack.c.l.b16 %v2017
      %v2534 = vunpack.c.l.b16 %v2018
      %v2535 = vunpack.c.l.b16 %v2019
      %v2536 = vunpack.c.l.b16 %v2020
      %v2537 = vunpack.c.l.b16 %v2021
      %v2538 = vunpack.c.l.b16 %v2022
      %v2539 = vunpack.c.l.b16 %v2023
      %v2540 = vunpack.c.l.b16 %v2024
      %v2541 = vunpack.c.l.b16 %v2025
      %v2542 = vunpack.c.l.b16 %v2026
      %v2543 = vunpack.c.l.b16 %v2027
      %v2544 = vunpack.c.l.b16 %v2028
      %v2545 = vunpack.c.l.b16 %v2029
      %v2546 = vunpack.c.l.b16 %v2030
      %v2547 = vunpack.c.l.b16 %v2031
      %v2548 = vunpack.c.l.b16 %v2032
      %v2549 = vunpack.c.l.b16 %v2033
      %v2550 = vunpack.c.l.b16 %v2034
      %v2551 = vunpack.c.l.b16 %v2035
      %v2552 = vunpack.c.l.b16 %v2036
      %v2553 = vpack.c.b16 %v2298, %v2297
      %v2554 = vpack.c.b16 %v2300, %v2299
      %v2555 = vpack.c.b16 %v2302, %v2301
      %v2556 = vpack.c.b16 %v2304, %v2303
      %v2557 = vpack.c.b16 %v2306, %v2305
      %v2558 = vpack.c.b16 %v2308, %v2307
      %v2559 = vpack.c.b16 %v2310, %v2309
      %v2560 = vpack.c.b16 %v2312, %v2311
      %v2561 = vpack.c.b16 %v2314, %v2313
      %v2562 = vpack.c.b16 %v2316, %v2315
      %v2563 = vpack.c.b16 %v2318, %v2317
      %v2564 = vpack.c.b16 %v2320, %v2319
      %v2565 = vpack.c.b16 %v2322, %v2321
      %v2566 = vpack.c.b16 %v2324, %v2323
      %v2567 = vpack.c.b16 %v2326, %v2325
      %v2568 = vpack.c.b16 %v2328, %v2327
      %v2569 = vpack.c.b16 %v2330, %v2329
      %v2570 = vpack.c.b16 %v2332, %v2331
      %v2571 = vpack.c.b16 %v2334, %v2333
      %v2572 = vpack.c.b16 %v2336, %v2335
      %v2573 = vpack.c.b16 %v2338, %v2337
      %v2574 = vpack.c.b16 %v2340, %v2339
      %v2575 = vpack.c.b16 %v2342, %v2341
      %v2576 = vpack.c.b16 %v2344, %v2343
      %v2577 = vpack.c.b16 %v2346, %v2345
      %v2578 = vpack.c.b16 %v2348, %v2347
      %v2579 = vpack.c.b16 %v2350, %v2349
      %v2580 = vpack.c.b16 %v2352, %v2351
      %v2581 = vpack.c.b16 %v2354, %v2353
      %v2582 = vpack.c.b16 %v2356, %v2355
      %v2583 = vpack.c.b16 %v2358, %v2357
      %v2584 = vpack.c.b16 %v2360, %v2359
      %v2585 = vpack.c.b16 %v2362, %v2361
      %v2586 = vpack.c.b16 %v2364, %v2363
      %v2587 = vpack.c.b16 %v2366, %v2365
      %v2588 = vpack.c.b16 %v2368, %v2367
      %v2589 = vpack.c.b16 %v2370, %v2369
      %v2590 = vpack.c.b16 %v2372, %v2371
      %v2591 = vpack.c.b16 %v2374, %v2373
      %v2592 = vpack.c.b16 %v2376, %v2375
      %v2593 = vpack.c.b16 %v2378, %v2377
      %v2594 = vpack.c.b16 %v2380, %v2379
      %v2595 = vpack.c.b16 %v2382, %v2381
      %v2596 = vpack.c.b16 %v2384, %v2383
      %v2597 = vpack.c.b16 %v2386, %v2385
      %v2598 = vpack.c.b16 %v2388, %v2387
      %v2599 = vpack.c.b16 %v2390, %v2389
      %v2600 = vpack.c.b16 %v2392, %v2391
      %v2601 = vpack.c.b16 %v2394, %v2393
      %v2602 = vpack.c.b16 %v2396, %v2395
      %v2603 = vpack.c.b16 %v2398, %v2397
      %v2604 = vpack.c.b16 %v2400, %v2399
      %v2605 = vpack.c.b16 %v2402, %v2401
      %v2606 = vpack.c.b16 %v2404, %v2403
      %v2607 = vpack.c.b16 %v2406, %v2405
      %v2608 = vpack.c.b16 %v2408, %v2407
      %v2609 = vpack.c.b16 %v2410, %v2409
      %v2610 = vpack.c.b16 %v2412, %v2411
      %v2611 = vpack.c.b16 %v2414, %v2413
      %v2612 = vpack.c.b16 %v2416, %v2415
      %v2613 = vpack.c.b16 %v2418, %v2417
      %v2614 = vpack.c.b16 %v2420, %v2419
      %v2615 = vpack.c.b16 %v2422, %v2421
      %v2616 = vpack.c.b16 %v2424, %v2423
      %v2617 = vpack.c.b16 %v2426, %v2425
      %v2618 = vpack.c.b16 %v2428, %v2427
      %v2619 = vpack.c.b16 %v2430, %v2429
      %v2620 = vpack.c.b16 %v2432, %v2431
      %v2621 = vpack.c.b16 %v2434, %v2433
      %v2622 = vpack.c.b16 %v2436, %v2435
      %v2623 = vpack.c.b16 %v2438, %v2437
      %v2624 = vpack.c.b16 %v2440, %v2439
      %v2625 = vpack.c.b16 %v2442, %v2441
      %v2626 = vpack.c.b16 %v2444, %v2443
      %v2627 = vpack.c.b16 %v2446, %v2445
      %v2628 = vpack.c.b16 %v2448, %v2447
      %v2629 = vpack.c.b16 %v2450, %v2449
      %v2630 = vpack.c.b16 %v2452, %v2451
      %v2631 = vpack.c.b16 %v2454, %v2453
      %v2632 = vpack.c.b16 %v2456, %v2455
      %v2633 = vpack.c.b16 %v2458, %v2457
      %v2634 = vpack.c.b16 %v2460, %v2459
      %v2635 = vpack.c.b16 %v2462, %v2461
      %v2636 = vpack.c.b16 %v2464, %v2463
      %v2637 = vpack.c.b16 %v2466, %v2465
      %v2638 = vpack.c.b16 %v2468, %v2467
      %v2639 = vpack.c.b16 %v2470, %v2469
      %v2640 = vpack.c.b16 %v2472, %v2471
      %v2641 = vpack.c.b16 %v2474, %v2473
      %v2642 = vpack.c.b16 %v2476, %v2475
      %v2643 = vpack.c.b16 %v2478, %v2477
      %v2644 = vpack.c.b16 %v2480, %v2479
      %v2645 = vpack.c.b16 %v2482, %v2481
      %v2646 = vpack.c.b16 %v2484, %v2483
      %v2647 = vpack.c.b16 %v2486, %v2485
      %v2648 = vpack.c.b16 %v2488, %v2487
      %v2649 = vpack.c.b16 %v2490, %v2489
      %v2650 = vpack.c.b16 %v2492, %v2491
      %v2651 = vpack.c.b16 %v2494, %v2493
      %v2652 = vpack.c.b16 %v2496, %v2495
      %v2653 = vpack.c.b16 %v2498, %v2497
      %v2654 = vpack.c.b16 %v2500, %v2499
      %v2655 = vpack.c.b16 %v2502, %v2501
      %v2656 = vpack.c.b16 %v2504, %v2503
      %v2657 = vpack.c.b16 %v2506, %v2505
      %v2658 = vpack.c.b16 %v2508, %v2507
      %v2659 = vpack.c.b16 %v2510, %v2509
      %v2660 = vpack.c.b16 %v2512, %v2511
      %v2661 = vpack.c.b16 %v2514, %v2513
      %v2662 = vpack.c.b16 %v2516, %v2515
      %v2663 = vpack.c.b16 %v2518, %v2517
      %v2664 = vpack.c.b16 %v2520, %v2519
      %v2665 = vpack.c.b16 %v2522, %v2521
      %v2666 = vpack.c.b16 %v2524, %v2523
      %v2667 = vpack.c.b16 %v2526, %v2525
      %v2668 = vpack.c.b16 %v2528, %v2527
      %v2669 = vpack.c.b16 %v2530, %v2529
      %v2670 = vpack.c.b16 %v2532, %v2531
      %v2671 = vpack.c.b16 %v2534, %v2533
      %v2672 = vpack.c.b16 %v2536, %v2535
      %v2673 = vpack.c.b16 %v2538, %v2537
      %v2674 = vpack.c.b16 %v2540, %v2539
      %v2675 = vpack.c.b16 %v2542, %v2541
      %v2676 = vpack.c.b16 %v2544, %v2543
      %v2677 = vpack.c.b16 %v2546, %v2545
      %v2678 = vpack.c.b16 %v2548, %v2547
      %v2679 = vpack.c.b16 %v2550, %v2549
      %v2680 = vpack.c.b16 %v2552, %v2551
      %2809 = vmatpush.bf16.msra.mxu0 %v2560
      %2810 = vmatpush.bf16.msra.mxu0 %v2559
      %2811 = vmatpush.bf16.msra.mxu0 %v2558
      %2812 = vmatpush.bf16.msra.mxu0 %v2557
      %2813 = vmatpush.bf16.msra.mxu0 %v2556
      %2814 = vmatpush.bf16.msra.mxu0 %v2555
      %2815 = vmatpush.bf16.msra.mxu0 %v2554
      %2816 = vmatpush.bf16.msra.mxu0 %v2553
      %2817 = vmatmul.bf16.gmra.mxu0 %v1765
      %v2818 = vpop.f32.mrf.mxu0
      %v2819 = vadd.f32 %v2039, %v2818
      %v2820 = vpop.f32.mrf.mxu0
      %2821 = vdwg.mxu0
      %2822 = vmatpush.bf16.msra.mxu0 %v2568
      %2823 = vmatpush.bf16.msra.mxu0 %v2567
      %2824 = vmatpush.bf16.msra.mxu0 %v2566
      %2825 = vmatpush.bf16.msra.mxu0 %v2565
      %2826 = vmatpush.bf16.msra.mxu0 %v2564
      %2827 = vmatpush.bf16.msra.mxu0 %v2563
      %2828 = vmatpush.bf16.msra.mxu0 %v2562
      %2829 = vmatpush.bf16.msra.mxu0 %v2561
      %2830 = vmatmul.bf16.gmra.mxu0 %v1766
      %v2831 = vpop.f32.mrf.mxu0
      %v2832 = vadd.f32 %v2819, %v2831
      %v2833 = vpop.f32.mrf.mxu0
      %2834 = vdwg.mxu0
      %2835 = vmatpush.bf16.msra.mxu0 %v2576
      %2836 = vmatpush.bf16.msra.mxu0 %v2575
      %2837 = vmatpush.bf16.msra.mxu0 %v2574
      %2838 = vmatpush.bf16.msra.mxu0 %v2573
      %2839 = vmatpush.bf16.msra.mxu0 %v2572
      %2840 = vmatpush.bf16.msra.mxu0 %v2571
      %2841 = vmatpush.bf16.msra.mxu0 %v2570
      %2842 = vmatpush.bf16.msra.mxu0 %v2569
      %2843 = vmatmul.bf16.gmra.mxu0 %v1767
      %v2844 = vpop.f32.mrf.mxu0
      %v2845 = vadd.f32 %v2832, %v2844
      %v2846 = vpop.f32.mrf.mxu0
      %2847 = vdwg.mxu0
      %2848 = vmatpush.bf16.msra.mxu0 %v2584
      %2849 = vmatpush.bf16.msra.mxu0 %v2583
      %2850 = vmatpush.bf16.msra.mxu0 %v2582
      %2851 = vmatpush.bf16.msra.mxu0 %v2581
      %2852 = vmatpush.bf16.msra.mxu0 %v2580
      %2853 = vmatpush.bf16.msra.mxu0 %v2579
      %2854 = vmatpush.bf16.msra.mxu0 %v2578
      %2855 = vmatpush.bf16.msra.mxu0 %v2577
      %2856 = vmatmul.bf16.gmra.mxu0 %v1768
      %v2857 = vpop.f32.mrf.mxu0
      %v2858 = vadd.f32 %v2845, %v2857
      %v2859 = vpop.f32.mrf.mxu0
      %2860 = vdwg.mxu0
      %2861 = vmatpush.bf16.msra.mxu0 %v2592
      %2862 = vmatpush.bf16.msra.mxu0 %v2591
      %2863 = vmatpush.bf16.msra.mxu0 %v2590
      %2864 = vmatpush.bf16.msra.mxu0 %v2589
      %2865 = vmatpush.bf16.msra.mxu0 %v2588
      %2866 = vmatpush.bf16.msra.mxu0 %v2587
      %2867 = vmatpush.bf16.msra.mxu0 %v2586
      %2868 = vmatpush.bf16.msra.mxu0 %v2585
      %2869 = vmatmul.bf16.gmra.mxu0 %v1769
      %v2870 = vpop.f32.mrf.mxu0
      %v2871 = vadd.f32 %v2858, %v2870
      %v2872 = vpop.f32.mrf.mxu0
      %2873 = vdwg.mxu0
      %2874 = vmatpush.bf16.msra.mxu0 %v2600
      %2875 = vmatpush.bf16.msra.mxu0 %v2599
      %2876 = vmatpush.bf16.msra.mxu0 %v2598
      %2877 = vmatpush.bf16.msra.mxu0 %v2597
      %2878 = vmatpush.bf16.msra.mxu0 %v2596
      %2879 = vmatpush.bf16.msra.mxu0 %v2595
      %2880 = vmatpush.bf16.msra.mxu0 %v2594
      %2881 = vmatpush.bf16.msra.mxu0 %v2593
      %2882 = vmatmul.bf16.gmra.mxu0 %v1770
      %v2883 = vpop.f32.mrf.mxu0
      %v2884 = vadd.f32 %v2871, %v2883
      %v2885 = vpop.f32.mrf.mxu0
      %2886 = vdwg.mxu0
      %2887 = vmatpush.bf16.msra.mxu0 %v2608
      %2888 = vmatpush.bf16.msra.mxu0 %v2607
      %2889 = vmatpush.bf16.msra.mxu0 %v2606
      %2890 = vmatpush.bf16.msra.mxu0 %v2605
      %2891 = vmatpush.bf16.msra.mxu0 %v2604
      %2892 = vmatpush.bf16.msra.mxu0 %v2603
      %2893 = vmatpush.bf16.msra.mxu0 %v2602
      %2894 = vmatpush.bf16.msra.mxu0 %v2601
      %2895 = vmatmul.bf16.gmra.mxu0 %v1771
      %v2896 = vpop.f32.mrf.mxu0
      %v2897 = vadd.f32 %v2884, %v2896
      %v2898 = vpop.f32.mrf.mxu0
      %2899 = vdwg.mxu0
      %2900 = vmatpush.bf16.msra.mxu0 %v2616
      %2901 = vmatpush.bf16.msra.mxu0 %v2615
      %2902 = vmatpush.bf16.msra.mxu0 %v2614
      %2903 = vmatpush.bf16.msra.mxu0 %v2613
      %2904 = vmatpush.bf16.msra.mxu0 %v2612
      %2905 = vmatpush.bf16.msra.mxu0 %v2611
      %2906 = vmatpush.bf16.msra.mxu0 %v2610
      %2907 = vmatpush.bf16.msra.mxu0 %v2609
      %2908 = vmatmul.bf16.gmra.mxu0 %v1772
      %v2909 = vpop.f32.mrf.mxu0
      %v2910 = vadd.f32 %v2897, %v2909
      %v2911 = vpop.f32.mrf.mxu0
      %2912 = vdwg.mxu0
      %2913 = vmatpush.bf16.msra.mxu0 %v2624
      %2914 = vmatpush.bf16.msra.mxu0 %v2623
      %2915 = vmatpush.bf16.msra.mxu0 %v2622
      %2916 = vmatpush.bf16.msra.mxu0 %v2621
      %2917 = vmatpush.bf16.msra.mxu0 %v2620
      %2918 = vmatpush.bf16.msra.mxu0 %v2619
      %2919 = vmatpush.bf16.msra.mxu0 %v2618
      %2920 = vmatpush.bf16.msra.mxu0 %v2617
      %2921 = vmatmul.bf16.gmra.mxu0 %v1773
      %v2922 = vpop.f32.mrf.mxu0
      %v2923 = vadd.f32 %v2910, %v2922
      %v2924 = vpop.f32.mrf.mxu0
      %2925 = vdwg.mxu0
      %2926 = vmatpush.bf16.msra.mxu0 %v2632
      %2927 = vmatpush.bf16.msra.mxu0 %v2631
      %2928 = vmatpush.bf16.msra.mxu0 %v2630
      %2929 = vmatpush.bf16.msra.mxu0 %v2629
      %2930 = vmatpush.bf16.msra.mxu0 %v2628
      %2931 = vmatpush.bf16.msra.mxu0 %v2627
      %2932 = vmatpush.bf16.msra.mxu0 %v2626
      %2933 = vmatpush.bf16.msra.mxu0 %v2625
      %2934 = vmatmul.bf16.gmra.mxu0 %v1774
      %v2935 = vpop.f32.mrf.mxu0
      %v2936 = vadd.f32 %v2923, %v2935
      %v2937 = vpop.f32.mrf.mxu0
      %2938 = vdwg.mxu0
      %2939 = vmatpush.bf16.msra.mxu0 %v2640
      %2940 = vmatpush.bf16.msra.mxu0 %v2639
      %2941 = vmatpush.bf16.msra.mxu0 %v2638
      %2942 = vmatpush.bf16.msra.mxu0 %v2637
      %2943 = vmatpush.bf16.msra.mxu0 %v2636
      %2944 = vmatpush.bf16.msra.mxu0 %v2635
      %2945 = vmatpush.bf16.msra.mxu0 %v2634
      %2946 = vmatpush.bf16.msra.mxu0 %v2633
      %2947 = vmatmul.bf16.gmra.mxu0 %v1775
      %v2948 = vpop.f32.mrf.mxu0
      %v2949 = vadd.f32 %v2936, %v2948
      %v2950 = vpop.f32.mrf.mxu0
      %2951 = vdwg.mxu0
      %2952 = vmatpush.bf16.msra.mxu0 %v2648
      %2953 = vmatpush.bf16.msra.mxu0 %v2647
      %2954 = vmatpush.bf16.msra.mxu0 %v2646
      %2955 = vmatpush.bf16.msra.mxu0 %v2645
      %2956 = vmatpush.bf16.msra.mxu0 %v2644
      %2957 = vmatpush.bf16.msra.mxu0 %v2643
      %2958 = vmatpush.bf16.msra.mxu0 %v2642
      %2959 = vmatpush.bf16.msra.mxu0 %v2641
      %2960 = vmatmul.bf16.gmra.mxu0 %v1776
      %v2961 = vpop.f32.mrf.mxu0
      %v2962 = vadd.f32 %v2949, %v2961
      %v2963 = vpop.f32.mrf.mxu0
      %2964 = vdwg.mxu0
      %2965 = vmatpush.bf16.msra.mxu0 %v2656
      %2966 = vmatpush.bf16.msra.mxu0 %v2655
      %2967 = vmatpush.bf16.msra.mxu0 %v2654
      %2968 = vmatpush.bf16.msra.mxu0 %v2653
      %2969 = vmatpush.bf16.msra.mxu0 %v2652
      %2970 = vmatpush.bf16.msra.mxu0 %v2651
      %2971 = vmatpush.bf16.msra.mxu0 %v2650
      %2972 = vmatpush.bf16.msra.mxu0 %v2649
      %2973 = vmatmul.bf16.gmra.mxu0 %v1777
      %v2974 = vpop.f32.mrf.mxu0
      %v2975 = vadd.f32 %v2962, %v2974
      %v2976 = vpop.f32.mrf.mxu0
      %2977 = vdwg.mxu0
      %2978 = vmatpush.bf16.msra.mxu0 %v2664
      %2979 = vmatpush.bf16.msra.mxu0 %v2663
      %2980 = vmatpush.bf16.msra.mxu0 %v2662
      %2981 = vmatpush.bf16.msra.mxu0 %v2661
      %2982 = vmatpush.bf16.msra.mxu0 %v2660
      %2983 = vmatpush.bf16.msra.mxu0 %v2659
      %2984 = vmatpush.bf16.msra.mxu0 %v2658
      %2985 = vmatpush.bf16.msra.mxu0 %v2657
      %2986 = vmatmul.bf16.gmra.mxu0 %v1778
      %v2987 = vpop.f32.mrf.mxu0
      %v2988 = vadd.f32 %v2975, %v2987
      %v2989 = vpop.f32.mrf.mxu0
      %2990 = vdwg.mxu0
      %2991 = vmatpush.bf16.msra.mxu0 %v2672
      %2992 = vmatpush.bf16.msra.mxu0 %v2671
      %2993 = vmatpush.bf16.msra.mxu0 %v2670
      %2994 = vmatpush.bf16.msra.mxu0 %v2669
      %2995 = vmatpush.bf16.msra.mxu0 %v2668
      %2996 = vmatpush.bf16.msra.mxu0 %v2667
      %2997 = vmatpush.bf16.msra.mxu0 %v2666
      %2998 = vmatpush.bf16.msra.mxu0 %v2665
      %2999 = vmatmul.bf16.gmra.mxu0 %v1779
      %v3000 = vpop.f32.mrf.mxu0
      %v3001 = vadd.f32 %v2988, %v3000
      %v3002 = vpop.f32.mrf.mxu0
      %3003 = vdwg.mxu0
      %3004 = vmatpush.bf16.msra.mxu0 %v2680
      %3005 = vmatpush.bf16.msra.mxu0 %v2679
      %3006 = vmatpush.bf16.msra.mxu0 %v2678
      %3007 = vmatpush.bf16.msra.mxu0 %v2677
      %3008 = vmatpush.bf16.msra.mxu0 %v2676
      %3009 = vmatpush.bf16.msra.mxu0 %v2675
      %3010 = vmatpush.bf16.msra.mxu0 %v2674
      %3011 = vmatpush.bf16.msra.mxu0 %v2673
      %3012 = vmatmul.bf16.gmra.mxu0 %v1780
      %v3013 = vpop.f32.mrf.mxu0
      %v3014 = vadd.f32 %v3001, %v3013
      %v3015 = vpop.f32.mrf.mxu0
      %3016 = vdwg.mxu0
      %v3017 = vadd.f32 %v1116, %v3014
      %v3018 = vld [vmem:[%s11] sm:$0x1]
      %v3019 = vld [vmem:[%s12] sm:$0x1]
      %v3020 = vsel %vm493, %v3017, 0.0
      %3021 = vadd.xlane.f32.xlu0 %v3020
      %v3022 = vpop.xlane.xlu0 %3021
      %v3023 = vmul.f32 %v3022, %v1089
      %v3024 = vsub.f32 %v3017, %v3023
      %v3025 = vmul.f32 %v3024, %v3024
      %v3026 = vsel %vm493, %v3025, 0.0
      %3027 = vadd.xlane.f32.xlu0 %v3026
      %v3028 = vpop.xlane.xlu0 %3027
      %v3029 = vmul.f32 %v3028, %v1089
      %v3030 = vadd.f32 %v3029, 1e-05
      %v3031 = vrsqrt.pop %v3030
      %v3032 = vmul.f32 %v3031, %v3030
      %v3033 = vmul.f32 %v3032, %v3031
      %v3034 = vmul.f32 0.5, %v3033
      %v3035 = vsub.f32 1.5, %v3034
      %v3036 = vmul.f32 %v3031, %v3035
      %vm3037 = vweird.f32 %v3030
      %vm3038 = vweird.f32 %v3031
      %vm3039 = vmor %vm3037, %vm3038
      %v3040 = vsel %vm3039, %v3031, %v3036
      %v3041 = vmul.f32 %v3024, %v3040
      %v3043 = vperm.slane %v3018, 0
      %v3045 = vmul.f32 %v3041, %v3043
      %v3047 = vperm.slane %v3019, 0
      %v3049 = vadd.f32 %v3045, %v3047
      %3050 = vst.msk [vmem:[%s435] sm:$0xff] %vm493, %v3049
      %p3051 = scmp.lt.s32.totalorder %s24, 1
      %s3052 = scalar_select %p3051, %s24, 1
      %s3053 = smul.addr %s3052, 8
      %s3054 = scalar_lea.vmem %s13, %s3053
      // Predicated region
      $region73: #{multimodal_interaction.4} parent=71 // pred_check
        %p3055 = pneg %p320
      $region74: #{multimodal_interaction.4} parent=71 // pred_check_branch
        %3057 = sbr.rel (%p3055) target = $region76
      $region75: #{multimodal_interaction.4} parent=71 // pred_region
        _
      $region76: #{multimodal_interaction.4} parent=71 // pred_fallthru
        _
    $region72: #{multimodal_interaction.4} parent=5 // pred_fallthru
      _
    %p3058 = scmp.le.s32.totalorder 2, %s19
    // Predicated region
    $region77: #{multimodal_interaction.4} parent=5 // pred_check
      %p3059 = pneg %p3058
    $region78: #{multimodal_interaction.4} parent=5 // pred_check_branch
      %3061 = sbr.rel (%p3059) target = $region80
    $region79: #{multimodal_interaction.4} parent=5 // pred_region
      %s3062 = ssub.s32 %s19, 2
      // Predicated region
      $region81: #{multimodal_interaction.4} parent=79 // pred_check
        %p3063 = pneg %p326
      $region82: #{multimodal_interaction.4} parent=79 // pred_check_branch
        %3065 = sbr.rel (%p3063) target = $region84
      $region83: #{multimodal_interaction.4} parent=79 // pred_region
        %p3066 = scmp.lt.s32.totalorder %s25, 1
        %s3067 = scalar_select %p3066, %s25, 1
        %s3068 = smul.addr %s3067, 8
        %s3069 = scalar_lea.vmem %s13, %s3068
      $region84: #{multimodal_interaction.4} parent=79 // pred_fallthru
        _
    $region80: #{multimodal_interaction.4} parent=5 // pred_fallthru
      _
  $region6: #{multimodal_interaction.4} parent=0 // loop_footer
    %s23 = sadd.s32 1, %s19
  $region7: #{multimodal_interaction.4} parent=0 // loop_footer_branch
    %18 = sbr.rel target = $region3
  $region8: #{multimodal_interaction.4} parent=0 // loop_exit
    _

// kernel: multimodal_interaction.5
$region0: #{multimodal_interaction.5}
  #allocation0 [shape = 'u32[]', space=smem, size = 0x4, offset = 0x4, fixed_abs, tag = 'smem constant byte address 0x4 - core index']
  #allocation1 [shape = 'u32[72,128]{1,0:T(1,128)}', space=vmem, size = 0x9000, scoped, tag = 'internal scratch']
  %s0 = inlined_call_operand.vmem [shape: f32[2,8,64], index: 0, kind: input, shape index: {}]
  %s1 = inlined_call_operand.vmem [shape: bf16[64,192], index: 1, kind: input, shape index: {}]
  %s2 = inlined_call_operand.vmem [shape: f32[1,192], index: 2, kind: input, shape index: {}]
  %s3 = inlined_call_operand.vmem [shape: bf16[64,64], index: 3, kind: input, shape index: {}]
  %s4 = inlined_call_operand.vmem [shape: f32[1,64], index: 4, kind: input, shape index: {}]
  %s5 = inlined_call_operand.vmem [shape: f32[1,64], index: 5, kind: input, shape index: {}]
  %s6 = inlined_call_operand.vmem [shape: f32[1,64], index: 6, kind: input, shape index: {}]
  %s7 = inlined_call_operand.vmem [shape: bf16[64,2048], index: 7, kind: input, shape index: {}]
  %s8 = inlined_call_operand.vmem [shape: f32[1,2048], index: 8, kind: input, shape index: {}]
  %s9 = inlined_call_operand.vmem [shape: bf16[2048,64], index: 9, kind: input, shape index: {}]
  %s10 = inlined_call_operand.vmem [shape: f32[1,64], index: 10, kind: input, shape index: {}]
  %s11 = inlined_call_operand.vmem [shape: f32[1,64], index: 11, kind: input, shape index: {}]
  %s12 = inlined_call_operand.vmem [shape: f32[1,64], index: 12, kind: input, shape index: {}]
  %s13 = inlined_call_operand.hbm [shape: f32[2,8,64], index: 13, kind: output, shape index: {}]
  %s14 = sld [smem:[#allocation0]]
  $region85: #{multimodal_interaction.5} parent=0
    _
  %s16 = ssub.s32 1, %s14
  %s17 = scalar_select 0, %s16, %s14
  $region1: #{multimodal_interaction.5} parent=0
    #allocation2 [shape = 'u8[8192]{0}', space=vmem, size = 0x2000, scoped, tag = 'output window, operand 0']
    #allocation3 [shape = 's32[2]{0}', space=sflag, size = 0x8, scoped, tag = 'scoped memory for multimodal_interaction.5']
    %18 = vsyncpa [#allocation3], 0
    %s19 = scalar_lea.sflag [#allocation3], 1
    %20 = vsyncpa %s19, 0
    loop: start=0, step=1, limit=4
    $region2: #{multimodal_interaction.5} parent=1 // loop_pre_header
      _
    $region3: #{multimodal_interaction.5} parent=1 // loop_header
      %s22 = sphi 0, %s26
      %p23 = scmp.ge.s32.totalorder %s22, 4
      %s32 = sphi 0, %s34
      %s35 = sphi 0, %s32
      %s36 = sphi 0, %s35
      %s52 = sphi 0, %s36
      %s56 = sphi 0, %s56
      %s58 = sphi 0, %s56
      %s59 = sphi 0, %s58
      %s73 = sphi 0, %s59
      %s77 = sphi 0, %s77
      %s79 = sphi 0, %s77
      %s80 = sphi 0, %s79
      %s94 = sphi 0, %s80
      %s98 = sphi 0, %s98
      %s100 = sphi 0, %s98
      %s101 = sphi 0, %s100
      %s115 = sphi 0, %s101
      %s119 = sphi 0, %s119
      %s121 = sphi 0, %s119
      %s122 = sphi 0, %s121
      %s136 = sphi 0, %s122
      %s140 = sphi 0, %s140
      %s142 = sphi 0, %s140
      %s143 = sphi 0, %s142
      %s157 = sphi 0, %s143
      %s161 = sphi 0, %s161
      %s163 = sphi 0, %s161
      %s164 = sphi 0, %s163
      %s178 = sphi 0, %s164
      %s182 = sphi 0, %s182
      %s184 = sphi 0, %s182
      %s185 = sphi 0, %s184
      %s199 = sphi 0, %s185
      %s203 = sphi 0, %s203
      %s205 = sphi 0, %s203
      %s206 = sphi 0, %s205
      %s220 = sphi 0, %s206
      %s224 = sphi 0, %s224
      %s226 = sphi 0, %s224
      %s227 = sphi 0, %s226
      %s241 = sphi 0, %s227
      %s245 = sphi 0, %s245
      %s247 = sphi 0, %s245
      %s248 = sphi 0, %s247
      %s262 = sphi 0, %s248
      %s266 = sphi 0, %s266
      %s268 = sphi 0, %s266
      %s269 = sphi 0, %s268
      %s283 = sphi 0, %s269
      %s287 = sphi 0, %s287
      %s289 = sphi 0, %s287
      %s290 = sphi 0, %s289
      %s304 = sphi 0, %s290
      %s310 = sphi 0, %s312
      %s313 = sphi 0, %s310
      %s314 = sphi 0, %s313
      %s330 = sphi 0, %s314
    $region4: #{multimodal_interaction.5} parent=1 // loop_header_branch
      %25 = sbr.rel (%p23) target = $region8
    $region5: #{multimodal_interaction.5} parent=1 // loop_body
      %s27 = ssub.s32 %s22, 1
      %s28 = ssub.s32 %s22, 2
      %s29 = sadd.s32 %s22, 1
      %s30 = ssub.s32 %s22, %s29
      %p31 = scmp.eq.s32.totalorder %s30, 0
      %s33 = sadd.s32 %s32, 1
      %s34 = scalar_select %p31, %s32, %s33
      %p37 = pneg %p31
      %p38 = scmp.eq.s32.totalorder %s22, 1
      %p39 = por %p37, %p38
      %p40 = scmp.ne.s32.totalorder %s32, %s35
      %p41 = scmp.eq.s32.totalorder %s22, 0
      %p42 = por %p40, %p41
      %p43 = scmp.ne.s32.totalorder %s32, %s35
      %p44 = scmp.eq.s32.totalorder %s27, 1
      %p45 = por %p43, %p44
      %p46 = scmp.ne.s32.totalorder %s35, %s36
      %p47 = scmp.eq.s32.totalorder %s27, 0
      %p48 = por %p46, %p47
      %p49 = scmp.ne.s32.totalorder %s35, %s36
      %p50 = scmp.eq.s32.totalorder %s28, 1
      %p51 = por %p49, %p50
      %p53 = scmp.ne.s32.totalorder %s36, %s52
      %p54 = scmp.eq.s32.totalorder %s28, 0
      %p55 = por %p53, %p54
      %s57 = sadd.s32 %s56, 1
      %p60 = scmp.eq.s32.totalorder %s22, 1
      %p61 = scmp.ne.s32.totalorder %s56, %s58
      %p62 = scmp.eq.s32.totalorder %s22, 0
      %p63 = por %p61, %p62
      %p64 = scmp.ne.s32.totalorder %s56, %s58
      %p65 = scmp.eq.s32.totalorder %s27, 1
      %p66 = por %p64, %p65
      %p67 = scmp.ne.s32.totalorder %s58, %s59
      %p68 = scmp.eq.s32.totalorder %s27, 0
      %p69 = por %p67, %p68
      %p70 = scmp.ne.s32.totalorder %s58, %s59
      %p71 = scmp.eq.s32.totalorder %s28, 1
      %p72 = por %p70, %p71
      %p74 = scmp.ne.s32.totalorder %s59, %s73
      %p75 = scmp.eq.s32.totalorder %s28, 0
      %p76 = por %p74, %p75
      %s78 = sadd.s32 %s77, 1
      %p81 = scmp.eq.s32.totalorder %s22, 1
      %p82 = scmp.ne.s32.totalorder %s77, %s79
      %p83 = scmp.eq.s32.totalorder %s22, 0
      %p84 = por %p82, %p83
      %p85 = scmp.ne.s32.totalorder %s77, %s79
      %p86 = scmp.eq.s32.totalorder %s27, 1
      %p87 = por %p85, %p86
      %p88 = scmp.ne.s32.totalorder %s79, %s80
      %p89 = scmp.eq.s32.totalorder %s27, 0
      %p90 = por %p88, %p89
      %p91 = scmp.ne.s32.totalorder %s79, %s80
      %p92 = scmp.eq.s32.totalorder %s28, 1
      %p93 = por %p91, %p92
      %p95 = scmp.ne.s32.totalorder %s80, %s94
      %p96 = scmp.eq.s32.totalorder %s28, 0
      %p97 = por %p95, %p96
      %s99 = sadd.s32 %s98, 1
      %p102 = scmp.eq.s32.totalorder %s22, 1
      %p103 = scmp.ne.s32.totalorder %s98, %s100
      %p104 = scmp.eq.s32.totalorder %s22, 0
      %p105 = por %p103, %p104
      %p106 = scmp.ne.s32.totalorder %s98, %s100
      %p107 = scmp.eq.s32.totalorder %s27, 1
      %p108 = por %p106, %p107
      %p109 = scmp.ne.s32.totalorder %s100, %s101
      %p110 = scmp.eq.s32.totalorder %s27, 0
      %p111 = por %p109, %p110
      %p112 = scmp.ne.s32.totalorder %s100, %s101
      %p113 = scmp.eq.s32.totalorder %s28, 1
      %p114 = por %p112, %p113
      %p116 = scmp.ne.s32.totalorder %s101, %s115
      %p117 = scmp.eq.s32.totalorder %s28, 0
      %p118 = por %p116, %p117
      %s120 = sadd.s32 %s119, 1
      %p123 = scmp.eq.s32.totalorder %s22, 1
      %p124 = scmp.ne.s32.totalorder %s119, %s121
      %p125 = scmp.eq.s32.totalorder %s22, 0
      %p126 = por %p124, %p125
      %p127 = scmp.ne.s32.totalorder %s119, %s121
      %p128 = scmp.eq.s32.totalorder %s27, 1
      %p129 = por %p127, %p128
      %p130 = scmp.ne.s32.totalorder %s121, %s122
      %p131 = scmp.eq.s32.totalorder %s27, 0
      %p132 = por %p130, %p131
      %p133 = scmp.ne.s32.totalorder %s121, %s122
      %p134 = scmp.eq.s32.totalorder %s28, 1
      %p135 = por %p133, %p134
      %p137 = scmp.ne.s32.totalorder %s122, %s136
      %p138 = scmp.eq.s32.totalorder %s28, 0
      %p139 = por %p137, %p138
      %s141 = sadd.s32 %s140, 1
      %p144 = scmp.eq.s32.totalorder %s22, 1
      %p145 = scmp.ne.s32.totalorder %s140, %s142
      %p146 = scmp.eq.s32.totalorder %s22, 0
      %p147 = por %p145, %p146
      %p148 = scmp.ne.s32.totalorder %s140, %s142
      %p149 = scmp.eq.s32.totalorder %s27, 1
      %p150 = por %p148, %p149
      %p151 = scmp.ne.s32.totalorder %s142, %s143
      %p152 = scmp.eq.s32.totalorder %s27, 0
      %p153 = por %p151, %p152
      %p154 = scmp.ne.s32.totalorder %s142, %s143
      %p155 = scmp.eq.s32.totalorder %s28, 1
      %p156 = por %p154, %p155
      %p158 = scmp.ne.s32.totalorder %s143, %s157
      %p159 = scmp.eq.s32.totalorder %s28, 0
      %p160 = por %p158, %p159
      %s162 = sadd.s32 %s161, 1
      %p165 = scmp.eq.s32.totalorder %s22, 1
      %p166 = scmp.ne.s32.totalorder %s161, %s163
      %p167 = scmp.eq.s32.totalorder %s22, 0
      %p168 = por %p166, %p167
      %p169 = scmp.ne.s32.totalorder %s161, %s163
      %p170 = scmp.eq.s32.totalorder %s27, 1
      %p171 = por %p169, %p170
      %p172 = scmp.ne.s32.totalorder %s163, %s164
      %p173 = scmp.eq.s32.totalorder %s27, 0
      %p174 = por %p172, %p173
      %p175 = scmp.ne.s32.totalorder %s163, %s164
      %p176 = scmp.eq.s32.totalorder %s28, 1
      %p177 = por %p175, %p176
      %p179 = scmp.ne.s32.totalorder %s164, %s178
      %p180 = scmp.eq.s32.totalorder %s28, 0
      %p181 = por %p179, %p180
      %s183 = sadd.s32 %s182, 1
      %p186 = scmp.eq.s32.totalorder %s22, 1
      %p187 = scmp.ne.s32.totalorder %s182, %s184
      %p188 = scmp.eq.s32.totalorder %s22, 0
      %p189 = por %p187, %p188
      %p190 = scmp.ne.s32.totalorder %s182, %s184
      %p191 = scmp.eq.s32.totalorder %s27, 1
      %p192 = por %p190, %p191
      %p193 = scmp.ne.s32.totalorder %s184, %s185
      %p194 = scmp.eq.s32.totalorder %s27, 0
      %p195 = por %p193, %p194
      %p196 = scmp.ne.s32.totalorder %s184, %s185
      %p197 = scmp.eq.s32.totalorder %s28, 1
      %p198 = por %p196, %p197
      %p200 = scmp.ne.s32.totalorder %s185, %s199
      %p201 = scmp.eq.s32.totalorder %s28, 0
      %p202 = por %p200, %p201
      %s204 = sadd.s32 %s203, 1
      %p207 = scmp.eq.s32.totalorder %s22, 1
      %p208 = scmp.ne.s32.totalorder %s203, %s205
      %p209 = scmp.eq.s32.totalorder %s22, 0
      %p210 = por %p208, %p209
      %p211 = scmp.ne.s32.totalorder %s203, %s205
      %p212 = scmp.eq.s32.totalorder %s27, 1
      %p213 = por %p211, %p212
      %p214 = scmp.ne.s32.totalorder %s205, %s206
      %p215 = scmp.eq.s32.totalorder %s27, 0
      %p216 = por %p214, %p215
      %p217 = scmp.ne.s32.totalorder %s205, %s206
      %p218 = scmp.eq.s32.totalorder %s28, 1
      %p219 = por %p217, %p218
      %p221 = scmp.ne.s32.totalorder %s206, %s220
      %p222 = scmp.eq.s32.totalorder %s28, 0
      %p223 = por %p221, %p222
      %s225 = sadd.s32 %s224, 1
      %p228 = scmp.eq.s32.totalorder %s22, 1
      %p229 = scmp.ne.s32.totalorder %s224, %s226
      %p230 = scmp.eq.s32.totalorder %s22, 0
      %p231 = por %p229, %p230
      %p232 = scmp.ne.s32.totalorder %s224, %s226
      %p233 = scmp.eq.s32.totalorder %s27, 1
      %p234 = por %p232, %p233
      %p235 = scmp.ne.s32.totalorder %s226, %s227
      %p236 = scmp.eq.s32.totalorder %s27, 0
      %p237 = por %p235, %p236
      %p238 = scmp.ne.s32.totalorder %s226, %s227
      %p239 = scmp.eq.s32.totalorder %s28, 1
      %p240 = por %p238, %p239
      %p242 = scmp.ne.s32.totalorder %s227, %s241
      %p243 = scmp.eq.s32.totalorder %s28, 0
      %p244 = por %p242, %p243
      %s246 = sadd.s32 %s245, 1
      %p249 = scmp.eq.s32.totalorder %s22, 1
      %p250 = scmp.ne.s32.totalorder %s245, %s247
      %p251 = scmp.eq.s32.totalorder %s22, 0
      %p252 = por %p250, %p251
      %p253 = scmp.ne.s32.totalorder %s245, %s247
      %p254 = scmp.eq.s32.totalorder %s27, 1
      %p255 = por %p253, %p254
      %p256 = scmp.ne.s32.totalorder %s247, %s248
      %p257 = scmp.eq.s32.totalorder %s27, 0
      %p258 = por %p256, %p257
      %p259 = scmp.ne.s32.totalorder %s247, %s248
      %p260 = scmp.eq.s32.totalorder %s28, 1
      %p261 = por %p259, %p260
      %p263 = scmp.ne.s32.totalorder %s248, %s262
      %p264 = scmp.eq.s32.totalorder %s28, 0
      %p265 = por %p263, %p264
      %s267 = sadd.s32 %s266, 1
      %p270 = scmp.eq.s32.totalorder %s22, 1
      %p271 = scmp.ne.s32.totalorder %s266, %s268
      %p272 = scmp.eq.s32.totalorder %s22, 0
      %p273 = por %p271, %p272
      %p274 = scmp.ne.s32.totalorder %s266, %s268
      %p275 = scmp.eq.s32.totalorder %s27, 1
      %p276 = por %p274, %p275
      %p277 = scmp.ne.s32.totalorder %s268, %s269
      %p278 = scmp.eq.s32.totalorder %s27, 0
      %p279 = por %p277, %p278
      %p280 = scmp.ne.s32.totalorder %s268, %s269
      %p281 = scmp.eq.s32.totalorder %s28, 1
      %p282 = por %p280, %p281
      %p284 = scmp.ne.s32.totalorder %s269, %s283
      %p285 = scmp.eq.s32.totalorder %s28, 0
      %p286 = por %p284, %p285
      %s288 = sadd.s32 %s287, 1
      %p291 = scmp.eq.s32.totalorder %s22, 1
      %p292 = scmp.ne.s32.totalorder %s287, %s289
      %p293 = scmp.eq.s32.totalorder %s22, 0
      %p294 = por %p292, %p293
      %p295 = scmp.ne.s32.totalorder %s287, %s289
      %p296 = scmp.eq.s32.totalorder %s27, 1
      %p297 = por %p295, %p296
      %p298 = scmp.ne.s32.totalorder %s289, %s290
      %p299 = scmp.eq.s32.totalorder %s27, 0
      %p300 = por %p298, %p299
      %p301 = scmp.ne.s32.totalorder %s289, %s290
      %p302 = scmp.eq.s32.totalorder %s28, 1
      %p303 = por %p301, %p302
      %p305 = scmp.ne.s32.totalorder %s290, %s304
      %p306 = scmp.eq.s32.totalorder %s28, 0
      %p307 = por %p305, %p306
      %s308 = ssub.s32 %s22, %s29
      %p309 = scmp.eq.s32.totalorder %s308, 0
      %s311 = sadd.s32 %s310, 1
      %s312 = scalar_select %p309, %s310, %s311
      %p315 = pneg %p309
      %p316 = scmp.eq.s32.totalorder %s22, 1
      %p317 = por %p315, %p316
      %p318 = scmp.ne.s32.totalorder %s310, %s313
      %p319 = scmp.eq.s32.totalorder %s22, 0
      %p320 = por %p318, %p319
      %p321 = scmp.ne.s32.totalorder %s310, %s313
      %p322 = scmp.eq.s32.totalorder %s27, 1
      %p323 = por %p321, %p322
      %p324 = scmp.ne.s32.totalorder %s313, %s314
      %p325 = scmp.eq.s32.totalorder %s27, 0
      %p326 = por %p324, %p325
      %p327 = scmp.ne.s32.totalorder %s313, %s314
      %p328 = scmp.eq.s32.totalorder %s28, 1
      %p329 = por %p327, %p328
      %p331 = scmp.ne.s32.totalorder %s314, %s330
      %p332 = scmp.eq.s32.totalorder %s28, 0
      %p333 = por %p331, %p332
      %p334 = scmp.le.s32.totalorder 1, %s22
      %p335 = scmp.lt.s32.totalorder %s22, 3
      %p336 = pnand %p334, %p335
      %p337 = pneg %p336
      // Predicated region
      $region9: #{multimodal_interaction.5} parent=5 // pred_check
        _
      $region10: #{multimodal_interaction.5} parent=5 // pred_check_branch
        %339 = sbr.rel (%p336) target = $region12
      $region11: #{multimodal_interaction.5} parent=5 // pred_region
        %s340 = ssub.s32 %s22, 1
        // Predicated region
        $region13: #{multimodal_interaction.5} parent=11 // pred_check
          %p341 = pneg %p69
        $region14: #{multimodal_interaction.5} parent=11 // pred_check_branch
          %343 = sbr.rel (%p341) target = $region16
        $region15: #{multimodal_interaction.5} parent=11 // pred_region
          _
        $region16: #{multimodal_interaction.5} parent=11 // pred_fallthru
          _
        // Predicated region
        $region17: #{multimodal_interaction.5} parent=11 // pred_check
          %p344 = pneg %p90
        $region18: #{multimodal_interaction.5} parent=11 // pred_check_branch
          %346 = sbr.rel (%p344) target = $region20
        $region19: #{multimodal_interaction.5} parent=11 // pred_region
          _
        $region20: #{multimodal_interaction.5} parent=11 // pred_fallthru
          _
        // Predicated region
        $region21: #{multimodal_interaction.5} parent=11 // pred_check
          %p347 = pneg %p111
        $region22: #{multimodal_interaction.5} parent=11 // pred_check_branch
          %349 = sbr.rel (%p347) target = $region24
        $region23: #{multimodal_interaction.5} parent=11 // pred_region
          _
        $region24: #{multimodal_interaction.5} parent=11 // pred_fallthru
          _
        // Predicated region
        $region25: #{multimodal_interaction.5} parent=11 // pred_check
          %p350 = pneg %p132
        $region26: #{multimodal_interaction.5} parent=11 // pred_check_branch
          %352 = sbr.rel (%p350) target = $region28
        $region27: #{multimodal_interaction.5} parent=11 // pred_region
          _
        $region28: #{multimodal_interaction.5} parent=11 // pred_fallthru
          _
        // Predicated region
        $region29: #{multimodal_interaction.5} parent=11 // pred_check
          %p353 = pneg %p153
        $region30: #{multimodal_interaction.5} parent=11 // pred_check_branch
          %355 = sbr.rel (%p353) target = $region32
        $region31: #{multimodal_interaction.5} parent=11 // pred_region
          _
        $region32: #{multimodal_interaction.5} parent=11 // pred_fallthru
          _
        // Predicated region
        $region33: #{multimodal_interaction.5} parent=11 // pred_check
          %p356 = pneg %p174
        $region34: #{multimodal_interaction.5} parent=11 // pred_check_branch
          %358 = sbr.rel (%p356) target = $region36
        $region35: #{multimodal_interaction.5} parent=11 // pred_region
          _
        $region36: #{multimodal_interaction.5} parent=11 // pred_fallthru
          _
        // Predicated region
        $region37: #{multimodal_interaction.5} parent=11 // pred_check
          %p359 = pneg %p195
        $region38: #{multimodal_interaction.5} parent=11 // pred_check_branch
          %361 = sbr.rel (%p359) target = $region40
        $region39: #{multimodal_interaction.5} parent=11 // pred_region
          _
        $region40: #{multimodal_interaction.5} parent=11 // pred_fallthru
          _
        // Predicated region
        $region41: #{multimodal_interaction.5} parent=11 // pred_check
          %p362 = pneg %p216
        $region42: #{multimodal_interaction.5} parent=11 // pred_check_branch
          %364 = sbr.rel (%p362) target = $region44
        $region43: #{multimodal_interaction.5} parent=11 // pred_region
          _
        $region44: #{multimodal_interaction.5} parent=11 // pred_fallthru
          _
        // Predicated region
        $region45: #{multimodal_interaction.5} parent=11 // pred_check
          %p365 = pneg %p237
        $region46: #{multimodal_interaction.5} parent=11 // pred_check_branch
          %367 = sbr.rel (%p365) target = $region48
        $region47: #{multimodal_interaction.5} parent=11 // pred_region
          _
        $region48: #{multimodal_interaction.5} parent=11 // pred_fallthru
          _
        // Predicated region
        $region49: #{multimodal_interaction.5} parent=11 // pred_check
          %p368 = pneg %p258
        $region50: #{multimodal_interaction.5} parent=11 // pred_check_branch
          %370 = sbr.rel (%p368) target = $region52
        $region51: #{multimodal_interaction.5} parent=11 // pred_region
          _
        $region52: #{multimodal_interaction.5} parent=11 // pred_fallthru
          _
        // Predicated region
        $region53: #{multimodal_interaction.5} parent=11 // pred_check
          %p371 = pneg %p279
        $region54: #{multimodal_interaction.5} parent=11 // pred_check_branch
          %373 = sbr.rel (%p371) target = $region56
        $region55: #{multimodal_interaction.5} parent=11 // pred_region
          _
        $region56: #{multimodal_interaction.5} parent=11 // pred_fallthru
          _
        // Predicated region
        $region57: #{multimodal_interaction.5} parent=11 // pred_check
          %p374 = pneg %p300
        $region58: #{multimodal_interaction.5} parent=11 // pred_check_branch
          %376 = sbr.rel (%p374) target = $region60
        $region59: #{multimodal_interaction.5} parent=11 // pred_region
          _
        $region60: #{multimodal_interaction.5} parent=11 // pred_fallthru
          _
      $region12: #{multimodal_interaction.5} parent=5 // pred_fallthru
        _
      %p377 = scmp.lt.s32.totalorder %s22, 2
      // Predicated region
      $region61: #{multimodal_interaction.5} parent=5 // pred_check
        %p378 = pneg %p377
      $region62: #{multimodal_interaction.5} parent=5 // pred_check_branch
        %380 = sbr.rel (%p378) target = $region64
      $region63: #{multimodal_interaction.5} parent=5 // pred_region
        // Predicated region
        $region65: #{multimodal_interaction.5} parent=63 // pred_check
          %p381 = pneg %p42
        $region66: #{multimodal_interaction.5} parent=63 // pred_check_branch
          %383 = sbr.rel (%p381) target = $region68
        $region67: #{multimodal_interaction.5} parent=63 // pred_region
          %p384 = scmp.lt.s32.totalorder %s22, 1
          %s385 = scalar_select %p384, %s22, 1
          %s386 = smul.addr %s385, 8
          %s387 = scalar_lea.vmem %s0, %s386
        $region68: #{multimodal_interaction.5} parent=63 // pred_fallthru
          _
      $region64: #{multimodal_interaction.5} parent=5 // pred_fallthru
        _
      %p388 = scmp.le.s32.totalorder 1, %s22
      %p389 = scmp.lt.s32.totalorder %s22, 3
      %p390 = pnand %p388, %p389
      %p391 = pneg %p390
      // Predicated region
      $region69: #{multimodal_interaction.5} parent=5 // pred_check
        _
      $region70: #{multimodal_interaction.5} parent=5 // pred_check_branch
        %393 = sbr.rel (%p390) target = $region72
      $region71: #{multimodal_interaction.5} parent=5 // pred_region
        %s394 = ssub.s32 %s22, 1
        %p395 = scmp.lt.s32.totalorder %s27, 1
        %s396 = scalar_select %p395, %s27, 1
        %s397 = smul.addr %s396, 8
        %s398 = scalar_lea.vmem %s0, %s397
        %p399 = pneg %p48
        %p400 = pneg %p45
        %p401 = pneg %p69
        %p402 = pneg %p66
        %p403 = pneg %p90
        %p404 = pneg %p87
        %p405 = pneg %p111
        %p406 = pneg %p108
        %p407 = pneg %p132
        %p408 = pneg %p129
        %p409 = pneg %p153
        %p410 = pneg %p150
        %p411 = pneg %p174
        %p412 = pneg %p171
        %p413 = pneg %p195
        %p414 = pneg %p192
        %p415 = pneg %p216
        %p416 = pneg %p213
        %p417 = pneg %p237
        %p418 = pneg %p234
        %p419 = pneg %p258
        %p420 = pneg %p255
        %p421 = pneg %p279
        %p422 = pneg %p276
        %p423 = pneg %p300
        %p424 = pneg %p297
        %p425 = pneg %p326
        %p426 = pneg %p323
        %s427 = sand.u32 %s313, 1
        %s428 = scalar_lea.sflag [#allocation3], %s427
        %s429 = sand.u32 %s313, 1
        %s430 = smul.addr %s429, 8
        %s431 = scalar_lea.vmem [#allocation2], %s430
        %p432 = scmp.lt.s32.totalorder %s27, 1
        %s433 = scalar_select %p432, %s27, 1
        %s434 = smul.addr %s433, 8
        %s435 = scalar_lea.vmem %s0, %s434
        %v437 = vld [vmem:[%s435] sm:$0xff]
        %v438 = vpack.c.bf16 %v437, %v437
        %v439 = vld [vmem:[%s1] sm:$0xff]
        %v440 = vld [vmem:[%s1 + $0x8] sm:$0xff]
        %v441 = vld [vmem:[%s1 + $0x10] sm:$0xff]
        %v442 = vld [vmem:[%s1 + $0x18] sm:$0xff]
        %v443 = vld [vmem:[%s1 + $0x20] sm:$0xff]
        %v444 = vld [vmem:[%s1 + $0x28] sm:$0xff]
        %v445 = vld [vmem:[%s1 + $0x30] sm:$0xff]
        %v446 = vld [vmem:[%s1 + $0x38] sm:$0xff]
        %v447 = vld [vmem:[%s2] sm:$0x3]
        %v449 = vperm.slane %v447, 0
        %v450 = vperm.slane %v447, 1
        %v461 = vunpack.c.l.b16 %v439
        %v462 = vunpack.c.h.b16 %v439
        %v463 = vunpack.c.l.b16 %v440
        %v464 = vunpack.c.h.b16 %v440
        %v465 = vunpack.c.l.b16 %v441
        %v466 = vunpack.c.h.b16 %v441
        %v467 = vunpack.c.l.b16 %v442
        %v468 = vunpack.c.h.b16 %v442
        %v469 = vunpack.c.l.b16 %v443
        %v470 = vunpack.c.h.b16 %v443
        %v471 = vunpack.c.l.b16 %v444
        %v472 = vunpack.c.h.b16 %v444
        %v473 = vunpack.c.l.b16 %v445
        %v474 = vunpack.c.h.b16 %v445
        %v475 = vunpack.c.l.b16 %v446
        %v476 = vunpack.c.h.b16 %v446
        %v477 = vpack.c.b16 %v463, %v461
        %v478 = vpack.c.b16 %v464, %v462
        %v479 = vpack.c.b16 %v467, %v465
        %v480 = vpack.c.b16 %v468, %v466
        %v481 = vpack.c.b16 %v471, %v469
        %v482 = vpack.c.b16 %v472, %v470
        %v483 = vpack.c.b16 %v475, %v473
        %v484 = vpack.c.b16 %v476, %v474
        %vm493 = vcmask 523264
        %v495 = vsel %vm493, %v438, 0
        %497 = vmatpush.bf16.msra.mxu0 0
        %498 = vmatpush.bf16.msra.mxu0 0
        %499 = vmatpush.bf16.msra.mxu0 0
        %500 = vmatpush.bf16.msra.mxu0 0
        %501 = vmatpush.bf16.msra.mxu0 %v483
        %502 = vmatpush.bf16.msra.mxu0 %v481
        %503 = vmatpush.bf16.msra.mxu0 %v479
        %504 = vmatpush.bf16.msra.mxu0 %v477
        %505 = vmatmul.bf16.gmra.mxu0 %v495
        %v506 = vpop.f32.mrf.mxu0
        %v507 = vadd.f32 %v449, %v506
        %v508 = vpop.f32.mrf.mxu0
        %509 = vdwg.mxu0
        %510 = vmatpush.bf16.msra.mxu0 0
        %511 = vmatpush.bf16.msra.mxu0 0
        %512 = vmatpush.bf16.msra.mxu0 0
        %513 = vmatpush.bf16.msra.mxu0 0
        %514 = vmatpush.bf16.msra.mxu0 %v484
        %515 = vmatpush.bf16.msra.mxu0 %v482
        %516 = vmatpush.bf16.msra.mxu0 %v480
        %517 = vmatpush.bf16.msra.mxu0 %v478
        %518 = vmatmul.bf16.gmra.mxu0 %v495
        %v519 = vpop.f32.mrf.mxu0
        %v520 = vadd.f32 %v450, %v519
        %v521 = vpop.f32.mrf.mxu0
        %522 = vdwg.mxu0
        %v523 = vpack.c.bf16 %v520, %v507
        %v525 = vunpack.c.l.b16 %v523
        %v526 = vpack.c.b16 %v525, %v525
        %527 = vrot.lane.b32.xlu0 %v526, 64
        %v528 = vpop.permute.xlu0 %527
        %vm529 = vcmask 64512
        %v531 = vsel %vm529, %v523, 0
        %v534 = vsel %vm529, %v528, 0
        %536 = vmatpush.bf16.xpose.msra.mxu0 0
        %537 = vmatpush.bf16.xpose.msra.mxu0 0
        %538 = vmatpush.bf16.xpose.msra.mxu0 0
        %539 = vmatpush.bf16.xpose.msra.mxu0 0
        %540 = vmatpush.bf16.xpose.msra.mxu0 0
        %541 = vmatpush.bf16.xpose.msra.mxu0 0
        %542 = vmatpush.bf16.xpose.msra.mxu0 0
        %543 = vmatpush.bf16.xpose.msra.mxu0 %v534
        %544 = vmatmul.bf16.gmra.mxu0 %v531
        %v545 = vpop.f32.mrf.mxu0
        %v546 = vadd.f32 0.0, %v545
        %v547 = vpop.f32.mrf.mxu0
        %548 = vdwg.mxu0
        %v549 = vmul.f32 %v546, 0.35355338
        %v550 = vsel %vm529, %v549, -inf
        %551 = vmax.xlane.f32.xlu0 %v550
        %v552 = vpop.xlane.xlu0 %551
        %v553 = vsub.f32 %v549, %v552
        %v554 = vmul.f32 %v553, 1.442695
        %v555 = vpow.pop %v554
        %v556 = vsel %vm529, %v555, 0.0
        %557 = vadd.xlane.f32.xlu0 %v556
        %v558 = vpop.xlane.xlu0 %557
        %v559 = vrcp.pop %v558
        %v560 = vmul.f32 %v555, %v559
        %v561 = vpack.c.bf16 %v560, %v560
        %v562 = vunpack.c.h.b16 %v523
        %v563 = vpack.c.b16 %v562, %v562
        %v565 = vsel %vm529, %v561, 0
        %vm567 = vcmask 1043456
        %v569 = vsel %vm567, %v563, 0
        %571 = vmatpush.bf16.msra.mxu0 0
        %572 = vmatpush.bf16.msra.mxu0 0
        %573 = vmatpush.bf16.msra.mxu0 0
        %574 = vmatpush.bf16.msra.mxu0 0
        %575 = vmatpush.bf16.msra.mxu0 0
        %576 = vmatpush.bf16.msra.mxu0 0
        %577 = vmatpush.bf16.msra.mxu0 0
        %578 = vmatpush.bf16.msra.mxu0 %v569
        %579 = vmatmul.bf16.gmra.mxu0 %v565
        %v580 = vpop.f32.mrf.mxu0
        %v581 = vadd.f32 0.0, %v580
        %v582 = vpop.f32.mrf.mxu0
        %583 = vdwg.mxu0
        %584 = vrot.lane.b32.xlu0 %v526, 120
        %v585 = vpop.permute.xlu0 %584
        %586 = vrot.lane.b32.xlu0 %v526, 56
        %v587 = vpop.permute.xlu0 %586
        %v589 = vsel %vm529, %v585, 0
        %v592 = vsel %vm529, %v587, 0
        %594 = vmatpush.bf16.xpose.msra.mxu0 0
        %595 = vmatpush.bf16.xpose.msra.mxu0 0
        %596 = vmatpush.bf16.xpose.msra.mxu0 0
        %597 = vmatpush.bf16.xpose.msra.mxu0 0
        %598 = vmatpush.bf16.xpose.msra.mxu0 0
        %599 = vmatpush.bf16.xpose.msra.mxu0 0
        %600 = vmatpush.bf16.xpose.msra.mxu0 0
        %601 = vmatpush.bf16.xpose.msra.mxu0 %v592
        %602 = vmatmul.bf16.gmra.mxu0 %v589
        %v603 = vpop.f32.mrf.mxu0
        %v604 = vadd.f32 0.0, %v603
        %v605 = vpop.f32.mrf.mxu0
        %606 = vdwg.mxu0
        %v607 = vmul.f32 %v604, 0.35355338
        %v608 = vsel %vm529, %v607, -inf
        %609 = vmax.xlane.f32.xlu0 %v608
        %v610 = vpop.xlane.xlu0 %609
        %v611 = vsub.f32 %v607, %v610
        %v612 = vmul.f32 %v611, 1.442695
        %v613 = vpow.pop %v612
        %v614 = vsel %vm529, %v613, 0.0
        %615 = vadd.xlane.f32.xlu0 %v614
        %v616 = vpop.xlane.xlu0 %615
        %v617 = vrcp.pop %v616
        %v618 = vmul.f32 %v613, %v617
        %v619 = vpack.c.bf16 %v618, %v618
        %620 = vrot.lane.b32.xlu0 %v563, 120
        %v621 = vpop.permute.xlu0 %620
        %v623 = vsel %vm529, %v619, 0
        %v626 = vsel %vm567, %v621, 0
        %628 = vmatpush.bf16.msra.mxu0 0
        %629 = vmatpush.bf16.msra.mxu0 0
        %630 = vmatpush.bf16.msra.mxu0 0
        %631 = vmatpush.bf16.msra.mxu0 0
        %632 = vmatpush.bf16.msra.mxu0 0
        %633 = vmatpush.bf16.msra.mxu0 0
        %634 = vmatpush.bf16.msra.mxu0 0
        %635 = vmatpush.bf16.msra.mxu0 %v626
        %636 = vmatmul.bf16.gmra.mxu0 %v623
        %v637 = vpop.f32.mrf.mxu0
        %v638 = vadd.f32 0.0, %v637
        %v639 = vpop.f32.mrf.mxu0
        %640 = vdwg.mxu0
        %641 = vrot.lane.b32.xlu0 %v526, 112
        %v642 = vpop.permute.xlu0 %641
        %643 = vrot.lane.b32.xlu0 %v526, 48
        %v644 = vpop.permute.xlu0 %643
        %v646 = vsel %vm529, %v642, 0
        %v649 = vsel %vm529, %v644, 0
        %651 = vmatpush.bf16.xpose.msra.mxu0 0
        %652 = vmatpush.bf16.xpose.msra.mxu0 0
        %653 = vmatpush.bf16.xpose.msra.mxu0 0
        %654 = vmatpush.bf16.xpose.msra.mxu0 0
        %655 = vmatpush.bf16.xpose.msra.mxu0 0
        %656 = vmatpush.bf16.xpose.msra.mxu0 0
        %657 = vmatpush.bf16.xpose.msra.mxu0 0
        %658 = vmatpush.bf16.xpose.msra.mxu0 %v649
        %659 = vmatmul.bf16.gmra.mxu0 %v646
        %v660 = vpop.f32.mrf.mxu0
        %v661 = vadd.f32 0.0, %v660
        %v662 = vpop.f32.mrf.mxu0
        %663 = vdwg.mxu0
        %v664 = vmul.f32 %v661, 0.35355338
        %v665 = vsel %vm529, %v664, -inf
        %666 = vmax.xlane.f32.xlu0 %v665
        %v667 = vpop.xlane.xlu0 %666
        %v668 = vsub.f32 %v664, %v667
        %v669 = vmul.f32 %v668, 1.442695
        %v670 = vpow.pop %v669
        %v671 = vsel %vm529, %v670, 0.0
        %672 = vadd.xlane.f32.xlu0 %v671
        %v673 = vpop.xlane.xlu0 %672
        %v674 = vrcp.pop %v673
        %v675 = vmul.f32 %v670, %v674
        %v676 = vpack.c.bf16 %v675, %v675
        %677 = vrot.lane.b32.xlu0 %v563, 112
        %v678 = vpop.permute.xlu0 %677
        %v680 = vsel %vm529, %v676, 0
        %v683 = vsel %vm567, %v678, 0
        %685 = vmatpush.bf16.msra.mxu0 0
        %686 = vmatpush.bf16.msra.mxu0 0
        %687 = vmatpush.bf16.msra.mxu0 0
        %688 = vmatpush.bf16.msra.mxu0 0
        %689 = vmatpush.bf16.msra.mxu0 0
        %690 = vmatpush.bf16.msra.mxu0 0
        %691 = vmatpush.bf16.msra.mxu0 0
        %692 = vmatpush.bf16.msra.mxu0 %v683
        %693 = vmatmul.bf16.gmra.mxu0 %v680
        %v694 = vpop.f32.mrf.mxu0
        %v695 = vadd.f32 0.0, %v694
        %v696 = vpop.f32.mrf.mxu0
        %697 = vdwg.mxu0
        %698 = vrot.lane.b32.xlu0 %v526, 104
        %v699 = vpop.permute.xlu0 %698
        %700 = vrot.lane.b32.xlu0 %v526, 40
        %v701 = vpop.permute.xlu0 %700
        %v703 = vsel %vm529, %v699, 0
        %v706 = vsel %vm529, %v701, 0
        %708 = vmatpush.bf16.xpose.msra.mxu0 0
        %709 = vmatpush.bf16.xpose.msra.mxu0 0
        %710 = vmatpush.bf16.xpose.msra.mxu0 0
        %711 = vmatpush.bf16.xpose.msra.mxu0 0
        %712 = vmatpush.bf16.xpose.msra.mxu0 0
        %713 = vmatpush.bf16.xpose.msra.mxu0 0
        %714 = vmatpush.bf16.xpose.msra.mxu0 0
        %715 = vmatpush.bf16.xpose.msra.mxu0 %v706
        %716 = vmatmul.bf16.gmra.mxu0 %v703
        %v717 = vpop.f32.mrf.mxu0
        %v718 = vadd.f32 0.0, %v717
        %v719 = vpop.f32.mrf.mxu0
        %720 = vdwg.mxu0
        %v721 = vmul.f32 %v718, 0.35355338
        %v722 = vsel %vm529, %v721, -inf
        %723 = vmax.xlane.f32.xlu0 %v722
        %v724 = vpop.xlane.xlu0 %723
        %v725 = vsub.f32 %v721, %v724
        %v726 = vmul.f32 %v725, 1.442695
        %v727 = vpow.pop %v726
        %v728 = vsel %vm529, %v727, 0.0
        %729 = vadd.xlane.f32.xlu0 %v728
        %v730 = vpop.xlane.xlu0 %729
        %v731 = vrcp.pop %v730
        %v732 = vmul.f32 %v727, %v731
        %v733 = vpack.c.bf16 %v732, %v732
        %734 = vrot.lane.b32.xlu0 %v563, 104
        %v735 = vpop.permute.xlu0 %734
        %v737 = vsel %vm529, %v733, 0
        %v740 = vsel %vm567, %v735, 0
        %742 = vmatpush.bf16.msra.mxu0 0
        %743 = vmatpush.bf16.msra.mxu0 0
        %744 = vmatpush.bf16.msra.mxu0 0
        %745 = vmatpush.bf16.msra.mxu0 0
        %746 = vmatpush.bf16.msra.mxu0 0
        %747 = vmatpush.bf16.msra.mxu0 0
        %748 = vmatpush.bf16.msra.mxu0 0
        %749 = vmatpush.bf16.msra.mxu0 %v740
        %750 = vmatmul.bf16.gmra.mxu0 %v737
        %v751 = vpop.f32.mrf.mxu0
        %v752 = vadd.f32 0.0, %v751
        %v753 = vpop.f32.mrf.mxu0
        %754 = vdwg.mxu0
        %755 = vrot.lane.b32.xlu0 %v526, 96
        %v756 = vpop.permute.xlu0 %755
        %757 = vrot.lane.b32.xlu0 %v526, 32
        %v758 = vpop.permute.xlu0 %757
        %v760 = vsel %vm529, %v756, 0
        %v763 = vsel %vm529, %v758, 0
        %765 = vmatpush.bf16.xpose.msra.mxu0 0
        %766 = vmatpush.bf16.xpose.msra.mxu0 0
        %767 = vmatpush.bf16.xpose.msra.mxu0 0
        %768 = vmatpush.bf16.xpose.msra.mxu0 0
        %769 = vmatpush.bf16.xpose.msra.mxu0 0
        %770 = vmatpush.bf16.xpose.msra.mxu0 0
        %771 = vmatpush.bf16.xpose.msra.mxu0 0
        %772 = vmatpush.bf16.xpose.msra.mxu0 %v763
        %773 = vmatmul.bf16.gmra.mxu0 %v760
        %v774 = vpop.f32.mrf.mxu0
        %v775 = vadd.f32 0.0, %v774
        %v776 = vpop.f32.mrf.mxu0
        %777 = vdwg.mxu0
        %v778 = vmul.f32 %v775, 0.35355338
        %v779 = vsel %vm529, %v778, -inf
        %780 = vmax.xlane.f32.xlu0 %v779
        %v781 = vpop.xlane.xlu0 %780
        %v782 = vsub.f32 %v778, %v781
        %v783 = vmul.f32 %v782, 1.442695
        %v784 = vpow.pop %v783
        %v785 = vsel %vm529, %v784, 0.0
        %786 = vadd.xlane.f32.xlu0 %v785
        %v787 = vpop.xlane.xlu0 %786
        %v788 = vrcp.pop %v787
        %v789 = vmul.f32 %v784, %v788
        %v790 = vpack.c.bf16 %v789, %v789
        %791 = vrot.lane.b32.xlu0 %v563, 96
        %v792 = vpop.permute.xlu0 %791
        %v794 = vsel %vm529, %v790, 0
        %v797 = vsel %vm567, %v792, 0
        %799 = vmatpush.bf16.msra.mxu0 0
        %800 = vmatpush.bf16.msra.mxu0 0
        %801 = vmatpush.bf16.msra.mxu0 0
        %802 = vmatpush.bf16.msra.mxu0 0
        %803 = vmatpush.bf16.msra.mxu0 0
        %804 = vmatpush.bf16.msra.mxu0 0
        %805 = vmatpush.bf16.msra.mxu0 0
        %806 = vmatpush.bf16.msra.mxu0 %v797
        %807 = vmatmul.bf16.gmra.mxu0 %v794
        %v808 = vpop.f32.mrf.mxu0
        %v809 = vadd.f32 0.0, %v808
        %v810 = vpop.f32.mrf.mxu0
        %811 = vdwg.mxu0
        %812 = vrot.lane.b32.xlu0 %v526, 88
        %v813 = vpop.permute.xlu0 %812
        %814 = vrot.lane.b32.xlu0 %v526, 24
        %v815 = vpop.permute.xlu0 %814
        %v817 = vsel %vm529, %v813, 0
        %v820 = vsel %vm529, %v815, 0
        %822 = vmatpush.bf16.xpose.msra.mxu0 0
        %823 = vmatpush.bf16.xpose.msra.mxu0 0
        %824 = vmatpush.bf16.xpose.msra.mxu0 0
        %825 = vmatpush.bf16.xpose.msra.mxu0 0
        %826 = vmatpush.bf16.xpose.msra.mxu0 0
        %827 = vmatpush.bf16.xpose.msra.mxu0 0
        %828 = vmatpush.bf16.xpose.msra.mxu0 0
        %829 = vmatpush.bf16.xpose.msra.mxu0 %v820
        %830 = vmatmul.bf16.gmra.mxu0 %v817
        %v831 = vpop.f32.mrf.mxu0
        %v832 = vadd.f32 0.0, %v831
        %v833 = vpop.f32.mrf.mxu0
        %834 = vdwg.mxu0
        %v835 = vmul.f32 %v832, 0.35355338
        %v836 = vsel %vm529, %v835, -inf
        %837 = vmax.xlane.f32.xlu0 %v836
        %v838 = vpop.xlane.xlu0 %837
        %v839 = vsub.f32 %v835, %v838
        %v840 = vmul.f32 %v839, 1.442695
        %v841 = vpow.pop %v840
        %v842 = vsel %vm529, %v841, 0.0
        %843 = vadd.xlane.f32.xlu0 %v842
        %v844 = vpop.xlane.xlu0 %843
        %v845 = vrcp.pop %v844
        %v846 = vmul.f32 %v841, %v845
        %v847 = vpack.c.bf16 %v846, %v846
        %848 = vrot.lane.b32.xlu0 %v563, 88
        %v849 = vpop.permute.xlu0 %848
        %v851 = vsel %vm529, %v847, 0
        %v854 = vsel %vm567, %v849, 0
        %856 = vmatpush.bf16.msra.mxu0 0
        %857 = vmatpush.bf16.msra.mxu0 0
        %858 = vmatpush.bf16.msra.mxu0 0
        %859 = vmatpush.bf16.msra.mxu0 0
        %860 = vmatpush.bf16.msra.mxu0 0
        %861 = vmatpush.bf16.msra.mxu0 0
        %862 = vmatpush.bf16.msra.mxu0 0
        %863 = vmatpush.bf16.msra.mxu0 %v854
        %864 = vmatmul.bf16.gmra.mxu0 %v851
        %v865 = vpop.f32.mrf.mxu0
        %v866 = vadd.f32 0.0, %v865
        %v867 = vpop.f32.mrf.mxu0
        %868 = vdwg.mxu0
        %869 = vrot.lane.b32.xlu0 %v526, 80
        %v870 = vpop.permute.xlu0 %869
        %871 = vrot.lane.b32.xlu0 %v526, 16
        %v872 = vpop.permute.xlu0 %871
        %v874 = vsel %vm529, %v870, 0
        %v877 = vsel %vm529, %v872, 0
        %879 = vmatpush.bf16.xpose.msra.mxu0 0
        %880 = vmatpush.bf16.xpose.msra.mxu0 0
        %881 = vmatpush.bf16.xpose.msra.mxu0 0
        %882 = vmatpush.bf16.xpose.msra.mxu0 0
        %883 = vmatpush.bf16.xpose.msra.mxu0 0
        %884 = vmatpush.bf16.xpose.msra.mxu0 0
        %885 = vmatpush.bf16.xpose.msra.mxu0 0
        %886 = vmatpush.bf16.xpose.msra.mxu0 %v877
        %887 = vmatmul.bf16.gmra.mxu0 %v874
        %v888 = vpop.f32.mrf.mxu0
        %v889 = vadd.f32 0.0, %v888
        %v890 = vpop.f32.mrf.mxu0
        %891 = vdwg.mxu0
        %v892 = vmul.f32 %v889, 0.35355338
        %v893 = vsel %vm529, %v892, -inf
        %894 = vmax.xlane.f32.xlu0 %v893
        %v895 = vpop.xlane.xlu0 %894
        %v896 = vsub.f32 %v892, %v895
        %v897 = vmul.f32 %v896, 1.442695
        %v898 = vpow.pop %v897
        %v899 = vsel %vm529, %v898, 0.0
        %900 = vadd.xlane.f32.xlu0 %v899
        %v901 = vpop.xlane.xlu0 %900
        %v902 = vrcp.pop %v901
        %v903 = vmul.f32 %v898, %v902
        %v904 = vpack.c.bf16 %v903, %v903
        %905 = vrot.lane.b32.xlu0 %v563, 80
        %v906 = vpop.permute.xlu0 %905
        %v908 = vsel %vm529, %v904, 0
        %v911 = vsel %vm567, %v906, 0
        %913 = vmatpush.bf16.msra.mxu0 0
        %914 = vmatpush.bf16.msra.mxu0 0
        %915 = vmatpush.bf16.msra.mxu0 0
        %916 = vmatpush.bf16.msra.mxu0 0
        %917 = vmatpush.bf16.msra.mxu0 0
        %918 = vmatpush.bf16.msra.mxu0 0
        %919 = vmatpush.bf16.msra.mxu0 0
        %920 = vmatpush.bf16.msra.mxu0 %v911
        %921 = vmatmul.bf16.gmra.mxu0 %v908
        %v922 = vpop.f32.mrf.mxu0
        %v923 = vadd.f32 0.0, %v922
        %v924 = vpop.f32.mrf.mxu0
        %925 = vdwg.mxu0
        %926 = vrot.lane.b32.xlu0 %v526, 72
        %v927 = vpop.permute.xlu0 %926
        %928 = vrot.lane.b32.xlu0 %v526, 8
        %v929 = vpop.permute.xlu0 %928
        %v931 = vsel %vm529, %v927, 0
        %v934 = vsel %vm529, %v929, 0
        %936 = vmatpush.bf16.xpose.msra.mxu0 0
        %937 = vmatpush.bf16.xpose.msra.mxu0 0
        %938 = vmatpush.bf16.xpose.msra.mxu0 0
        %939 = vmatpush.bf16.xpose.msra.mxu0 0
        %940 = vmatpush.bf16.xpose.msra.mxu0 0
        %941 = vmatpush.bf16.xpose.msra.mxu0 0
        %942 = vmatpush.bf16.xpose.msra.mxu0 0
        %943 = vmatpush.bf16.xpose.msra.mxu0 %v934
        %944 = vmatmul.bf16.gmra.mxu0 %v931
        %v945 = vpop.f32.mrf.mxu0
        %v946 = vadd.f32 0.0, %v945
        %v947 = vpop.f32.mrf.mxu0
        %948 = vdwg.mxu0
        %v949 = vmul.f32 %v946, 0.35355338
        %v950 = vsel %vm529, %v949, -inf
        %951 = vmax.xlane.f32.xlu0 %v950
        %v952 = vpop.xlane.xlu0 %951
        %v953 = vsub.f32 %v949, %v952
        %v954 = vmul.f32 %v953, 1.442695
        %v955 = vpow.pop %v954
        %v956 = vsel %vm529, %v955, 0.0
        %957 = vadd.xlane.f32.xlu0 %v956
        %v958 = vpop.xlane.xlu0 %957
        %v959 = vrcp.pop %v958
        %v960 = vmul.f32 %v955, %v959
        %v961 = vpack.c.bf16 %v960, %v960
        %962 = vrot.lane.b32.xlu0 %v563, 72
        %v963 = vpop.permute.xlu0 %962
        %v965 = vsel %vm529, %v961, 0
        %v968 = vsel %vm567, %v963, 0
        %970 = vmatpush.bf16.msra.mxu0 0
        %971 = vmatpush.bf16.msra.mxu0 0
        %972 = vmatpush.bf16.msra.mxu0 0
        %973 = vmatpush.bf16.msra.mxu0 0
        %974 = vmatpush.bf16.msra.mxu0 0
        %975 = vmatpush.bf16.msra.mxu0 0
        %976 = vmatpush.bf16.msra.mxu0 0
        %977 = vmatpush.bf16.msra.mxu0 %v968
        %978 = vmatmul.bf16.gmra.mxu0 %v965
        %v979 = vpop.f32.mrf.mxu0
        %v980 = vadd.f32 0.0, %v979
        %v981 = vpop.f32.mrf.mxu0
        %982 = vdwg.mxu0
        %984 = vrot.lane.b32.xlu0 %v638, 8
        %v985 = vpop.permute.xlu0 %984
        %988 = vrot.lane.b32.xlu0 %v695, 16
        %v989 = vpop.permute.xlu0 %988
        %992 = vrot.lane.b32.xlu0 %v752, 24
        %v993 = vpop.permute.xlu0 %992
        %996 = vrot.lane.b32.xlu0 %v809, 32
        %v997 = vpop.permute.xlu0 %996
        %1000 = vrot.lane.b32.xlu0 %v866, 40
        %v1001 = vpop.permute.xlu0 %1000
        %1004 = vrot.lane.b32.xlu0 %v923, 48
        %v1005 = vpop.permute.xlu0 %1004
        %1008 = vrot.lane.b32.xlu0 %v980, 56
        %v1009 = vpop.permute.xlu0 %1008
        %v1011 = vsel %vm529, %v581, %v985
        %vm1012 = vcmask 130048
        %v1013 = vsel %vm1012, %v1011, %v989
        %vm1014 = vcmask 195584
        %v1015 = vsel %vm1014, %v1013, %v993
        %vm1016 = vcmask 261120
        %v1017 = vsel %vm1016, %v1015, %v997
        %vm1018 = vcmask 326656
        %v1019 = vsel %vm1018, %v1017, %v1001
        %vm1020 = vcmask 392192
        %v1021 = vsel %vm1020, %v1019, %v1005
        %vm1022 = vcmask 457728
        %v1023 = vsel %vm1022, %v1021, %v1009
        %v1024 = vpack.c.bf16 %v1023, %v1023
        %v1025 = vld [vmem:[%s3] sm:$0xf]
        %v1026 = vld [vmem:[%s3 + $0x4] sm:$0xf]
        %v1027 = vld [vmem:[%s3 + $0x8] sm:$0xf]
        %v1028 = vld [vmem:[%s3 + $0xc] sm:$0xf]
        %v1029 = vld [vmem:[%s3 + $0x10] sm:$0xf]
        %v1030 = vld [vmem:[%s3 + $0x14] sm:$0xf]
        %v1031 = vld [vmem:[%s3 + $0x18] sm:$0xf]
        %v1032 = vld [vmem:[%s3 + $0x1c] sm:$0xf]
        %v1033 = vld [vmem:[%s4] sm:$0x1]
        %v1035 = vperm.slane %v1033, 0
        %v1045 = vunpack.c.l.b16 %v1025
        %v1046 = vunpack.c.l.b16 %v1026
        %v1047 = vunpack.c.l.b16 %v1027
        %v1048 = vunpack.c.l.b16 %v1028
        %v1049 = vunpack.c.l.b16 %v1029
        %v1050 = vunpack.c.l.b16 %v1030
        %v1051 = vunpack.c.l.b16 %v1031
        %v1052 = vunpack.c.l.b16 %v1032
        %v1053 = vpack.c.b16 %v1046, %v1045
        %v1054 = vpack.c.b16 %v1048, %v1047
        %v1055 = vpack.c.b16 %v1050, %v1049
        %v1056 = vpack.c.b16 %v1052, %v1051
        %v1062 = vsel %vm493, %v1024, 0
        %1064 = vmatpush.bf16.msra.mxu0 0
        %1065 = vmatpush.bf16.msra.mxu0 0
        %1066 = vmatpush.bf16.msra.mxu0 0
        %1067 = vmatpush.bf16.msra.mxu0 0
        %1068 = vmatpush.bf16.msra.mxu0 %v1056
        %1069 = vmatpush.bf16.msra.mxu0 %v1055
        %1070 = vmatpush.bf16.msra.mxu0 %v1054
        %1071 = vmatpush.bf16.msra.mxu0 %v1053
        %1072 = vmatmul.bf16.gmra.mxu0 %v1062
        %v1073 = vpop.f32.mrf.mxu0
        %v1074 = vadd.f32 %v1035, %v1073
        %v1075 = vpop.f32.mrf.mxu0
        %1076 = vdwg.mxu0
        %v1077 = vadd.f32 %v437, %v1074
        %v1078 = vld [vmem:[%s5] sm:$0x1]
        %v1079 = vld [vmem:[%s6] sm:$0x1]
        %v1080 = vsel %vm493, %v1077, 0.0
        %1081 = vadd.xlane.f32.xlu0 %v1080
        %v1082 = vpop.xlane.xlu0 %1081
        %v1083 = vrcp.pop 64.0
        %v1084 = vmul.f32 64.0, %v1083
        %v1085 = vsub.f32 1.0, %v1084
        %v1086 = vmul.f32 %v1083, %v1085
        %v1087 = vadd.f32 %v1083, %v1086
        %vm1088 = vweird.f32 %v1083
        %v1089 = vsel %vm1088, %v1083, %v1087
        %v1090 = vmul.f32 %v1082, %v1089
        %v1091 = vsub.f32 %v1077, %v1090
        %v1092 = vmul.f32 %v1091, %v1091
        %v1093 = vsel %vm493, %v1092, 0.0
        %1094 = vadd.xlane.f32.xlu0 %v1093
        %v1095 = vpop.xlane.xlu0 %1094
        %v1096 = vmul.f32 %v1095, %v1089
        %v1097 = vadd.f32 %v1096, 1e-05
        %v1098 = vrsqrt.pop %v1097
        %v1099 = vmul.f32 %v1098, %v1097
        %v1100 = vmul.f32 %v1099, %v1098
        %v1101 = vmul.f32 0.5, %v1100
        %v1102 = vsub.f32 1.5, %v1101
        %v1103 = vmul.f32 %v1098, %v1102
        %vm1104 = vweird.f32 %v1097
        %vm1105 = vweird.f32 %v1098
        %vm1106 = vmor %vm1104, %vm1105
        %v1107 = vsel %vm1106, %v1098, %v1103
        %v1108 = vmul.f32 %v1091, %v1107
        %v1110 = vperm.slane %v1078, 0
        %v1112 = vmul.f32 %v1108, %v1110
        %v1114 = vperm.slane %v1079, 0
        %v1116 = vadd.f32 %v1112, %v1114
        %v1117 = vpack.c.bf16 %v1116, %v1116
        %v1118 = vld [vmem:[%s7] sm:$0xff]
        %v1119 = vld [vmem:[%s7 + $0x8] sm:$0xff]
        %v1120 = vld [vmem:[%s7 + $0x10] sm:$0xff]
        %v1121 = vld [vmem:[%s7 + $0x18] sm:$0xff]
        %v1122 = vld [vmem:[%s7 + $0x20] sm:$0xff]
        %v1123 = vld [vmem:[%s7 + $0x28] sm:$0xff]
        %v1124 = vld [vmem:[%s7 + $0x30] sm:$0xff]
        %v1125 = vld [vmem:[%s7 + $0x38] sm:$0xff]
        %v1126 = vld [vmem:[%s7 + $0x40] sm:$0xff]
        %v1127 = vld [vmem:[%s7 + $0x48] sm:$0xff]
        %v1128 = vld [vmem:[%s7 + $0x50] sm:$0xff]
        %v1129 = vld [vmem:[%s7 + $0x58] sm:$0xff]
        %v1130 = vld [vmem:[%s7 + $0x60] sm:$0xff]
        %v1131 = vld [vmem:[%s7 + $0x68] sm:$0xff]
        %v1132 = vld [vmem:[%s7 + $0x70] sm:$0xff]
        %v1133 = vld [vmem:[%s7 + $0x78] sm:$0xff]
        %v1134 = vld [vmem:[%s7 + $0x80] sm:$0xff]
        %v1135 = vld [vmem:[%s7 + $0x88] sm:$0xff]
        %v1136 = vld [vmem:[%s7 + $0x90] sm:$0xff]
        %v1137 = vld [vmem:[%s7 + $0x98] sm:$0xff]
        %v1138 = vld [vmem:[%s7 + $0xa0] sm:$0xff]
        %v1139 = vld [vmem:[%s7 + $0xa8] sm:$0xff]
        %v1140 = vld [vmem:[%s7 + $0xb0] sm:$0xff]
        %v1141 = vld [vmem:[%s7 + $0xb8] sm:$0xff]
        %v1142 = vld [vmem:[%s7 + $0xc0] sm:$0xff]
        %v1143 = vld [vmem:[%s7 + $0xc8] sm:$0xff]
        %v1144 = vld [vmem:[%s7 + $0xd0] sm:$0xff]
        %v1145 = vld [vmem:[%s7 + $0xd8] sm:$0xff]
        %v1146 = vld [vmem:[%s7 + $0xe0] sm:$0xff]
        %v1147 = vld [vmem:[%s7 + $0xe8] sm:$0xff]
        %v1148 = vld [vmem:[%s7 + $0xf0] sm:$0xff]
        %v1149 = vld [vmem:[%s7 + $0xf8] sm:$0xff]
        %v1150 = vld [vmem:[%s7 + $0x100] sm:$0xff]
        %v1151 = vld [vmem:[%s7 + $0x108] sm:$0xff]
        %v1152 = vld [vmem:[%s7 + $0x110] sm:$0xff]
        %v1153 = vld [vmem:[%s7 + $0x118] sm:$0xff]
        %v1154 = vld [vmem:[%s7 + $0x120] sm:$0xff]
        %v1155 = vld [vmem:[%s7 + $0x128] sm:$0xff]
        %v1156 = vld [vmem:[%s7 + $0x130] sm:$0xff]
        %v1157 = vld [vmem:[%s7 + $0x138] sm:$0xff]
        %v1158 = vld [vmem:[%s7 + $0x140] sm:$0xff]
        %v1159 = vld [vmem:[%s7 + $0x148] sm:$0xff]
        %v1160 = vld [vmem:[%s7 + $0x150] sm:$0xff]
        %v1161 = vld [vmem:[%s7 + $0x158] sm:$0xff]
        %v1162 = vld [vmem:[%s7 + $0x160] sm:$0xff]
        %v1163 = vld [vmem:[%s7 + $0x168] sm:$0xff]
        %v1164 = vld [vmem:[%s7 + $0x170] sm:$0xff]
        %v1165 = vld [vmem:[%s7 + $0x178] sm:$0xff]
        %v1166 = vld [vmem:[%s7 + $0x180] sm:$0xff]
        %v1167 = vld [vmem:[%s7 + $0x188] sm:$0xff]
        %v1168 = vld [vmem:[%s7 + $0x190] sm:$0xff]
        %v1169 = vld [vmem:[%s7 + $0x198] sm:$0xff]
        %v1170 = vld [vmem:[%s7 + $0x1a0] sm:$0xff]
        %v1171 = vld [vmem:[%s7 + $0x1a8] sm:$0xff]
        %v1172 = vld [vmem:[%s7 + $0x1b0] sm:$0xff]
        %v1173 = vld [vmem:[%s7 + $0x1b8] sm:$0xff]
        %v1174 = vld [vmem:[%s7 + $0x1c0] sm:$0xff]
        %v1175 = vld [vmem:[%s7 + $0x1c8] sm:$0xff]
        %v1176 = vld [vmem:[%s7 + $0x1d0] sm:$0xff]
        %v1177 = vld [vmem:[%s7 + $0x1d8] sm:$0xff]
        %v1178 = vld [vmem:[%s7 + $0x1e0] sm:$0xff]
        %v1179 = vld [vmem:[%s7 + $0x1e8] sm:$0xff]
        %v1180 = vld [vmem:[%s7 + $0x1f0] sm:$0xff]
        %v1181 = vld [vmem:[%s7 + $0x1f8] sm:$0xff]
        %v1182 = vld [vmem:[%s8] sm:$0xff]
        %v1183 = vld [vmem:[%s8 + $0x8] sm:$0xff]
        %v1186 = vperm.slane %v1182, 0
        %v1187 = vperm.slane %v1182, 1
        %v1188 = vperm.slane %v1182, 2
        %v1189 = vperm.slane %v1182, 3
        %v1190 = vperm.slane %v1182, 4
        %v1191 = vperm.slane %v1182, 5
        %v1192 = vperm.slane %v1182, 6
        %v1193 = vperm.slane %v1182, 7
        %v1194 = vperm.slane %v1183, 0
        %v1195 = vperm.slane %v1183, 1
        %v1196 = vperm.slane %v1183, 2
        %v1197 = vperm.slane %v1183, 3
        %v1198 = vperm.slane %v1183, 4
        %v1199 = vperm.slane %v1183, 5
        %v1200 = vperm.slane %v1183, 6
        %v1201 = vperm.slane %v1183, 7
        %v1282 = vunpack.c.l.b16 %v1118
        %v1283 = vunpack.c.h.b16 %v1118
        %v1284 = vunpack.c.l.b16 %v1119
        %v1285 = vunpack.c.h.b16 %v1119
        %v1286 = vunpack.c.l.b16 %v1120
        %v1287 = vunpack.c.h.b16 %v1120
        %v1288 = vunpack.c.l.b16 %v1121
        %v1289 = vunpack.c.h.b16 %v1121
        %v1290 = vunpack.c.l.b16 %v1122
        %v1291 = vunpack.c.h.b16 %v1122
        %v1292 = vunpack.c.l.b16 %v1123
        %v1293 = vunpack.c.h.b16 %v1123
        %v1294 = vunpack.c.l.b16 %v1124
        %v1295 = vunpack.c.h.b16 %v1124
        %v1296 = vunpack.c.l.b16 %v1125
        %v1297 = vunpack.c.h.b16 %v1125
        %v1298 = vunpack.c.l.b16 %v1126
        %v1299 = vunpack.c.h.b16 %v1126
        %v1300 = vunpack.c.l.b16 %v1127
        %v1301 = vunpack.c.h.b16 %v1127
        %v1302 = vunpack.c.l.b16 %v1128
        %v1303 = vunpack.c.h.b16 %v1128
        %v1304 = vunpack.c.l.b16 %v1129
        %v1305 = vunpack.c.h.b16 %v1129
        %v1306 = vunpack.c.l.b16 %v1130
        %v1307 = vunpack.c.h.b16 %v1130
        %v1308 = vunpack.c.l.b16 %v1131
        %v1309 = vunpack.c.h.b16 %v1131
        %v1310 = vunpack.c.l.b16 %v1132
        %v1311 = vunpack.c.h.b16 %v1132
        %v1312 = vunpack.c.l.b16 %v1133
        %v1313 = vunpack.c.h.b16 %v1133
        %v1314 = vunpack.c.l.b16 %v1134
        %v1315 = vunpack.c.h.b16 %v1134
        %v1316 = vunpack.c.l.b16 %v1135
        %v1317 = vunpack.c.h.b16 %v1135
        %v1318 = vunpack.c.l.b16 %v1136
        %v1319 = vunpack.c.h.b16 %v1136
        %v1320 = vunpack.c.l.b16 %v1137
        %v1321 = vunpack.c.h.b16 %v1137
        %v1322 = vunpack.c.l.b16 %v1138
        %v1323 = vunpack.c.h.b16 %v1138
        %v1324 = vunpack.c.l.b16 %v1139
        %v1325 = vunpack.c.h.b16 %v1139
        %v1326 = vunpack.c.l.b16 %v1140
        %v1327 = vunpack.c.h.b16 %v1140
        %v1328 = vunpack.c.l.b16 %v1141
        %v1329 = vunpack.c.h.b16 %v1141
        %v1330 = vunpack.c.l.b16 %v1142
        %v1331 = vunpack.c.h.b16 %v1142
        %v1332 = vunpack.c.l.b16 %v1143
        %v1333 = vunpack.c.h.b16 %v1143
        %v1334 = vunpack.c.l.b16 %v1144
        %v1335 = vunpack.c.h.b16 %v1144
        %v1336 = vunpack.c.l.b16 %v1145
        %v1337 = vunpack.c.h.b16 %v1145
        %v1338 = vunpack.c.l.b16 %v1146
        %v1339 = vunpack.c.h.b16 %v1146
        %v1340 = vunpack.c.l.b16 %v1147
        %v1341 = vunpack.c.h.b16 %v1147
        %v1342 = vunpack.c.l.b16 %v1148
        %v1343 = vunpack.c.h.b16 %v1148
        %v1344 = vunpack.c.l.b16 %v1149
        %v1345 = vunpack.c.h.b16 %v1149
        %v1346 = vunpack.c.l.b16 %v1150
        %v1347 = vunpack.c.h.b16 %v1150
        %v1348 = vunpack.c.l.b16 %v1151
        %v1349 = vunpack.c.h.b16 %v1151
        %v1350 = vunpack.c.l.b16 %v1152
        %v1351 = vunpack.c.h.b16 %v1152
        %v1352 = vunpack.c.l.b16 %v1153
        %v1353 = vunpack.c.h.b16 %v1153
        %v1354 = vunpack.c.l.b16 %v1154
        %v1355 = vunpack.c.h.b16 %v1154
        %v1356 = vunpack.c.l.b16 %v1155
        %v1357 = vunpack.c.h.b16 %v1155
        %v1358 = vunpack.c.l.b16 %v1156
        %v1359 = vunpack.c.h.b16 %v1156
        %v1360 = vunpack.c.l.b16 %v1157
        %v1361 = vunpack.c.h.b16 %v1157
        %v1362 = vunpack.c.l.b16 %v1158
        %v1363 = vunpack.c.h.b16 %v1158
        %v1364 = vunpack.c.l.b16 %v1159
        %v1365 = vunpack.c.h.b16 %v1159
        %v1366 = vunpack.c.l.b16 %v1160
        %v1367 = vunpack.c.h.b16 %v1160
        %v1368 = vunpack.c.l.b16 %v1161
        %v1369 = vunpack.c.h.b16 %v1161
        %v1370 = vunpack.c.l.b16 %v1162
        %v1371 = vunpack.c.h.b16 %v1162
        %v1372 = vunpack.c.l.b16 %v1163
        %v1373 = vunpack.c.h.b16 %v1163
        %v1374 = vunpack.c.l.b16 %v1164
        %v1375 = vunpack.c.h.b16 %v1164
        %v1376 = vunpack.c.l.b16 %v1165
        %v1377 = vunpack.c.h.b16 %v1165
        %v1378 = vunpack.c.l.b16 %v1166
        %v1379 = vunpack.c.h.b16 %v1166
        %v1380 = vunpack.c.l.b16 %v1167
        %v1381 = vunpack.c.h.b16 %v1167
        %v1382 = vunpack.c.l.b16 %v1168
        %v1383 = vunpack.c.h.b16 %v1168
        %v1384 = vunpack.c.l.b16 %v1169
        %v1385 = vunpack.c.h.b16 %v1169
        %v1386 = vunpack.c.l.b16 %v1170
        %v1387 = vunpack.c.h.b16 %v1170
        %v1388 = vunpack.c.l.b16 %v1171
        %v1389 = vunpack.c.h.b16 %v1171
        %v1390 = vunpack.c.l.b16 %v1172
        %v1391 = vunpack.c.h.b16 %v1172
        %v1392 = vunpack.c.l.b16 %v1173
        %v1393 = vunpack.c.h.b16 %v1173
        %v1394 = vunpack.c.l.b16 %v1174
        %v1395 = vunpack.c.h.b16 %v1174
        %v1396 = vunpack.c.l.b16 %v1175
        %v1397 = vunpack.c.h.b16 %v1175
        %v1398 = vunpack.c.l.b16 %v1176
        %v1399 = vunpack.c.h.b16 %v1176
        %v1400 = vunpack.c.l.b16 %v1177
        %v1401 = vunpack.c.h.b16 %v1177
        %v1402 = vunpack.c.l.b16 %v1178
        %v1403 = vunpack.c.h.b16 %v1178
        %v1404 = vunpack.c.l.b16 %v1179
        %v1405 = vunpack.c.h.b16 %v1179
        %v1406 = vunpack.c.l.b16 %v1180
        %v1407 = vunpack.c.h.b16 %v1180
        %v1408 = vunpack.c.l.b16 %v1181
        %v1409 = vunpack.c.h.b16 %v1181
        %v1410 = vpack.c.b16 %v1298, %v1282
        %v1411 = vpack.c.b16 %v1299, %v1283
        %v1412 = vpack.c.b16 %v1300, %v1284
        %v1413 = vpack.c.b16 %v1301, %v1285
        %v1414 = vpack.c.b16 %v1302, %v1286
        %v1415 = vpack.c.b16 %v1303, %v1287
        %v1416 = vpack.c.b16 %v1304, %v1288
        %v1417 = vpack.c.b16 %v1305, %v1289
        %v1418 = vpack.c.b16 %v1306, %v1290
        %v1419 = vpack.c.b16 %v1307, %v1291
        %v1420 = vpack.c.b16 %v1308, %v1292
        %v1421 = vpack.c.b16 %v1309, %v1293
        %v1422 = vpack.c.b16 %v1310, %v1294
        %v1423 = vpack.c.b16 %v1311, %v1295
        %v1424 = vpack.c.b16 %v1312, %v1296
        %v1425 = vpack.c.b16 %v1313, %v1297
        %v1426 = vpack.c.b16 %v1330, %v1314
        %v1427 = vpack.c.b16 %v1331, %v1315
        %v1428 = vpack.c.b16 %v1332, %v1316
        %v1429 = vpack.c.b16 %v1333, %v1317
        %v1430 = vpack.c.b16 %v1334, %v1318
        %v1431 = vpack.c.b16 %v1335, %v1319
        %v1432 = vpack.c.b16 %v1336, %v1320
        %v1433 = vpack.c.b16 %v1337, %v1321
        %v1434 = vpack.c.b16 %v1338, %v1322
        %v1435 = vpack.c.b16 %v1339, %v1323
        %v1436 = vpack.c.b16 %v1340, %v1324
        %v1437 = vpack.c.b16 %v1341, %v1325
        %v1438 = vpack.c.b16 %v1342, %v1326
        %v1439 = vpack.c.b16 %v1343, %v1327
        %v1440 = vpack.c.b16 %v1344, %v1328
        %v1441 = vpack.c.b16 %v1345, %v1329
        %v1442 = vpack.c.b16 %v1362, %v1346
        %v1443 = vpack.c.b16 %v1363, %v1347
        %v1444 = vpack.c.b16 %v1364, %v1348
        %v1445 = vpack.c.b16 %v1365, %v1349
        %v1446 = vpack.c.b16 %v1366, %v1350
        %v1447 = vpack.c.b16 %v1367, %v1351
        %v1448 = vpack.c.b16 %v1368, %v1352
        %v1449 = vpack.c.b16 %v1369, %v1353
        %v1450 = vpack.c.b16 %v1370, %v1354
        %v1451 = vpack.c.b16 %v1371, %v1355
        %v1452 = vpack.c.b16 %v1372, %v1356
        %v1453 = vpack.c.b16 %v1373, %v1357
        %v1454 = vpack.c.b16 %v1374, %v1358
        %v1455 = vpack.c.b16 %v1375, %v1359
        %v1456 = vpack.c.b16 %v1376, %v1360
        %v1457 = vpack.c.b16 %v1377, %v1361
        %v1458 = vpack.c.b16 %v1394, %v1378
        %v1459 = vpack.c.b16 %v1395, %v1379
        %v1460 = vpack.c.b16 %v1396, %v1380
        %v1461 = vpack.c.b16 %v1397, %v1381
        %v1462 = vpack.c.b16 %v1398, %v1382
        %v1463 = vpack.c.b16 %v1399, %v1383
        %v1464 = vpack.c.b16 %v1400, %v1384
        %v1465 = vpack.c.b16 %v1401, %v1385
        %v1466 = vpack.c.b16 %v1402, %v1386
        %v1467 = vpack.c.b16 %v1403, %v1387
        %v1468 = vpack.c.b16 %v1404, %v1388
        %v1469 = vpack.c.b16 %v1405, %v1389
        %v1470 = vpack.c.b16 %v1406, %v1390
        %v1471 = vpack.c.b16 %v1407, %v1391
        %v1472 = vpack.c.b16 %v1408, %v1392
        %v1473 = vpack.c.b16 %v1409, %v1393
        %v1539 = vsel %vm493, %v1117, 0
        %1541 = vmatpush.bf16.msra.mxu0 0
        %1542 = vmatpush.bf16.msra.mxu0 0
        %1543 = vmatpush.bf16.msra.mxu0 0
        %1544 = vmatpush.bf16.msra.mxu0 0
        %1545 = vmatpush.bf16.msra.mxu0 %v1458
        %1546 = vmatpush.bf16.msra.mxu0 %v1442
        %1547 = vmatpush.bf16.msra.mxu0 %v1426
        %1548 = vmatpush.bf16.msra.mxu0 %v1410
        %1549 = vmatmul.bf16.gmra.mxu0 %v1539
        %v1550 = vpop.f32.mrf.mxu0
        %v1551 = vadd.f32 %v1186, %v1550
        %v1552 = vpop.f32.mrf.mxu0
        %1553 = vdwg.mxu0
        %1554 = vmatpush.bf16.msra.mxu0 0
        %1555 = vmatpush.bf16.msra.mxu0 0
        %1556 = vmatpush.bf16.msra.mxu0 0
        %1557 = vmatpush.bf16.msra.mxu0 0
        %1558 = vmatpush.bf16.msra.mxu0 %v1459
        %1559 = vmatpush.bf16.msra.mxu0 %v1443
        %1560 = vmatpush.bf16.msra.mxu0 %v1427
        %1561 = vmatpush.bf16.msra.mxu0 %v1411
        %1562 = vmatmul.bf16.gmra.mxu0 %v1539
        %v1563 = vpop.f32.mrf.mxu0
        %v1564 = vadd.f32 %v1187, %v1563
        %v1565 = vpop.f32.mrf.mxu0
        %1566 = vdwg.mxu0
        %1567 = vmatpush.bf16.msra.mxu0 0
        %1568 = vmatpush.bf16.msra.mxu0 0
        %1569 = vmatpush.bf16.msra.mxu0 0
        %1570 = vmatpush.bf16.msra.mxu0 0
        %1571 = vmatpush.bf16.msra.mxu0 %v1460
        %1572 = vmatpush.bf16.msra.mxu0 %v1444
        %1573 = vmatpush.bf16.msra.mxu0 %v1428
        %1574 = vmatpush.bf16.msra.mxu0 %v1412
        %1575 = vmatmul.bf16.gmra.mxu0 %v1539
        %v1576 = vpop.f32.mrf.mxu0
        %v1577 = vadd.f32 %v1188, %v1576
        %v1578 = vpop.f32.mrf.mxu0
        %1579 = vdwg.mxu0
        %1580 = vmatpush.bf16.msra.mxu0 0
        %1581 = vmatpush.bf16.msra.mxu0 0
        %1582 = vmatpush.bf16.msra.mxu0 0
        %1583 = vmatpush.bf16.msra.mxu0 0
        %1584 = vmatpush.bf16.msra.mxu0 %v1461
        %1585 = vmatpush.bf16.msra.mxu0 %v1445
        %1586 = vmatpush.bf16.msra.mxu0 %v1429
        %1587 = vmatpush.bf16.msra.mxu0 %v1413
        %1588 = vmatmul.bf16.gmra.mxu0 %v1539
        %v1589 = vpop.f32.mrf.mxu0
        %v1590 = vadd.f32 %v1189, %v1589
        %v1591 = vpop.f32.mrf.mxu0
        %1592 = vdwg.mxu0
        %1593 = vmatpush.bf16.msra.mxu0 0
        %1594 = vmatpush.bf16.msra.mxu0 0
        %1595 = vmatpush.bf16.msra.mxu0 0
        %1596 = vmatpush.bf16.msra.mxu0 0
        %1597 = vmatpush.bf16.msra.mxu0 %v1462
        %1598 = vmatpush.bf16.msra.mxu0 %v1446
        %1599 = vmatpush.bf16.msra.mxu0 %v1430
        %1600 = vmatpush.bf16.msra.mxu0 %v1414
        %1601 = vmatmul.bf16.gmra.mxu0 %v1539
        %v1602 = vpop.f32.mrf.mxu0
        %v1603 = vadd.f32 %v1190, %v1602
        %v1604 = vpop.f32.mrf.mxu0
        %1605 = vdwg.mxu0
        %1606 = vmatpush.bf16.msra.mxu0 0
        %1607 = vmatpush.bf16.msra.mxu0 0
        %1608 = vmatpush.bf16.msra.mxu0 0
        %1609 = vmatpush.bf16.msra.mxu0 0
        %1610 = vmatpush.bf16.msra.mxu0 %v1463
        %1611 = vmatpush.bf16.msra.mxu0 %v1447
        %1612 = vmatpush.bf16.msra.mxu0 %v1431
        %1613 = vmatpush.bf16.msra.mxu0 %v1415
        %1614 = vmatmul.bf16.gmra.mxu0 %v1539
        %v1615 = vpop.f32.mrf.mxu0
        %v1616 = vadd.f32 %v1191, %v1615
        %v1617 = vpop.f32.mrf.mxu0
        %1618 = vdwg.mxu0
        %1619 = vmatpush.bf16.msra.mxu0 0
        %1620 = vmatpush.bf16.msra.mxu0 0
        %1621 = vmatpush.bf16.msra.mxu0 0
        %1622 = vmatpush.bf16.msra.mxu0 0
        %1623 = vmatpush.bf16.msra.mxu0 %v1464
        %1624 = vmatpush.bf16.msra.mxu0 %v1448
        %1625 = vmatpush.bf16.msra.mxu0 %v1432
        %1626 = vmatpush.bf16.msra.mxu0 %v1416
        %1627 = vmatmul.bf16.gmra.mxu0 %v1539
        %v1628 = vpop.f32.mrf.mxu0
        %v1629 = vadd.f32 %v1192, %v1628
        %v1630 = vpop.f32.mrf.mxu0
        %1631 = vdwg.mxu0
        %1632 = vmatpush.bf16.msra.mxu0 0
        %1633 = vmatpush.bf16.msra.mxu0 0
        %1634 = vmatpush.bf16.msra.mxu0 0
        %1635 = vmatpush.bf16.msra.mxu0 0
        %1636 = vmatpush.bf16.msra.mxu0 %v1465
        %1637 = vmatpush.bf16.msra.mxu0 %v1449
        %1638 = vmatpush.bf16.msra.mxu0 %v1433
        %1639 = vmatpush.bf16.msra.mxu0 %v1417
        %1640 = vmatmul.bf16.gmra.mxu0 %v1539
        %v1641 = vpop.f32.mrf.mxu0
        %v1642 = vadd.f32 %v1193, %v1641
        %v1643 = vpop.f32.mrf.mxu0
        %1644 = vdwg.mxu0
        %1645 = vmatpush.bf16.msra.mxu0 0
        %1646 = vmatpush.bf16.msra.mxu0 0
        %1647 = vmatpush.bf16.msra.mxu0 0
        %1648 = vmatpush.bf16.msra.mxu0 0
        %1649 = vmatpush.bf16.msra.mxu0 %v1466
        %1650 = vmatpush.bf16.msra.mxu0 %v1450
        %1651 = vmatpush.bf16.msra.mxu0 %v1434
        %1652 = vmatpush.bf16.msra.mxu0 %v1418
        %1653 = vmatmul.bf16.gmra.mxu0 %v1539
        %v1654 = vpop.f32.mrf.mxu0
        %v1655 = vadd.f32 %v1194, %v1654
        %v1656 = vpop.f32.mrf.mxu0
        %1657 = vdwg.mxu0
        %1658 = vmatpush.bf16.msra.mxu0 0
        %1659 = vmatpush.bf16.msra.mxu0 0
        %1660 = vmatpush.bf16.msra.mxu0 0
        %1661 = vmatpush.bf16.msra.mxu0 0
        %1662 = vmatpush.bf16.msra.mxu0 %v1467
        %1663 = vmatpush.bf16.msra.mxu0 %v1451
        %1664 = vmatpush.bf16.msra.mxu0 %v1435
        %1665 = vmatpush.bf16.msra.mxu0 %v1419
        %1666 = vmatmul.bf16.gmra.mxu0 %v1539
        %v1667 = vpop.f32.mrf.mxu0
        %v1668 = vadd.f32 %v1195, %v1667
        %v1669 = vpop.f32.mrf.mxu0
        %1670 = vdwg.mxu0
        %1671 = vmatpush.bf16.msra.mxu0 0
        %1672 = vmatpush.bf16.msra.mxu0 0
        %1673 = vmatpush.bf16.msra.mxu0 0
        %1674 = vmatpush.bf16.msra.mxu0 0
        %1675 = vmatpush.bf16.msra.mxu0 %v1468
        %1676 = vmatpush.bf16.msra.mxu0 %v1452
        %1677 = vmatpush.bf16.msra.mxu0 %v1436
        %1678 = vmatpush.bf16.msra.mxu0 %v1420
        %1679 = vmatmul.bf16.gmra.mxu0 %v1539
        %v1680 = vpop.f32.mrf.mxu0
        %v1681 = vadd.f32 %v1196, %v1680
        %v1682 = vpop.f32.mrf.mxu0
        %1683 = vdwg.mxu0
        %1684 = vmatpush.bf16.msra.mxu0 0
        %1685 = vmatpush.bf16.msra.mxu0 0
        %1686 = vmatpush.bf16.msra.mxu0 0
        %1687 = vmatpush.bf16.msra.mxu0 0
        %1688 = vmatpush.bf16.msra.mxu0 %v1469
        %1689 = vmatpush.bf16.msra.mxu0 %v1453
        %1690 = vmatpush.bf16.msra.mxu0 %v1437
        %1691 = vmatpush.bf16.msra.mxu0 %v1421
        %1692 = vmatmul.bf16.gmra.mxu0 %v1539
        %v1693 = vpop.f32.mrf.mxu0
        %v1694 = vadd.f32 %v1197, %v1693
        %v1695 = vpop.f32.mrf.mxu0
        %1696 = vdwg.mxu0
        %1697 = vmatpush.bf16.msra.mxu0 0
        %1698 = vmatpush.bf16.msra.mxu0 0
        %1699 = vmatpush.bf16.msra.mxu0 0
        %1700 = vmatpush.bf16.msra.mxu0 0
        %1701 = vmatpush.bf16.msra.mxu0 %v1470
        %1702 = vmatpush.bf16.msra.mxu0 %v1454
        %1703 = vmatpush.bf16.msra.mxu0 %v1438
        %1704 = vmatpush.bf16.msra.mxu0 %v1422
        %1705 = vmatmul.bf16.gmra.mxu0 %v1539
        %v1706 = vpop.f32.mrf.mxu0
        %v1707 = vadd.f32 %v1198, %v1706
        %v1708 = vpop.f32.mrf.mxu0
        %1709 = vdwg.mxu0
        %1710 = vmatpush.bf16.msra.mxu0 0
        %1711 = vmatpush.bf16.msra.mxu0 0
        %1712 = vmatpush.bf16.msra.mxu0 0
        %1713 = vmatpush.bf16.msra.mxu0 0
        %1714 = vmatpush.bf16.msra.mxu0 %v1471
        %1715 = vmatpush.bf16.msra.mxu0 %v1455
        %1716 = vmatpush.bf16.msra.mxu0 %v1439
        %1717 = vmatpush.bf16.msra.mxu0 %v1423
        %1718 = vmatmul.bf16.gmra.mxu0 %v1539
        %v1719 = vpop.f32.mrf.mxu0
        %v1720 = vadd.f32 %v1199, %v1719
        %v1721 = vpop.f32.mrf.mxu0
        %1722 = vdwg.mxu0
        %1723 = vmatpush.bf16.msra.mxu0 0
        %1724 = vmatpush.bf16.msra.mxu0 0
        %1725 = vmatpush.bf16.msra.mxu0 0
        %1726 = vmatpush.bf16.msra.mxu0 0
        %1727 = vmatpush.bf16.msra.mxu0 %v1472
        %1728 = vmatpush.bf16.msra.mxu0 %v1456
        %1729 = vmatpush.bf16.msra.mxu0 %v1440
        %1730 = vmatpush.bf16.msra.mxu0 %v1424
        %1731 = vmatmul.bf16.gmra.mxu0 %v1539
        %v1732 = vpop.f32.mrf.mxu0
        %v1733 = vadd.f32 %v1200, %v1732
        %v1734 = vpop.f32.mrf.mxu0
        %1735 = vdwg.mxu0
        %1736 = vmatpush.bf16.msra.mxu0 0
        %1737 = vmatpush.bf16.msra.mxu0 0
        %1738 = vmatpush.bf16.msra.mxu0 0
        %1739 = vmatpush.bf16.msra.mxu0 0
        %1740 = vmatpush.bf16.msra.mxu0 %v1473
        %1741 = vmatpush.bf16.msra.mxu0 %v1457
        %1742 = vmatpush.bf16.msra.mxu0 %v1441
        %1743 = vmatpush.bf16.msra.mxu0 %v1425
        %1744 = vmatmul.bf16.gmra.mxu0 %v1539
        %v1745 = vpop.f32.mrf.mxu0
        %v1746 = vadd.f32 %v1201, %v1745
        %v1747 = vpop.f32.mrf.mxu0
        %1748 = vdwg.mxu0
        %v1749 = vmax.f32 %v1551, 0.0
        %v1750 = vmax.f32 %v1564, 0.0
        %v1751 = vmax.f32 %v1577, 0.0
        %v1752 = vmax.f32 %v1590, 0.0
        %v1753 = vmax.f32 %v1603, 0.0
        %v1754 = vmax.f32 %v1616, 0.0
        %v1755 = vmax.f32 %v1629, 0.0
        %v1756 = vmax.f32 %v1642, 0.0
        %v1757 = vmax.f32 %v1655, 0.0
        %v1758 = vmax.f32 %v1668, 0.0
        %v1759 = vmax.f32 %v1681, 0.0
        %v1760 = vmax.f32 %v1694, 0.0
        %v1761 = vmax.f32 %v1707, 0.0
        %v1762 = vmax.f32 %v1720, 0.0
        %v1763 = vmax.f32 %v1733, 0.0
        %v1764 = vmax.f32 %v1746, 0.0
        %v1765 = vpack.c.bf16 %v1749, %v1749
        %v1766 = vpack.c.bf16 %v1750, %v1750
        %v1767 = vpack.c.bf16 %v1751, %v1751
        %v1768 = vpack.c.bf16 %v1752, %v1752
        %v1769 = vpack.c.bf16 %v1753, %v1753
        %v1770 = vpack.c.bf16 %v1754, %v1754
        %v1771 = vpack.c.bf16 %v1755, %v1755
        %v1772 = vpack.c.bf16 %v1756, %v1756
        %v1773 = vpack.c.bf16 %v1757, %v1757
        %v1774 = vpack.c.bf16 %v1758, %v1758
        %v1775 = vpack.c.bf16 %v1759, %v1759
        %v1776 = vpack.c.bf16 %v1760, %v1760
        %v1777 = vpack.c.bf16 %v1761, %v1761
        %v1778 = vpack.c.bf16 %v1762, %v1762
        %v1779 = vpack.c.bf16 %v1763, %v1763
        %v1780 = vpack.c.bf16 %v1764, %v1764
        %v1781 = vld [vmem:[%s9] sm:$0xf]
        %v1782 = vld [vmem:[%s9 + $0x4] sm:$0xf]
        %v1783 = vld [vmem:[%s9 + $0x8] sm:$0xf]
        %v1784 = vld [vmem:[%s9 + $0xc] sm:$0xf]
        %v1785 = vld [vmem:[%s9 + $0x10] sm:$0xf]
        %v1786 = vld [vmem:[%s9 + $0x14] sm:$0xf]
        %v1787 = vld [vmem:[%s9 + $0x18] sm:$0xf]
        %v1788 = vld [vmem:[%s9 + $0x1c] sm:$0xf]
        %v1789 = vld [vmem:[%s9 + $0x20] sm:$0xf]
        %v1790 = vld [vmem:[%s9 + $0x24] sm:$0xf]
        %v1791 = vld [vmem:[%s9 + $0x28] sm:$0xf]
        %v1792 = vld [vmem:[%s9 + $0x2c] sm:$0xf]
        %v1793 = vld [vmem:[%s9 + $0x30] sm:$0xf]
        %v1794 = vld [vmem:[%s9 + $0x34] sm:$0xf]
        %v1795 = vld [vmem:[%s9 + $0x38] sm:$0xf]
        %v1796 = vld [vmem:[%s9 + $0x3c] sm:$0xf]
        %v1797 = vld [vmem:[%s9 + $0x40] sm:$0xf]
        %v1798 = vld [vmem:[%s9 + $0x44] sm:$0xf]
        %v1799 = vld [vmem:[%s9 + $0x48] sm:$0xf]
        %v1800 = vld [vmem:[%s9 + $0x4c] sm:$0xf]
        %v1801 = vld [vmem:[%s9 + $0x50] sm:$0xf]
        %v1802 = vld [vmem:[%s9 + $0x54] sm:$0xf]
        %v1803 = vld [vmem:[%s9 + $0x58] sm:$0xf]
        %v1804 = vld [vmem:[%s9 + $0x5c] sm:$0xf]
        %v1805 = vld [vmem:[%s9 + $0x60] sm:$0xf]
        %v1806 = vld [vmem:[%s9 + $0x64] sm:$0xf]
        %v1807 = vld [vmem:[%s9 + $0x68] sm:$0xf]
        %v1808 = vld [vmem:[%s9 + $0x6c] sm:$0xf]
        %v1809 = vld [vmem:[%s9 + $0x70] sm:$0xf]
        %v1810 = vld [vmem:[%s9 + $0x74] sm:$0xf]
        %v1811 = vld [vmem:[%s9 + $0x78] sm:$0xf]
        %v1812 = vld [vmem:[%s9 + $0x7c] sm:$0xf]
        %v1813 = vld [vmem:[%s9 + $0x80] sm:$0xf]
        %v1814 = vld [vmem:[%s9 + $0x84] sm:$0xf]
        %v1815 = vld [vmem:[%s9 + $0x88] sm:$0xf]
        %v1816 = vld [vmem:[%s9 + $0x8c] sm:$0xf]
        %v1817 = vld [vmem:[%s9 + $0x90] sm:$0xf]
        %v1818 = vld [vmem:[%s9 + $0x94] sm:$0xf]
        %v1819 = vld [vmem:[%s9 + $0x98] sm:$0xf]
        %v1820 = vld [vmem:[%s9 + $0x9c] sm:$0xf]
        %v1821 = vld [vmem:[%s9 + $0xa0] sm:$0xf]
        %v1822 = vld [vmem:[%s9 + $0xa4] sm:$0xf]
        %v1823 = vld [vmem:[%s9 + $0xa8] sm:$0xf]
        %v1824 = vld [vmem:[%s9 + $0xac] sm:$0xf]
        %v1825 = vld [vmem:[%s9 + $0xb0] sm:$0xf]
        %v1826 = vld [vmem:[%s9 + $0xb4] sm:$0xf]
        %v1827 = vld [vmem:[%s9 + $0xb8] sm:$0xf]
        %v1828 = vld [vmem:[%s9 + $0xbc] sm:$0xf]
        %v1829 = vld [vmem:[%s9 + $0xc0] sm:$0xf]
        %v1830 = vld [vmem:[%s9 + $0xc4] sm:$0xf]
        %v1831 = vld [vmem:[%s9 + $0xc8] sm:$0xf]
        %v1832 = vld [vmem:[%s9 + $0xcc] sm:$0xf]
        %v1833 = vld [vmem:[%s9 + $0xd0] sm:$0xf]
        %v1834 = vld [vmem:[%s9 + $0xd4] sm:$0xf]
        %v1835 = vld [vmem:[%s9 + $0xd8] sm:$0xf]
        %v1836 = vld [vmem:[%s9 + $0xdc] sm:$0xf]
        %v1837 = vld [vmem:[%s9 + $0xe0] sm:$0xf]
        %v1838 = vld [vmem:[%s9 + $0xe4] sm:$0xf]
        %v1839 = vld [vmem:[%s9 + $0xe8] sm:$0xf]
        %v1840 = vld [vmem:[%s9 + $0xec] sm:$0xf]
        %v1841 = vld [vmem:[%s9 + $0xf0] sm:$0xf]
        %v1842 = vld [vmem:[%s9 + $0xf4] sm:$0xf]
        %v1843 = vld [vmem:[%s9 + $0xf8] sm:$0xf]
        %v1844 = vld [vmem:[%s9 + $0xfc] sm:$0xf]
        %v1845 = vld [vmem:[%s9 + $0x100] sm:$0xf]
        %v1846 = vld [vmem:[%s9 + $0x104] sm:$0xf]
        %v1847 = vld [vmem:[%s9 + $0x108] sm:$0xf]
        %v1848 = vld [vmem:[%s9 + $0x10c] sm:$0xf]
        %v1849 = vld [vmem:[%s9 + $0x110] sm:$0xf]
        %v1850 = vld [vmem:[%s9 + $0x114] sm:$0xf]
        %v1851 = vld [vmem:[%s9 + $0x118] sm:$0xf]
        %v1852 = vld [vmem:[%s9 + $0x11c] sm:$0xf]
        %v1853 = vld [vmem:[%s9 + $0x120] sm:$0xf]
        %v1854 = vld [vmem:[%s9 + $0x124] sm:$0xf]
        %v1855 = vld [vmem:[%s9 + $0x128] sm:$0xf]
        %v1856 = vld [vmem:[%s9 + $0x12c] sm:$0xf]
        %v1857 = vld [vmem:[%s9 + $0x130] sm:$0xf]
        %v1858 = vld [vmem:[%s9 + $0x134] sm:$0xf]
        %v1859 = vld [vmem:[%s9 + $0x138] sm:$0xf]
        %v1860 = vld [vmem:[%s9 + $0x13c] sm:$0xf]
        %v1861 = vld [vmem:[%s9 + $0x140] sm:$0xf]
        %v1862 = vld [vmem:[%s9 + $0x144] sm:$0xf]
        %v1863 = vld [vmem:[%s9 + $0x148] sm:$0xf]
        %v1864 = vld [vmem:[%s9 + $0x14c] sm:$0xf]
        %v1865 = vld [vmem:[%s9 + $0x150] sm:$0xf]
        %v1866 = vld [vmem:[%s9 + $0x154] sm:$0xf]
        %v1867 = vld [vmem:[%s9 + $0x158] sm:$0xf]
        %v1868 = vld [vmem:[%s9 + $0x15c] sm:$0xf]
        %v1869 = vld [vmem:[%s9 + $0x160] sm:$0xf]
        %v1870 = vld [vmem:[%s9 + $0x164] sm:$0xf]
        %v1871 = vld [vmem:[%s9 + $0x168] sm:$0xf]
        %v1872 = vld [vmem:[%s9 + $0x16c] sm:$0xf]
        %v1873 = vld [vmem:[%s9 + $0x170] sm:$0xf]
        %v1874 = vld [vmem:[%s9 + $0x174] sm:$0xf]
        %v1875 = vld [vmem:[%s9 + $0x178] sm:$0xf]
        %v1876 = vld [vmem:[%s9 + $0x17c] sm:$0xf]
        %v1877 = vld [vmem:[%s9 + $0x180] sm:$0xf]
        %v1878 = vld [vmem:[%s9 + $0x184] sm:$0xf]
        %v1879 = vld [vmem:[%s9 + $0x188] sm:$0xf]
        %v1880 = vld [vmem:[%s9 + $0x18c] sm:$0xf]
        %v1881 = vld [vmem:[%s9 + $0x190] sm:$0xf]
        %v1882 = vld [vmem:[%s9 + $0x194] sm:$0xf]
        %v1883 = vld [vmem:[%s9 + $0x198] sm:$0xf]
        %v1884 = vld [vmem:[%s9 + $0x19c] sm:$0xf]
        %v1885 = vld [vmem:[%s9 + $0x1a0] sm:$0xf]
        %v1886 = vld [vmem:[%s9 + $0x1a4] sm:$0xf]
        %v1887 = vld [vmem:[%s9 + $0x1a8] sm:$0xf]
        %v1888 = vld [vmem:[%s9 + $0x1ac] sm:$0xf]
        %v1889 = vld [vmem:[%s9 + $0x1b0] sm:$0xf]
        %v1890 = vld [vmem:[%s9 + $0x1b4] sm:$0xf]
        %v1891 = vld [vmem:[%s9 + $0x1b8] sm:$0xf]
        %v1892 = vld [vmem:[%s9 + $0x1bc] sm:$0xf]
        %v1893 = vld [vmem:[%s9 + $0x1c0] sm:$0xf]
        %v1894 = vld [vmem:[%s9 + $0x1c4] sm:$0xf]
        %v1895 = vld [vmem:[%s9 + $0x1c8] sm:$0xf]
        %v1896 = vld [vmem:[%s9 + $0x1cc] sm:$0xf]
        %v1897 = vld [vmem:[%s9 + $0x1d0] sm:$0xf]
        %v1898 = vld [vmem:[%s9 + $0x1d4] sm:$0xf]
        %v1899 = vld [vmem:[%s9 + $0x1d8] sm:$0xf]
        %v1900 = vld [vmem:[%s9 + $0x1dc] sm:$0xf]
        %v1901 = vld [vmem:[%s9 + $0x1e0] sm:$0xf]
        %v1902 = vld [vmem:[%s9 + $0x1e4] sm:$0xf]
        %v1903 = vld [vmem:[%s9 + $0x1e8] sm:$0xf]
        %v1904 = vld [vmem:[%s9 + $0x1ec] sm:$0xf]
        %v1905 = vld [vmem:[%s9 + $0x1f0] sm:$0xf]
        %v1906 = vld [vmem:[%s9 + $0x1f4] sm:$0xf]
        %v1907 = vld [vmem:[%s9 + $0x1f8] sm:$0xf]
        %v1908 = vld [vmem:[%s9 + $0x1fc] sm:$0xf]
        %v1909 = vld [vmem:[%s9 + $0x200] sm:$0xf]
        %v1910 = vld [vmem:[%s9 + $0x204] sm:$0xf]
        %v1911 = vld [vmem:[%s9 + $0x208] sm:$0xf]
        %v1912 = vld [vmem:[%s9 + $0x20c] sm:$0xf]
        %v1913 = vld [vmem:[%s9 + $0x210] sm:$0xf]
        %v1914 = vld [vmem:[%s9 + $0x214] sm:$0xf]
        %v1915 = vld [vmem:[%s9 + $0x218] sm:$0xf]
        %v1916 = vld [vmem:[%s9 + $0x21c] sm:$0xf]
        %v1917 = vld [vmem:[%s9 + $0x220] sm:$0xf]
        %v1918 = vld [vmem:[%s9 + $0x224] sm:$0xf]
        %v1919 = vld [vmem:[%s9 + $0x228] sm:$0xf]
        %v1920 = vld [vmem:[%s9 + $0x22c] sm:$0xf]
        %v1921 = vld [vmem:[%s9 + $0x230] sm:$0xf]
        %v1922 = vld [vmem:[%s9 + $0x234] sm:$0xf]
        %v1923 = vld [vmem:[%s9 + $0x238] sm:$0xf]
        %v1924 = vld [vmem:[%s9 + $0x23c] sm:$0xf]
        %v1925 = vld [vmem:[%s9 + $0x240] sm:$0xf]
        %v1926 = vld [vmem:[%s9 + $0x244] sm:$0xf]
        %v1927 = vld [vmem:[%s9 + $0x248] sm:$0xf]
        %v1928 = vld [vmem:[%s9 + $0x24c] sm:$0xf]
        %v1929 = vld [vmem:[%s9 + $0x250] sm:$0xf]
        %v1930 = vld [vmem:[%s9 + $0x254] sm:$0xf]
        %v1931 = vld [vmem:[%s9 + $0x258] sm:$0xf]
        %v1932 = vld [vmem:[%s9 + $0x25c] sm:$0xf]
        %v1933 = vld [vmem:[%s9 + $0x260] sm:$0xf]
        %v1934 = vld [vmem:[%s9 + $0x264] sm:$0xf]
        %v1935 = vld [vmem:[%s9 + $0x268] sm:$0xf]
        %v1936 = vld [vmem:[%s9 + $0x26c] sm:$0xf]
        %v1937 = vld [vmem:[%s9 + $0x270] sm:$0xf]
        %v1938 = vld [vmem:[%s9 + $0x274] sm:$0xf]
        %v1939 = vld [vmem:[%s9 + $0x278] sm:$0xf]
        %v1940 = vld [vmem:[%s9 + $0x27c] sm:$0xf]
        %v1941 = vld [vmem:[%s9 + $0x280] sm:$0xf]
        %v1942 = vld [vmem:[%s9 + $0x284] sm:$0xf]
        %v1943 = vld [vmem:[%s9 + $0x288] sm:$0xf]
        %v1944 = vld [vmem:[%s9 + $0x28c] sm:$0xf]
        %v1945 = vld [vmem:[%s9 + $0x290] sm:$0xf]
        %v1946 = vld [vmem:[%s9 + $0x294] sm:$0xf]
        %v1947 = vld [vmem:[%s9 + $0x298] sm:$0xf]
        %v1948 = vld [vmem:[%s9 + $0x29c] sm:$0xf]
        %v1949 = vld [vmem:[%s9 + $0x2a0] sm:$0xf]
        %v1950 = vld [vmem:[%s9 + $0x2a4] sm:$0xf]
        %v1951 = vld [vmem:[%s9 + $0x2a8] sm:$0xf]
        %v1952 = vld [vmem:[%s9 + $0x2ac] sm:$0xf]
        %v1953 = vld [vmem:[%s9 + $0x2b0] sm:$0xf]
        %v1954 = vld [vmem:[%s9 + $0x2b4] sm:$0xf]
        %v1955 = vld [vmem:[%s9 + $0x2b8] sm:$0xf]
        %v1956 = vld [vmem:[%s9 + $0x2bc] sm:$0xf]
        %v1957 = vld [vmem:[%s9 + $0x2c0] sm:$0xf]
        %v1958 = vld [vmem:[%s9 + $0x2c4] sm:$0xf]
        %v1959 = vld [vmem:[%s9 + $0x2c8] sm:$0xf]
        %v1960 = vld [vmem:[%s9 + $0x2cc] sm:$0xf]
        %v1961 = vld [vmem:[%s9 + $0x2d0] sm:$0xf]
        %v1962 = vld [vmem:[%s9 + $0x2d4] sm:$0xf]
        %v1963 = vld [vmem:[%s9 + $0x2d8] sm:$0xf]
        %v1964 = vld [vmem:[%s9 + $0x2dc] sm:$0xf]
        %v1965 = vld [vmem:[%s9 + $0x2e0] sm:$0xf]
        %v1966 = vld [vmem:[%s9 + $0x2e4] sm:$0xf]
        %v1967 = vld [vmem:[%s9 + $0x2e8] sm:$0xf]
        %v1968 = vld [vmem:[%s9 + $0x2ec] sm:$0xf]
        %v1969 = vld [vmem:[%s9 + $0x2f0] sm:$0xf]
        %v1970 = vld [vmem:[%s9 + $0x2f4] sm:$0xf]
        %v1971 = vld [vmem:[%s9 + $0x2f8] sm:$0xf]
        %v1972 = vld [vmem:[%s9 + $0x2fc] sm:$0xf]
        %v1973 = vld [vmem:[%s9 + $0x300] sm:$0xf]
        %v1974 = vld [vmem:[%s9 + $0x304] sm:$0xf]
        %v1975 = vld [vmem:[%s9 + $0x308] sm:$0xf]
        %v1976 = vld [vmem:[%s9 + $0x30c] sm:$0xf]
        %v1977 = vld [vmem:[%s9 + $0x310] sm:$0xf]
        %v1978 = vld [vmem:[%s9 + $0x314] sm:$0xf]
        %v1979 = vld [vmem:[%s9 + $0x318] sm:$0xf]
        %v1980 = vld [vmem:[%s9 + $0x31c] sm:$0xf]
        %v1981 = vld [vmem:[%s9 + $0x320] sm:$0xf]
        %v1982 = vld [vmem:[%s9 + $0x324] sm:$0xf]
        %v1983 = vld [vmem:[%s9 + $0x328] sm:$0xf]
        %v1984 = vld [vmem:[%s9 + $0x32c] sm:$0xf]
        %v1985 = vld [vmem:[%s9 + $0x330] sm:$0xf]
        %v1986 = vld [vmem:[%s9 + $0x334] sm:$0xf]
        %v1987 = vld [vmem:[%s9 + $0x338] sm:$0xf]
        %v1988 = vld [vmem:[%s9 + $0x33c] sm:$0xf]
        %v1989 = vld [vmem:[%s9 + $0x340] sm:$0xf]
        %v1990 = vld [vmem:[%s9 + $0x344] sm:$0xf]
        %v1991 = vld [vmem:[%s9 + $0x348] sm:$0xf]
        %v1992 = vld [vmem:[%s9 + $0x34c] sm:$0xf]
        %v1993 = vld [vmem:[%s9 + $0x350] sm:$0xf]
        %v1994 = vld [vmem:[%s9 + $0x354] sm:$0xf]
        %v1995 = vld [vmem:[%s9 + $0x358] sm:$0xf]
        %v1996 = vld [vmem:[%s9 + $0x35c] sm:$0xf]
        %v1997 = vld [vmem:[%s9 + $0x360] sm:$0xf]
        %v1998 = vld [vmem:[%s9 + $0x364] sm:$0xf]
        %v1999 = vld [vmem:[%s9 + $0x368] sm:$0xf]
        %v2000 = vld [vmem:[%s9 + $0x36c] sm:$0xf]
        %v2001 = vld [vmem:[%s9 + $0x370] sm:$0xf]
        %v2002 = vld [vmem:[%s9 + $0x374] sm:$0xf]
        %v2003 = vld [vmem:[%s9 + $0x378] sm:$0xf]
        %v2004 = vld [vmem:[%s9 + $0x37c] sm:$0xf]
        %v2005 = vld [vmem:[%s9 + $0x380] sm:$0xf]
        %v2006 = vld [vmem:[%s9 + $0x384] sm:$0xf]
        %v2007 = vld [vmem:[%s9 + $0x388] sm:$0xf]
        %v2008 = vld [vmem:[%s9 + $0x38c] sm:$0xf]
        %v2009 = vld [vmem:[%s9 + $0x390] sm:$0xf]
        %v2010 = vld [vmem:[%s9 + $0x394] sm:$0xf]
        %v2011 = vld [vmem:[%s9 + $0x398] sm:$0xf]
        %v2012 = vld [vmem:[%s9 + $0x39c] sm:$0xf]
        %v2013 = vld [vmem:[%s9 + $0x3a0] sm:$0xf]
        %v2014 = vld [vmem:[%s9 + $0x3a4] sm:$0xf]
        %v2015 = vld [vmem:[%s9 + $0x3a8] sm:$0xf]
        %v2016 = vld [vmem:[%s9 + $0x3ac] sm:$0xf]
        %v2017 = vld [vmem:[%s9 + $0x3b0] sm:$0xf]
        %v2018 = vld [vmem:[%s9 + $0x3b4] sm:$0xf]
        %v2019 = vld [vmem:[%s9 + $0x3b8] sm:$0xf]
        %v2020 = vld [vmem:[%s9 + $0x3bc] sm:$0xf]
        %v2021 = vld [vmem:[%s9 + $0x3c0] sm:$0xf]
        %v2022 = vld [vmem:[%s9 + $0x3c4] sm:$0xf]
        %v2023 = vld [vmem:[%s9 + $0x3c8] sm:$0xf]
        %v2024 = vld [vmem:[%s9 + $0x3cc] sm:$0xf]
        %v2025 = vld [vmem:[%s9 + $0x3d0] sm:$0xf]
        %v2026 = vld [vmem:[%s9 + $0x3d4] sm:$0xf]
        %v2027 = vld [vmem:[%s9 + $0x3d8] sm:$0xf]
        %v2028 = vld [vmem:[%s9 + $0x3dc] sm:$0xf]
        %v2029 = vld [vmem:[%s9 + $0x3e0] sm:$0xf]
        %v2030 = vld [vmem:[%s9 + $0x3e4] sm:$0xf]
        %v2031 = vld [vmem:[%s9 + $0x3e8] sm:$0xf]
        %v2032 = vld [vmem:[%s9 + $0x3ec] sm:$0xf]
        %v2033 = vld [vmem:[%s9 + $0x3f0] sm:$0xf]
        %v2034 = vld [vmem:[%s9 + $0x3f4] sm:$0xf]
        %v2035 = vld [vmem:[%s9 + $0x3f8] sm:$0xf]
        %v2036 = vld [vmem:[%s9 + $0x3fc] sm:$0xf]
        %v2037 = vld [vmem:[%s10] sm:$0x1]
        %v2039 = vperm.slane %v2037, 0
        %v2297 = vunpack.c.l.b16 %v1781
        %v2298 = vunpack.c.l.b16 %v1782
        %v2299 = vunpack.c.l.b16 %v1783
        %v2300 = vunpack.c.l.b16 %v1784
        %v2301 = vunpack.c.l.b16 %v1785
        %v2302 = vunpack.c.l.b16 %v1786
        %v2303 = vunpack.c.l.b16 %v1787
        %v2304 = vunpack.c.l.b16 %v1788
        %v2305 = vunpack.c.l.b16 %v1789
        %v2306 = vunpack.c.l.b16 %v1790
        %v2307 = vunpack.c.l.b16 %v1791
        %v2308 = vunpack.c.l.b16 %v1792
        %v2309 = vunpack.c.l.b16 %v1793
        %v2310 = vunpack.c.l.b16 %v1794
        %v2311 = vunpack.c.l.b16 %v1795
        %v2312 = vunpack.c.l.b16 %v1796
        %v2313 = vunpack.c.l.b16 %v1797
        %v2314 = vunpack.c.l.b16 %v1798
        %v2315 = vunpack.c.l.b16 %v1799
        %v2316 = vunpack.c.l.b16 %v1800
        %v2317 = vunpack.c.l.b16 %v1801
        %v2318 = vunpack.c.l.b16 %v1802
        %v2319 = vunpack.c.l.b16 %v1803
        %v2320 = vunpack.c.l.b16 %v1804
        %v2321 = vunpack.c.l.b16 %v1805
        %v2322 = vunpack.c.l.b16 %v1806
        %v2323 = vunpack.c.l.b16 %v1807
        %v2324 = vunpack.c.l.b16 %v1808
        %v2325 = vunpack.c.l.b16 %v1809
        %v2326 = vunpack.c.l.b16 %v1810
        %v2327 = vunpack.c.l.b16 %v1811
        %v2328 = vunpack.c.l.b16 %v1812
        %v2329 = vunpack.c.l.b16 %v1813
        %v2330 = vunpack.c.l.b16 %v1814
        %v2331 = vunpack.c.l.b16 %v1815
        %v2332 = vunpack.c.l.b16 %v1816
        %v2333 = vunpack.c.l.b16 %v1817
        %v2334 = vunpack.c.l.b16 %v1818
        %v2335 = vunpack.c.l.b16 %v1819
        %v2336 = vunpack.c.l.b16 %v1820
        %v2337 = vunpack.c.l.b16 %v1821
        %v2338 = vunpack.c.l.b16 %v1822
        %v2339 = vunpack.c.l.b16 %v1823
        %v2340 = vunpack.c.l.b16 %v1824
        %v2341 = vunpack.c.l.b16 %v1825
        %v2342 = vunpack.c.l.b16 %v1826
        %v2343 = vunpack.c.l.b16 %v1827
        %v2344 = vunpack.c.l.b16 %v1828
        %v2345 = vunpack.c.l.b16 %v1829
        %v2346 = vunpack.c.l.b16 %v1830
        %v2347 = vunpack.c.l.b16 %v1831
        %v2348 = vunpack.c.l.b16 %v1832
        %v2349 = vunpack.c.l.b16 %v1833
        %v2350 = vunpack.c.l.b16 %v1834
        %v2351 = vunpack.c.l.b16 %v1835
        %v2352 = vunpack.c.l.b16 %v1836
        %v2353 = vunpack.c.l.b16 %v1837
        %v2354 = vunpack.c.l.b16 %v1838
        %v2355 = vunpack.c.l.b16 %v1839
        %v2356 = vunpack.c.l.b16 %v1840
        %v2357 = vunpack.c.l.b16 %v1841
        %v2358 = vunpack.c.l.b16 %v1842
        %v2359 = vunpack.c.l.b16 %v1843
        %v2360 = vunpack.c.l.b16 %v1844
        %v2361 = vunpack.c.l.b16 %v1845
        %v2362 = vunpack.c.l.b16 %v1846
        %v2363 = vunpack.c.l.b16 %v1847
        %v2364 = vunpack.c.l.b16 %v1848
        %v2365 = vunpack.c.l.b16 %v1849
        %v2366 = vunpack.c.l.b16 %v1850
        %v2367 = vunpack.c.l.b16 %v1851
        %v2368 = vunpack.c.l.b16 %v1852
        %v2369 = vunpack.c.l.b16 %v1853
        %v2370 = vunpack.c.l.b16 %v1854
        %v2371 = vunpack.c.l.b16 %v1855
        %v2372 = vunpack.c.l.b16 %v1856
        %v2373 = vunpack.c.l.b16 %v1857
        %v2374 = vunpack.c.l.b16 %v1858
        %v2375 = vunpack.c.l.b16 %v1859
        %v2376 = vunpack.c.l.b16 %v1860
        %v2377 = vunpack.c.l.b16 %v1861
        %v2378 = vunpack.c.l.b16 %v1862
        %v2379 = vunpack.c.l.b16 %v1863
        %v2380 = vunpack.c.l.b16 %v1864
        %v2381 = vunpack.c.l.b16 %v1865
        %v2382 = vunpack.c.l.b16 %v1866
        %v2383 = vunpack.c.l.b16 %v1867
        %v2384 = vunpack.c.l.b16 %v1868
        %v2385 = vunpack.c.l.b16 %v1869
        %v2386 = vunpack.c.l.b16 %v1870
        %v2387 = vunpack.c.l.b16 %v1871
        %v2388 = vunpack.c.l.b16 %v1872
        %v2389 = vunpack.c.l.b16 %v1873
        %v2390 = vunpack.c.l.b16 %v1874
        %v2391 = vunpack.c.l.b16 %v1875
        %v2392 = vunpack.c.l.b16 %v1876
        %v2393 = vunpack.c.l.b16 %v1877
        %v2394 = vunpack.c.l.b16 %v1878
        %v2395 = vunpack.c.l.b16 %v1879
        %v2396 = vunpack.c.l.b16 %v1880
        %v2397 = vunpack.c.l.b16 %v1881
        %v2398 = vunpack.c.l.b16 %v1882
        %v2399 = vunpack.c.l.b16 %v1883
        %v2400 = vunpack.c.l.b16 %v1884
        %v2401 = vunpack.c.l.b16 %v1885
        %v2402 = vunpack.c.l.b16 %v1886
        %v2403 = vunpack.c.l.b16 %v1887
        %v2404 = vunpack.c.l.b16 %v1888
        %v2405 = vunpack.c.l.b16 %v1889
        %v2406 = vunpack.c.l.b16 %v1890
        %v2407 = vunpack.c.l.b16 %v1891
        %v2408 = vunpack.c.l.b16 %v1892
        %v2409 = vunpack.c.l.b16 %v1893
        %v2410 = vunpack.c.l.b16 %v1894
        %v2411 = vunpack.c.l.b16 %v1895
        %v2412 = vunpack.c.l.b16 %v1896
        %v2413 = vunpack.c.l.b16 %v1897
        %v2414 = vunpack.c.l.b16 %v1898
        %v2415 = vunpack.c.l.b16 %v1899
        %v2416 = vunpack.c.l.b16 %v1900
        %v2417 = vunpack.c.l.b16 %v1901
        %v2418 = vunpack.c.l.b16 %v1902
        %v2419 = vunpack.c.l.b16 %v1903
        %v2420 = vunpack.c.l.b16 %v1904
        %v2421 = vunpack.c.l.b16 %v1905
        %v2422 = vunpack.c.l.b16 %v1906
        %v2423 = vunpack.c.l.b16 %v1907
        %v2424 = vunpack.c.l.b16 %v1908
        %v2425 = vunpack.c.l.b16 %v1909
        %v2426 = vunpack.c.l.b16 %v1910
        %v2427 = vunpack.c.l.b16 %v1911
        %v2428 = vunpack.c.l.b16 %v1912
        %v2429 = vunpack.c.l.b16 %v1913
        %v2430 = vunpack.c.l.b16 %v1914
        %v2431 = vunpack.c.l.b16 %v1915
        %v2432 = vunpack.c.l.b16 %v1916
        %v2433 = vunpack.c.l.b16 %v1917
        %v2434 = vunpack.c.l.b16 %v1918
        %v2435 = vunpack.c.l.b16 %v1919
        %v2436 = vunpack.c.l.b16 %v1920
        %v2437 = vunpack.c.l.b16 %v1921
        %v2438 = vunpack.c.l.b16 %v1922
        %v2439 = vunpack.c.l.b16 %v1923
        %v2440 = vunpack.c.l.b16 %v1924
        %v2441 = vunpack.c.l.b16 %v1925
        %v2442 = vunpack.c.l.b16 %v1926
        %v2443 = vunpack.c.l.b16 %v1927
        %v2444 = vunpack.c.l.b16 %v1928
        %v2445 = vunpack.c.l.b16 %v1929
        %v2446 = vunpack.c.l.b16 %v1930
        %v2447 = vunpack.c.l.b16 %v1931
        %v2448 = vunpack.c.l.b16 %v1932
        %v2449 = vunpack.c.l.b16 %v1933
        %v2450 = vunpack.c.l.b16 %v1934
        %v2451 = vunpack.c.l.b16 %v1935
        %v2452 = vunpack.c.l.b16 %v1936
        %v2453 = vunpack.c.l.b16 %v1937
        %v2454 = vunpack.c.l.b16 %v1938
        %v2455 = vunpack.c.l.b16 %v1939
        %v2456 = vunpack.c.l.b16 %v1940
        %v2457 = vunpack.c.l.b16 %v1941
        %v2458 = vunpack.c.l.b16 %v1942
        %v2459 = vunpack.c.l.b16 %v1943
        %v2460 = vunpack.c.l.b16 %v1944
        %v2461 = vunpack.c.l.b16 %v1945
        %v2462 = vunpack.c.l.b16 %v1946
        %v2463 = vunpack.c.l.b16 %v1947
        %v2464 = vunpack.c.l.b16 %v1948
        %v2465 = vunpack.c.l.b16 %v1949
        %v2466 = vunpack.c.l.b16 %v1950
        %v2467 = vunpack.c.l.b16 %v1951
        %v2468 = vunpack.c.l.b16 %v1952
        %v2469 = vunpack.c.l.b16 %v1953
        %v2470 = vunpack.c.l.b16 %v1954
        %v2471 = vunpack.c.l.b16 %v1955
        %v2472 = vunpack.c.l.b16 %v1956
        %v2473 = vunpack.c.l.b16 %v1957
        %v2474 = vunpack.c.l.b16 %v1958
        %v2475 = vunpack.c.l.b16 %v1959
        %v2476 = vunpack.c.l.b16 %v1960
        %v2477 = vunpack.c.l.b16 %v1961
        %v2478 = vunpack.c.l.b16 %v1962
        %v2479 = vunpack.c.l.b16 %v1963
        %v2480 = vunpack.c.l.b16 %v1964
        %v2481 = vunpack.c.l.b16 %v1965
        %v2482 = vunpack.c.l.b16 %v1966
        %v2483 = vunpack.c.l.b16 %v1967
        %v2484 = vunpack.c.l.b16 %v1968
        %v2485 = vunpack.c.l.b16 %v1969
        %v2486 = vunpack.c.l.b16 %v1970
        %v2487 = vunpack.c.l.b16 %v1971
        %v2488 = vunpack.c.l.b16 %v1972
        %v2489 = vunpack.c.l.b16 %v1973
        %v2490 = vunpack.c.l.b16 %v1974
        %v2491 = vunpack.c.l.b16 %v1975
        %v2492 = vunpack.c.l.b16 %v1976
        %v2493 = vunpack.c.l.b16 %v1977
        %v2494 = vunpack.c.l.b16 %v1978
        %v2495 = vunpack.c.l.b16 %v1979
        %v2496 = vunpack.c.l.b16 %v1980
        %v2497 = vunpack.c.l.b16 %v1981
        %v2498 = vunpack.c.l.b16 %v1982
        %v2499 = vunpack.c.l.b16 %v1983
        %v2500 = vunpack.c.l.b16 %v1984
        %v2501 = vunpack.c.l.b16 %v1985
        %v2502 = vunpack.c.l.b16 %v1986
        %v2503 = vunpack.c.l.b16 %v1987
        %v2504 = vunpack.c.l.b16 %v1988
        %v2505 = vunpack.c.l.b16 %v1989
        %v2506 = vunpack.c.l.b16 %v1990
        %v2507 = vunpack.c.l.b16 %v1991
        %v2508 = vunpack.c.l.b16 %v1992
        %v2509 = vunpack.c.l.b16 %v1993
        %v2510 = vunpack.c.l.b16 %v1994
        %v2511 = vunpack.c.l.b16 %v1995
        %v2512 = vunpack.c.l.b16 %v1996
        %v2513 = vunpack.c.l.b16 %v1997
        %v2514 = vunpack.c.l.b16 %v1998
        %v2515 = vunpack.c.l.b16 %v1999
        %v2516 = vunpack.c.l.b16 %v2000
        %v2517 = vunpack.c.l.b16 %v2001
        %v2518 = vunpack.c.l.b16 %v2002
        %v2519 = vunpack.c.l.b16 %v2003
        %v2520 = vunpack.c.l.b16 %v2004
        %v2521 = vunpack.c.l.b16 %v2005
        %v2522 = vunpack.c.l.b16 %v2006
        %v2523 = vunpack.c.l.b16 %v2007
        %v2524 = vunpack.c.l.b16 %v2008
        %v2525 = vunpack.c.l.b16 %v2009
        %v2526 = vunpack.c.l.b16 %v2010
        %v2527 = vunpack.c.l.b16 %v2011
        %v2528 = vunpack.c.l.b16 %v2012
        %v2529 = vunpack.c.l.b16 %v2013
        %v2530 = vunpack.c.l.b16 %v2014
        %v2531 = vunpack.c.l.b16 %v2015
        %v2532 = vunpack.c.l.b16 %v2016
        %v2533 = vunpack.c.l.b16 %v2017
        %v2534 = vunpack.c.l.b16 %v2018
        %v2535 = vunpack.c.l.b16 %v2019
        %v2536 = vunpack.c.l.b16 %v2020
        %v2537 = vunpack.c.l.b16 %v2021
        %v2538 = vunpack.c.l.b16 %v2022
        %v2539 = vunpack.c.l.b16 %v2023
        %v2540 = vunpack.c.l.b16 %v2024
        %v2541 = vunpack.c.l.b16 %v2025
        %v2542 = vunpack.c.l.b16 %v2026
        %v2543 = vunpack.c.l.b16 %v2027
        %v2544 = vunpack.c.l.b16 %v2028
        %v2545 = vunpack.c.l.b16 %v2029
        %v2546 = vunpack.c.l.b16 %v2030
        %v2547 = vunpack.c.l.b16 %v2031
        %v2548 = vunpack.c.l.b16 %v2032
        %v2549 = vunpack.c.l.b16 %v2033
        %v2550 = vunpack.c.l.b16 %v2034
        %v2551 = vunpack.c.l.b16 %v2035
        %v2552 = vunpack.c.l.b16 %v2036
        %v2553 = vpack.c.b16 %v2298, %v2297
        %v2554 = vpack.c.b16 %v2300, %v2299
        %v2555 = vpack.c.b16 %v2302, %v2301
        %v2556 = vpack.c.b16 %v2304, %v2303
        %v2557 = vpack.c.b16 %v2306, %v2305
        %v2558 = vpack.c.b16 %v2308, %v2307
        %v2559 = vpack.c.b16 %v2310, %v2309
        %v2560 = vpack.c.b16 %v2312, %v2311
        %v2561 = vpack.c.b16 %v2314, %v2313
        %v2562 = vpack.c.b16 %v2316, %v2315
        %v2563 = vpack.c.b16 %v2318, %v2317
        %v2564 = vpack.c.b16 %v2320, %v2319
        %v2565 = vpack.c.b16 %v2322, %v2321
        %v2566 = vpack.c.b16 %v2324, %v2323
        %v2567 = vpack.c.b16 %v2326, %v2325
        %v2568 = vpack.c.b16 %v2328, %v2327
        %v2569 = vpack.c.b16 %v2330, %v2329
        %v2570 = vpack.c.b16 %v2332, %v2331
        %v2571 = vpack.c.b16 %v2334, %v2333
        %v2572 = vpack.c.b16 %v2336, %v2335
        %v2573 = vpack.c.b16 %v2338, %v2337
        %v2574 = vpack.c.b16 %v2340, %v2339
        %v2575 = vpack.c.b16 %v2342, %v2341
        %v2576 = vpack.c.b16 %v2344, %v2343
        %v2577 = vpack.c.b16 %v2346, %v2345
        %v2578 = vpack.c.b16 %v2348, %v2347
        %v2579 = vpack.c.b16 %v2350, %v2349
        %v2580 = vpack.c.b16 %v2352, %v2351
        %v2581 = vpack.c.b16 %v2354, %v2353
        %v2582 = vpack.c.b16 %v2356, %v2355
        %v2583 = vpack.c.b16 %v2358, %v2357
        %v2584 = vpack.c.b16 %v2360, %v2359
        %v2585 = vpack.c.b16 %v2362, %v2361
        %v2586 = vpack.c.b16 %v2364, %v2363
        %v2587 = vpack.c.b16 %v2366, %v2365
        %v2588 = vpack.c.b16 %v2368, %v2367
        %v2589 = vpack.c.b16 %v2370, %v2369
        %v2590 = vpack.c.b16 %v2372, %v2371
        %v2591 = vpack.c.b16 %v2374, %v2373
        %v2592 = vpack.c.b16 %v2376, %v2375
        %v2593 = vpack.c.b16 %v2378, %v2377
        %v2594 = vpack.c.b16 %v2380, %v2379
        %v2595 = vpack.c.b16 %v2382, %v2381
        %v2596 = vpack.c.b16 %v2384, %v2383
        %v2597 = vpack.c.b16 %v2386, %v2385
        %v2598 = vpack.c.b16 %v2388, %v2387
        %v2599 = vpack.c.b16 %v2390, %v2389
        %v2600 = vpack.c.b16 %v2392, %v2391
        %v2601 = vpack.c.b16 %v2394, %v2393
        %v2602 = vpack.c.b16 %v2396, %v2395
        %v2603 = vpack.c.b16 %v2398, %v2397
        %v2604 = vpack.c.b16 %v2400, %v2399
        %v2605 = vpack.c.b16 %v2402, %v2401
        %v2606 = vpack.c.b16 %v2404, %v2403
        %v2607 = vpack.c.b16 %v2406, %v2405
        %v2608 = vpack.c.b16 %v2408, %v2407
        %v2609 = vpack.c.b16 %v2410, %v2409
        %v2610 = vpack.c.b16 %v2412, %v2411
        %v2611 = vpack.c.b16 %v2414, %v2413
        %v2612 = vpack.c.b16 %v2416, %v2415
        %v2613 = vpack.c.b16 %v2418, %v2417
        %v2614 = vpack.c.b16 %v2420, %v2419
        %v2615 = vpack.c.b16 %v2422, %v2421
        %v2616 = vpack.c.b16 %v2424, %v2423
        %v2617 = vpack.c.b16 %v2426, %v2425
        %v2618 = vpack.c.b16 %v2428, %v2427
        %v2619 = vpack.c.b16 %v2430, %v2429
        %v2620 = vpack.c.b16 %v2432, %v2431
        %v2621 = vpack.c.b16 %v2434, %v2433
        %v2622 = vpack.c.b16 %v2436, %v2435
        %v2623 = vpack.c.b16 %v2438, %v2437
        %v2624 = vpack.c.b16 %v2440, %v2439
        %v2625 = vpack.c.b16 %v2442, %v2441
        %v2626 = vpack.c.b16 %v2444, %v2443
        %v2627 = vpack.c.b16 %v2446, %v2445
        %v2628 = vpack.c.b16 %v2448, %v2447
        %v2629 = vpack.c.b16 %v2450, %v2449
        %v2630 = vpack.c.b16 %v2452, %v2451
        %v2631 = vpack.c.b16 %v2454, %v2453
        %v2632 = vpack.c.b16 %v2456, %v2455
        %v2633 = vpack.c.b16 %v2458, %v2457
        %v2634 = vpack.c.b16 %v2460, %v2459
        %v2635 = vpack.c.b16 %v2462, %v2461
        %v2636 = vpack.c.b16 %v2464, %v2463
        %v2637 = vpack.c.b16 %v2466, %v2465
        %v2638 = vpack.c.b16 %v2468, %v2467
        %v2639 = vpack.c.b16 %v2470, %v2469
        %v2640 = vpack.c.b16 %v2472, %v2471
        %v2641 = vpack.c.b16 %v2474, %v2473
        %v2642 = vpack.c.b16 %v2476, %v2475
        %v2643 = vpack.c.b16 %v2478, %v2477
        %v2644 = vpack.c.b16 %v2480, %v2479
        %v2645 = vpack.c.b16 %v2482, %v2481
        %v2646 = vpack.c.b16 %v2484, %v2483
        %v2647 = vpack.c.b16 %v2486, %v2485
        %v2648 = vpack.c.b16 %v2488, %v2487
        %v2649 = vpack.c.b16 %v2490, %v2489
        %v2650 = vpack.c.b16 %v2492, %v2491
        %v2651 = vpack.c.b16 %v2494, %v2493
        %v2652 = vpack.c.b16 %v2496, %v2495
        %v2653 = vpack.c.b16 %v2498, %v2497
        %v2654 = vpack.c.b16 %v2500, %v2499
        %v2655 = vpack.c.b16 %v2502, %v2501
        %v2656 = vpack.c.b16 %v2504, %v2503
        %v2657 = vpack.c.b16 %v2506, %v2505
        %v2658 = vpack.c.b16 %v2508, %v2507
        %v2659 = vpack.c.b16 %v2510, %v2509
        %v2660 = vpack.c.b16 %v2512, %v2511
        %v2661 = vpack.c.b16 %v2514, %v2513
        %v2662 = vpack.c.b16 %v2516, %v2515
        %v2663 = vpack.c.b16 %v2518, %v2517
        %v2664 = vpack.c.b16 %v2520, %v2519
        %v2665 = vpack.c.b16 %v2522, %v2521
        %v2666 = vpack.c.b16 %v2524, %v2523
        %v2667 = vpack.c.b16 %v2526, %v2525
        %v2668 = vpack.c.b16 %v2528, %v2527
        %v2669 = vpack.c.b16 %v2530, %v2529
        %v2670 = vpack.c.b16 %v2532, %v2531
        %v2671 = vpack.c.b16 %v2534, %v2533
        %v2672 = vpack.c.b16 %v2536, %v2535
        %v2673 = vpack.c.b16 %v2538, %v2537
        %v2674 = vpack.c.b16 %v2540, %v2539
        %v2675 = vpack.c.b16 %v2542, %v2541
        %v2676 = vpack.c.b16 %v2544, %v2543
        %v2677 = vpack.c.b16 %v2546, %v2545
        %v2678 = vpack.c.b16 %v2548, %v2547
        %v2679 = vpack.c.b16 %v2550, %v2549
        %v2680 = vpack.c.b16 %v2552, %v2551
        %2809 = vmatpush.bf16.msra.mxu0 %v2560
        %2810 = vmatpush.bf16.msra.mxu0 %v2559
        %2811 = vmatpush.bf16.msra.mxu0 %v2558
        %2812 = vmatpush.bf16.msra.mxu0 %v2557
        %2813 = vmatpush.bf16.msra.mxu0 %v2556
        %2814 = vmatpush.bf16.msra.mxu0 %v2555
        %2815 = vmatpush.bf16.msra.mxu0 %v2554
        %2816 = vmatpush.bf16.msra.mxu0 %v2553
        %2817 = vmatmul.bf16.gmra.mxu0 %v1765
        %v2818 = vpop.f32.mrf.mxu0
        %v2819 = vadd.f32 %v2039, %v2818
        %v2820 = vpop.f32.mrf.mxu0
        %2821 = vdwg.mxu0
        %2822 = vmatpush.bf16.msra.mxu0 %v2568
        %2823 = vmatpush.bf16.msra.mxu0 %v2567
        %2824 = vmatpush.bf16.msra.mxu0 %v2566
        %2825 = vmatpush.bf16.msra.mxu0 %v2565
        %2826 = vmatpush.bf16.msra.mxu0 %v2564
        %2827 = vmatpush.bf16.msra.mxu0 %v2563
        %2828 = vmatpush.bf16.msra.mxu0 %v2562
        %2829 = vmatpush.bf16.msra.mxu0 %v2561
        %2830 = vmatmul.bf16.gmra.mxu0 %v1766
        %v2831 = vpop.f32.mrf.mxu0
        %v2832 = vadd.f32 %v2819, %v2831
        %v2833 = vpop.f32.mrf.mxu0
        %2834 = vdwg.mxu0
        %2835 = vmatpush.bf16.msra.mxu0 %v2576
        %2836 = vmatpush.bf16.msra.mxu0 %v2575
        %2837 = vmatpush.bf16.msra.mxu0 %v2574
        %2838 = vmatpush.bf16.msra.mxu0 %v2573
        %2839 = vmatpush.bf16.msra.mxu0 %v2572
        %2840 = vmatpush.bf16.msra.mxu0 %v2571
        %2841 = vmatpush.bf16.msra.mxu0 %v2570
        %2842 = vmatpush.bf16.msra.mxu0 %v2569
        %2843 = vmatmul.bf16.gmra.mxu0 %v1767
        %v2844 = vpop.f32.mrf.mxu0
        %v2845 = vadd.f32 %v2832, %v2844
        %v2846 = vpop.f32.mrf.mxu0
        %2847 = vdwg.mxu0
        %2848 = vmatpush.bf16.msra.mxu0 %v2584
        %2849 = vmatpush.bf16.msra.mxu0 %v2583
        %2850 = vmatpush.bf16.msra.mxu0 %v2582
        %2851 = vmatpush.bf16.msra.mxu0 %v2581
        %2852 = vmatpush.bf16.msra.mxu0 %v2580
        %2853 = vmatpush.bf16.msra.mxu0 %v2579
        %2854 = vmatpush.bf16.msra.mxu0 %v2578
        %2855 = vmatpush.bf16.msra.mxu0 %v2577
        %2856 = vmatmul.bf16.gmra.mxu0 %v1768
        %v2857 = vpop.f32.mrf.mxu0
        %v2858 = vadd.f32 %v2845, %v2857
        %v2859 = vpop.f32.mrf.mxu0
        %2860 = vdwg.mxu0
        %2861 = vmatpush.bf16.msra.mxu0 %v2592
        %2862 = vmatpush.bf16.msra.mxu0 %v2591
        %2863 = vmatpush.bf16.msra.mxu0 %v2590
        %2864 = vmatpush.bf16.msra.mxu0 %v2589
        %2865 = vmatpush.bf16.msra.mxu0 %v2588
        %2866 = vmatpush.bf16.msra.mxu0 %v2587
        %2867 = vmatpush.bf16.msra.mxu0 %v2586
        %2868 = vmatpush.bf16.msra.mxu0 %v2585
        %2869 = vmatmul.bf16.gmra.mxu0 %v1769
        %v2870 = vpop.f32.mrf.mxu0
        %v2871 = vadd.f32 %v2858, %v2870
        %v2872 = vpop.f32.mrf.mxu0
        %2873 = vdwg.mxu0
        %2874 = vmatpush.bf16.msra.mxu0 %v2600
        %2875 = vmatpush.bf16.msra.mxu0 %v2599
        %2876 = vmatpush.bf16.msra.mxu0 %v2598
        %2877 = vmatpush.bf16.msra.mxu0 %v2597
        %2878 = vmatpush.bf16.msra.mxu0 %v2596
        %2879 = vmatpush.bf16.msra.mxu0 %v2595
        %2880 = vmatpush.bf16.msra.mxu0 %v2594
        %2881 = vmatpush.bf16.msra.mxu0 %v2593
        %2882 = vmatmul.bf16.gmra.mxu0 %v1770
        %v2883 = vpop.f32.mrf.mxu0
        %v2884 = vadd.f32 %v2871, %v2883
        %v2885 = vpop.f32.mrf.mxu0
        %2886 = vdwg.mxu0
        %2887 = vmatpush.bf16.msra.mxu0 %v2608
        %2888 = vmatpush.bf16.msra.mxu0 %v2607
        %2889 = vmatpush.bf16.msra.mxu0 %v2606
        %2890 = vmatpush.bf16.msra.mxu0 %v2605
        %2891 = vmatpush.bf16.msra.mxu0 %v2604
        %2892 = vmatpush.bf16.msra.mxu0 %v2603
        %2893 = vmatpush.bf16.msra.mxu0 %v2602
        %2894 = vmatpush.bf16.msra.mxu0 %v2601
        %2895 = vmatmul.bf16.gmra.mxu0 %v1771
        %v2896 = vpop.f32.mrf.mxu0
        %v2897 = vadd.f32 %v2884, %v2896
        %v2898 = vpop.f32.mrf.mxu0
        %2899 = vdwg.mxu0
        %2900 = vmatpush.bf16.msra.mxu0 %v2616
        %2901 = vmatpush.bf16.msra.mxu0 %v2615
        %2902 = vmatpush.bf16.msra.mxu0 %v2614
        %2903 = vmatpush.bf16.msra.mxu0 %v2613
        %2904 = vmatpush.bf16.msra.mxu0 %v2612
        %2905 = vmatpush.bf16.msra.mxu0 %v2611
        %2906 = vmatpush.bf16.msra.mxu0 %v2610
        %2907 = vmatpush.bf16.msra.mxu0 %v2609
        %2908 = vmatmul.bf16.gmra.mxu0 %v1772
        %v2909 = vpop.f32.mrf.mxu0
        %v2910 = vadd.f32 %v2897, %v2909
        %v2911 = vpop.f32.mrf.mxu0
        %2912 = vdwg.mxu0
        %2913 = vmatpush.bf16.msra.mxu0 %v2624
        %2914 = vmatpush.bf16.msra.mxu0 %v2623
        %2915 = vmatpush.bf16.msra.mxu0 %v2622
        %2916 = vmatpush.bf16.msra.mxu0 %v2621
        %2917 = vmatpush.bf16.msra.mxu0 %v2620
        %2918 = vmatpush.bf16.msra.mxu0 %v2619
        %2919 = vmatpush.bf16.msra.mxu0 %v2618
        %2920 = vmatpush.bf16.msra.mxu0 %v2617
        %2921 = vmatmul.bf16.gmra.mxu0 %v1773
        %v2922 = vpop.f32.mrf.mxu0
        %v2923 = vadd.f32 %v2910, %v2922
        %v2924 = vpop.f32.mrf.mxu0
        %2925 = vdwg.mxu0
        %2926 = vmatpush.bf16.msra.mxu0 %v2632
        %2927 = vmatpush.bf16.msra.mxu0 %v2631
        %2928 = vmatpush.bf16.msra.mxu0 %v2630
        %2929 = vmatpush.bf16.msra.mxu0 %v2629
        %2930 = vmatpush.bf16.msra.mxu0 %v2628
        %2931 = vmatpush.bf16.msra.mxu0 %v2627
        %2932 = vmatpush.bf16.msra.mxu0 %v2626
        %2933 = vmatpush.bf16.msra.mxu0 %v2625
        %2934 = vmatmul.bf16.gmra.mxu0 %v1774
        %v2935 = vpop.f32.mrf.mxu0
        %v2936 = vadd.f32 %v2923, %v2935
        %v2937 = vpop.f32.mrf.mxu0
        %2938 = vdwg.mxu0
        %2939 = vmatpush.bf16.msra.mxu0 %v2640
        %2940 = vmatpush.bf16.msra.mxu0 %v2639
        %2941 = vmatpush.bf16.msra.mxu0 %v2638
        %2942 = vmatpush.bf16.msra.mxu0 %v2637
        %2943 = vmatpush.bf16.msra.mxu0 %v2636
        %2944 = vmatpush.bf16.msra.mxu0 %v2635
        %2945 = vmatpush.bf16.msra.mxu0 %v2634
        %2946 = vmatpush.bf16.msra.mxu0 %v2633
        %2947 = vmatmul.bf16.gmra.mxu0 %v1775
        %v2948 = vpop.f32.mrf.mxu0
        %v2949 = vadd.f32 %v2936, %v2948
        %v2950 = vpop.f32.mrf.mxu0
        %2951 = vdwg.mxu0
        %2952 = vmatpush.bf16.msra.mxu0 %v2648
        %2953 = vmatpush.bf16.msra.mxu0 %v2647
        %2954 = vmatpush.bf16.msra.mxu0 %v2646
        %2955 = vmatpush.bf16.msra.mxu0 %v2645
        %2956 = vmatpush.bf16.msra.mxu0 %v2644
        %2957 = vmatpush.bf16.msra.mxu0 %v2643
        %2958 = vmatpush.bf16.msra.mxu0 %v2642
        %2959 = vmatpush.bf16.msra.mxu0 %v2641
        %2960 = vmatmul.bf16.gmra.mxu0 %v1776
        %v2961 = vpop.f32.mrf.mxu0
        %v2962 = vadd.f32 %v2949, %v2961
        %v2963 = vpop.f32.mrf.mxu0
        %2964 = vdwg.mxu0
        %2965 = vmatpush.bf16.msra.mxu0 %v2656
        %2966 = vmatpush.bf16.msra.mxu0 %v2655
        %2967 = vmatpush.bf16.msra.mxu0 %v2654
        %2968 = vmatpush.bf16.msra.mxu0 %v2653
        %2969 = vmatpush.bf16.msra.mxu0 %v2652
        %2970 = vmatpush.bf16.msra.mxu0 %v2651
        %2971 = vmatpush.bf16.msra.mxu0 %v2650
        %2972 = vmatpush.bf16.msra.mxu0 %v2649
        %2973 = vmatmul.bf16.gmra.mxu0 %v1777
        %v2974 = vpop.f32.mrf.mxu0
        %v2975 = vadd.f32 %v2962, %v2974
        %v2976 = vpop.f32.mrf.mxu0
        %2977 = vdwg.mxu0
        %2978 = vmatpush.bf16.msra.mxu0 %v2664
        %2979 = vmatpush.bf16.msra.mxu0 %v2663
        %2980 = vmatpush.bf16.msra.mxu0 %v2662
        %2981 = vmatpush.bf16.msra.mxu0 %v2661
        %2982 = vmatpush.bf16.msra.mxu0 %v2660
        %2983 = vmatpush.bf16.msra.mxu0 %v2659
        %2984 = vmatpush.bf16.msra.mxu0 %v2658
        %2985 = vmatpush.bf16.msra.mxu0 %v2657
        %2986 = vmatmul.bf16.gmra.mxu0 %v1778
        %v2987 = vpop.f32.mrf.mxu0
        %v2988 = vadd.f32 %v2975, %v2987
        %v2989 = vpop.f32.mrf.mxu0
        %2990 = vdwg.mxu0
        %2991 = vmatpush.bf16.msra.mxu0 %v2672
        %2992 = vmatpush.bf16.msra.mxu0 %v2671
        %2993 = vmatpush.bf16.msra.mxu0 %v2670
        %2994 = vmatpush.bf16.msra.mxu0 %v2669
        %2995 = vmatpush.bf16.msra.mxu0 %v2668
        %2996 = vmatpush.bf16.msra.mxu0 %v2667
        %2997 = vmatpush.bf16.msra.mxu0 %v2666
        %2998 = vmatpush.bf16.msra.mxu0 %v2665
        %2999 = vmatmul.bf16.gmra.mxu0 %v1779
        %v3000 = vpop.f32.mrf.mxu0
        %v3001 = vadd.f32 %v2988, %v3000
        %v3002 = vpop.f32.mrf.mxu0
        %3003 = vdwg.mxu0
        %3004 = vmatpush.bf16.msra.mxu0 %v2680
        %3005 = vmatpush.bf16.msra.mxu0 %v2679
        %3006 = vmatpush.bf16.msra.mxu0 %v2678
        %3007 = vmatpush.bf16.msra.mxu0 %v2677
        %3008 = vmatpush.bf16.msra.mxu0 %v2676
        %3009 = vmatpush.bf16.msra.mxu0 %v2675
        %3010 = vmatpush.bf16.msra.mxu0 %v2674
        %3011 = vmatpush.bf16.msra.mxu0 %v2673
        %3012 = vmatmul.bf16.gmra.mxu0 %v1780
        %v3013 = vpop.f32.mrf.mxu0
        %v3014 = vadd.f32 %v3001, %v3013
        %v3015 = vpop.f32.mrf.mxu0
        %3016 = vdwg.mxu0
        %v3017 = vadd.f32 %v1116, %v3014
        %v3018 = vld [vmem:[%s11] sm:$0x1]
        %v3019 = vld [vmem:[%s12] sm:$0x1]
        %v3020 = vsel %vm493, %v3017, 0.0
        %3021 = vadd.xlane.f32.xlu0 %v3020
        %v3022 = vpop.xlane.xlu0 %3021
        %v3023 = vmul.f32 %v3022, %v1089
        %v3024 = vsub.f32 %v3017, %v3023
        %v3025 = vmul.f32 %v3024, %v3024
        %v3026 = vsel %vm493, %v3025, 0.0
        %3027 = vadd.xlane.f32.xlu0 %v3026
        %v3028 = vpop.xlane.xlu0 %3027
        %v3029 = vmul.f32 %v3028, %v1089
        %v3030 = vadd.f32 %v3029, 1e-05
        %v3031 = vrsqrt.pop %v3030
        %v3032 = vmul.f32 %v3031, %v3030
        %v3033 = vmul.f32 %v3032, %v3031
        %v3034 = vmul.f32 0.5, %v3033
        %v3035 = vsub.f32 1.5, %v3034
        %v3036 = vmul.f32 %v3031, %v3035
        %vm3037 = vweird.f32 %v3030
        %vm3038 = vweird.f32 %v3031
        %vm3039 = vmor %vm3037, %vm3038
        %v3040 = vsel %vm3039, %v3031, %v3036
        %v3041 = vmul.f32 %v3024, %v3040
        %v3043 = vperm.slane %v3018, 0
        %v3045 = vmul.f32 %v3041, %v3043
        %v3047 = vperm.slane %v3019, 0
        %v3049 = vadd.f32 %v3045, %v3047
        %3050 = vst.msk [vmem:[%s431] sm:$0xff] %vm493, %v3049
        %s3051 = sand.u32 %s313, 1
        %s3052 = scalar_lea.sflag [#allocation3], %s3051
        %s3053 = sand.u32 %s313, 1
        %s3054 = smul.addr %s3053, 8
        %s3055 = scalar_lea.vmem [#allocation2], %s3054
        // Predicated region
        $region73: #{multimodal_interaction.5} parent=71 // pred_check
          %p3056 = pneg %p323
        $region74: #{multimodal_interaction.5} parent=71 // pred_check_branch
          %3058 = sbr.rel (%p3056) target = $region76
        $region75: #{multimodal_interaction.5} parent=71 // pred_region
          %3060 = vsyncadd %s3052, 0
          %s3061 = smul.addr %s27, 8
          %s3062 = scalar_lea.hbm %s13, %s3061
          %s3064 = sshll.u32 %s3055, 4
          %s3065 = int_to_ptr.vmem [resolvable:$true] %s3064
          %s3066 = sshll.u32 %s3062, 4
          %s3067 = int_to_ptr.hbm [resolvable:$true] %s3066
          %3069 = dma.vmem_to_hbm [thread:$0]  %s3065, 128, %s3067, %s3052
        $region76: #{multimodal_interaction.5} parent=71 // pred_fallthru
          _
      $region72: #{multimodal_interaction.5} parent=5 // pred_fallthru
        _
      %p3070 = scmp.le.s32.totalorder 2, %s22
      // Predicated region
      $region77: #{multimodal_interaction.5} parent=5 // pred_check
        %p3071 = pneg %p3070
      $region78: #{multimodal_interaction.5} parent=5 // pred_check_branch
        %3073 = sbr.rel (%p3071) target = $region80
      $region79: #{multimodal_interaction.5} parent=5 // pred_region
        %s3074 = ssub.s32 %s22, 2
        // Predicated region
        $region81: #{multimodal_interaction.5} parent=79 // pred_check
          %p3075 = pneg %p329
        $region82: #{multimodal_interaction.5} parent=79 // pred_check_branch
          %3077 = sbr.rel (%p3075) target = $region84
        $region83: #{multimodal_interaction.5} parent=79 // pred_region
          %s3078 = sand.u32 %s314, 1
          %s3079 = scalar_lea.sflag [#allocation3], %s3078
          %s3080 = sand.u32 %s314, 1
          %s3081 = smul.addr %s3080, 8
          %s3082 = scalar_lea.vmem [#allocation2], %s3081
          %3084 = dma.done %s3079, 128
        $region84: #{multimodal_interaction.5} parent=79 // pred_fallthru
          _
      $region80: #{multimodal_interaction.5} parent=5 // pred_fallthru
        _
    $region6: #{multimodal_interaction.5} parent=1 // loop_footer
      %s26 = sadd.s32 1, %s22
    $region7: #{multimodal_interaction.5} parent=1 // loop_footer_branch
      %21 = sbr.rel target = $region3
    $region8: #{multimodal_interaction.5} parent=1 // loop_exit
      _
    %3085 = vsyncpa [#allocation3], 1
    %s3086 = scalar_lea.sflag [#allocation3], 1
    %3087 = vsyncpa %s3086, 1

</llo_original>
